<compile_context>
chip_gen: v7x
topology: tpu7x:2x2x1
jax: 0.10.0
libtpu: 0.0.40
codegen_flags: <defaults>
</compile_context>

<pallas_src>
import functools

import numpy as np
import jax
import jax.numpy as jnp
from jax import lax
from jax.experimental import pallas as pl
from jax.experimental.pallas import tpu as pltpu

EMBED_DIM = 32
NUM_HEADS = 4
HEAD_DIM = EMBED_DIM // NUM_HEADS
LN_EPS = 1e-5
LANE_GROUP = 128          # every packed weight/bias group starts on a 128-lane boundary


# ----------------------------- helpers -------------------------------------

def _rotate_half_matrix(d):
    # rotate_half(x) == x @ R  with  R[2i+1, 2i] = -1, R[2i, 2i+1] = +1
    r = np.zeros((d, d), np.float32)
    for i in range(d // 2):
        r[2 * i + 1, 2 * i] = -1.0
        r[2 * i, 2 * i + 1] = 1.0
    return jnp.asarray(r)


def rotate_half(x):
    # matches torch: out[..., 2i] = -x[..., 2i+1]; out[..., 2i+1] = x[..., 2i]
    x1 = x[..., 0::2]
    x2 = x[..., 1::2]
    return jnp.stack((-x2, x1), axis=-1).reshape(x.shape)


def _erf_approx(x):
    # Abramowitz & Stegun 7.1.26 (|err| < 1.5e-7): Mosaic-friendly exact-GELU erf.
    p = 0.3275911
    a1, a2, a3, a4, a5 = 0.254829592, -0.284496736, 1.421413741, -1.453152027, 1.061405429
    z = jnp.abs(x)
    t = 1.0 / (1.0 + p * z)
    poly = ((((a5 * t + a4) * t + a3) * t + a2) * t + a1) * t
    y = 1.0 - poly * jnp.exp(-z * z)
    return jnp.where(x < 0.0, -y, y)


def _gelu_exact(x):
    # nn.GELU() default (erf-based), not the tanh approximation.
    return 0.5 * x * (1.0 + _erf_approx(x * (1.0 / np.sqrt(2.0))))


# ----------------------------- fused kernel ---------------------------------

def _fused_layer_kernel(x_ref, cs_ref, wa_ref, ba_ref, wctx_ref, w2_ref, vec_ref,
                        o_ref, *, batch, seq):
    D, H, Dh, G = EMBED_DIM, NUM_HEADS, HEAD_DIM, LANE_GROUP
    N = seq
    half = batch * seq                      # rows per descriptor (B*N)

    x = x_ref[...]                          # [2*half, D]  rows = (desc, batch, seq)
    cos = cs_ref[0]                         # [2*half, D]
    sin = cs_ref[1]

    # head separation via lane masks (exact: masked lanes contribute 0.0)
    lane = lax.broadcasted_iota(jnp.int32, (1, D), 1)
    masks = [((lane >= h * Dh) & (lane < (h + 1) * Dh)).astype(jnp.float32)
             for h in range(H)]

    def softmax_rows(s):
        e = jnp.exp(s - jnp.max(s, axis=-1, keepdims=True))
        return e * pl.reciprocal(jnp.sum(e, axis=-1, keepdims=True), approx=True)

    def ffn_tail(h_lin, gamma, beta, w2, b2, resid):
        # LayerNorm(2D) -> GELU -> Linear(2D, D) + residual
        mu = jnp.mean(h_lin, axis=-1, keepdims=True)
        var = jnp.mean(jnp.square(h_lin - mu), axis=-1, keepdims=True)
        hn = (h_lin - mu) * lax.rsqrt(var + LN_EPS) * gamma + beta
        return resid + jnp.dot(_gelu_exact(hn), w2,
                               preferred_element_type=jnp.float32) + b2

    # ---------------- self block -------------------------------------------
    # one wide matmul: groups [q | k | q@R | k@R | v | ffn1_x], each 128-aligned
    pj = (jnp.dot(x, wa_ref[:, 0:6 * G], preferred_element_type=jnp.float32)
          + ba_ref[:, 0:6 * G])
    q = pj[:, 0 * G:0 * G + D] * cos + pj[:, 2 * G:2 * G + D] * sin     # rotary
    k = pj[:, 1 * G:1 * G + D] * cos + pj[:, 3 * G:3 * G + D] * sin
    v = pj[:, 4 * G:4 * G + D]
    h_self = pj[:, 5 * G:5 * G + 2 * D]     # x@w1x + (bo@w1m + b1), [2*half, 2D]

    qm = [q * m for m in masks]
    vm = [v * m for m in masks]

    ctx_segs = []
    for seg in range(2 * batch):            # 4 independent (descriptor, batch) segments
        r0 = seg * N
        k_seg = k[r0:r0 + N, :]
        acc = jnp.zeros((N, D), jnp.float32)
        for h in range(H):
            s = lax.dot_general(qm[h][r0:r0 + N, :], k_seg, (((1,), (1,)), ((), ())),
                                preferred_element_type=jnp.float32)     # [N, N]
            acc = acc + jnp.dot(softmax_rows(s), vm[h][r0:r0 + N, :],
                                preferred_element_type=jnp.float32)
        ctx_segs.append(acc)
    ctx = jnp.concatenate(ctx_segs, axis=0)                             # [2*half, D]

    # split-K FFN: h = x@w1x + ctx@(wo@w1m) + folded bias  (no concat, no scratch)
    h_self = h_self + jnp.dot(ctx, wctx_ref[0:D, :], preferred_element_type=jnp.float32)
    y = ffn_tail(h_self, vec_ref[0:1, :], vec_ref[1:2, :],
                 w2_ref[0:2 * D, :], vec_ref[2:3, 0:D], x)              # [2*half, D]

    # ---------------- cross block -------------------------------------------
    # groups [qk(scaled) | v | ffn1_x], each 128-aligned
    pc = (jnp.dot(y, wa_ref[:, 6 * G:9 * G], preferred_element_type=jnp.float32)
          + ba_ref[:, 6 * G:9 * G])
    qk = pc[:, 0:D]                         # already scaled by Dh**-0.25
    vc = pc[:, G:G + D]
    h_cross = pc[:, 2 * G:2 * G + 2 * D]    # y@w1x_c + (bout@w1m_c + b1_c)

    qkm = [qk * m for m in masks]
    vcm = [vc * m for m in masks]

    ctx0_segs, ctx1_segs = [], []
    for b in range(batch):
        r0 = b * N                          # descriptor-0 rows of batch b
        r1 = half + b * N                   # descriptor-1 rows of batch b
        qk0 = qk[r0:r0 + N, :]
        qk1 = qk[r1:r1 + N, :]
        acc0 = jnp.zeros((N, D), jnp.float32)
        acc1 = jnp.zeros((N, D), jnp.float32)
        for h in range(H):
            sim = lax.dot_general(qkm[h][r0:r0 + N, :], qk1, (((1,), (1,)), ((), ())),
                                  preferred_element_type=jnp.float32)   # [N, N]
            # explicit transposed score matmul: keeps both softmaxes on the last axis
            sim_t = lax.dot_general(qkm[h][r1:r1 + N, :], qk0, (((1,), (1,)), ((), ())),
                                    preferred_element_type=jnp.float32)
            acc0 = acc0 + jnp.dot(softmax_rows(sim), vcm[h][r1:r1 + N, :],
                                  preferred_element_type=jnp.float32)
            acc1 = acc1 + jnp.dot(softmax_rows(sim_t), vcm[h][r0:r0 + N, :],
                                  preferred_element_type=jnp.float32)
        ctx0_segs.append(acc0)
        ctx1_segs.append(acc1)
    ctx0 = jnp.concatenate(ctx0_segs, axis=0)                           # [half, D]
    ctx1 = jnp.concatenate(ctx1_segs, axis=0)

    wctx_c = wctx_ref[D:2 * D, :]
    h0 = h_cross[0:half, :] + jnp.dot(ctx0, wctx_c, preferred_element_type=jnp.float32)
    h1 = h_cross[half:2 * half, :] + jnp.dot(ctx1, wctx_c, preferred_element_type=jnp.float32)
    z0 = ffn_tail(h0, vec_ref[3:4, :], vec_ref[4:5, :],
                  w2_ref[2 * D:4 * D, :], vec_ref[5:6, 0:D], y[0:half, :])
    z1 = ffn_tail(h1, vec_ref[3:4, :], vec_ref[4:5, :],
                  w2_ref[2 * D:4 * D, :], vec_ref[5:6, 0:D], y[half:2 * half, :])

    # single lane-dense store of the concatenated [B*N, 2D] output
    o_ref[...] = jnp.concatenate([z0, z1], axis=-1).astype(o_ref.dtype)


# ----------------------------- wrapper ---------------------------------------

def _pad_group(w):
    return jnp.pad(w, ((0, 0), (0, LANE_GROUP - w.shape[1])))


def _pack_params(params):
    """Fold rotary / scales / out-proj into the weights and pack into slabs."""
    D = EMBED_DIM
    ps, pc = params["self"], params["cross"]
    fs, fc = ps["ffn"], pc["ffn"]
    Rm = _rotate_half_matrix(D)

    # fold the 1/sqrt(Dh) SDPA scale into the query projection
    scale = float(HEAD_DIM) ** -0.5
    wq, bq = ps["wq"] * scale, ps["bq"] * scale
    b_fold_s = ps["bo"] @ fs["w1"][D:, :] + fs["b1"]                    # [1, 2D]
    wa_self = [wq, ps["wk"], wq @ Rm, ps["wk"] @ Rm, ps["wv"], fs["w1"][:D, :]]
    ba_self = [bq, ps["bk"], bq @ Rm, ps["bk"] @ Rm, ps["bv"], b_fold_s]

    # fold the Dh^-0.25 scale into the shared cross qk projection
    sh = float(HEAD_DIM) ** -0.25
    wqk, bqk = pc["wqk"] * sh, pc["bqk"] * sh
    b_fold_c = pc["bout"] @ fc["w1"][D:, :] + fc["b1"]
    wa_cross = [wqk, pc["wv"], fc["w1"][:D, :]]
    ba_cross = [bqk, pc["bv"], b_fold_c]

    WA = jnp.concatenate([_pad_group(w) for w in wa_self + wa_cross], axis=1)   # [D, 9*128]
    BA = jnp.concatenate([_pad_group(b) for b in ba_self + ba_cross], axis=1)   # [1, 9*128]
    # out-projection folded through the FFN msg-half of w1
    WCTX = jnp.concatenate([ps["wo"] @ fs["w1"][D:, :],
                            pc["wout"] @ fc["w1"][D:, :]], axis=0)              # [2D, 2D]
    W2 = jnp.concatenate([fs["w2"], fc["w2"]], axis=0)                          # [4D, D]

    def row2d(v):
        return jnp.pad(v, ((0, 0), (0, 2 * D - v.shape[1])))
    VECS = jnp.concatenate([fs["gamma"], fs["beta"], row2d(fs["b2"]),
                            fc["gamma"], fc["beta"], row2d(fc["b2"])], axis=0)  # [6, 2D]
    return WA, BA, WCTX, W2, VECS


def my_transformer_layer(desc0, desc1, enc0, enc1, params):
    B, N, D = desc0.shape
    BN = B * N
    WA, BA, WCTX, W2, VECS = _pack_params(params)

    def expand_enc(enc):
        cos = jnp.tile(enc[0][:, 0], (1, 1, NUM_HEADS)).reshape(BN, D)
        sin = jnp.tile(enc[1][:, 0], (1, 1, NUM_HEADS)).reshape(BN, D)
        return cos, sin

    cos0, sin0 = expand_enc(enc0)
    cos1, sin1 = expand_enc(enc1)
    x_all = jnp.concatenate([desc0.reshape(BN, D), desc1.reshape(BN, D)], axis=0)  # [2BN, D]
    cs_all = jnp.stack([jnp.concatenate([cos0, cos1], axis=0),
                        jnp.concatenate([sin0, sin1], axis=0)], axis=0)            # [2, 2BN, D]

    def full_spec(shape):
        n = len(shape)
        return pl.BlockSpec(shape, lambda i, n=n: (0,) * n)

    in_arrays = (x_all, cs_all, WA, BA, WCTX, W2, VECS)
    out2d = pl.pallas_call(
        functools.partial(_fused_layer_kernel, batch=B, seq=N),
        out_shape=jax.ShapeDtypeStruct((BN, 2 * D), jnp.float32),
        grid=(1,),
        in_specs=[full_spec(a.shape) for a in in_arrays],
        out_specs=full_spec((BN, 2 * D)),
        compiler_params=pltpu.CompilerParams(dimension_semantics=("arbitrary",)),
        cost_estimate=pl.CostEstimate(flops=9_000_000, transcendentals=25_000,
                                      bytes_accessed=300_000),
    )(*in_arrays)

    cat = out2d.reshape(B, N, 2 * D)
    return cat, cat


# ----------------------------- params ---------------------------------------

def init_params(key):
    D = EMBED_DIM

    def lin_init(k, din, dout):
        kw, kb = jax.random.split(k)
        lim = 1.0 / np.sqrt(din)
        w = jax.random.uniform(kw, (din, dout), jnp.float32, -lim, lim)
        b = jax.random.uniform(kb, (1, dout), jnp.float32, -lim, lim)
        return w, b

    def ffn_init(k):
        k1, k2 = jax.random.split(k)
        w1, b1 = lin_init(k1, 2 * D, 2 * D)
        w2, b2 = lin_init(k2, 2 * D, D)
        return dict(w1=w1, b1=b1,
                    gamma=jnp.ones((1, 2 * D), jnp.float32),
                    beta=jnp.zeros((1, 2 * D), jnp.float32),
                    w2=w2, b2=b2)

    ks = jax.random.split(key, 7)
    wqkv, bqkv = lin_init(ks[0], D, 3 * D)
    wo, bo = lin_init(ks[1], D, D)
    wqk, bqk = lin_init(ks[2], D, D)
    wv, bv = lin_init(ks[3], D, D)
    wout, bout = lin_init(ks[4], D, D)
    return {
        "self": dict(wq=wqkv[:, :D], wk=wqkv[:, D:2 * D], wv=wqkv[:, 2 * D:],
                     bq=bqkv[:, :D], bk=bqkv[:, D:2 * D], bv=bqkv[:, 2 * D:],
                     wo=wo, bo=bo, ffn=ffn_init(ks[5])),
        "cross": dict(wqk=wqk, bqk=bqk, wv=wv, bv=bv, wout=wout, bout=bout,
                      ffn=ffn_init(ks[6])),
    }


# ----------------------------- pure-JAX reference ---------------------------

def _ref_ffn(x, m, f):
    h = jnp.concatenate([x, m], axis=-1) @ f["w1"] + f["b1"]
    mu = h.mean(-1, keepdims=True)
    var = jnp.mean((h - mu) ** 2, -1, keepdims=True)
    hn = (h - mu) / jnp.sqrt(var + LN_EPS) * f["gamma"] + f["beta"]
    return x + jax.nn.gelu(hn, approximate=False) @ f["w2"] + f["b2"]


def ref_forward(desc0, desc1, enc0, enc1, params):
    ps, pc = params["self"], params["cross"]
    B, N, D = desc0.shape
    H, Dh = NUM_HEADS, HEAD_DIM

    def heads(x2, w, b):
        return (x2 @ w + b).reshape(B, N, H, Dh).transpose(0, 2, 1, 3)

    def self_blk(x, enc):
        x2 = x.reshape(B * N, D)
        q = heads(x2, ps["wq"], ps["bq"])
        k = heads(x2, ps["wk"], ps["bk"])
        v = heads(x2, ps["wv"], ps["bv"])
        cos, sin = enc[0], enc[1]
        q = q * cos + rotate_half(q) * sin
        k = k * cos + rotate_half(k) * sin
        s = jnp.einsum("bhid,bhjd->bhij", q, k) / np.sqrt(Dh)
        ctx = jnp.einsum("bhij,bhjd->bhid", jax.nn.softmax(s, -1), v)
        msg = ctx.transpose(0, 2, 1, 3).reshape(B * N, D) @ ps["wo"] + ps["bo"]
        return _ref_ffn(x2, msg, ps["ffn"]).reshape(B, N, D)

    def cross_blk(x0, x1):
        sh = float(HEAD_DIM ** -0.25)
        qk0 = heads(x0.reshape(B * N, D), pc["wqk"], pc["bqk"]) * sh
        qk1 = heads(x1.reshape(B * N, D), pc["wqk"], pc["bqk"]) * sh
        v0 = heads(x0.reshape(B * N, D), pc["wv"], pc["bv"])
        v1 = heads(x1.reshape(B * N, D), pc["wv"], pc["bv"])
        sim = jnp.einsum("bhid,bhjd->bhij", qk0, qk1)
        a01 = jax.nn.softmax(sim, axis=-1)
        a10 = jax.nn.softmax(sim, axis=-2)
        m0 = jnp.einsum("bhij,bhjd->bhid", a01, v1)
        m1 = jnp.einsum("bhij,bhid->bhjd", a10, v0)

        def out(mm):
            return mm.transpose(0, 2, 1, 3).reshape(B * N, D) @ pc["wout"] + pc["bout"]

        y0 = _ref_ffn(x0.reshape(B * N, D), out(m0), pc["ffn"]).reshape(B, N, D)
        y1 = _ref_ffn(x1.reshape(B * N, D), out(m1), pc["ffn"]).reshape(B, N, D)
        return y0, y1

    d0 = self_blk(desc0, enc0)
    d1 = self_blk(desc1, enc1)
    d0, d1 = cross_blk(d0, d1)
    cat = jnp.concatenate([d0, d1], axis=2)
    return cat, cat


# ----------------------------- main ------------------------------------------

if __name__ == "__main__":
    key = jax.random.PRNGKey(0)
    k_params, k0, k1, ka0, ka1 = jax.random.split(key, 5)
    B, N, D = 2, 16, EMBED_DIM

    params = init_params(k_params)
    desc0 = jax.random.normal(k0, (B, N, D), jnp.float32)
    desc1 = jax.random.normal(k1, (B, N, D), jnp.float32)
    ang0 = jax.random.uniform(ka0, (B, 1, N, HEAD_DIM), jnp.float32, 0.0, 2 * np.pi)
    ang1 = jax.random.uniform(ka1, (B, 1, N, HEAD_DIM), jnp.float32, 0.0, 2 * np.pi)
    enc0 = jnp.stack([jnp.cos(ang0), jnp.sin(ang0)], axis=0)   # [2,B,1,N,Dh]
    enc1 = jnp.stack([jnp.cos(ang1), jnp.sin(ang1)], axis=0)

    fwd = jax.jit(my_transformer_layer)
    out0, out1 = fwd(desc0, desc1, enc0, enc1, params)
    jax.block_until_ready((out0, out1))

    ref0, _ = ref_forward(desc0, desc1, enc0, enc1, params)
    assert out0.shape == (B, N, 2 * D) and out1.shape == (B, N, 2 * D)
    np.testing.assert_allclose(np.asarray(out0), np.asarray(ref0), rtol=5e-3, atol=5e-3)
    np.testing.assert_allclose(np.asarray(out1), np.asarray(ref0), rtol=5e-3, atol=5e-3)
    print("KERNEL_OK")
</pallas_src>

<mosaic_0001>
module attributes {stable_mosaic.version = 11 : i64} {
  func.func @_fused_layer_kernel(%arg0: i32, %arg1: memref<64x32xf32, #tpu.memory_space<vmem>>, %arg2: memref<2x64x32xf32, #tpu.memory_space<vmem>>, %arg3: memref<32x1152xf32, #tpu.memory_space<vmem>>, %arg4: memref<1x1152xf32, #tpu.memory_space<vmem>>, %arg5: memref<64x64xf32, #tpu.memory_space<vmem>>, %arg6: memref<128x32xf32, #tpu.memory_space<vmem>>, %arg7: memref<6x64xf32, #tpu.memory_space<vmem>>, %arg8: memref<32x64xf32, #tpu.memory_space<vmem>>) attributes {dimension_semantics = [#tpu.dimension_semantics<arbitrary>], iteration_bounds = array<i64: 1>, scalar_prefetch = 0 : i64, scratch_operands = 0 : i64, tpu.core_type = #tpu.core_type<tc>, window_params = [{pipeline_mode = #tpu.pipeline_mode<synchronous>, transform_indices = @transform_0, window_bounds = array<i64: 64, 32>}, {pipeline_mode = #tpu.pipeline_mode<synchronous>, transform_indices = @transform_1, window_bounds = array<i64: 2, 64, 32>}, {pipeline_mode = #tpu.pipeline_mode<synchronous>, transform_indices = @transform_2, window_bounds = array<i64: 32, 1152>}, {pipeline_mode = #tpu.pipeline_mode<synchronous>, transform_indices = @transform_3, window_bounds = array<i64: 1, 1152>}, {pipeline_mode = #tpu.pipeline_mode<synchronous>, transform_indices = @transform_4, window_bounds = array<i64: 64, 64>}, {pipeline_mode = #tpu.pipeline_mode<synchronous>, transform_indices = @transform_5, window_bounds = array<i64: 128, 32>}, {pipeline_mode = #tpu.pipeline_mode<synchronous>, transform_indices = @transform_6, window_bounds = array<i64: 6, 64>}, {pipeline_mode = #tpu.pipeline_mode<synchronous>, transform_indices = @transform_7, window_bounds = array<i64: 32, 64>}]} {
    %c0 = arith.constant 0 : index
    %c0_0 = arith.constant 0 : index
    %0 = vector.load %arg1[%c0, %c0_0] : memref<64x32xf32, #tpu.memory_space<vmem>>, vector<64x32xf32>
    %c0_1 = arith.constant 0 : index
    %c0_2 = arith.constant 0 : index
    %c0_3 = arith.constant 0 : index
    %1 = vector.load %arg2[%c0_1, %c0_2, %c0_3] : memref<2x64x32xf32, #tpu.memory_space<vmem>>, vector<1x64x32xf32>
    %2 = vector.shape_cast %1 : vector<1x64x32xf32> to vector<64x32xf32>
    %c1 = arith.constant 1 : index
    %c0_4 = arith.constant 0 : index
    %c0_5 = arith.constant 0 : index
    %3 = vector.load %arg2[%c1, %c0_4, %c0_5] : memref<2x64x32xf32, #tpu.memory_space<vmem>>, vector<1x64x32xf32>
    %4 = vector.shape_cast %3 : vector<1x64x32xf32> to vector<64x32xf32>
    %5 = tpu.iota {dimensions = array<i32: 1>} : vector<1x32xi32>
    %c0_i32 = arith.constant 0 : i32
    %6 = vector.broadcast %c0_i32 : i32 to vector<1x32xi32>
    %7 = arith.cmpi sge, %5, %6 : vector<1x32xi32>
    %c8_i32 = arith.constant 8 : i32
    %8 = vector.broadcast %c8_i32 : i32 to vector<1x32xi32>
    %9 = arith.cmpi slt, %5, %8 : vector<1x32xi32>
    %10 = arith.andi %7, %9 : vector<1x32xi1>
    %11 = arith.extui %10 : vector<1x32xi1> to vector<1x32xi32>
    %12 = arith.sitofp %11 : vector<1x32xi32> to vector<1x32xf32>
    %c8_i32_6 = arith.constant 8 : i32
    %13 = vector.broadcast %c8_i32_6 : i32 to vector<1x32xi32>
    %14 = arith.cmpi sge, %5, %13 : vector<1x32xi32>
    %c16_i32 = arith.constant 16 : i32
    %15 = vector.broadcast %c16_i32 : i32 to vector<1x32xi32>
    %16 = arith.cmpi slt, %5, %15 : vector<1x32xi32>
    %17 = arith.andi %14, %16 : vector<1x32xi1>
    %18 = arith.extui %17 : vector<1x32xi1> to vector<1x32xi32>
    %19 = arith.sitofp %18 : vector<1x32xi32> to vector<1x32xf32>
    %c16_i32_7 = arith.constant 16 : i32
    %20 = vector.broadcast %c16_i32_7 : i32 to vector<1x32xi32>
    %21 = arith.cmpi sge, %5, %20 : vector<1x32xi32>
    %c24_i32 = arith.constant 24 : i32
    %22 = vector.broadcast %c24_i32 : i32 to vector<1x32xi32>
    %23 = arith.cmpi slt, %5, %22 : vector<1x32xi32>
    %24 = arith.andi %21, %23 : vector<1x32xi1>
    %25 = arith.extui %24 : vector<1x32xi1> to vector<1x32xi32>
    %26 = arith.sitofp %25 : vector<1x32xi32> to vector<1x32xf32>
    %c24_i32_8 = arith.constant 24 : i32
    %27 = vector.broadcast %c24_i32_8 : i32 to vector<1x32xi32>
    %28 = arith.cmpi sge, %5, %27 : vector<1x32xi32>
    %c32_i32 = arith.constant 32 : i32
    %29 = vector.broadcast %c32_i32 : i32 to vector<1x32xi32>
    %30 = arith.cmpi slt, %5, %29 : vector<1x32xi32>
    %31 = arith.andi %28, %30 : vector<1x32xi1>
    %32 = arith.extui %31 : vector<1x32xi1> to vector<1x32xi32>
    %33 = arith.sitofp %32 : vector<1x32xi32> to vector<1x32xf32>
    %c0_9 = arith.constant 0 : index
    %c0_10 = arith.constant 0 : index
    %34 = vector.load %arg3[%c0_9, %c0_10] : memref<32x1152xf32, #tpu.memory_space<vmem>>, vector<32x768xf32>
    %cst = arith.constant dense<0.000000e+00> : vector<64x768xf32>
    %35 = tpu.matmul %0, %34, %cst {dimension_numbers = #tpu.dot_dimension_numbers<[1], [0], [0], [1], [0, 0, 1, 1], [], []>} : vector<64x32xf32>, vector<32x768xf32>, vector<64x768xf32> -> vector<64x768xf32>
    %c0_11 = arith.constant 0 : index
    %c0_12 = arith.constant 0 : index
    %36 = vector.load %arg4[%c0_11, %c0_12] : memref<1x1152xf32, #tpu.memory_space<vmem>>, vector<1x768xf32>
    %37 = vector.broadcast %36 : vector<1x768xf32> to vector<64x768xf32>
    %38 = arith.addf %35, %37 : vector<64x768xf32>
    %39 = vector.extract_strided_slice %38 {offsets = [0, 0], sizes = [64, 32], strides = [1, 1]} : vector<64x768xf32> to vector<64x32xf32>
    %40 = arith.mulf %39, %2 : vector<64x32xf32>
    %41 = vector.extract_strided_slice %38 {offsets = [0, 256], sizes = [64, 32], strides = [1, 1]} : vector<64x768xf32> to vector<64x32xf32>
    %42 = arith.mulf %41, %4 : vector<64x32xf32>
    %43 = arith.addf %40, %42 : vector<64x32xf32>
    %44 = vector.extract_strided_slice %38 {offsets = [0, 128], sizes = [64, 32], strides = [1, 1]} : vector<64x768xf32> to vector<64x32xf32>
    %45 = arith.mulf %44, %2 : vector<64x32xf32>
    %46 = vector.extract_strided_slice %38 {offsets = [0, 384], sizes = [64, 32], strides = [1, 1]} : vector<64x768xf32> to vector<64x32xf32>
    %47 = arith.mulf %46, %4 : vector<64x32xf32>
    %48 = arith.addf %45, %47 : vector<64x32xf32>
    %49 = vector.extract_strided_slice %38 {offsets = [0, 512], sizes = [64, 32], strides = [1, 1]} : vector<64x768xf32> to vector<64x32xf32>
    %50 = vector.extract_strided_slice %38 {offsets = [0, 640], sizes = [64, 64], strides = [1, 1]} : vector<64x768xf32> to vector<64x64xf32>
    %51 = vector.broadcast %12 : vector<1x32xf32> to vector<64x32xf32>
    %52 = arith.mulf %43, %51 : vector<64x32xf32>
    %53 = vector.broadcast %19 : vector<1x32xf32> to vector<64x32xf32>
    %54 = arith.mulf %43, %53 : vector<64x32xf32>
    %55 = vector.broadcast %26 : vector<1x32xf32> to vector<64x32xf32>
    %56 = arith.mulf %43, %55 : vector<64x32xf32>
    %57 = vector.broadcast %33 : vector<1x32xf32> to vector<64x32xf32>
    %58 = arith.mulf %43, %57 : vector<64x32xf32>
    %59 = vector.broadcast %12 : vector<1x32xf32> to vector<64x32xf32>
    %60 = arith.mulf %49, %59 : vector<64x32xf32>
    %61 = vector.broadcast %19 : vector<1x32xf32> to vector<64x32xf32>
    %62 = arith.mulf %49, %61 : vector<64x32xf32>
    %63 = vector.broadcast %26 : vector<1x32xf32> to vector<64x32xf32>
    %64 = arith.mulf %49, %63 : vector<64x32xf32>
    %65 = vector.broadcast %33 : vector<1x32xf32> to vector<64x32xf32>
    %66 = arith.mulf %49, %65 : vector<64x32xf32>
    %67 = vector.extract_strided_slice %48 {offsets = [0, 0], sizes = [16, 32], strides = [1, 1]} : vector<64x32xf32> to vector<16x32xf32>
    %cst_13 = arith.constant 0.000000e+00 : f32
    %68 = vector.broadcast %cst_13 : f32 to vector<16x32xf32>
    %69 = vector.extract_strided_slice %52 {offsets = [0, 0], sizes = [16, 32], strides = [1, 1]} : vector<64x32xf32> to vector<16x32xf32>
    %cst_14 = arith.constant dense<0.000000e+00> : vector<16x16xf32>
    %70 = tpu.matmul %69, %67, %cst_14 {dimension_numbers = #tpu.dot_dimension_numbers<[1], [1], [0], [0], [0, 0, 1, 0], [], []>} : vector<16x32xf32>, vector<16x32xf32>, vector<16x16xf32> -> vector<16x16xf32>
    %cst_15 = arith.constant dense<0xFF800000> : vector<16xf32>
    %71 = vector.multi_reduction <maximumf>, %70, %cst_15 [1] : vector<16x16xf32> to vector<16xf32>
    %72 = vector.shape_cast %71 : vector<16xf32> to vector<16x1xf32>
    %73 = vector.broadcast %72 : vector<16x1xf32> to vector<16x16xf32>
    %74 = arith.subf %70, %73 : vector<16x16xf32>
    %75 = math.exp %74 : vector<16x16xf32>
    %cst_16 = arith.constant dense<0.000000e+00> : vector<16xf32>
    %76 = vector.multi_reduction <add>, %75, %cst_16 [1] : vector<16x16xf32> to vector<16xf32>
    %77 = vector.shape_cast %76 : vector<16xf32> to vector<16x1xf32>
    %78 = tpu.reciprocal %77 {approx = true} : vector<16x1xf32> -> vector<16x1xf32>
    %79 = vector.broadcast %78 : vector<16x1xf32> to vector<16x16xf32>
    %80 = arith.mulf %75, %79 : vector<16x16xf32>
    %81 = vector.extract_strided_slice %60 {offsets = [0, 0], sizes = [16, 32], strides = [1, 1]} : vector<64x32xf32> to vector<16x32xf32>
    %cst_17 = arith.constant dense<0.000000e+00> : vector<16x32xf32>
    %82 = tpu.matmul %80, %81, %cst_17 {dimension_numbers = #tpu.dot_dimension_numbers<[1], [0], [0], [1], [0, 0, 1, 1], [], []>} : vector<16x16xf32>, vector<16x32xf32>, vector<16x32xf32> -> vector<16x32xf32>
    %83 = arith.addf %68, %82 : vector<16x32xf32>
    %84 = vector.extract_strided_slice %54 {offsets = [0, 0], sizes = [16, 32], strides = [1, 1]} : vector<64x32xf32> to vector<16x32xf32>
    %cst_18 = arith.constant dense<0.000000e+00> : vector<16x16xf32>
    %85 = tpu.matmul %84, %67, %cst_18 {dimension_numbers = #tpu.dot_dimension_numbers<[1], [1], [0], [0], [0, 0, 1, 0], [], []>} : vector<16x32xf32>, vector<16x32xf32>, vector<16x16xf32> -> vector<16x16xf32>
    %cst_19 = arith.constant dense<0xFF800000> : vector<16xf32>
    %86 = vector.multi_reduction <maximumf>, %85, %cst_19 [1] : vector<16x16xf32> to vector<16xf32>
    %87 = vector.shape_cast %86 : vector<16xf32> to vector<16x1xf32>
    %88 = vector.broadcast %87 : vector<16x1xf32> to vector<16x16xf32>
    %89 = arith.subf %85, %88 : vector<16x16xf32>
    %90 = math.exp %89 : vector<16x16xf32>
    %cst_20 = arith.constant dense<0.000000e+00> : vector<16xf32>
    %91 = vector.multi_reduction <add>, %90, %cst_20 [1] : vector<16x16xf32> to vector<16xf32>
    %92 = vector.shape_cast %91 : vector<16xf32> to vector<16x1xf32>
    %93 = tpu.reciprocal %92 {approx = true} : vector<16x1xf32> -> vector<16x1xf32>
    %94 = vector.broadcast %93 : vector<16x1xf32> to vector<16x16xf32>
    %95 = arith.mulf %90, %94 : vector<16x16xf32>
    %96 = vector.extract_strided_slice %62 {offsets = [0, 0], sizes = [16, 32], strides = [1, 1]} : vector<64x32xf32> to vector<16x32xf32>
    %cst_21 = arith.constant dense<0.000000e+00> : vector<16x32xf32>
    %97 = tpu.matmul %95, %96, %cst_21 {dimension_numbers = #tpu.dot_dimension_numbers<[1], [0], [0], [1], [0, 0, 1, 1], [], []>} : vector<16x16xf32>, vector<16x32xf32>, vector<16x32xf32> -> vector<16x32xf32>
    %98 = arith.addf %83, %97 : vector<16x32xf32>
    %99 = vector.extract_strided_slice %56 {offsets = [0, 0], sizes = [16, 32], strides = [1, 1]} : vector<64x32xf32> to vector<16x32xf32>
    %cst_22 = arith.constant dense<0.000000e+00> : vector<16x16xf32>
    %100 = tpu.matmul %99, %67, %cst_22 {dimension_numbers = #tpu.dot_dimension_numbers<[1], [1], [0], [0], [0, 0, 1, 0], [], []>} : vector<16x32xf32>, vector<16x32xf32>, vector<16x16xf32> -> vector<16x16xf32>
    %cst_23 = arith.constant dense<0xFF800000> : vector<16xf32>
    %101 = vector.multi_reduction <maximumf>, %100, %cst_23 [1] : vector<16x16xf32> to vector<16xf32>
    %102 = vector.shape_cast %101 : vector<16xf32> to vector<16x1xf32>
    %103 = vector.broadcast %102 : vector<16x1xf32> to vector<16x16xf32>
    %104 = arith.subf %100, %103 : vector<16x16xf32>
    %105 = math.exp %104 : vector<16x16xf32>
    %cst_24 = arith.constant dense<0.000000e+00> : vector<16xf32>
    %106 = vector.multi_reduction <add>, %105, %cst_24 [1] : vector<16x16xf32> to vector<16xf32>
    %107 = vector.shape_cast %106 : vector<16xf32> to vector<16x1xf32>
    %108 = tpu.reciprocal %107 {approx = true} : vector<16x1xf32> -> vector<16x1xf32>
    %109 = vector.broadcast %108 : vector<16x1xf32> to vector<16x16xf32>
    %110 = arith.mulf %105, %109 : vector<16x16xf32>
    %111 = vector.extract_strided_slice %64 {offsets = [0, 0], sizes = [16, 32], strides = [1, 1]} : vector<64x32xf32> to vector<16x32xf32>
    %cst_25 = arith.constant dense<0.000000e+00> : vector<16x32xf32>
    %112 = tpu.matmul %110, %111, %cst_25 {dimension_numbers = #tpu.dot_dimension_numbers<[1], [0], [0], [1], [0, 0, 1, 1], [], []>} : vector<16x16xf32>, vector<16x32xf32>, vector<16x32xf32> -> vector<16x32xf32>
    %113 = arith.addf %98, %112 : vector<16x32xf32>
    %114 = vector.extract_strided_slice %58 {offsets = [0, 0], sizes = [16, 32], strides = [1, 1]} : vector<64x32xf32> to vector<16x32xf32>
    %cst_26 = arith.constant dense<0.000000e+00> : vector<16x16xf32>
    %115 = tpu.matmul %114, %67, %cst_26 {dimension_numbers = #tpu.dot_dimension_numbers<[1], [1], [0], [0], [0, 0, 1, 0], [], []>} : vector<16x32xf32>, vector<16x32xf32>, vector<16x16xf32> -> vector<16x16xf32>
    %cst_27 = arith.constant dense<0xFF800000> : vector<16xf32>
    %116 = vector.multi_reduction <maximumf>, %115, %cst_27 [1] : vector<16x16xf32> to vector<16xf32>
    %117 = vector.shape_cast %116 : vector<16xf32> to vector<16x1xf32>
    %118 = vector.broadcast %117 : vector<16x1xf32> to vector<16x16xf32>
    %119 = arith.subf %115, %118 : vector<16x16xf32>
    %120 = math.exp %119 : vector<16x16xf32>
    %cst_28 = arith.constant dense<0.000000e+00> : vector<16xf32>
    %121 = vector.multi_reduction <add>, %120, %cst_28 [1] : vector<16x16xf32> to vector<16xf32>
    %122 = vector.shape_cast %121 : vector<16xf32> to vector<16x1xf32>
    %123 = tpu.reciprocal %122 {approx = true} : vector<16x1xf32> -> vector<16x1xf32>
    %124 = vector.broadcast %123 : vector<16x1xf32> to vector<16x16xf32>
    %125 = arith.mulf %120, %124 : vector<16x16xf32>
    %126 = vector.extract_strided_slice %66 {offsets = [0, 0], sizes = [16, 32], strides = [1, 1]} : vector<64x32xf32> to vector<16x32xf32>
    %cst_29 = arith.constant dense<0.000000e+00> : vector<16x32xf32>
    %127 = tpu.matmul %125, %126, %cst_29 {dimension_numbers = #tpu.dot_dimension_numbers<[1], [0], [0], [1], [0, 0, 1, 1], [], []>} : vector<16x16xf32>, vector<16x32xf32>, vector<16x32xf32> -> vector<16x32xf32>
    %128 = arith.addf %113, %127 : vector<16x32xf32>
    %129 = vector.extract_strided_slice %48 {offsets = [16, 0], sizes = [16, 32], strides = [1, 1]} : vector<64x32xf32> to vector<16x32xf32>
    %cst_30 = arith.constant 0.000000e+00 : f32
    %130 = vector.broadcast %cst_30 : f32 to vector<16x32xf32>
    %131 = vector.extract_strided_slice %52 {offsets = [16, 0], sizes = [16, 32], strides = [1, 1]} : vector<64x32xf32> to vector<16x32xf32>
    %cst_31 = arith.constant dense<0.000000e+00> : vector<16x16xf32>
    %132 = tpu.matmul %131, %129, %cst_31 {dimension_numbers = #tpu.dot_dimension_numbers<[1], [1], [0], [0], [0, 0, 1, 0], [], []>} : vector<16x32xf32>, vector<16x32xf32>, vector<16x16xf32> -> vector<16x16xf32>
    %cst_32 = arith.constant dense<0xFF800000> : vector<16xf32>
    %133 = vector.multi_reduction <maximumf>, %132, %cst_32 [1] : vector<16x16xf32> to vector<16xf32>
    %134 = vector.shape_cast %133 : vector<16xf32> to vector<16x1xf32>
    %135 = vector.broadcast %134 : vector<16x1xf32> to vector<16x16xf32>
    %136 = arith.subf %132, %135 : vector<16x16xf32>
    %137 = math.exp %136 : vector<16x16xf32>
    %cst_33 = arith.constant dense<0.000000e+00> : vector<16xf32>
    %138 = vector.multi_reduction <add>, %137, %cst_33 [1] : vector<16x16xf32> to vector<16xf32>
    %139 = vector.shape_cast %138 : vector<16xf32> to vector<16x1xf32>
    %140 = tpu.reciprocal %139 {approx = true} : vector<16x1xf32> -> vector<16x1xf32>
    %141 = vector.broadcast %140 : vector<16x1xf32> to vector<16x16xf32>
    %142 = arith.mulf %137, %141 : vector<16x16xf32>
    %143 = vector.extract_strided_slice %60 {offsets = [16, 0], sizes = [16, 32], strides = [1, 1]} : vector<64x32xf32> to vector<16x32xf32>
    %cst_34 = arith.constant dense<0.000000e+00> : vector<16x32xf32>
    %144 = tpu.matmul %142, %143, %cst_34 {dimension_numbers = #tpu.dot_dimension_numbers<[1], [0], [0], [1], [0, 0, 1, 1], [], []>} : vector<16x16xf32>, vector<16x32xf32>, vector<16x32xf32> -> vector<16x32xf32>
    %145 = arith.addf %130, %144 : vector<16x32xf32>
    %146 = vector.extract_strided_slice %54 {offsets = [16, 0], sizes = [16, 32], strides = [1, 1]} : vector<64x32xf32> to vector<16x32xf32>
    %cst_35 = arith.constant dense<0.000000e+00> : vector<16x16xf32>
    %147 = tpu.matmul %146, %129, %cst_35 {dimension_numbers = #tpu.dot_dimension_numbers<[1], [1], [0], [0], [0, 0, 1, 0], [], []>} : vector<16x32xf32>, vector<16x32xf32>, vector<16x16xf32> -> vector<16x16xf32>
    %cst_36 = arith.constant dense<0xFF800000> : vector<16xf32>
    %148 = vector.multi_reduction <maximumf>, %147, %cst_36 [1] : vector<16x16xf32> to vector<16xf32>
    %149 = vector.shape_cast %148 : vector<16xf32> to vector<16x1xf32>
    %150 = vector.broadcast %149 : vector<16x1xf32> to vector<16x16xf32>
    %151 = arith.subf %147, %150 : vector<16x16xf32>
    %152 = math.exp %151 : vector<16x16xf32>
    %cst_37 = arith.constant dense<0.000000e+00> : vector<16xf32>
    %153 = vector.multi_reduction <add>, %152, %cst_37 [1] : vector<16x16xf32> to vector<16xf32>
    %154 = vector.shape_cast %153 : vector<16xf32> to vector<16x1xf32>
    %155 = tpu.reciprocal %154 {approx = true} : vector<16x1xf32> -> vector<16x1xf32>
    %156 = vector.broadcast %155 : vector<16x1xf32> to vector<16x16xf32>
    %157 = arith.mulf %152, %156 : vector<16x16xf32>
    %158 = vector.extract_strided_slice %62 {offsets = [16, 0], sizes = [16, 32], strides = [1, 1]} : vector<64x32xf32> to vector<16x32xf32>
    %cst_38 = arith.constant dense<0.000000e+00> : vector<16x32xf32>
    %159 = tpu.matmul %157, %158, %cst_38 {dimension_numbers = #tpu.dot_dimension_numbers<[1], [0], [0], [1], [0, 0, 1, 1], [], []>} : vector<16x16xf32>, vector<16x32xf32>, vector<16x32xf32> -> vector<16x32xf32>
    %160 = arith.addf %145, %159 : vector<16x32xf32>
    %161 = vector.extract_strided_slice %56 {offsets = [16, 0], sizes = [16, 32], strides = [1, 1]} : vector<64x32xf32> to vector<16x32xf32>
    %cst_39 = arith.constant dense<0.000000e+00> : vector<16x16xf32>
    %162 = tpu.matmul %161, %129, %cst_39 {dimension_numbers = #tpu.dot_dimension_numbers<[1], [1], [0], [0], [0, 0, 1, 0], [], []>} : vector<16x32xf32>, vector<16x32xf32>, vector<16x16xf32> -> vector<16x16xf32>
    %cst_40 = arith.constant dense<0xFF800000> : vector<16xf32>
    %163 = vector.multi_reduction <maximumf>, %162, %cst_40 [1] : vector<16x16xf32> to vector<16xf32>
    %164 = vector.shape_cast %163 : vector<16xf32> to vector<16x1xf32>
    %165 = vector.broadcast %164 : vector<16x1xf32> to vector<16x16xf32>
    %166 = arith.subf %162, %165 : vector<16x16xf32>
    %167 = math.exp %166 : vector<16x16xf32>
    %cst_41 = arith.constant dense<0.000000e+00> : vector<16xf32>
    %168 = vector.multi_reduction <add>, %167, %cst_41 [1] : vector<16x16xf32> to vector<16xf32>
    %169 = vector.shape_cast %168 : vector<16xf32> to vector<16x1xf32>
    %170 = tpu.reciprocal %169 {approx = true} : vector<16x1xf32> -> vector<16x1xf32>
    %171 = vector.broadcast %170 : vector<16x1xf32> to vector<16x16xf32>
    %172 = arith.mulf %167, %171 : vector<16x16xf32>
    %173 = vector.extract_strided_slice %64 {offsets = [16, 0], sizes = [16, 32], strides = [1, 1]} : vector<64x32xf32> to vector<16x32xf32>
    %cst_42 = arith.constant dense<0.000000e+00> : vector<16x32xf32>
    %174 = tpu.matmul %172, %173, %cst_42 {dimension_numbers = #tpu.dot_dimension_numbers<[1], [0], [0], [1], [0, 0, 1, 1], [], []>} : vector<16x16xf32>, vector<16x32xf32>, vector<16x32xf32> -> vector<16x32xf32>
    %175 = arith.addf %160, %174 : vector<16x32xf32>
    %176 = vector.extract_strided_slice %58 {offsets = [16, 0], sizes = [16, 32], strides = [1, 1]} : vector<64x32xf32> to vector<16x32xf32>
    %cst_43 = arith.constant dense<0.000000e+00> : vector<16x16xf32>
    %177 = tpu.matmul %176, %129, %cst_43 {dimension_numbers = #tpu.dot_dimension_numbers<[1], [1], [0], [0], [0, 0, 1, 0], [], []>} : vector<16x32xf32>, vector<16x32xf32>, vector<16x16xf32> -> vector<16x16xf32>
    %cst_44 = arith.constant dense<0xFF800000> : vector<16xf32>
    %178 = vector.multi_reduction <maximumf>, %177, %cst_44 [1] : vector<16x16xf32> to vector<16xf32>
    %179 = vector.shape_cast %178 : vector<16xf32> to vector<16x1xf32>
    %180 = vector.broadcast %179 : vector<16x1xf32> to vector<16x16xf32>
    %181 = arith.subf %177, %180 : vector<16x16xf32>
    %182 = math.exp %181 : vector<16x16xf32>
    %cst_45 = arith.constant dense<0.000000e+00> : vector<16xf32>
    %183 = vector.multi_reduction <add>, %182, %cst_45 [1] : vector<16x16xf32> to vector<16xf32>
    %184 = vector.shape_cast %183 : vector<16xf32> to vector<16x1xf32>
    %185 = tpu.reciprocal %184 {approx = true} : vector<16x1xf32> -> vector<16x1xf32>
    %186 = vector.broadcast %185 : vector<16x1xf32> to vector<16x16xf32>
    %187 = arith.mulf %182, %186 : vector<16x16xf32>
    %188 = vector.extract_strided_slice %66 {offsets = [16, 0], sizes = [16, 32], strides = [1, 1]} : vector<64x32xf32> to vector<16x32xf32>
    %cst_46 = arith.constant dense<0.000000e+00> : vector<16x32xf32>
    %189 = tpu.matmul %187, %188, %cst_46 {dimension_numbers = #tpu.dot_dimension_numbers<[1], [0], [0], [1], [0, 0, 1, 1], [], []>} : vector<16x16xf32>, vector<16x32xf32>, vector<16x32xf32> -> vector<16x32xf32>
    %190 = arith.addf %175, %189 : vector<16x32xf32>
    %191 = vector.extract_strided_slice %48 {offsets = [32, 0], sizes = [16, 32], strides = [1, 1]} : vector<64x32xf32> to vector<16x32xf32>
    %cst_47 = arith.constant 0.000000e+00 : f32
    %192 = vector.broadcast %cst_47 : f32 to vector<16x32xf32>
    %193 = vector.extract_strided_slice %52 {offsets = [32, 0], sizes = [16, 32], strides = [1, 1]} : vector<64x32xf32> to vector<16x32xf32>
    %cst_48 = arith.constant dense<0.000000e+00> : vector<16x16xf32>
    %194 = tpu.matmul %193, %191, %cst_48 {dimension_numbers = #tpu.dot_dimension_numbers<[1], [1], [0], [0], [0, 0, 1, 0], [], []>} : vector<16x32xf32>, vector<16x32xf32>, vector<16x16xf32> -> vector<16x16xf32>
    %cst_49 = arith.constant dense<0xFF800000> : vector<16xf32>
    %195 = vector.multi_reduction <maximumf>, %194, %cst_49 [1] : vector<16x16xf32> to vector<16xf32>
    %196 = vector.shape_cast %195 : vector<16xf32> to vector<16x1xf32>
    %197 = vector.broadcast %196 : vector<16x1xf32> to vector<16x16xf32>
    %198 = arith.subf %194, %197 : vector<16x16xf32>
    %199 = math.exp %198 : vector<16x16xf32>
    %cst_50 = arith.constant dense<0.000000e+00> : vector<16xf32>
    %200 = vector.multi_reduction <add>, %199, %cst_50 [1] : vector<16x16xf32> to vector<16xf32>
    %201 = vector.shape_cast %200 : vector<16xf32> to vector<16x1xf32>
    %202 = tpu.reciprocal %201 {approx = true} : vector<16x1xf32> -> vector<16x1xf32>
    %203 = vector.broadcast %202 : vector<16x1xf32> to vector<16x16xf32>
    %204 = arith.mulf %199, %203 : vector<16x16xf32>
    %205 = vector.extract_strided_slice %60 {offsets = [32, 0], sizes = [16, 32], strides = [1, 1]} : vector<64x32xf32> to vector<16x32xf32>
    %cst_51 = arith.constant dense<0.000000e+00> : vector<16x32xf32>
    %206 = tpu.matmul %204, %205, %cst_51 {dimension_numbers = #tpu.dot_dimension_numbers<[1], [0], [0], [1], [0, 0, 1, 1], [], []>} : vector<16x16xf32>, vector<16x32xf32>, vector<16x32xf32> -> vector<16x32xf32>
    %207 = arith.addf %192, %206 : vector<16x32xf32>
    %208 = vector.extract_strided_slice %54 {offsets = [32, 0], sizes = [16, 32], strides = [1, 1]} : vector<64x32xf32> to vector<16x32xf32>
    %cst_52 = arith.constant dense<0.000000e+00> : vector<16x16xf32>
    %209 = tpu.matmul %208, %191, %cst_52 {dimension_numbers = #tpu.dot_dimension_numbers<[1], [1], [0], [0], [0, 0, 1, 0], [], []>} : vector<16x32xf32>, vector<16x32xf32>, vector<16x16xf32> -> vector<16x16xf32>
    %cst_53 = arith.constant dense<0xFF800000> : vector<16xf32>
    %210 = vector.multi_reduction <maximumf>, %209, %cst_53 [1] : vector<16x16xf32> to vector<16xf32>
    %211 = vector.shape_cast %210 : vector<16xf32> to vector<16x1xf32>
    %212 = vector.broadcast %211 : vector<16x1xf32> to vector<16x16xf32>
    %213 = arith.subf %209, %212 : vector<16x16xf32>
    %214 = math.exp %213 : vector<16x16xf32>
    %cst_54 = arith.constant dense<0.000000e+00> : vector<16xf32>
    %215 = vector.multi_reduction <add>, %214, %cst_54 [1] : vector<16x16xf32> to vector<16xf32>
    %216 = vector.shape_cast %215 : vector<16xf32> to vector<16x1xf32>
    %217 = tpu.reciprocal %216 {approx = true} : vector<16x1xf32> -> vector<16x1xf32>
    %218 = vector.broadcast %217 : vector<16x1xf32> to vector<16x16xf32>
    %219 = arith.mulf %214, %218 : vector<16x16xf32>
    %220 = vector.extract_strided_slice %62 {offsets = [32, 0], sizes = [16, 32], strides = [1, 1]} : vector<64x32xf32> to vector<16x32xf32>
    %cst_55 = arith.constant dense<0.000000e+00> : vector<16x32xf32>
    %221 = tpu.matmul %219, %220, %cst_55 {dimension_numbers = #tpu.dot_dimension_numbers<[1], [0], [0], [1], [0, 0, 1, 1], [], []>} : vector<16x16xf32>, vector<16x32xf32>, vector<16x32xf32> -> vector<16x32xf32>
    %222 = arith.addf %207, %221 : vector<16x32xf32>
    %223 = vector.extract_strided_slice %56 {offsets = [32, 0], sizes = [16, 32], strides = [1, 1]} : vector<64x32xf32> to vector<16x32xf32>
    %cst_56 = arith.constant dense<0.000000e+00> : vector<16x16xf32>
    %224 = tpu.matmul %223, %191, %cst_56 {dimension_numbers = #tpu.dot_dimension_numbers<[1], [1], [0], [0], [0, 0, 1, 0], [], []>} : vector<16x32xf32>, vector<16x32xf32>, vector<16x16xf32> -> vector<16x16xf32>
    %cst_57 = arith.constant dense<0xFF800000> : vector<16xf32>
    %225 = vector.multi_reduction <maximumf>, %224, %cst_57 [1] : vector<16x16xf32> to vector<16xf32>
    %226 = vector.shape_cast %225 : vector<16xf32> to vector<16x1xf32>
    %227 = vector.broadcast %226 : vector<16x1xf32> to vector<16x16xf32>
    %228 = arith.subf %224, %227 : vector<16x16xf32>
    %229 = math.exp %228 : vector<16x16xf32>
    %cst_58 = arith.constant dense<0.000000e+00> : vector<16xf32>
    %230 = vector.multi_reduction <add>, %229, %cst_58 [1] : vector<16x16xf32> to vector<16xf32>
    %231 = vector.shape_cast %230 : vector<16xf32> to vector<16x1xf32>
    %232 = tpu.reciprocal %231 {approx = true} : vector<16x1xf32> -> vector<16x1xf32>
    %233 = vector.broadcast %232 : vector<16x1xf32> to vector<16x16xf32>
    %234 = arith.mulf %229, %233 : vector<16x16xf32>
    %235 = vector.extract_strided_slice %64 {offsets = [32, 0], sizes = [16, 32], strides = [1, 1]} : vector<64x32xf32> to vector<16x32xf32>
    %cst_59 = arith.constant dense<0.000000e+00> : vector<16x32xf32>
    %236 = tpu.matmul %234, %235, %cst_59 {dimension_numbers = #tpu.dot_dimension_numbers<[1], [0], [0], [1], [0, 0, 1, 1], [], []>} : vector<16x16xf32>, vector<16x32xf32>, vector<16x32xf32> -> vector<16x32xf32>
    %237 = arith.addf %222, %236 : vector<16x32xf32>
    %238 = vector.extract_strided_slice %58 {offsets = [32, 0], sizes = [16, 32], strides = [1, 1]} : vector<64x32xf32> to vector<16x32xf32>
    %cst_60 = arith.constant dense<0.000000e+00> : vector<16x16xf32>
    %239 = tpu.matmul %238, %191, %cst_60 {dimension_numbers = #tpu.dot_dimension_numbers<[1], [1], [0], [0], [0, 0, 1, 0], [], []>} : vector<16x32xf32>, vector<16x32xf32>, vector<16x16xf32> -> vector<16x16xf32>
    %cst_61 = arith.constant dense<0xFF800000> : vector<16xf32>
    %240 = vector.multi_reduction <maximumf>, %239, %cst_61 [1] : vector<16x16xf32> to vector<16xf32>
    %241 = vector.shape_cast %240 : vector<16xf32> to vector<16x1xf32>
    %242 = vector.broadcast %241 : vector<16x1xf32> to vector<16x16xf32>
    %243 = arith.subf %239, %242 : vector<16x16xf32>
    %244 = math.exp %243 : vector<16x16xf32>
    %cst_62 = arith.constant dense<0.000000e+00> : vector<16xf32>
    %245 = vector.multi_reduction <add>, %244, %cst_62 [1] : vector<16x16xf32> to vector<16xf32>
    %246 = vector.shape_cast %245 : vector<16xf32> to vector<16x1xf32>
    %247 = tpu.reciprocal %246 {approx = true} : vector<16x1xf32> -> vector<16x1xf32>
    %248 = vector.broadcast %247 : vector<16x1xf32> to vector<16x16xf32>
    %249 = arith.mulf %244, %248 : vector<16x16xf32>
    %250 = vector.extract_strided_slice %66 {offsets = [32, 0], sizes = [16, 32], strides = [1, 1]} : vector<64x32xf32> to vector<16x32xf32>
    %cst_63 = arith.constant dense<0.000000e+00> : vector<16x32xf32>
    %251 = tpu.matmul %249, %250, %cst_63 {dimension_numbers = #tpu.dot_dimension_numbers<[1], [0], [0], [1], [0, 0, 1, 1], [], []>} : vector<16x16xf32>, vector<16x32xf32>, vector<16x32xf32> -> vector<16x32xf32>
    %252 = arith.addf %237, %251 : vector<16x32xf32>
    %253 = vector.extract_strided_slice %48 {offsets = [48, 0], sizes = [16, 32], strides = [1, 1]} : vector<64x32xf32> to vector<16x32xf32>
    %cst_64 = arith.constant 0.000000e+00 : f32
    %254 = vector.broadcast %cst_64 : f32 to vector<16x32xf32>
    %255 = vector.extract_strided_slice %52 {offsets = [48, 0], sizes = [16, 32], strides = [1, 1]} : vector<64x32xf32> to vector<16x32xf32>
    %cst_65 = arith.constant dense<0.000000e+00> : vector<16x16xf32>
    %256 = tpu.matmul %255, %253, %cst_65 {dimension_numbers = #tpu.dot_dimension_numbers<[1], [1], [0], [0], [0, 0, 1, 0], [], []>} : vector<16x32xf32>, vector<16x32xf32>, vector<16x16xf32> -> vector<16x16xf32>
    %cst_66 = arith.constant dense<0xFF800000> : vector<16xf32>
    %257 = vector.multi_reduction <maximumf>, %256, %cst_66 [1] : vector<16x16xf32> to vector<16xf32>
    %258 = vector.shape_cast %257 : vector<16xf32> to vector<16x1xf32>
    %259 = vector.broadcast %258 : vector<16x1xf32> to vector<16x16xf32>
    %260 = arith.subf %256, %259 : vector<16x16xf32>
    %261 = math.exp %260 : vector<16x16xf32>
    %cst_67 = arith.constant dense<0.000000e+00> : vector<16xf32>
    %262 = vector.multi_reduction <add>, %261, %cst_67 [1] : vector<16x16xf32> to vector<16xf32>
    %263 = vector.shape_cast %262 : vector<16xf32> to vector<16x1xf32>
    %264 = tpu.reciprocal %263 {approx = true} : vector<16x1xf32> -> vector<16x1xf32>
    %265 = vector.broadcast %264 : vector<16x1xf32> to vector<16x16xf32>
    %266 = arith.mulf %261, %265 : vector<16x16xf32>
    %267 = vector.extract_strided_slice %60 {offsets = [48, 0], sizes = [16, 32], strides = [1, 1]} : vector<64x32xf32> to vector<16x32xf32>
    %cst_68 = arith.constant dense<0.000000e+00> : vector<16x32xf32>
    %268 = tpu.matmul %266, %267, %cst_68 {dimension_numbers = #tpu.dot_dimension_numbers<[1], [0], [0], [1], [0, 0, 1, 1], [], []>} : vector<16x16xf32>, vector<16x32xf32>, vector<16x32xf32> -> vector<16x32xf32>
    %269 = arith.addf %254, %268 : vector<16x32xf32>
    %270 = vector.extract_strided_slice %54 {offsets = [48, 0], sizes = [16, 32], strides = [1, 1]} : vector<64x32xf32> to vector<16x32xf32>
    %cst_69 = arith.constant dense<0.000000e+00> : vector<16x16xf32>
    %271 = tpu.matmul %270, %253, %cst_69 {dimension_numbers = #tpu.dot_dimension_numbers<[1], [1], [0], [0], [0, 0, 1, 0], [], []>} : vector<16x32xf32>, vector<16x32xf32>, vector<16x16xf32> -> vector<16x16xf32>
    %cst_70 = arith.constant dense<0xFF800000> : vector<16xf32>
    %272 = vector.multi_reduction <maximumf>, %271, %cst_70 [1] : vector<16x16xf32> to vector<16xf32>
    %273 = vector.shape_cast %272 : vector<16xf32> to vector<16x1xf32>
    %274 = vector.broadcast %273 : vector<16x1xf32> to vector<16x16xf32>
    %275 = arith.subf %271, %274 : vector<16x16xf32>
    %276 = math.exp %275 : vector<16x16xf32>
    %cst_71 = arith.constant dense<0.000000e+00> : vector<16xf32>
    %277 = vector.multi_reduction <add>, %276, %cst_71 [1] : vector<16x16xf32> to vector<16xf32>
    %278 = vector.shape_cast %277 : vector<16xf32> to vector<16x1xf32>
    %279 = tpu.reciprocal %278 {approx = true} : vector<16x1xf32> -> vector<16x1xf32>
    %280 = vector.broadcast %279 : vector<16x1xf32> to vector<16x16xf32>
    %281 = arith.mulf %276, %280 : vector<16x16xf32>
    %282 = vector.extract_strided_slice %62 {offsets = [48, 0], sizes = [16, 32], strides = [1, 1]} : vector<64x32xf32> to vector<16x32xf32>
    %cst_72 = arith.constant dense<0.000000e+00> : vector<16x32xf32>
    %283 = tpu.matmul %281, %282, %cst_72 {dimension_numbers = #tpu.dot_dimension_numbers<[1], [0], [0], [1], [0, 0, 1, 1], [], []>} : vector<16x16xf32>, vector<16x32xf32>, vector<16x32xf32> -> vector<16x32xf32>
    %284 = arith.addf %269, %283 : vector<16x32xf32>
    %285 = vector.extract_strided_slice %56 {offsets = [48, 0], sizes = [16, 32], strides = [1, 1]} : vector<64x32xf32> to vector<16x32xf32>
    %cst_73 = arith.constant dense<0.000000e+00> : vector<16x16xf32>
    %286 = tpu.matmul %285, %253, %cst_73 {dimension_numbers = #tpu.dot_dimension_numbers<[1], [1], [0], [0], [0, 0, 1, 0], [], []>} : vector<16x32xf32>, vector<16x32xf32>, vector<16x16xf32> -> vector<16x16xf32>
    %cst_74 = arith.constant dense<0xFF800000> : vector<16xf32>
    %287 = vector.multi_reduction <maximumf>, %286, %cst_74 [1] : vector<16x16xf32> to vector<16xf32>
    %288 = vector.shape_cast %287 : vector<16xf32> to vector<16x1xf32>
    %289 = vector.broadcast %288 : vector<16x1xf32> to vector<16x16xf32>
    %290 = arith.subf %286, %289 : vector<16x16xf32>
    %291 = math.exp %290 : vector<16x16xf32>
    %cst_75 = arith.constant dense<0.000000e+00> : vector<16xf32>
    %292 = vector.multi_reduction <add>, %291, %cst_75 [1] : vector<16x16xf32> to vector<16xf32>
    %293 = vector.shape_cast %292 : vector<16xf32> to vector<16x1xf32>
    %294 = tpu.reciprocal %293 {approx = true} : vector<16x1xf32> -> vector<16x1xf32>
    %295 = vector.broadcast %294 : vector<16x1xf32> to vector<16x16xf32>
    %296 = arith.mulf %291, %295 : vector<16x16xf32>
    %297 = vector.extract_strided_slice %64 {offsets = [48, 0], sizes = [16, 32], strides = [1, 1]} : vector<64x32xf32> to vector<16x32xf32>
    %cst_76 = arith.constant dense<0.000000e+00> : vector<16x32xf32>
    %298 = tpu.matmul %296, %297, %cst_76 {dimension_numbers = #tpu.dot_dimension_numbers<[1], [0], [0], [1], [0, 0, 1, 1], [], []>} : vector<16x16xf32>, vector<16x32xf32>, vector<16x32xf32> -> vector<16x32xf32>
    %299 = arith.addf %284, %298 : vector<16x32xf32>
    %300 = vector.extract_strided_slice %58 {offsets = [48, 0], sizes = [16, 32], strides = [1, 1]} : vector<64x32xf32> to vector<16x32xf32>
    %cst_77 = arith.constant dense<0.000000e+00> : vector<16x16xf32>
    %301 = tpu.matmul %300, %253, %cst_77 {dimension_numbers = #tpu.dot_dimension_numbers<[1], [1], [0], [0], [0, 0, 1, 0], [], []>} : vector<16x32xf32>, vector<16x32xf32>, vector<16x16xf32> -> vector<16x16xf32>
    %cst_78 = arith.constant dense<0xFF800000> : vector<16xf32>
    %302 = vector.multi_reduction <maximumf>, %301, %cst_78 [1] : vector<16x16xf32> to vector<16xf32>
    %303 = vector.shape_cast %302 : vector<16xf32> to vector<16x1xf32>
    %304 = vector.broadcast %303 : vector<16x1xf32> to vector<16x16xf32>
    %305 = arith.subf %301, %304 : vector<16x16xf32>
    %306 = math.exp %305 : vector<16x16xf32>
    %cst_79 = arith.constant dense<0.000000e+00> : vector<16xf32>
    %307 = vector.multi_reduction <add>, %306, %cst_79 [1] : vector<16x16xf32> to vector<16xf32>
    %308 = vector.shape_cast %307 : vector<16xf32> to vector<16x1xf32>
    %309 = tpu.reciprocal %308 {approx = true} : vector<16x1xf32> -> vector<16x1xf32>
    %310 = vector.broadcast %309 : vector<16x1xf32> to vector<16x16xf32>
    %311 = arith.mulf %306, %310 : vector<16x16xf32>
    %312 = vector.extract_strided_slice %66 {offsets = [48, 0], sizes = [16, 32], strides = [1, 1]} : vector<64x32xf32> to vector<16x32xf32>
    %cst_80 = arith.constant dense<0.000000e+00> : vector<16x32xf32>
    %313 = tpu.matmul %311, %312, %cst_80 {dimension_numbers = #tpu.dot_dimension_numbers<[1], [0], [0], [1], [0, 0, 1, 1], [], []>} : vector<16x16xf32>, vector<16x32xf32>, vector<16x32xf32> -> vector<16x32xf32>
    %314 = arith.addf %299, %313 : vector<16x32xf32>
    %315 = tpu.concatenate %128, %190, %252, %314 in 0 : vector<16x32xf32>, vector<16x32xf32>, vector<16x32xf32>, vector<16x32xf32> -> vector<64x32xf32>
    %c0_81 = arith.constant 0 : index
    %c0_82 = arith.constant 0 : index
    %316 = vector.load %arg5[%c0_81, %c0_82] : memref<64x64xf32, #tpu.memory_space<vmem>>, vector<32x64xf32>
    %cst_83 = arith.constant dense<0.000000e+00> : vector<64x64xf32>
    %317 = tpu.matmul %315, %316, %cst_83 {dimension_numbers = #tpu.dot_dimension_numbers<[1], [0], [0], [1], [0, 0, 1, 1], [], []>} : vector<64x32xf32>, vector<32x64xf32>, vector<64x64xf32> -> vector<64x64xf32>
    %318 = arith.addf %50, %317 : vector<64x64xf32>
    %c0_84 = arith.constant 0 : index
    %c0_85 = arith.constant 0 : index
    %319 = vector.load %arg7[%c0_84, %c0_85] : memref<6x64xf32, #tpu.memory_space<vmem>>, vector<1x64xf32>
    %c1_86 = arith.constant 1 : index
    %c0_87 = arith.constant 0 : index
    %320 = vector.load %arg7[%c1_86, %c0_87] : memref<6x64xf32, #tpu.memory_space<vmem>>, vector<1x64xf32>
    %c0_88 = arith.constant 0 : index
    %c0_89 = arith.constant 0 : index
    %321 = vector.load %arg6[%c0_88, %c0_89] : memref<128x32xf32, #tpu.memory_space<vmem>>, vector<64x32xf32>
    %c2 = arith.constant 2 : index
    %c0_90 = arith.constant 0 : index
    %322 = vector.load %arg7[%c2, %c0_90] : memref<6x64xf32, #tpu.memory_space<vmem>>, vector<1x32xf32>
    %cst_91 = arith.constant dense<0.000000e+00> : vector<64xf32>
    %323 = vector.multi_reduction <add>, %318, %cst_91 [1] : vector<64x64xf32> to vector<64xf32>
    %324 = vector.shape_cast %323 : vector<64xf32> to vector<64x1xf32>
    %cst_92 = arith.constant 6.400000e+01 : f32
    %325 = vector.broadcast %cst_92 : f32 to vector<64x1xf32>
    %326 = arith.divf %324, %325 : vector<64x1xf32>
    %327 = vector.broadcast %326 : vector<64x1xf32> to vector<64x64xf32>
    %328 = arith.subf %318, %327 : vector<64x64xf32>
    %329 = arith.mulf %328, %328 : vector<64x64xf32>
    %cst_93 = arith.constant dense<0.000000e+00> : vector<64xf32>
    %330 = vector.multi_reduction <add>, %329, %cst_93 [1] : vector<64x64xf32> to vector<64xf32>
    %331 = vector.shape_cast %330 : vector<64xf32> to vector<64x1xf32>
    %cst_94 = arith.constant 6.400000e+01 : f32
    %332 = vector.broadcast %cst_94 : f32 to vector<64x1xf32>
    %333 = arith.divf %331, %332 : vector<64x1xf32>
    %334 = vector.broadcast %326 : vector<64x1xf32> to vector<64x64xf32>
    %335 = arith.subf %318, %334 : vector<64x64xf32>
    %cst_95 = arith.constant 9.99999974E-6 : f32
    %336 = vector.broadcast %cst_95 : f32 to vector<64x1xf32>
    %337 = arith.addf %333, %336 : vector<64x1xf32>
    %338 = math.rsqrt %337 : vector<64x1xf32>
    %339 = vector.broadcast %338 : vector<64x1xf32> to vector<64x64xf32>
    %340 = arith.mulf %335, %339 : vector<64x64xf32>
    %341 = vector.broadcast %319 : vector<1x64xf32> to vector<64x64xf32>
    %342 = arith.mulf %340, %341 : vector<64x64xf32>
    %343 = vector.broadcast %320 : vector<1x64xf32> to vector<64x64xf32>
    %344 = arith.addf %342, %343 : vector<64x64xf32>
    %cst_96 = arith.constant 5.000000e-01 : f32
    %345 = vector.broadcast %cst_96 : f32 to vector<64x64xf32>
    %346 = arith.mulf %345, %344 : vector<64x64xf32>
    %cst_97 = arith.constant 0.707106769 : f32
    %347 = vector.broadcast %cst_97 : f32 to vector<64x64xf32>
    %348 = arith.mulf %344, %347 : vector<64x64xf32>
    %349 = math.absf %348 : vector<64x64xf32>
    %cst_98 = arith.constant 0.327591091 : f32
    %350 = vector.broadcast %cst_98 : f32 to vector<64x64xf32>
    %351 = arith.mulf %350, %349 : vector<64x64xf32>
    %cst_99 = arith.constant 1.000000e+00 : f32
    %352 = vector.broadcast %cst_99 : f32 to vector<64x64xf32>
    %353 = arith.addf %352, %351 : vector<64x64xf32>
    %cst_100 = arith.constant 1.000000e+00 : f32
    %354 = vector.broadcast %cst_100 : f32 to vector<64x64xf32>
    %355 = arith.divf %354, %353 : vector<64x64xf32>
    %cst_101 = arith.constant 1.06140542 : f32
    %356 = vector.broadcast %cst_101 : f32 to vector<64x64xf32>
    %357 = arith.mulf %356, %355 : vector<64x64xf32>
    %cst_102 = arith.constant -1.45315206 : f32
    %358 = vector.broadcast %cst_102 : f32 to vector<64x64xf32>
    %359 = arith.addf %357, %358 : vector<64x64xf32>
    %360 = arith.mulf %359, %355 : vector<64x64xf32>
    %cst_103 = arith.constant 1.42141378 : f32
    %361 = vector.broadcast %cst_103 : f32 to vector<64x64xf32>
    %362 = arith.addf %360, %361 : vector<64x64xf32>
    %363 = arith.mulf %362, %355 : vector<64x64xf32>
    %cst_104 = arith.constant -0.284496725 : f32
    %364 = vector.broadcast %cst_104 : f32 to vector<64x64xf32>
    %365 = arith.addf %363, %364 : vector<64x64xf32>
    %366 = arith.mulf %365, %355 : vector<64x64xf32>
    %cst_105 = arith.constant 0.254829586 : f32
    %367 = vector.broadcast %cst_105 : f32 to vector<64x64xf32>
    %368 = arith.addf %366, %367 : vector<64x64xf32>
    %369 = arith.mulf %368, %355 : vector<64x64xf32>
    %cst_106 = arith.constant 0.000000e+00 : f32
    %370 = vector.broadcast %cst_106 : f32 to vector<64x64xf32>
    %371 = arith.subf %370, %349 : vector<64x64xf32>
    %372 = arith.mulf %371, %349 : vector<64x64xf32>
    %373 = math.exp %372 : vector<64x64xf32>
    %374 = arith.mulf %369, %373 : vector<64x64xf32>
    %cst_107 = arith.constant 1.000000e+00 : f32
    %375 = vector.broadcast %cst_107 : f32 to vector<64x64xf32>
    %376 = arith.subf %375, %374 : vector<64x64xf32>
    %cst_108 = arith.constant 0.000000e+00 : f32
    %377 = vector.broadcast %cst_108 : f32 to vector<64x64xf32>
    %378 = arith.cmpf olt, %348, %377 : vector<64x64xf32>
    %cst_109 = arith.constant 0.000000e+00 : f32
    %379 = vector.broadcast %cst_109 : f32 to vector<64x64xf32>
    %380 = arith.subf %379, %376 : vector<64x64xf32>
    %381 = arith.select %378, %380, %376 : vector<64x64xi1>, vector<64x64xf32>
    %cst_110 = arith.constant 1.000000e+00 : f32
    %382 = vector.broadcast %cst_110 : f32 to vector<64x64xf32>
    %383 = arith.addf %382, %381 : vector<64x64xf32>
    %384 = arith.mulf %346, %383 : vector<64x64xf32>
    %cst_111 = arith.constant dense<0.000000e+00> : vector<64x32xf32>
    %385 = tpu.matmul %384, %321, %cst_111 {dimension_numbers = #tpu.dot_dimension_numbers<[1], [0], [0], [1], [0, 0, 1, 1], [], []>} : vector<64x64xf32>, vector<64x32xf32>, vector<64x32xf32> -> vector<64x32xf32>
    %386 = arith.addf %0, %385 : vector<64x32xf32>
    %387 = vector.broadcast %322 : vector<1x32xf32> to vector<64x32xf32>
    %388 = arith.addf %386, %387 : vector<64x32xf32>
    %c0_112 = arith.constant 0 : index
    %c768 = arith.constant 768 : index
    %389 = vector.load %arg3[%c0_112, %c768] : memref<32x1152xf32, #tpu.memory_space<vmem>>, vector<32x384xf32>
    %cst_113 = arith.constant dense<0.000000e+00> : vector<64x384xf32>
    %390 = tpu.matmul %388, %389, %cst_113 {dimension_numbers = #tpu.dot_dimension_numbers<[1], [0], [0], [1], [0, 0, 1, 1], [], []>} : vector<64x32xf32>, vector<32x384xf32>, vector<64x384xf32> -> vector<64x384xf32>
    %c0_114 = arith.constant 0 : index
    %c768_115 = arith.constant 768 : index
    %391 = vector.load %arg4[%c0_114, %c768_115] : memref<1x1152xf32, #tpu.memory_space<vmem>>, vector<1x384xf32>
    %392 = vector.broadcast %391 : vector<1x384xf32> to vector<64x384xf32>
    %393 = arith.addf %390, %392 : vector<64x384xf32>
    %394 = vector.extract_strided_slice %393 {offsets = [0, 0], sizes = [64, 32], strides = [1, 1]} : vector<64x384xf32> to vector<64x32xf32>
    %395 = vector.extract_strided_slice %393 {offsets = [0, 128], sizes = [64, 32], strides = [1, 1]} : vector<64x384xf32> to vector<64x32xf32>
    %396 = vector.extract_strided_slice %393 {offsets = [0, 256], sizes = [64, 64], strides = [1, 1]} : vector<64x384xf32> to vector<64x64xf32>
    %397 = vector.broadcast %12 : vector<1x32xf32> to vector<64x32xf32>
    %398 = arith.mulf %394, %397 : vector<64x32xf32>
    %399 = vector.broadcast %19 : vector<1x32xf32> to vector<64x32xf32>
    %400 = arith.mulf %394, %399 : vector<64x32xf32>
    %401 = vector.broadcast %26 : vector<1x32xf32> to vector<64x32xf32>
    %402 = arith.mulf %394, %401 : vector<64x32xf32>
    %403 = vector.broadcast %33 : vector<1x32xf32> to vector<64x32xf32>
    %404 = arith.mulf %394, %403 : vector<64x32xf32>
    %405 = vector.broadcast %12 : vector<1x32xf32> to vector<64x32xf32>
    %406 = arith.mulf %395, %405 : vector<64x32xf32>
    %407 = vector.broadcast %19 : vector<1x32xf32> to vector<64x32xf32>
    %408 = arith.mulf %395, %407 : vector<64x32xf32>
    %409 = vector.broadcast %26 : vector<1x32xf32> to vector<64x32xf32>
    %410 = arith.mulf %395, %409 : vector<64x32xf32>
    %411 = vector.broadcast %33 : vector<1x32xf32> to vector<64x32xf32>
    %412 = arith.mulf %395, %411 : vector<64x32xf32>
    %413 = vector.extract_strided_slice %394 {offsets = [0, 0], sizes = [16, 32], strides = [1, 1]} : vector<64x32xf32> to vector<16x32xf32>
    %414 = vector.extract_strided_slice %394 {offsets = [32, 0], sizes = [16, 32], strides = [1, 1]} : vector<64x32xf32> to vector<16x32xf32>
    %cst_116 = arith.constant 0.000000e+00 : f32
    %415 = vector.broadcast %cst_116 : f32 to vector<16x32xf32>
    %cst_117 = arith.constant 0.000000e+00 : f32
    %416 = vector.broadcast %cst_117 : f32 to vector<16x32xf32>
    %417 = vector.extract_strided_slice %398 {offsets = [0, 0], sizes = [16, 32], strides = [1, 1]} : vector<64x32xf32> to vector<16x32xf32>
    %cst_118 = arith.constant dense<0.000000e+00> : vector<16x16xf32>
    %418 = tpu.matmul %417, %414, %cst_118 {dimension_numbers = #tpu.dot_dimension_numbers<[1], [1], [0], [0], [0, 0, 1, 0], [], []>} : vector<16x32xf32>, vector<16x32xf32>, vector<16x16xf32> -> vector<16x16xf32>
    %419 = vector.extract_strided_slice %398 {offsets = [32, 0], sizes = [16, 32], strides = [1, 1]} : vector<64x32xf32> to vector<16x32xf32>
    %cst_119 = arith.constant dense<0.000000e+00> : vector<16x16xf32>
    %420 = tpu.matmul %419, %413, %cst_119 {dimension_numbers = #tpu.dot_dimension_numbers<[1], [1], [0], [0], [0, 0, 1, 0], [], []>} : vector<16x32xf32>, vector<16x32xf32>, vector<16x16xf32> -> vector<16x16xf32>
    %cst_120 = arith.constant dense<0xFF800000> : vector<16xf32>
    %421 = vector.multi_reduction <maximumf>, %418, %cst_120 [1] : vector<16x16xf32> to vector<16xf32>
    %422 = vector.shape_cast %421 : vector<16xf32> to vector<16x1xf32>
    %423 = vector.broadcast %422 : vector<16x1xf32> to vector<16x16xf32>
    %424 = arith.subf %418, %423 : vector<16x16xf32>
    %425 = math.exp %424 : vector<16x16xf32>
    %cst_121 = arith.constant dense<0.000000e+00> : vector<16xf32>
    %426 = vector.multi_reduction <add>, %425, %cst_121 [1] : vector<16x16xf32> to vector<16xf32>
    %427 = vector.shape_cast %426 : vector<16xf32> to vector<16x1xf32>
    %428 = tpu.reciprocal %427 {approx = true} : vector<16x1xf32> -> vector<16x1xf32>
    %429 = vector.broadcast %428 : vector<16x1xf32> to vector<16x16xf32>
    %430 = arith.mulf %425, %429 : vector<16x16xf32>
    %431 = vector.extract_strided_slice %406 {offsets = [32, 0], sizes = [16, 32], strides = [1, 1]} : vector<64x32xf32> to vector<16x32xf32>
    %cst_122 = arith.constant dense<0.000000e+00> : vector<16x32xf32>
    %432 = tpu.matmul %430, %431, %cst_122 {dimension_numbers = #tpu.dot_dimension_numbers<[1], [0], [0], [1], [0, 0, 1, 1], [], []>} : vector<16x16xf32>, vector<16x32xf32>, vector<16x32xf32> -> vector<16x32xf32>
    %433 = arith.addf %415, %432 : vector<16x32xf32>
    %cst_123 = arith.constant dense<0xFF800000> : vector<16xf32>
    %434 = vector.multi_reduction <maximumf>, %420, %cst_123 [1] : vector<16x16xf32> to vector<16xf32>
    %435 = vector.shape_cast %434 : vector<16xf32> to vector<16x1xf32>
    %436 = vector.broadcast %435 : vector<16x1xf32> to vector<16x16xf32>
    %437 = arith.subf %420, %436 : vector<16x16xf32>
    %438 = math.exp %437 : vector<16x16xf32>
    %cst_124 = arith.constant dense<0.000000e+00> : vector<16xf32>
    %439 = vector.multi_reduction <add>, %438, %cst_124 [1] : vector<16x16xf32> to vector<16xf32>
    %440 = vector.shape_cast %439 : vector<16xf32> to vector<16x1xf32>
    %441 = tpu.reciprocal %440 {approx = true} : vector<16x1xf32> -> vector<16x1xf32>
    %442 = vector.broadcast %441 : vector<16x1xf32> to vector<16x16xf32>
    %443 = arith.mulf %438, %442 : vector<16x16xf32>
    %444 = vector.extract_strided_slice %406 {offsets = [0, 0], sizes = [16, 32], strides = [1, 1]} : vector<64x32xf32> to vector<16x32xf32>
    %cst_125 = arith.constant dense<0.000000e+00> : vector<16x32xf32>
    %445 = tpu.matmul %443, %444, %cst_125 {dimension_numbers = #tpu.dot_dimension_numbers<[1], [0], [0], [1], [0, 0, 1, 1], [], []>} : vector<16x16xf32>, vector<16x32xf32>, vector<16x32xf32> -> vector<16x32xf32>
    %446 = arith.addf %416, %445 : vector<16x32xf32>
    %447 = vector.extract_strided_slice %400 {offsets = [0, 0], sizes = [16, 32], strides = [1, 1]} : vector<64x32xf32> to vector<16x32xf32>
    %cst_126 = arith.constant dense<0.000000e+00> : vector<16x16xf32>
    %448 = tpu.matmul %447, %414, %cst_126 {dimension_numbers = #tpu.dot_dimension_numbers<[1], [1], [0], [0], [0, 0, 1, 0], [], []>} : vector<16x32xf32>, vector<16x32xf32>, vector<16x16xf32> -> vector<16x16xf32>
    %449 = vector.extract_strided_slice %400 {offsets = [32, 0], sizes = [16, 32], strides = [1, 1]} : vector<64x32xf32> to vector<16x32xf32>
    %cst_127 = arith.constant dense<0.000000e+00> : vector<16x16xf32>
    %450 = tpu.matmul %449, %413, %cst_127 {dimension_numbers = #tpu.dot_dimension_numbers<[1], [1], [0], [0], [0, 0, 1, 0], [], []>} : vector<16x32xf32>, vector<16x32xf32>, vector<16x16xf32> -> vector<16x16xf32>
    %cst_128 = arith.constant dense<0xFF800000> : vector<16xf32>
    %451 = vector.multi_reduction <maximumf>, %448, %cst_128 [1] : vector<16x16xf32> to vector<16xf32>
    %452 = vector.shape_cast %451 : vector<16xf32> to vector<16x1xf32>
    %453 = vector.broadcast %452 : vector<16x1xf32> to vector<16x16xf32>
    %454 = arith.subf %448, %453 : vector<16x16xf32>
    %455 = math.exp %454 : vector<16x16xf32>
    %cst_129 = arith.constant dense<0.000000e+00> : vector<16xf32>
    %456 = vector.multi_reduction <add>, %455, %cst_129 [1] : vector<16x16xf32> to vector<16xf32>
    %457 = vector.shape_cast %456 : vector<16xf32> to vector<16x1xf32>
    %458 = tpu.reciprocal %457 {approx = true} : vector<16x1xf32> -> vector<16x1xf32>
    %459 = vector.broadcast %458 : vector<16x1xf32> to vector<16x16xf32>
    %460 = arith.mulf %455, %459 : vector<16x16xf32>
    %461 = vector.extract_strided_slice %408 {offsets = [32, 0], sizes = [16, 32], strides = [1, 1]} : vector<64x32xf32> to vector<16x32xf32>
    %cst_130 = arith.constant dense<0.000000e+00> : vector<16x32xf32>
    %462 = tpu.matmul %460, %461, %cst_130 {dimension_numbers = #tpu.dot_dimension_numbers<[1], [0], [0], [1], [0, 0, 1, 1], [], []>} : vector<16x16xf32>, vector<16x32xf32>, vector<16x32xf32> -> vector<16x32xf32>
    %463 = arith.addf %433, %462 : vector<16x32xf32>
    %cst_131 = arith.constant dense<0xFF800000> : vector<16xf32>
    %464 = vector.multi_reduction <maximumf>, %450, %cst_131 [1] : vector<16x16xf32> to vector<16xf32>
    %465 = vector.shape_cast %464 : vector<16xf32> to vector<16x1xf32>
    %466 = vector.broadcast %465 : vector<16x1xf32> to vector<16x16xf32>
    %467 = arith.subf %450, %466 : vector<16x16xf32>
    %468 = math.exp %467 : vector<16x16xf32>
    %cst_132 = arith.constant dense<0.000000e+00> : vector<16xf32>
    %469 = vector.multi_reduction <add>, %468, %cst_132 [1] : vector<16x16xf32> to vector<16xf32>
    %470 = vector.shape_cast %469 : vector<16xf32> to vector<16x1xf32>
    %471 = tpu.reciprocal %470 {approx = true} : vector<16x1xf32> -> vector<16x1xf32>
    %472 = vector.broadcast %471 : vector<16x1xf32> to vector<16x16xf32>
    %473 = arith.mulf %468, %472 : vector<16x16xf32>
    %474 = vector.extract_strided_slice %408 {offsets = [0, 0], sizes = [16, 32], strides = [1, 1]} : vector<64x32xf32> to vector<16x32xf32>
    %cst_133 = arith.constant dense<0.000000e+00> : vector<16x32xf32>
    %475 = tpu.matmul %473, %474, %cst_133 {dimension_numbers = #tpu.dot_dimension_numbers<[1], [0], [0], [1], [0, 0, 1, 1], [], []>} : vector<16x16xf32>, vector<16x32xf32>, vector<16x32xf32> -> vector<16x32xf32>
    %476 = arith.addf %446, %475 : vector<16x32xf32>
    %477 = vector.extract_strided_slice %402 {offsets = [0, 0], sizes = [16, 32], strides = [1, 1]} : vector<64x32xf32> to vector<16x32xf32>
    %cst_134 = arith.constant dense<0.000000e+00> : vector<16x16xf32>
    %478 = tpu.matmul %477, %414, %cst_134 {dimension_numbers = #tpu.dot_dimension_numbers<[1], [1], [0], [0], [0, 0, 1, 0], [], []>} : vector<16x32xf32>, vector<16x32xf32>, vector<16x16xf32> -> vector<16x16xf32>
    %479 = vector.extract_strided_slice %402 {offsets = [32, 0], sizes = [16, 32], strides = [1, 1]} : vector<64x32xf32> to vector<16x32xf32>
    %cst_135 = arith.constant dense<0.000000e+00> : vector<16x16xf32>
    %480 = tpu.matmul %479, %413, %cst_135 {dimension_numbers = #tpu.dot_dimension_numbers<[1], [1], [0], [0], [0, 0, 1, 0], [], []>} : vector<16x32xf32>, vector<16x32xf32>, vector<16x16xf32> -> vector<16x16xf32>
    %cst_136 = arith.constant dense<0xFF800000> : vector<16xf32>
    %481 = vector.multi_reduction <maximumf>, %478, %cst_136 [1] : vector<16x16xf32> to vector<16xf32>
    %482 = vector.shape_cast %481 : vector<16xf32> to vector<16x1xf32>
    %483 = vector.broadcast %482 : vector<16x1xf32> to vector<16x16xf32>
    %484 = arith.subf %478, %483 : vector<16x16xf32>
    %485 = math.exp %484 : vector<16x16xf32>
    %cst_137 = arith.constant dense<0.000000e+00> : vector<16xf32>
    %486 = vector.multi_reduction <add>, %485, %cst_137 [1] : vector<16x16xf32> to vector<16xf32>
    %487 = vector.shape_cast %486 : vector<16xf32> to vector<16x1xf32>
    %488 = tpu.reciprocal %487 {approx = true} : vector<16x1xf32> -> vector<16x1xf32>
    %489 = vector.broadcast %488 : vector<16x1xf32> to vector<16x16xf32>
    %490 = arith.mulf %485, %489 : vector<16x16xf32>
    %491 = vector.extract_strided_slice %410 {offsets = [32, 0], sizes = [16, 32], strides = [1, 1]} : vector<64x32xf32> to vector<16x32xf32>
    %cst_138 = arith.constant dense<0.000000e+00> : vector<16x32xf32>
    %492 = tpu.matmul %490, %491, %cst_138 {dimension_numbers = #tpu.dot_dimension_numbers<[1], [0], [0], [1], [0, 0, 1, 1], [], []>} : vector<16x16xf32>, vector<16x32xf32>, vector<16x32xf32> -> vector<16x32xf32>
    %493 = arith.addf %463, %492 : vector<16x32xf32>
    %cst_139 = arith.constant dense<0xFF800000> : vector<16xf32>
    %494 = vector.multi_reduction <maximumf>, %480, %cst_139 [1] : vector<16x16xf32> to vector<16xf32>
    %495 = vector.shape_cast %494 : vector<16xf32> to vector<16x1xf32>
    %496 = vector.broadcast %495 : vector<16x1xf32> to vector<16x16xf32>
    %497 = arith.subf %480, %496 : vector<16x16xf32>
    %498 = math.exp %497 : vector<16x16xf32>
    %cst_140 = arith.constant dense<0.000000e+00> : vector<16xf32>
    %499 = vector.multi_reduction <add>, %498, %cst_140 [1] : vector<16x16xf32> to vector<16xf32>
    %500 = vector.shape_cast %499 : vector<16xf32> to vector<16x1xf32>
    %501 = tpu.reciprocal %500 {approx = true} : vector<16x1xf32> -> vector<16x1xf32>
    %502 = vector.broadcast %501 : vector<16x1xf32> to vector<16x16xf32>
    %503 = arith.mulf %498, %502 : vector<16x16xf32>
    %504 = vector.extract_strided_slice %410 {offsets = [0, 0], sizes = [16, 32], strides = [1, 1]} : vector<64x32xf32> to vector<16x32xf32>
    %cst_141 = arith.constant dense<0.000000e+00> : vector<16x32xf32>
    %505 = tpu.matmul %503, %504, %cst_141 {dimension_numbers = #tpu.dot_dimension_numbers<[1], [0], [0], [1], [0, 0, 1, 1], [], []>} : vector<16x16xf32>, vector<16x32xf32>, vector<16x32xf32> -> vector<16x32xf32>
    %506 = arith.addf %476, %505 : vector<16x32xf32>
    %507 = vector.extract_strided_slice %404 {offsets = [0, 0], sizes = [16, 32], strides = [1, 1]} : vector<64x32xf32> to vector<16x32xf32>
    %cst_142 = arith.constant dense<0.000000e+00> : vector<16x16xf32>
    %508 = tpu.matmul %507, %414, %cst_142 {dimension_numbers = #tpu.dot_dimension_numbers<[1], [1], [0], [0], [0, 0, 1, 0], [], []>} : vector<16x32xf32>, vector<16x32xf32>, vector<16x16xf32> -> vector<16x16xf32>
    %509 = vector.extract_strided_slice %404 {offsets = [32, 0], sizes = [16, 32], strides = [1, 1]} : vector<64x32xf32> to vector<16x32xf32>
    %cst_143 = arith.constant dense<0.000000e+00> : vector<16x16xf32>
    %510 = tpu.matmul %509, %413, %cst_143 {dimension_numbers = #tpu.dot_dimension_numbers<[1], [1], [0], [0], [0, 0, 1, 0], [], []>} : vector<16x32xf32>, vector<16x32xf32>, vector<16x16xf32> -> vector<16x16xf32>
    %cst_144 = arith.constant dense<0xFF800000> : vector<16xf32>
    %511 = vector.multi_reduction <maximumf>, %508, %cst_144 [1] : vector<16x16xf32> to vector<16xf32>
    %512 = vector.shape_cast %511 : vector<16xf32> to vector<16x1xf32>
    %513 = vector.broadcast %512 : vector<16x1xf32> to vector<16x16xf32>
    %514 = arith.subf %508, %513 : vector<16x16xf32>
    %515 = math.exp %514 : vector<16x16xf32>
    %cst_145 = arith.constant dense<0.000000e+00> : vector<16xf32>
    %516 = vector.multi_reduction <add>, %515, %cst_145 [1] : vector<16x16xf32> to vector<16xf32>
    %517 = vector.shape_cast %516 : vector<16xf32> to vector<16x1xf32>
    %518 = tpu.reciprocal %517 {approx = true} : vector<16x1xf32> -> vector<16x1xf32>
    %519 = vector.broadcast %518 : vector<16x1xf32> to vector<16x16xf32>
    %520 = arith.mulf %515, %519 : vector<16x16xf32>
    %521 = vector.extract_strided_slice %412 {offsets = [32, 0], sizes = [16, 32], strides = [1, 1]} : vector<64x32xf32> to vector<16x32xf32>
    %cst_146 = arith.constant dense<0.000000e+00> : vector<16x32xf32>
    %522 = tpu.matmul %520, %521, %cst_146 {dimension_numbers = #tpu.dot_dimension_numbers<[1], [0], [0], [1], [0, 0, 1, 1], [], []>} : vector<16x16xf32>, vector<16x32xf32>, vector<16x32xf32> -> vector<16x32xf32>
    %523 = arith.addf %493, %522 : vector<16x32xf32>
    %cst_147 = arith.constant dense<0xFF800000> : vector<16xf32>
    %524 = vector.multi_reduction <maximumf>, %510, %cst_147 [1] : vector<16x16xf32> to vector<16xf32>
    %525 = vector.shape_cast %524 : vector<16xf32> to vector<16x1xf32>
    %526 = vector.broadcast %525 : vector<16x1xf32> to vector<16x16xf32>
    %527 = arith.subf %510, %526 : vector<16x16xf32>
    %528 = math.exp %527 : vector<16x16xf32>
    %cst_148 = arith.constant dense<0.000000e+00> : vector<16xf32>
    %529 = vector.multi_reduction <add>, %528, %cst_148 [1] : vector<16x16xf32> to vector<16xf32>
    %530 = vector.shape_cast %529 : vector<16xf32> to vector<16x1xf32>
    %531 = tpu.reciprocal %530 {approx = true} : vector<16x1xf32> -> vector<16x1xf32>
    %532 = vector.broadcast %531 : vector<16x1xf32> to vector<16x16xf32>
    %533 = arith.mulf %528, %532 : vector<16x16xf32>
    %534 = vector.extract_strided_slice %412 {offsets = [0, 0], sizes = [16, 32], strides = [1, 1]} : vector<64x32xf32> to vector<16x32xf32>
    %cst_149 = arith.constant dense<0.000000e+00> : vector<16x32xf32>
    %535 = tpu.matmul %533, %534, %cst_149 {dimension_numbers = #tpu.dot_dimension_numbers<[1], [0], [0], [1], [0, 0, 1, 1], [], []>} : vector<16x16xf32>, vector<16x32xf32>, vector<16x32xf32> -> vector<16x32xf32>
    %536 = arith.addf %506, %535 : vector<16x32xf32>
    %537 = vector.extract_strided_slice %394 {offsets = [16, 0], sizes = [16, 32], strides = [1, 1]} : vector<64x32xf32> to vector<16x32xf32>
    %538 = vector.extract_strided_slice %394 {offsets = [48, 0], sizes = [16, 32], strides = [1, 1]} : vector<64x32xf32> to vector<16x32xf32>
    %cst_150 = arith.constant 0.000000e+00 : f32
    %539 = vector.broadcast %cst_150 : f32 to vector<16x32xf32>
    %cst_151 = arith.constant 0.000000e+00 : f32
    %540 = vector.broadcast %cst_151 : f32 to vector<16x32xf32>
    %541 = vector.extract_strided_slice %398 {offsets = [16, 0], sizes = [16, 32], strides = [1, 1]} : vector<64x32xf32> to vector<16x32xf32>
    %cst_152 = arith.constant dense<0.000000e+00> : vector<16x16xf32>
    %542 = tpu.matmul %541, %538, %cst_152 {dimension_numbers = #tpu.dot_dimension_numbers<[1], [1], [0], [0], [0, 0, 1, 0], [], []>} : vector<16x32xf32>, vector<16x32xf32>, vector<16x16xf32> -> vector<16x16xf32>
    %543 = vector.extract_strided_slice %398 {offsets = [48, 0], sizes = [16, 32], strides = [1, 1]} : vector<64x32xf32> to vector<16x32xf32>
    %cst_153 = arith.constant dense<0.000000e+00> : vector<16x16xf32>
    %544 = tpu.matmul %543, %537, %cst_153 {dimension_numbers = #tpu.dot_dimension_numbers<[1], [1], [0], [0], [0, 0, 1, 0], [], []>} : vector<16x32xf32>, vector<16x32xf32>, vector<16x16xf32> -> vector<16x16xf32>
    %cst_154 = arith.constant dense<0xFF800000> : vector<16xf32>
    %545 = vector.multi_reduction <maximumf>, %542, %cst_154 [1] : vector<16x16xf32> to vector<16xf32>
    %546 = vector.shape_cast %545 : vector<16xf32> to vector<16x1xf32>
    %547 = vector.broadcast %546 : vector<16x1xf32> to vector<16x16xf32>
    %548 = arith.subf %542, %547 : vector<16x16xf32>
    %549 = math.exp %548 : vector<16x16xf32>
    %cst_155 = arith.constant dense<0.000000e+00> : vector<16xf32>
    %550 = vector.multi_reduction <add>, %549, %cst_155 [1] : vector<16x16xf32> to vector<16xf32>
    %551 = vector.shape_cast %550 : vector<16xf32> to vector<16x1xf32>
    %552 = tpu.reciprocal %551 {approx = true} : vector<16x1xf32> -> vector<16x1xf32>
    %553 = vector.broadcast %552 : vector<16x1xf32> to vector<16x16xf32>
    %554 = arith.mulf %549, %553 : vector<16x16xf32>
    %555 = vector.extract_strided_slice %406 {offsets = [48, 0], sizes = [16, 32], strides = [1, 1]} : vector<64x32xf32> to vector<16x32xf32>
    %cst_156 = arith.constant dense<0.000000e+00> : vector<16x32xf32>
    %556 = tpu.matmul %554, %555, %cst_156 {dimension_numbers = #tpu.dot_dimension_numbers<[1], [0], [0], [1], [0, 0, 1, 1], [], []>} : vector<16x16xf32>, vector<16x32xf32>, vector<16x32xf32> -> vector<16x32xf32>
    %557 = arith.addf %539, %556 : vector<16x32xf32>
    %cst_157 = arith.constant dense<0xFF800000> : vector<16xf32>
    %558 = vector.multi_reduction <maximumf>, %544, %cst_157 [1] : vector<16x16xf32> to vector<16xf32>
    %559 = vector.shape_cast %558 : vector<16xf32> to vector<16x1xf32>
    %560 = vector.broadcast %559 : vector<16x1xf32> to vector<16x16xf32>
    %561 = arith.subf %544, %560 : vector<16x16xf32>
    %562 = math.exp %561 : vector<16x16xf32>
    %cst_158 = arith.constant dense<0.000000e+00> : vector<16xf32>
    %563 = vector.multi_reduction <add>, %562, %cst_158 [1] : vector<16x16xf32> to vector<16xf32>
    %564 = vector.shape_cast %563 : vector<16xf32> to vector<16x1xf32>
    %565 = tpu.reciprocal %564 {approx = true} : vector<16x1xf32> -> vector<16x1xf32>
    %566 = vector.broadcast %565 : vector<16x1xf32> to vector<16x16xf32>
    %567 = arith.mulf %562, %566 : vector<16x16xf32>
    %568 = vector.extract_strided_slice %406 {offsets = [16, 0], sizes = [16, 32], strides = [1, 1]} : vector<64x32xf32> to vector<16x32xf32>
    %cst_159 = arith.constant dense<0.000000e+00> : vector<16x32xf32>
    %569 = tpu.matmul %567, %568, %cst_159 {dimension_numbers = #tpu.dot_dimension_numbers<[1], [0], [0], [1], [0, 0, 1, 1], [], []>} : vector<16x16xf32>, vector<16x32xf32>, vector<16x32xf32> -> vector<16x32xf32>
    %570 = arith.addf %540, %569 : vector<16x32xf32>
    %571 = vector.extract_strided_slice %400 {offsets = [16, 0], sizes = [16, 32], strides = [1, 1]} : vector<64x32xf32> to vector<16x32xf32>
    %cst_160 = arith.constant dense<0.000000e+00> : vector<16x16xf32>
    %572 = tpu.matmul %571, %538, %cst_160 {dimension_numbers = #tpu.dot_dimension_numbers<[1], [1], [0], [0], [0, 0, 1, 0], [], []>} : vector<16x32xf32>, vector<16x32xf32>, vector<16x16xf32> -> vector<16x16xf32>
    %573 = vector.extract_strided_slice %400 {offsets = [48, 0], sizes = [16, 32], strides = [1, 1]} : vector<64x32xf32> to vector<16x32xf32>
    %cst_161 = arith.constant dense<0.000000e+00> : vector<16x16xf32>
    %574 = tpu.matmul %573, %537, %cst_161 {dimension_numbers = #tpu.dot_dimension_numbers<[1], [1], [0], [0], [0, 0, 1, 0], [], []>} : vector<16x32xf32>, vector<16x32xf32>, vector<16x16xf32> -> vector<16x16xf32>
    %cst_162 = arith.constant dense<0xFF800000> : vector<16xf32>
    %575 = vector.multi_reduction <maximumf>, %572, %cst_162 [1] : vector<16x16xf32> to vector<16xf32>
    %576 = vector.shape_cast %575 : vector<16xf32> to vector<16x1xf32>
    %577 = vector.broadcast %576 : vector<16x1xf32> to vector<16x16xf32>
    %578 = arith.subf %572, %577 : vector<16x16xf32>
    %579 = math.exp %578 : vector<16x16xf32>
    %cst_163 = arith.constant dense<0.000000e+00> : vector<16xf32>
    %580 = vector.multi_reduction <add>, %579, %cst_163 [1] : vector<16x16xf32> to vector<16xf32>
    %581 = vector.shape_cast %580 : vector<16xf32> to vector<16x1xf32>
    %582 = tpu.reciprocal %581 {approx = true} : vector<16x1xf32> -> vector<16x1xf32>
    %583 = vector.broadcast %582 : vector<16x1xf32> to vector<16x16xf32>
    %584 = arith.mulf %579, %583 : vector<16x16xf32>
    %585 = vector.extract_strided_slice %408 {offsets = [48, 0], sizes = [16, 32], strides = [1, 1]} : vector<64x32xf32> to vector<16x32xf32>
    %cst_164 = arith.constant dense<0.000000e+00> : vector<16x32xf32>
    %586 = tpu.matmul %584, %585, %cst_164 {dimension_numbers = #tpu.dot_dimension_numbers<[1], [0], [0], [1], [0, 0, 1, 1], [], []>} : vector<16x16xf32>, vector<16x32xf32>, vector<16x32xf32> -> vector<16x32xf32>
    %587 = arith.addf %557, %586 : vector<16x32xf32>
    %cst_165 = arith.constant dense<0xFF800000> : vector<16xf32>
    %588 = vector.multi_reduction <maximumf>, %574, %cst_165 [1] : vector<16x16xf32> to vector<16xf32>
    %589 = vector.shape_cast %588 : vector<16xf32> to vector<16x1xf32>
    %590 = vector.broadcast %589 : vector<16x1xf32> to vector<16x16xf32>
    %591 = arith.subf %574, %590 : vector<16x16xf32>
    %592 = math.exp %591 : vector<16x16xf32>
    %cst_166 = arith.constant dense<0.000000e+00> : vector<16xf32>
    %593 = vector.multi_reduction <add>, %592, %cst_166 [1] : vector<16x16xf32> to vector<16xf32>
    %594 = vector.shape_cast %593 : vector<16xf32> to vector<16x1xf32>
    %595 = tpu.reciprocal %594 {approx = true} : vector<16x1xf32> -> vector<16x1xf32>
    %596 = vector.broadcast %595 : vector<16x1xf32> to vector<16x16xf32>
    %597 = arith.mulf %592, %596 : vector<16x16xf32>
    %598 = vector.extract_strided_slice %408 {offsets = [16, 0], sizes = [16, 32], strides = [1, 1]} : vector<64x32xf32> to vector<16x32xf32>
    %cst_167 = arith.constant dense<0.000000e+00> : vector<16x32xf32>
    %599 = tpu.matmul %597, %598, %cst_167 {dimension_numbers = #tpu.dot_dimension_numbers<[1], [0], [0], [1], [0, 0, 1, 1], [], []>} : vector<16x16xf32>, vector<16x32xf32>, vector<16x32xf32> -> vector<16x32xf32>
    %600 = arith.addf %570, %599 : vector<16x32xf32>
    %601 = vector.extract_strided_slice %402 {offsets = [16, 0], sizes = [16, 32], strides = [1, 1]} : vector<64x32xf32> to vector<16x32xf32>
    %cst_168 = arith.constant dense<0.000000e+00> : vector<16x16xf32>
    %602 = tpu.matmul %601, %538, %cst_168 {dimension_numbers = #tpu.dot_dimension_numbers<[1], [1], [0], [0], [0, 0, 1, 0], [], []>} : vector<16x32xf32>, vector<16x32xf32>, vector<16x16xf32> -> vector<16x16xf32>
    %603 = vector.extract_strided_slice %402 {offsets = [48, 0], sizes = [16, 32], strides = [1, 1]} : vector<64x32xf32> to vector<16x32xf32>
    %cst_169 = arith.constant dense<0.000000e+00> : vector<16x16xf32>
    %604 = tpu.matmul %603, %537, %cst_169 {dimension_numbers = #tpu.dot_dimension_numbers<[1], [1], [0], [0], [0, 0, 1, 0], [], []>} : vector<16x32xf32>, vector<16x32xf32>, vector<16x16xf32> -> vector<16x16xf32>
    %cst_170 = arith.constant dense<0xFF800000> : vector<16xf32>
    %605 = vector.multi_reduction <maximumf>, %602, %cst_170 [1] : vector<16x16xf32> to vector<16xf32>
    %606 = vector.shape_cast %605 : vector<16xf32> to vector<16x1xf32>
    %607 = vector.broadcast %606 : vector<16x1xf32> to vector<16x16xf32>
    %608 = arith.subf %602, %607 : vector<16x16xf32>
    %609 = math.exp %608 : vector<16x16xf32>
    %cst_171 = arith.constant dense<0.000000e+00> : vector<16xf32>
    %610 = vector.multi_reduction <add>, %609, %cst_171 [1] : vector<16x16xf32> to vector<16xf32>
    %611 = vector.shape_cast %610 : vector<16xf32> to vector<16x1xf32>
    %612 = tpu.reciprocal %611 {approx = true} : vector<16x1xf32> -> vector<16x1xf32>
    %613 = vector.broadcast %612 : vector<16x1xf32> to vector<16x16xf32>
    %614 = arith.mulf %609, %613 : vector<16x16xf32>
    %615 = vector.extract_strided_slice %410 {offsets = [48, 0], sizes = [16, 32], strides = [1, 1]} : vector<64x32xf32> to vector<16x32xf32>
    %cst_172 = arith.constant dense<0.000000e+00> : vector<16x32xf32>
    %616 = tpu.matmul %614, %615, %cst_172 {dimension_numbers = #tpu.dot_dimension_numbers<[1], [0], [0], [1], [0, 0, 1, 1], [], []>} : vector<16x16xf32>, vector<16x32xf32>, vector<16x32xf32> -> vector<16x32xf32>
    %617 = arith.addf %587, %616 : vector<16x32xf32>
    %cst_173 = arith.constant dense<0xFF800000> : vector<16xf32>
    %618 = vector.multi_reduction <maximumf>, %604, %cst_173 [1] : vector<16x16xf32> to vector<16xf32>
    %619 = vector.shape_cast %618 : vector<16xf32> to vector<16x1xf32>
    %620 = vector.broadcast %619 : vector<16x1xf32> to vector<16x16xf32>
    %621 = arith.subf %604, %620 : vector<16x16xf32>
    %622 = math.exp %621 : vector<16x16xf32>
    %cst_174 = arith.constant dense<0.000000e+00> : vector<16xf32>
    %623 = vector.multi_reduction <add>, %622, %cst_174 [1] : vector<16x16xf32> to vector<16xf32>
    %624 = vector.shape_cast %623 : vector<16xf32> to vector<16x1xf32>
    %625 = tpu.reciprocal %624 {approx = true} : vector<16x1xf32> -> vector<16x1xf32>
    %626 = vector.broadcast %625 : vector<16x1xf32> to vector<16x16xf32>
    %627 = arith.mulf %622, %626 : vector<16x16xf32>
    %628 = vector.extract_strided_slice %410 {offsets = [16, 0], sizes = [16, 32], strides = [1, 1]} : vector<64x32xf32> to vector<16x32xf32>
    %cst_175 = arith.constant dense<0.000000e+00> : vector<16x32xf32>
    %629 = tpu.matmul %627, %628, %cst_175 {dimension_numbers = #tpu.dot_dimension_numbers<[1], [0], [0], [1], [0, 0, 1, 1], [], []>} : vector<16x16xf32>, vector<16x32xf32>, vector<16x32xf32> -> vector<16x32xf32>
    %630 = arith.addf %600, %629 : vector<16x32xf32>
    %631 = vector.extract_strided_slice %404 {offsets = [16, 0], sizes = [16, 32], strides = [1, 1]} : vector<64x32xf32> to vector<16x32xf32>
    %cst_176 = arith.constant dense<0.000000e+00> : vector<16x16xf32>
    %632 = tpu.matmul %631, %538, %cst_176 {dimension_numbers = #tpu.dot_dimension_numbers<[1], [1], [0], [0], [0, 0, 1, 0], [], []>} : vector<16x32xf32>, vector<16x32xf32>, vector<16x16xf32> -> vector<16x16xf32>
    %633 = vector.extract_strided_slice %404 {offsets = [48, 0], sizes = [16, 32], strides = [1, 1]} : vector<64x32xf32> to vector<16x32xf32>
    %cst_177 = arith.constant dense<0.000000e+00> : vector<16x16xf32>
    %634 = tpu.matmul %633, %537, %cst_177 {dimension_numbers = #tpu.dot_dimension_numbers<[1], [1], [0], [0], [0, 0, 1, 0], [], []>} : vector<16x32xf32>, vector<16x32xf32>, vector<16x16xf32> -> vector<16x16xf32>
    %cst_178 = arith.constant dense<0xFF800000> : vector<16xf32>
    %635 = vector.multi_reduction <maximumf>, %632, %cst_178 [1] : vector<16x16xf32> to vector<16xf32>
    %636 = vector.shape_cast %635 : vector<16xf32> to vector<16x1xf32>
    %637 = vector.broadcast %636 : vector<16x1xf32> to vector<16x16xf32>
    %638 = arith.subf %632, %637 : vector<16x16xf32>
    %639 = math.exp %638 : vector<16x16xf32>
    %cst_179 = arith.constant dense<0.000000e+00> : vector<16xf32>
    %640 = vector.multi_reduction <add>, %639, %cst_179 [1] : vector<16x16xf32> to vector<16xf32>
    %641 = vector.shape_cast %640 : vector<16xf32> to vector<16x1xf32>
    %642 = tpu.reciprocal %641 {approx = true} : vector<16x1xf32> -> vector<16x1xf32>
    %643 = vector.broadcast %642 : vector<16x1xf32> to vector<16x16xf32>
    %644 = arith.mulf %639, %643 : vector<16x16xf32>
    %645 = vector.extract_strided_slice %412 {offsets = [48, 0], sizes = [16, 32], strides = [1, 1]} : vector<64x32xf32> to vector<16x32xf32>
    %cst_180 = arith.constant dense<0.000000e+00> : vector<16x32xf32>
    %646 = tpu.matmul %644, %645, %cst_180 {dimension_numbers = #tpu.dot_dimension_numbers<[1], [0], [0], [1], [0, 0, 1, 1], [], []>} : vector<16x16xf32>, vector<16x32xf32>, vector<16x32xf32> -> vector<16x32xf32>
    %647 = arith.addf %617, %646 : vector<16x32xf32>
    %cst_181 = arith.constant dense<0xFF800000> : vector<16xf32>
    %648 = vector.multi_reduction <maximumf>, %634, %cst_181 [1] : vector<16x16xf32> to vector<16xf32>
    %649 = vector.shape_cast %648 : vector<16xf32> to vector<16x1xf32>
    %650 = vector.broadcast %649 : vector<16x1xf32> to vector<16x16xf32>
    %651 = arith.subf %634, %650 : vector<16x16xf32>
    %652 = math.exp %651 : vector<16x16xf32>
    %cst_182 = arith.constant dense<0.000000e+00> : vector<16xf32>
    %653 = vector.multi_reduction <add>, %652, %cst_182 [1] : vector<16x16xf32> to vector<16xf32>
    %654 = vector.shape_cast %653 : vector<16xf32> to vector<16x1xf32>
    %655 = tpu.reciprocal %654 {approx = true} : vector<16x1xf32> -> vector<16x1xf32>
    %656 = vector.broadcast %655 : vector<16x1xf32> to vector<16x16xf32>
    %657 = arith.mulf %652, %656 : vector<16x16xf32>
    %658 = vector.extract_strided_slice %412 {offsets = [16, 0], sizes = [16, 32], strides = [1, 1]} : vector<64x32xf32> to vector<16x32xf32>
    %cst_183 = arith.constant dense<0.000000e+00> : vector<16x32xf32>
    %659 = tpu.matmul %657, %658, %cst_183 {dimension_numbers = #tpu.dot_dimension_numbers<[1], [0], [0], [1], [0, 0, 1, 1], [], []>} : vector<16x16xf32>, vector<16x32xf32>, vector<16x32xf32> -> vector<16x32xf32>
    %660 = arith.addf %630, %659 : vector<16x32xf32>
    %661 = tpu.concatenate %523, %647 in 0 : vector<16x32xf32>, vector<16x32xf32> -> vector<32x32xf32>
    %662 = tpu.concatenate %536, %660 in 0 : vector<16x32xf32>, vector<16x32xf32> -> vector<32x32xf32>
    %c32 = arith.constant 32 : index
    %c0_184 = arith.constant 0 : index
    %663 = vector.load %arg5[%c32, %c0_184] : memref<64x64xf32, #tpu.memory_space<vmem>>, vector<32x64xf32>
    %664 = vector.extract_strided_slice %396 {offsets = [0, 0], sizes = [32, 64], strides = [1, 1]} : vector<64x64xf32> to vector<32x64xf32>
    %cst_185 = arith.constant dense<0.000000e+00> : vector<32x64xf32>
    %665 = tpu.matmul %661, %663, %cst_185 {dimension_numbers = #tpu.dot_dimension_numbers<[1], [0], [0], [1], [0, 0, 1, 1], [], []>} : vector<32x32xf32>, vector<32x64xf32>, vector<32x64xf32> -> vector<32x64xf32>
    %666 = arith.addf %664, %665 : vector<32x64xf32>
    %667 = vector.extract_strided_slice %396 {offsets = [32, 0], sizes = [32, 64], strides = [1, 1]} : vector<64x64xf32> to vector<32x64xf32>
    %cst_186 = arith.constant dense<0.000000e+00> : vector<32x64xf32>
    %668 = tpu.matmul %662, %663, %cst_186 {dimension_numbers = #tpu.dot_dimension_numbers<[1], [0], [0], [1], [0, 0, 1, 1], [], []>} : vector<32x32xf32>, vector<32x64xf32>, vector<32x64xf32> -> vector<32x64xf32>
    %669 = arith.addf %667, %668 : vector<32x64xf32>
    %c3 = arith.constant 3 : index
    %c0_187 = arith.constant 0 : index
    %670 = vector.load %arg7[%c3, %c0_187] : memref<6x64xf32, #tpu.memory_space<vmem>>, vector<1x64xf32>
    %c4 = arith.constant 4 : index
    %c0_188 = arith.constant 0 : index
    %671 = vector.load %arg7[%c4, %c0_188] : memref<6x64xf32, #tpu.memory_space<vmem>>, vector<1x64xf32>
    %c64 = arith.constant 64 : index
    %c0_189 = arith.constant 0 : index
    %672 = vector.load %arg6[%c64, %c0_189] : memref<128x32xf32, #tpu.memory_space<vmem>>, vector<64x32xf32>
    %c5 = arith.constant 5 : index
    %c0_190 = arith.constant 0 : index
    %673 = vector.load %arg7[%c5, %c0_190] : memref<6x64xf32, #tpu.memory_space<vmem>>, vector<1x32xf32>
    %674 = vector.extract_strided_slice %388 {offsets = [0, 0], sizes = [32, 32], strides = [1, 1]} : vector<64x32xf32> to vector<32x32xf32>
    %cst_191 = arith.constant dense<0.000000e+00> : vector<32xf32>
    %675 = vector.multi_reduction <add>, %666, %cst_191 [1] : vector<32x64xf32> to vector<32xf32>
    %676 = vector.shape_cast %675 : vector<32xf32> to vector<32x1xf32>
    %cst_192 = arith.constant 6.400000e+01 : f32
    %677 = vector.broadcast %cst_192 : f32 to vector<32x1xf32>
    %678 = arith.divf %676, %677 : vector<32x1xf32>
    %679 = vector.broadcast %678 : vector<32x1xf32> to vector<32x64xf32>
    %680 = arith.subf %666, %679 : vector<32x64xf32>
    %681 = arith.mulf %680, %680 : vector<32x64xf32>
    %cst_193 = arith.constant dense<0.000000e+00> : vector<32xf32>
    %682 = vector.multi_reduction <add>, %681, %cst_193 [1] : vector<32x64xf32> to vector<32xf32>
    %683 = vector.shape_cast %682 : vector<32xf32> to vector<32x1xf32>
    %cst_194 = arith.constant 6.400000e+01 : f32
    %684 = vector.broadcast %cst_194 : f32 to vector<32x1xf32>
    %685 = arith.divf %683, %684 : vector<32x1xf32>
    %686 = vector.broadcast %678 : vector<32x1xf32> to vector<32x64xf32>
    %687 = arith.subf %666, %686 : vector<32x64xf32>
    %cst_195 = arith.constant 9.99999974E-6 : f32
    %688 = vector.broadcast %cst_195 : f32 to vector<32x1xf32>
    %689 = arith.addf %685, %688 : vector<32x1xf32>
    %690 = math.rsqrt %689 : vector<32x1xf32>
    %691 = vector.broadcast %690 : vector<32x1xf32> to vector<32x64xf32>
    %692 = arith.mulf %687, %691 : vector<32x64xf32>
    %693 = vector.broadcast %670 : vector<1x64xf32> to vector<32x64xf32>
    %694 = arith.mulf %692, %693 : vector<32x64xf32>
    %695 = vector.broadcast %671 : vector<1x64xf32> to vector<32x64xf32>
    %696 = arith.addf %694, %695 : vector<32x64xf32>
    %cst_196 = arith.constant 5.000000e-01 : f32
    %697 = vector.broadcast %cst_196 : f32 to vector<32x64xf32>
    %698 = arith.mulf %697, %696 : vector<32x64xf32>
    %cst_197 = arith.constant 0.707106769 : f32
    %699 = vector.broadcast %cst_197 : f32 to vector<32x64xf32>
    %700 = arith.mulf %696, %699 : vector<32x64xf32>
    %701 = math.absf %700 : vector<32x64xf32>
    %cst_198 = arith.constant 0.327591091 : f32
    %702 = vector.broadcast %cst_198 : f32 to vector<32x64xf32>
    %703 = arith.mulf %702, %701 : vector<32x64xf32>
    %cst_199 = arith.constant 1.000000e+00 : f32
    %704 = vector.broadcast %cst_199 : f32 to vector<32x64xf32>
    %705 = arith.addf %704, %703 : vector<32x64xf32>
    %cst_200 = arith.constant 1.000000e+00 : f32
    %706 = vector.broadcast %cst_200 : f32 to vector<32x64xf32>
    %707 = arith.divf %706, %705 : vector<32x64xf32>
    %cst_201 = arith.constant 1.06140542 : f32
    %708 = vector.broadcast %cst_201 : f32 to vector<32x64xf32>
    %709 = arith.mulf %708, %707 : vector<32x64xf32>
    %cst_202 = arith.constant -1.45315206 : f32
    %710 = vector.broadcast %cst_202 : f32 to vector<32x64xf32>
    %711 = arith.addf %709, %710 : vector<32x64xf32>
    %712 = arith.mulf %711, %707 : vector<32x64xf32>
    %cst_203 = arith.constant 1.42141378 : f32
    %713 = vector.broadcast %cst_203 : f32 to vector<32x64xf32>
    %714 = arith.addf %712, %713 : vector<32x64xf32>
    %715 = arith.mulf %714, %707 : vector<32x64xf32>
    %cst_204 = arith.constant -0.284496725 : f32
    %716 = vector.broadcast %cst_204 : f32 to vector<32x64xf32>
    %717 = arith.addf %715, %716 : vector<32x64xf32>
    %718 = arith.mulf %717, %707 : vector<32x64xf32>
    %cst_205 = arith.constant 0.254829586 : f32
    %719 = vector.broadcast %cst_205 : f32 to vector<32x64xf32>
    %720 = arith.addf %718, %719 : vector<32x64xf32>
    %721 = arith.mulf %720, %707 : vector<32x64xf32>
    %cst_206 = arith.constant 0.000000e+00 : f32
    %722 = vector.broadcast %cst_206 : f32 to vector<32x64xf32>
    %723 = arith.subf %722, %701 : vector<32x64xf32>
    %724 = arith.mulf %723, %701 : vector<32x64xf32>
    %725 = math.exp %724 : vector<32x64xf32>
    %726 = arith.mulf %721, %725 : vector<32x64xf32>
    %cst_207 = arith.constant 1.000000e+00 : f32
    %727 = vector.broadcast %cst_207 : f32 to vector<32x64xf32>
    %728 = arith.subf %727, %726 : vector<32x64xf32>
    %cst_208 = arith.constant 0.000000e+00 : f32
    %729 = vector.broadcast %cst_208 : f32 to vector<32x64xf32>
    %730 = arith.cmpf olt, %700, %729 : vector<32x64xf32>
    %cst_209 = arith.constant 0.000000e+00 : f32
    %731 = vector.broadcast %cst_209 : f32 to vector<32x64xf32>
    %732 = arith.subf %731, %728 : vector<32x64xf32>
    %733 = arith.select %730, %732, %728 : vector<32x64xi1>, vector<32x64xf32>
    %cst_210 = arith.constant 1.000000e+00 : f32
    %734 = vector.broadcast %cst_210 : f32 to vector<32x64xf32>
    %735 = arith.addf %734, %733 : vector<32x64xf32>
    %736 = arith.mulf %698, %735 : vector<32x64xf32>
    %cst_211 = arith.constant dense<0.000000e+00> : vector<32x32xf32>
    %737 = tpu.matmul %736, %672, %cst_211 {dimension_numbers = #tpu.dot_dimension_numbers<[1], [0], [0], [1], [0, 0, 1, 1], [], []>} : vector<32x64xf32>, vector<64x32xf32>, vector<32x32xf32> -> vector<32x32xf32>
    %738 = arith.addf %674, %737 : vector<32x32xf32>
    %739 = vector.broadcast %673 : vector<1x32xf32> to vector<32x32xf32>
    %740 = arith.addf %738, %739 : vector<32x32xf32>
    %c3_212 = arith.constant 3 : index
    %c0_213 = arith.constant 0 : index
    %741 = vector.load %arg7[%c3_212, %c0_213] : memref<6x64xf32, #tpu.memory_space<vmem>>, vector<1x64xf32>
    %c4_214 = arith.constant 4 : index
    %c0_215 = arith.constant 0 : index
    %742 = vector.load %arg7[%c4_214, %c0_215] : memref<6x64xf32, #tpu.memory_space<vmem>>, vector<1x64xf32>
    %c64_216 = arith.constant 64 : index
    %c0_217 = arith.constant 0 : index
    %743 = vector.load %arg6[%c64_216, %c0_217] : memref<128x32xf32, #tpu.memory_space<vmem>>, vector<64x32xf32>
    %c5_218 = arith.constant 5 : index
    %c0_219 = arith.constant 0 : index
    %744 = vector.load %arg7[%c5_218, %c0_219] : memref<6x64xf32, #tpu.memory_space<vmem>>, vector<1x32xf32>
    %745 = vector.extract_strided_slice %388 {offsets = [32, 0], sizes = [32, 32], strides = [1, 1]} : vector<64x32xf32> to vector<32x32xf32>
    %cst_220 = arith.constant dense<0.000000e+00> : vector<32xf32>
    %746 = vector.multi_reduction <add>, %669, %cst_220 [1] : vector<32x64xf32> to vector<32xf32>
    %747 = vector.shape_cast %746 : vector<32xf32> to vector<32x1xf32>
    %cst_221 = arith.constant 6.400000e+01 : f32
    %748 = vector.broadcast %cst_221 : f32 to vector<32x1xf32>
    %749 = arith.divf %747, %748 : vector<32x1xf32>
    %750 = vector.broadcast %749 : vector<32x1xf32> to vector<32x64xf32>
    %751 = arith.subf %669, %750 : vector<32x64xf32>
    %752 = arith.mulf %751, %751 : vector<32x64xf32>
    %cst_222 = arith.constant dense<0.000000e+00> : vector<32xf32>
    %753 = vector.multi_reduction <add>, %752, %cst_222 [1] : vector<32x64xf32> to vector<32xf32>
    %754 = vector.shape_cast %753 : vector<32xf32> to vector<32x1xf32>
    %cst_223 = arith.constant 6.400000e+01 : f32
    %755 = vector.broadcast %cst_223 : f32 to vector<32x1xf32>
    %756 = arith.divf %754, %755 : vector<32x1xf32>
    %757 = vector.broadcast %749 : vector<32x1xf32> to vector<32x64xf32>
    %758 = arith.subf %669, %757 : vector<32x64xf32>
    %cst_224 = arith.constant 9.99999974E-6 : f32
    %759 = vector.broadcast %cst_224 : f32 to vector<32x1xf32>
    %760 = arith.addf %756, %759 : vector<32x1xf32>
    %761 = math.rsqrt %760 : vector<32x1xf32>
    %762 = vector.broadcast %761 : vector<32x1xf32> to vector<32x64xf32>
    %763 = arith.mulf %758, %762 : vector<32x64xf32>
    %764 = vector.broadcast %741 : vector<1x64xf32> to vector<32x64xf32>
    %765 = arith.mulf %763, %764 : vector<32x64xf32>
    %766 = vector.broadcast %742 : vector<1x64xf32> to vector<32x64xf32>
    %767 = arith.addf %765, %766 : vector<32x64xf32>
    %cst_225 = arith.constant 5.000000e-01 : f32
    %768 = vector.broadcast %cst_225 : f32 to vector<32x64xf32>
    %769 = arith.mulf %768, %767 : vector<32x64xf32>
    %cst_226 = arith.constant 0.707106769 : f32
    %770 = vector.broadcast %cst_226 : f32 to vector<32x64xf32>
    %771 = arith.mulf %767, %770 : vector<32x64xf32>
    %772 = math.absf %771 : vector<32x64xf32>
    %cst_227 = arith.constant 0.327591091 : f32
    %773 = vector.broadcast %cst_227 : f32 to vector<32x64xf32>
    %774 = arith.mulf %773, %772 : vector<32x64xf32>
    %cst_228 = arith.constant 1.000000e+00 : f32
    %775 = vector.broadcast %cst_228 : f32 to vector<32x64xf32>
    %776 = arith.addf %775, %774 : vector<32x64xf32>
    %cst_229 = arith.constant 1.000000e+00 : f32
    %777 = vector.broadcast %cst_229 : f32 to vector<32x64xf32>
    %778 = arith.divf %777, %776 : vector<32x64xf32>
    %cst_230 = arith.constant 1.06140542 : f32
    %779 = vector.broadcast %cst_230 : f32 to vector<32x64xf32>
    %780 = arith.mulf %779, %778 : vector<32x64xf32>
    %cst_231 = arith.constant -1.45315206 : f32
    %781 = vector.broadcast %cst_231 : f32 to vector<32x64xf32>
    %782 = arith.addf %780, %781 : vector<32x64xf32>
    %783 = arith.mulf %782, %778 : vector<32x64xf32>
    %cst_232 = arith.constant 1.42141378 : f32
    %784 = vector.broadcast %cst_232 : f32 to vector<32x64xf32>
    %785 = arith.addf %783, %784 : vector<32x64xf32>
    %786 = arith.mulf %785, %778 : vector<32x64xf32>
    %cst_233 = arith.constant -0.284496725 : f32
    %787 = vector.broadcast %cst_233 : f32 to vector<32x64xf32>
    %788 = arith.addf %786, %787 : vector<32x64xf32>
    %789 = arith.mulf %788, %778 : vector<32x64xf32>
    %cst_234 = arith.constant 0.254829586 : f32
    %790 = vector.broadcast %cst_234 : f32 to vector<32x64xf32>
    %791 = arith.addf %789, %790 : vector<32x64xf32>
    %792 = arith.mulf %791, %778 : vector<32x64xf32>
    %cst_235 = arith.constant 0.000000e+00 : f32
    %793 = vector.broadcast %cst_235 : f32 to vector<32x64xf32>
    %794 = arith.subf %793, %772 : vector<32x64xf32>
    %795 = arith.mulf %794, %772 : vector<32x64xf32>
    %796 = math.exp %795 : vector<32x64xf32>
    %797 = arith.mulf %792, %796 : vector<32x64xf32>
    %cst_236 = arith.constant 1.000000e+00 : f32
    %798 = vector.broadcast %cst_236 : f32 to vector<32x64xf32>
    %799 = arith.subf %798, %797 : vector<32x64xf32>
    %cst_237 = arith.constant 0.000000e+00 : f32
    %800 = vector.broadcast %cst_237 : f32 to vector<32x64xf32>
    %801 = arith.cmpf olt, %771, %800 : vector<32x64xf32>
    %cst_238 = arith.constant 0.000000e+00 : f32
    %802 = vector.broadcast %cst_238 : f32 to vector<32x64xf32>
    %803 = arith.subf %802, %799 : vector<32x64xf32>
    %804 = arith.select %801, %803, %799 : vector<32x64xi1>, vector<32x64xf32>
    %cst_239 = arith.constant 1.000000e+00 : f32
    %805 = vector.broadcast %cst_239 : f32 to vector<32x64xf32>
    %806 = arith.addf %805, %804 : vector<32x64xf32>
    %807 = arith.mulf %769, %806 : vector<32x64xf32>
    %cst_240 = arith.constant dense<0.000000e+00> : vector<32x32xf32>
    %808 = tpu.matmul %807, %743, %cst_240 {dimension_numbers = #tpu.dot_dimension_numbers<[1], [0], [0], [1], [0, 0, 1, 1], [], []>} : vector<32x64xf32>, vector<64x32xf32>, vector<32x32xf32> -> vector<32x32xf32>
    %809 = arith.addf %745, %808 : vector<32x32xf32>
    %810 = vector.broadcast %744 : vector<1x32xf32> to vector<32x32xf32>
    %811 = arith.addf %809, %810 : vector<32x32xf32>
    %812 = tpu.concatenate %740, %811 in 1 : vector<32x32xf32>, vector<32x32xf32> -> vector<32x64xf32>
    %c0_241 = arith.constant 0 : index
    %c0_242 = arith.constant 0 : index
    %813 = vector.load %arg8[%c0_241, %c0_242] : memref<32x64xf32, #tpu.memory_space<vmem>>, vector<32x64xf32>
    tpu.vector_store %arg8[%c0_241, %c0_242], %812 {strides = array<i32>} : memref<32x64xf32, #tpu.memory_space<vmem>>, vector<32x64xf32>,
    return
  }
  func.func @transform_0(%arg0: i32) -> (i32, i32) {
    %c0_i32 = arith.constant 0 : i32
    %c0_i32_0 = arith.constant 0 : i32
    %c0_i32_1 = arith.constant 0 : i32
    return %c0_i32, %c0_i32_0 : i32, i32
  }
  func.func @transform_1(%arg0: i32) -> (i32, i32, i32) {
    %c0_i32 = arith.constant 0 : i32
    %c0_i32_0 = arith.constant 0 : i32
    %c0_i32_1 = arith.constant 0 : i32
    %c0_i32_2 = arith.constant 0 : i32
    return %c0_i32, %c0_i32_0, %c0_i32_1 : i32, i32, i32
  }
  func.func @transform_2(%arg0: i32) -> (i32, i32) {
    %c0_i32 = arith.constant 0 : i32
    %c0_i32_0 = arith.constant 0 : i32
    %c0_i32_1 = arith.constant 0 : i32
    return %c0_i32, %c0_i32_0 : i32, i32
  }
  func.func @transform_3(%arg0: i32) -> (i32, i32) {
    %c0_i32 = arith.constant 0 : i32
    %c0_i32_0 = arith.constant 0 : i32
    %c0_i32_1 = arith.constant 0 : i32
    return %c0_i32, %c0_i32_0 : i32, i32
  }
  func.func @transform_4(%arg0: i32) -> (i32, i32) {
    %c0_i32 = arith.constant 0 : i32
    %c0_i32_0 = arith.constant 0 : i32
    %c0_i32_1 = arith.constant 0 : i32
    return %c0_i32, %c0_i32_0 : i32, i32
  }
  func.func @transform_5(%arg0: i32) -> (i32, i32) {
    %c0_i32 = arith.constant 0 : i32
    %c0_i32_0 = arith.constant 0 : i32
    %c0_i32_1 = arith.constant 0 : i32
    return %c0_i32, %c0_i32_0 : i32, i32
  }
  func.func @transform_6(%arg0: i32) -> (i32, i32) {
    %c0_i32 = arith.constant 0 : i32
    %c0_i32_0 = arith.constant 0 : i32
    %c0_i32_1 = arith.constant 0 : i32
    return %c0_i32, %c0_i32_0 : i32, i32
  }
  func.func @transform_7(%arg0: i32) -> (i32, i32) {
    %c0_i32 = arith.constant 0 : i32
    %c0_i32_0 = arith.constant 0 : i32
    %c0_i32_1 = arith.constant 0 : i32
    return %c0_i32, %c0_i32_0 : i32, i32
  }
}

</mosaic_0001>

<llo_original>
// kernel: tile.27
$region0: #{tile.27}
  %s0 = inlined_call_operand.vmem [shape: f32[2,1,16,4,8], index: 0, kind: input, shape index: {}]
  %s1 = inlined_call_operand.vmem [shape: f32[32,32], index: 1, kind: output, shape index: {}]
  $region1: #{tile.27} parent=0
    #allocation0 [shape = 'u8[131072]{0}', space=vmem, size = 0x20000, scoped, tag = 'scoped mem for input reshape']
    %s3 = sshllo.u32 0, 2
    %s4 = smul.addr 2, 31
    %s5 = scalar_lea.vmem %s0, %s4
    %v6 = vld [vmem:[%s5] sm:%s3]
    %s7 = scalar_lea.vmem [#allocation0], 248
    %8 = vst [vmem:[%s7] sm:%s3] %v6
    %s9 = smul.addr 2, 30
    %s10 = scalar_lea.vmem %s0, %s9
    %v11 = vld [vmem:[%s10] sm:%s3]
    %s12 = scalar_lea.vmem [#allocation0], 240
    %13 = vst [vmem:[%s12] sm:%s3] %v11
    %s14 = smul.addr 2, 29
    %s15 = scalar_lea.vmem %s0, %s14
    %v16 = vld [vmem:[%s15] sm:%s3]
    %s17 = scalar_lea.vmem [#allocation0], 232
    %18 = vst [vmem:[%s17] sm:%s3] %v16
    %s19 = smul.addr 2, 28
    %s20 = scalar_lea.vmem %s0, %s19
    %v21 = vld [vmem:[%s20] sm:%s3]
    %s22 = scalar_lea.vmem [#allocation0], 224
    %23 = vst [vmem:[%s22] sm:%s3] %v21
    %s24 = smul.addr 2, 27
    %s25 = scalar_lea.vmem %s0, %s24
    %v26 = vld [vmem:[%s25] sm:%s3]
    %s27 = scalar_lea.vmem [#allocation0], 216
    %28 = vst [vmem:[%s27] sm:%s3] %v26
    %s29 = smul.addr 2, 26
    %s30 = scalar_lea.vmem %s0, %s29
    %v31 = vld [vmem:[%s30] sm:%s3]
    %s32 = scalar_lea.vmem [#allocation0], 208
    %33 = vst [vmem:[%s32] sm:%s3] %v31
    %s34 = smul.addr 2, 25
    %s35 = scalar_lea.vmem %s0, %s34
    %v36 = vld [vmem:[%s35] sm:%s3]
    %s37 = scalar_lea.vmem [#allocation0], 200
    %38 = vst [vmem:[%s37] sm:%s3] %v36
    %s39 = smul.addr 2, 24
    %s40 = scalar_lea.vmem %s0, %s39
    %v41 = vld [vmem:[%s40] sm:%s3]
    %s42 = scalar_lea.vmem [#allocation0], 192
    %43 = vst [vmem:[%s42] sm:%s3] %v41
    %s44 = smul.addr 2, 23
    %s45 = scalar_lea.vmem %s0, %s44
    %v46 = vld [vmem:[%s45] sm:%s3]
    %s47 = scalar_lea.vmem [#allocation0], 184
    %48 = vst [vmem:[%s47] sm:%s3] %v46
    %s49 = smul.addr 2, 22
    %s50 = scalar_lea.vmem %s0, %s49
    %v51 = vld [vmem:[%s50] sm:%s3]
    %s52 = scalar_lea.vmem [#allocation0], 176
    %53 = vst [vmem:[%s52] sm:%s3] %v51
    %s54 = smul.addr 2, 21
    %s55 = scalar_lea.vmem %s0, %s54
    %v56 = vld [vmem:[%s55] sm:%s3]
    %s57 = scalar_lea.vmem [#allocation0], 168
    %58 = vst [vmem:[%s57] sm:%s3] %v56
    %s59 = smul.addr 2, 20
    %s60 = scalar_lea.vmem %s0, %s59
    %v61 = vld [vmem:[%s60] sm:%s3]
    %s62 = scalar_lea.vmem [#allocation0], 160
    %63 = vst [vmem:[%s62] sm:%s3] %v61
    %s64 = smul.addr 2, 19
    %s65 = scalar_lea.vmem %s0, %s64
    %v66 = vld [vmem:[%s65] sm:%s3]
    %s67 = scalar_lea.vmem [#allocation0], 152
    %68 = vst [vmem:[%s67] sm:%s3] %v66
    %s69 = smul.addr 2, 18
    %s70 = scalar_lea.vmem %s0, %s69
    %v71 = vld [vmem:[%s70] sm:%s3]
    %s72 = scalar_lea.vmem [#allocation0], 144
    %73 = vst [vmem:[%s72] sm:%s3] %v71
    %s74 = smul.addr 2, 17
    %s75 = scalar_lea.vmem %s0, %s74
    %v76 = vld [vmem:[%s75] sm:%s3]
    %s77 = scalar_lea.vmem [#allocation0], 136
    %78 = vst [vmem:[%s77] sm:%s3] %v76
    %s79 = smul.addr 2, 16
    %s80 = scalar_lea.vmem %s0, %s79
    %v81 = vld [vmem:[%s80] sm:%s3]
    %s82 = scalar_lea.vmem [#allocation0], 128
    %83 = vst [vmem:[%s82] sm:%s3] %v81
    %s84 = smul.addr 2, 15
    %s85 = scalar_lea.vmem %s0, %s84
    %v86 = vld [vmem:[%s85] sm:%s3]
    %s87 = scalar_lea.vmem [#allocation0], 120
    %88 = vst [vmem:[%s87] sm:%s3] %v86
    %s89 = smul.addr 2, 14
    %s90 = scalar_lea.vmem %s0, %s89
    %v91 = vld [vmem:[%s90] sm:%s3]
    %s92 = scalar_lea.vmem [#allocation0], 112
    %93 = vst [vmem:[%s92] sm:%s3] %v91
    %s94 = smul.addr 2, 13
    %s95 = scalar_lea.vmem %s0, %s94
    %v96 = vld [vmem:[%s95] sm:%s3]
    %s97 = scalar_lea.vmem [#allocation0], 104
    %98 = vst [vmem:[%s97] sm:%s3] %v96
    %s99 = smul.addr 2, 12
    %s100 = scalar_lea.vmem %s0, %s99
    %v101 = vld [vmem:[%s100] sm:%s3]
    %s102 = scalar_lea.vmem [#allocation0], 96
    %103 = vst [vmem:[%s102] sm:%s3] %v101
    %s104 = smul.addr 2, 11
    %s105 = scalar_lea.vmem %s0, %s104
    %v106 = vld [vmem:[%s105] sm:%s3]
    %s107 = scalar_lea.vmem [#allocation0], 88
    %108 = vst [vmem:[%s107] sm:%s3] %v106
    %s109 = smul.addr 2, 10
    %s110 = scalar_lea.vmem %s0, %s109
    %v111 = vld [vmem:[%s110] sm:%s3]
    %s112 = scalar_lea.vmem [#allocation0], 80
    %113 = vst [vmem:[%s112] sm:%s3] %v111
    %s114 = smul.addr 2, 9
    %s115 = scalar_lea.vmem %s0, %s114
    %v116 = vld [vmem:[%s115] sm:%s3]
    %s117 = scalar_lea.vmem [#allocation0], 72
    %118 = vst [vmem:[%s117] sm:%s3] %v116
    %s119 = smul.addr 2, 8
    %s120 = scalar_lea.vmem %s0, %s119
    %v121 = vld [vmem:[%s120] sm:%s3]
    %s122 = scalar_lea.vmem [#allocation0], 64
    %123 = vst [vmem:[%s122] sm:%s3] %v121
    %s124 = smul.addr 2, 7
    %s125 = scalar_lea.vmem %s0, %s124
    %v126 = vld [vmem:[%s125] sm:%s3]
    %s127 = scalar_lea.vmem [#allocation0], 56
    %128 = vst [vmem:[%s127] sm:%s3] %v126
    %s129 = smul.addr 2, 6
    %s130 = scalar_lea.vmem %s0, %s129
    %v131 = vld [vmem:[%s130] sm:%s3]
    %s132 = scalar_lea.vmem [#allocation0], 48
    %133 = vst [vmem:[%s132] sm:%s3] %v131
    %s134 = smul.addr 2, 5
    %s135 = scalar_lea.vmem %s0, %s134
    %v136 = vld [vmem:[%s135] sm:%s3]
    %s137 = scalar_lea.vmem [#allocation0], 40
    %138 = vst [vmem:[%s137] sm:%s3] %v136
    %s139 = smul.addr 2, 4
    %s140 = scalar_lea.vmem %s0, %s139
    %v141 = vld [vmem:[%s140] sm:%s3]
    %s142 = scalar_lea.vmem [#allocation0], 32
    %143 = vst [vmem:[%s142] sm:%s3] %v141
    %s144 = smul.addr 2, 3
    %s145 = scalar_lea.vmem %s0, %s144
    %v146 = vld [vmem:[%s145] sm:%s3]
    %s147 = scalar_lea.vmem [#allocation0], 24
    %148 = vst [vmem:[%s147] sm:%s3] %v146
    %s149 = smul.addr 2, 2
    %s150 = scalar_lea.vmem %s0, %s149
    %v151 = vld [vmem:[%s150] sm:%s3]
    %s152 = scalar_lea.vmem [#allocation0], 16
    %153 = vst [vmem:[%s152] sm:%s3] %v151
    %s154 = scalar_lea.vmem %s0, 2
    %v155 = vld [vmem:[%s154] sm:%s3]
    %s156 = scalar_lea.vmem [#allocation0], 8
    %157 = vst [vmem:[%s156] sm:%s3] %v155
    %v158 = vld [vmem:[%s0] sm:%s3]
    %159 = vst [vmem:[#allocation0] sm:%s3] %v158
    %v160 = vld [vmem:[#allocation0] ss:$8 sm:$0xf]
    %v161 = vld [vmem:[#allocation0] ss:$8 sm:$0xf0]
    %vm162 = vcmask 1047556
    %v163 = vsel %vm162, %v161, %v160
    %vm164 = vcmask 130048
    %165 = vst.msk [vmem:[%s1] sm:$0xff] %vm164, %v163
    %s166 = scalar_lea.vmem [#allocation0], 64
    %v167 = vld [vmem:[%s166] ss:$8 sm:$0xf]
    %s168 = scalar_lea.vmem [#allocation0], 64
    %v169 = vld [vmem:[%s168] ss:$8 sm:$0xf0]
    %vm170 = vcmask 1047556
    %v171 = vsel %vm170, %v169, %v167
    %vm172 = vcmask 130048
    %s173 = scalar_lea.vmem %s1, 8
    %174 = vst.msk [vmem:[%s173] sm:$0xff] %vm172, %v171
    %s175 = scalar_lea.vmem [#allocation0], 128
    %v176 = vld [vmem:[%s175] ss:$8 sm:$0xf]
    %s177 = scalar_lea.vmem [#allocation0], 128
    %v178 = vld [vmem:[%s177] ss:$8 sm:$0xf0]
    %vm179 = vcmask 1047556
    %v180 = vsel %vm179, %v178, %v176
    %vm181 = vcmask 130048
    %s182 = scalar_lea.vmem %s1, 16
    %183 = vst.msk [vmem:[%s182] sm:$0xff] %vm181, %v180
    %s184 = scalar_lea.vmem [#allocation0], 192
    %v185 = vld [vmem:[%s184] ss:$8 sm:$0xf]
    %s186 = scalar_lea.vmem [#allocation0], 192
    %v187 = vld [vmem:[%s186] ss:$8 sm:$0xf0]
    %vm188 = vcmask 1047556
    %v189 = vsel %vm188, %v187, %v185
    %vm190 = vcmask 130048
    %s191 = scalar_lea.vmem %s1, 24
    %192 = vst.msk [vmem:[%s191] sm:$0xff] %vm190, %v189
    %s193 = scalar_lea.vmem [#allocation0], 1
    %v194 = vld [vmem:[%s193] ss:$8 sm:$0xf]
    %s195 = scalar_lea.vmem [#allocation0], 1
    %v196 = vld [vmem:[%s195] ss:$8 sm:$0xf0]
    %vm197 = vcmask 1047556
    %v198 = vsel %vm197, %v196, %v194
    %199 = vrot.lane.b32.xlu0 %v198, 16
    %v200 = vpop.permute.xlu0 %199
    %vm201 = vcmask 261248
    %202 = vst.msk [vmem:[%s1] sm:$0xff] %vm201, %v200
    %s203 = scalar_lea.vmem [#allocation0], 65
    %v204 = vld [vmem:[%s203] ss:$8 sm:$0xf]
    %s205 = scalar_lea.vmem [#allocation0], 65
    %v206 = vld [vmem:[%s205] ss:$8 sm:$0xf0]
    %vm207 = vcmask 1047556
    %v208 = vsel %vm207, %v206, %v204
    %209 = vrot.lane.b32.xlu0 %v208, 16
    %v210 = vpop.permute.xlu0 %209
    %vm211 = vcmask 261248
    %s212 = scalar_lea.vmem %s1, 8
    %213 = vst.msk [vmem:[%s212] sm:$0xff] %vm211, %v210
    %s214 = scalar_lea.vmem [#allocation0], 129
    %v215 = vld [vmem:[%s214] ss:$8 sm:$0xf]
    %s216 = scalar_lea.vmem [#allocation0], 129
    %v217 = vld [vmem:[%s216] ss:$8 sm:$0xf0]
    %vm218 = vcmask 1047556
    %v219 = vsel %vm218, %v217, %v215
    %220 = vrot.lane.b32.xlu0 %v219, 16
    %v221 = vpop.permute.xlu0 %220
    %vm222 = vcmask 261248
    %s223 = scalar_lea.vmem %s1, 16
    %224 = vst.msk [vmem:[%s223] sm:$0xff] %vm222, %v221
    %s225 = scalar_lea.vmem [#allocation0], 193
    %v226 = vld [vmem:[%s225] ss:$8 sm:$0xf]
    %s227 = scalar_lea.vmem [#allocation0], 193
    %v228 = vld [vmem:[%s227] ss:$8 sm:$0xf0]
    %vm229 = vcmask 1047556
    %v230 = vsel %vm229, %v228, %v226
    %231 = vrot.lane.b32.xlu0 %v230, 16
    %v232 = vpop.permute.xlu0 %231
    %vm233 = vcmask 261248
    %s234 = scalar_lea.vmem %s1, 24
    %235 = vst.msk [vmem:[%s234] sm:$0xff] %vm233, %v232

// kernel: my_transformer_layer.1
$region0: #{my_transformer_layer.1}
  #allocation0 [shape = 'u32[]', space=smem, size = 0x4, offset = 0x4, fixed_abs, tag = 'smem constant byte address 0x4 - core index']
  #allocation1 [shape = 'u32[144,128]{1,0:T(1,128)}', space=vmem, size = 0x12000, scoped, tag = 'internal scratch']
  %s0 = inlined_call_operand.vmem [shape: f32[64,32], index: 0, kind: input, shape index: {}]
  %s1 = inlined_call_operand.vmem [shape: f32[2,64,32], index: 1, kind: input, shape index: {}]
  %s2 = inlined_call_operand.vmem [shape: f32[32,1152], index: 2, kind: input, shape index: {}]
  %s3 = inlined_call_operand.vmem [shape: f32[1,1152], index: 3, kind: input, shape index: {}]
  %s4 = inlined_call_operand.vmem [shape: f32[64,64], index: 4, kind: input, shape index: {}]
  %s5 = inlined_call_operand.vmem [shape: f32[128,32], index: 5, kind: input, shape index: {}]
  %s6 = inlined_call_operand.vmem [shape: f32[6,64], index: 6, kind: input, shape index: {}]
  %s7 = inlined_call_operand.vmem [shape: f32[32,64], index: 7, kind: output, shape index: {}]
  %s8 = sld [smem:[#allocation0]]
  $region38: #{my_transformer_layer.1} parent=0
    _
  %s10 = ssub.s32 1, %s8
  %s11 = scalar_select 0, %s10, %s8
  // Predicated region
  $region2: #{my_transformer_layer.1} parent=0 // pred_check
    _
  $region3: #{my_transformer_layer.1} parent=0 // pred_check_branch
    %13 = sbr.rel (0) target = $region5
  $region4: #{my_transformer_layer.1} parent=0 // pred_region
    _
  $region5: #{my_transformer_layer.1} parent=0 // pred_fallthru
    _
  // Predicated region
  $region6: #{my_transformer_layer.1} parent=0 // pred_check
    _
  $region7: #{my_transformer_layer.1} parent=0 // pred_check_branch
    %15 = sbr.rel (0) target = $region9
  $region8: #{my_transformer_layer.1} parent=0 // pred_region
    _
  $region9: #{my_transformer_layer.1} parent=0 // pred_fallthru
    _
  // Predicated region
  $region10: #{my_transformer_layer.1} parent=0 // pred_check
    _
  $region11: #{my_transformer_layer.1} parent=0 // pred_check_branch
    %17 = sbr.rel (0) target = $region13
  $region12: #{my_transformer_layer.1} parent=0 // pred_region
    _
  $region13: #{my_transformer_layer.1} parent=0 // pred_fallthru
    _
  // Predicated region
  $region14: #{my_transformer_layer.1} parent=0 // pred_check
    _
  $region15: #{my_transformer_layer.1} parent=0 // pred_check_branch
    %19 = sbr.rel (0) target = $region17
  $region16: #{my_transformer_layer.1} parent=0 // pred_region
    _
  $region17: #{my_transformer_layer.1} parent=0 // pred_fallthru
    _
  // Predicated region
  $region18: #{my_transformer_layer.1} parent=0 // pred_check
    _
  $region19: #{my_transformer_layer.1} parent=0 // pred_check_branch
    %21 = sbr.rel (0) target = $region21
  $region20: #{my_transformer_layer.1} parent=0 // pred_region
    _
  $region21: #{my_transformer_layer.1} parent=0 // pred_fallthru
    _
  // Predicated region
  $region22: #{my_transformer_layer.1} parent=0 // pred_check
    _
  $region23: #{my_transformer_layer.1} parent=0 // pred_check_branch
    %23 = sbr.rel (0) target = $region25
  $region24: #{my_transformer_layer.1} parent=0 // pred_region
    _
  $region25: #{my_transformer_layer.1} parent=0 // pred_fallthru
    _
  // Predicated region
  $region26: #{my_transformer_layer.1} parent=0 // pred_check
    _
  $region27: #{my_transformer_layer.1} parent=0 // pred_check_branch
    %25 = sbr.rel (0) target = $region29
  $region28: #{my_transformer_layer.1} parent=0 // pred_region
    _
  $region29: #{my_transformer_layer.1} parent=0 // pred_fallthru
    _
  %v26 = vld [vmem:[%s0] sm:$0xff]
  %v27 = vld [vmem:[%s0 + $0x8] sm:$0xff]
  %v28 = vld [vmem:[%s0 + $0x10] sm:$0xff]
  %v29 = vld [vmem:[%s0 + $0x18] sm:$0xff]
  %v30 = vld [vmem:[%s0 + $0x20] sm:$0xff]
  %v31 = vld [vmem:[%s0 + $0x28] sm:$0xff]
  %v32 = vld [vmem:[%s0 + $0x30] sm:$0xff]
  %v33 = vld [vmem:[%s0 + $0x38] sm:$0xff]
  %v34 = vld [vmem:[%s1] sm:$0xff]
  %v35 = vld [vmem:[%s1 + $0x8] sm:$0xff]
  %v36 = vld [vmem:[%s1 + $0x10] sm:$0xff]
  %v37 = vld [vmem:[%s1 + $0x18] sm:$0xff]
  %v38 = vld [vmem:[%s1 + $0x20] sm:$0xff]
  %v39 = vld [vmem:[%s1 + $0x28] sm:$0xff]
  %v40 = vld [vmem:[%s1 + $0x30] sm:$0xff]
  %v41 = vld [vmem:[%s1 + $0x38] sm:$0xff]
  %s42 = scalar_lea.vmem %s1, 64
  %v43 = vld [vmem:[%s42] sm:$0xff]
  %v44 = vld [vmem:[%s42 + $0x8] sm:$0xff]
  %v45 = vld [vmem:[%s42 + $0x10] sm:$0xff]
  %v46 = vld [vmem:[%s42 + $0x18] sm:$0xff]
  %v47 = vld [vmem:[%s42 + $0x20] sm:$0xff]
  %v48 = vld [vmem:[%s42 + $0x28] sm:$0xff]
  %v49 = vld [vmem:[%s42 + $0x30] sm:$0xff]
  %v50 = vld [vmem:[%s42 + $0x38] sm:$0xff]
  %v51 = vlaneseq
  %v52 = vand.u32 %v51, 127
  %vm53 = vcmp.ge.s32.totalorder %v52, 0
  %vm54 = vcmp.lt.s32.totalorder %v52, 8
  %vm55 = vmand %vm53, %vm54
  %v56 = vsel %vm55, 1, 0
  %v57 = vcvt.s32.f32 %v56
  %vm58 = vcmp.ge.s32.totalorder %v52, 8
  %vm59 = vcmp.lt.s32.totalorder %v52, 16
  %vm60 = vmand %vm58, %vm59
  %v61 = vsel %vm60, 1, 0
  %v62 = vcvt.s32.f32 %v61
  %vm63 = vcmp.ge.s32.totalorder %v52, 16
  %vm64 = vcmp.lt.s32.totalorder %v52, 24
  %vm65 = vmand %vm63, %vm64
  %v66 = vsel %vm65, 1, 0
  %v67 = vcvt.s32.f32 %v66
  %vm68 = vcmp.ge.s32.totalorder %v52, 24
  %vm69 = vcmp.lt.s32.totalorder %v52, 32
  %vm70 = vmand %vm68, %vm69
  %v71 = vsel %vm70, 1, 0
  %v72 = vcvt.s32.f32 %v71
  %v73 = vld [vmem:[%s2] sm:$0xff]
  %v74 = vld [vmem:[%s2 + $0x8] sm:$0xff]
  %v75 = vld [vmem:[%s2 + $0x10] sm:$0xff]
  %v76 = vld [vmem:[%s2 + $0x18] sm:$0xff]
  %v77 = vld [vmem:[%s2 + $0x20] sm:$0xff]
  %v78 = vld [vmem:[%s2 + $0x28] sm:$0xff]
  %v79 = vld [vmem:[%s2 + $0x48] sm:$0xff]
  %v80 = vld [vmem:[%s2 + $0x50] sm:$0xff]
  %v81 = vld [vmem:[%s2 + $0x58] sm:$0xff]
  %v82 = vld [vmem:[%s2 + $0x60] sm:$0xff]
  %v83 = vld [vmem:[%s2 + $0x68] sm:$0xff]
  %v84 = vld [vmem:[%s2 + $0x70] sm:$0xff]
  %v85 = vld [vmem:[%s2 + $0x90] sm:$0xff]
  %v86 = vld [vmem:[%s2 + $0x98] sm:$0xff]
  %v87 = vld [vmem:[%s2 + $0xa0] sm:$0xff]
  %v88 = vld [vmem:[%s2 + $0xa8] sm:$0xff]
  %v89 = vld [vmem:[%s2 + $0xb0] sm:$0xff]
  %v90 = vld [vmem:[%s2 + $0xb8] sm:$0xff]
  %v91 = vld [vmem:[%s2 + $0xd8] sm:$0xff]
  %v92 = vld [vmem:[%s2 + $0xe0] sm:$0xff]
  %v93 = vld [vmem:[%s2 + $0xe8] sm:$0xff]
  %v94 = vld [vmem:[%s2 + $0xf0] sm:$0xff]
  %v95 = vld [vmem:[%s2 + $0xf8] sm:$0xff]
  %v96 = vld [vmem:[%s2 + $0x100] sm:$0xff]
  %v97 = vld [vmem:[%s3] sm:$0x3f]
  %v99 = vlaneseq
  %v100 = vshrl.u32 %v99, 7
  %v101 = vsub.s32 0, %v100
  %v102 = vrot.slane %v97, %v101
  %v103 = vlaneseq
  %v104 = vshrl.u32 %v103, 7
  %v105 = vsub.s32 1, %v104
  %v106 = vrot.slane %v97, %v105
  %v107 = vlaneseq
  %v108 = vshrl.u32 %v107, 7
  %v109 = vsub.s32 2, %v108
  %v110 = vrot.slane %v97, %v109
  %v111 = vlaneseq
  %v112 = vshrl.u32 %v111, 7
  %v113 = vsub.s32 3, %v112
  %v114 = vrot.slane %v97, %v113
  %v115 = vlaneseq
  %v116 = vshrl.u32 %v115, 7
  %v117 = vsub.s32 4, %v116
  %v118 = vrot.slane %v97, %v117
  %v119 = vlaneseq
  %v120 = vshrl.u32 %v119, 7
  %v121 = vsub.s32 5, %v120
  %v122 = vrot.slane %v97, %v121
  %vm129 = vcmask 261120
  %v131 = vsel %vm129, %v26, 0
  %v134 = vsel %vm129, %v27, 0
  %v137 = vsel %vm129, %v28, 0
  %v140 = vsel %vm129, %v29, 0
  %v143 = vsel %vm129, %v30, 0
  %v146 = vsel %vm129, %v31, 0
  %v149 = vsel %vm129, %v32, 0
  %v152 = vsel %vm129, %v33, 0
  %154 = vmatprep.subr.mxu0 %v74
  %155 = vmatpush1.msra.mxu0 %v73
  %156 = vmatprep.subr.mxu0 %v80
  %157 = vmatpush1.msra.mxu0 %v79
  %158 = vmatprep.subr.mxu0 %v86
  %159 = vmatpush1.msra.mxu0 %v85
  %160 = vmatprep.subr.mxu0 %v92
  %161 = vmatpush1.msra.mxu0 %v91
  %162 = vmatprep.subr.mxu0 0.0
  %163 = vmatpush1.msra.mxu0 0.0
  %164 = vmatprep.subr.mxu0 0.0
  %165 = vmatpush1.msra.mxu0 0.0
  %166 = vmatprep.subr.mxu0 0.0
  %167 = vmatpush1.msra.mxu0 0.0
  %168 = vmatprep.subr.mxu0 0.0
  %169 = vmatpush1.msra.mxu0 0.0
  %170 = vmatprep.subr.mxu0 0.0
  %171 = vmatpush1.msra.mxu0 0.0
  %172 = vmatprep.subr.mxu0 0.0
  %173 = vmatpush1.msra.mxu0 0.0
  %174 = vmatprep.subr.mxu0 0.0
  %175 = vmatpush1.msra.mxu0 0.0
  %176 = vmatprep.subr.mxu0 0.0
  %177 = vmatpush1.msra.mxu0 0.0
  %178 = vmatprep.subr.mxu0 0.0
  %179 = vmatpush1.msra.mxu0 0.0
  %180 = vmatprep.subr.mxu0 0.0
  %181 = vmatpush1.msra.mxu0 0.0
  %182 = vmatprep.subr.mxu0 0.0
  %183 = vmatpush1.msra.mxu0 0.0
  %184 = vmatprep.subr.mxu0 0.0
  %185 = vmatpush1.msra.mxu0 0.0
  %186 = vmatprep.subr.mxu0 0.0
  %187 = vmatpush1.msra.mxu0 0.0
  %188 = vmatprep.subr.mxu0 0.0
  %189 = vmatpush1.msra.mxu0 0.0
  %190 = vmatprep.subr.mxu0 0.0
  %191 = vmatpush1.msra.mxu0 0.0
  %192 = vmatprep.subr.mxu0 0.0
  %193 = vmatpush1.msra.mxu0 0.0
  %194 = vmatprep.subr.mxu0 0.0
  %195 = vmatpush1.msra.mxu0 0.0
  %196 = vmatprep.subr.mxu0 0.0
  %197 = vmatpush1.msra.mxu0 0.0
  %198 = vmatprep.subr.mxu0 0.0
  %199 = vmatpush1.msra.mxu0 0.0
  %200 = vmatprep.subr.mxu0 0.0
  %201 = vmatpush1.msra.mxu0 0.0
  %202 = vmatprep.subr.mxu0 0.0
  %203 = vmatpush1.msra.mxu0 0.0
  %204 = vmatprep.subr.mxu0 0.0
  %205 = vmatpush1.msra.mxu0 0.0
  %206 = vmatprep.subr.mxu0 0.0
  %207 = vmatpush1.msra.mxu0 0.0
  %208 = vmatprep.subr.mxu0 0.0
  %209 = vmatpush1.msra.mxu0 0.0
  %210 = vmatprep.subr.mxu0 0.0
  %211 = vmatpush1.msra.mxu0 0.0
  %212 = vmatprep.subr.mxu0 0.0
  %213 = vmatpush1.msra.mxu0 0.0
  %214 = vmatprep.subr.mxu0 0.0
  %215 = vmatpush1.msra.mxu0 0.0
  %216 = vmatprep.subr.mxu0 0.0
  %217 = vmatpush1.msra.mxu0 0.0
  %218 = vmatprep.mubr.f32.mxu0 0.0
  %219 = vmatmul.mubr.f32.gmra.mrb[0].mxu0 %v131
  %v220 = vpop.f32.mrb[0].mxu0
  %v221 = vadd.f32 %v102, %v220
  %v222 = vpop.f32.mrb[0].mxu0
  %v223 = vadd.f32 %v106, %v222
  %224 = vmatprep.mubr.f32.mxu0 0.0
  %225 = vmatmul.mubr.f32.gmra.mrb[0].mxu0 %v134
  %v226 = vpop.f32.mrb[0].mxu0
  %v227 = vadd.f32 %v102, %v226
  %v228 = vpop.f32.mrb[0].mxu0
  %v229 = vadd.f32 %v106, %v228
  %230 = vmatprep.mubr.f32.mxu0 0.0
  %231 = vmatmul.mubr.f32.gmra.mrb[0].mxu0 %v137
  %v232 = vpop.f32.mrb[0].mxu0
  %v233 = vadd.f32 %v102, %v232
  %v234 = vpop.f32.mrb[0].mxu0
  %v235 = vadd.f32 %v106, %v234
  %236 = vmatprep.mubr.f32.mxu0 0.0
  %237 = vmatmul.mubr.f32.gmra.mrb[0].mxu0 %v140
  %v238 = vpop.f32.mrb[0].mxu0
  %v239 = vadd.f32 %v102, %v238
  %v240 = vpop.f32.mrb[0].mxu0
  %v241 = vadd.f32 %v106, %v240
  %242 = vmatprep.mubr.f32.mxu0 0.0
  %243 = vmatmul.mubr.f32.gmra.mrb[0].mxu0 %v143
  %v244 = vpop.f32.mrb[0].mxu0
  %v245 = vadd.f32 %v102, %v244
  %v246 = vpop.f32.mrb[0].mxu0
  %v247 = vadd.f32 %v106, %v246
  %248 = vmatprep.mubr.f32.mxu0 0.0
  %249 = vmatmul.mubr.f32.gmra.mrb[0].mxu0 %v146
  %v250 = vpop.f32.mrb[0].mxu0
  %v251 = vadd.f32 %v102, %v250
  %v252 = vpop.f32.mrb[0].mxu0
  %v253 = vadd.f32 %v106, %v252
  %254 = vmatprep.mubr.f32.mxu0 0.0
  %255 = vmatmul.mubr.f32.gmra.mrb[0].mxu0 %v149
  %v256 = vpop.f32.mrb[0].mxu0
  %v257 = vadd.f32 %v102, %v256
  %v258 = vpop.f32.mrb[0].mxu0
  %v259 = vadd.f32 %v106, %v258
  %260 = vmatprep.mubr.f32.mxu0 0.0
  %261 = vmatmul.mubr.f32.gmra.mrb[0].mxu0 %v152
  %v262 = vpop.f32.mrb[0].mxu0
  %v263 = vadd.f32 %v102, %v262
  %v264 = vpop.f32.mrb[0].mxu0
  %v265 = vadd.f32 %v106, %v264
  %266 = vdwg.mxu0
  %267 = vmatprep.subr.mxu0 %v76
  %268 = vmatpush1.msra.mxu0 %v75
  %269 = vmatprep.subr.mxu0 %v82
  %270 = vmatpush1.msra.mxu0 %v81
  %271 = vmatprep.subr.mxu0 %v88
  %272 = vmatpush1.msra.mxu0 %v87
  %273 = vmatprep.subr.mxu0 %v94
  %274 = vmatpush1.msra.mxu0 %v93
  %275 = vmatprep.subr.mxu0 0.0
  %276 = vmatpush1.msra.mxu0 0.0
  %277 = vmatprep.subr.mxu0 0.0
  %278 = vmatpush1.msra.mxu0 0.0
  %279 = vmatprep.subr.mxu0 0.0
  %280 = vmatpush1.msra.mxu0 0.0
  %281 = vmatprep.subr.mxu0 0.0
  %282 = vmatpush1.msra.mxu0 0.0
  %283 = vmatprep.subr.mxu0 0.0
  %284 = vmatpush1.msra.mxu0 0.0
  %285 = vmatprep.subr.mxu0 0.0
  %286 = vmatpush1.msra.mxu0 0.0
  %287 = vmatprep.subr.mxu0 0.0
  %288 = vmatpush1.msra.mxu0 0.0
  %289 = vmatprep.subr.mxu0 0.0
  %290 = vmatpush1.msra.mxu0 0.0
  %291 = vmatprep.subr.mxu0 0.0
  %292 = vmatpush1.msra.mxu0 0.0
  %293 = vmatprep.subr.mxu0 0.0
  %294 = vmatpush1.msra.mxu0 0.0
  %295 = vmatprep.subr.mxu0 0.0
  %296 = vmatpush1.msra.mxu0 0.0
  %297 = vmatprep.subr.mxu0 0.0
  %298 = vmatpush1.msra.mxu0 0.0
  %299 = vmatprep.subr.mxu0 0.0
  %300 = vmatpush1.msra.mxu0 0.0
  %301 = vmatprep.subr.mxu0 0.0
  %302 = vmatpush1.msra.mxu0 0.0
  %303 = vmatprep.subr.mxu0 0.0
  %304 = vmatpush1.msra.mxu0 0.0
  %305 = vmatprep.subr.mxu0 0.0
  %306 = vmatpush1.msra.mxu0 0.0
  %307 = vmatprep.subr.mxu0 0.0
  %308 = vmatpush1.msra.mxu0 0.0
  %309 = vmatprep.subr.mxu0 0.0
  %310 = vmatpush1.msra.mxu0 0.0
  %311 = vmatprep.subr.mxu0 0.0
  %312 = vmatpush1.msra.mxu0 0.0
  %313 = vmatprep.subr.mxu0 0.0
  %314 = vmatpush1.msra.mxu0 0.0
  %315 = vmatprep.subr.mxu0 0.0
  %316 = vmatpush1.msra.mxu0 0.0
  %317 = vmatprep.subr.mxu0 0.0
  %318 = vmatpush1.msra.mxu0 0.0
  %319 = vmatprep.subr.mxu0 0.0
  %320 = vmatpush1.msra.mxu0 0.0
  %321 = vmatprep.subr.mxu0 0.0
  %322 = vmatpush1.msra.mxu0 0.0
  %323 = vmatprep.subr.mxu0 0.0
  %324 = vmatpush1.msra.mxu0 0.0
  %325 = vmatprep.subr.mxu0 0.0
  %326 = vmatpush1.msra.mxu0 0.0
  %327 = vmatprep.subr.mxu0 0.0
  %328 = vmatpush1.msra.mxu0 0.0
  %329 = vmatprep.subr.mxu0 0.0
  %330 = vmatpush1.msra.mxu0 0.0
  %331 = vmatprep.mubr.f32.mxu0 0.0
  %332 = vmatmul.mubr.f32.gmra.mrb[0].mxu0 %v131
  %v333 = vpop.f32.mrb[0].mxu0
  %v334 = vadd.f32 %v110, %v333
  %v335 = vpop.f32.mrb[0].mxu0
  %v336 = vadd.f32 %v114, %v335
  %337 = vmatprep.mubr.f32.mxu0 0.0
  %338 = vmatmul.mubr.f32.gmra.mrb[0].mxu0 %v134
  %v339 = vpop.f32.mrb[0].mxu0
  %v340 = vadd.f32 %v110, %v339
  %v341 = vpop.f32.mrb[0].mxu0
  %v342 = vadd.f32 %v114, %v341
  %343 = vmatprep.mubr.f32.mxu0 0.0
  %344 = vmatmul.mubr.f32.gmra.mrb[0].mxu0 %v137
  %v345 = vpop.f32.mrb[0].mxu0
  %v346 = vadd.f32 %v110, %v345
  %v347 = vpop.f32.mrb[0].mxu0
  %v348 = vadd.f32 %v114, %v347
  %349 = vmatprep.mubr.f32.mxu0 0.0
  %350 = vmatmul.mubr.f32.gmra.mrb[0].mxu0 %v140
  %v351 = vpop.f32.mrb[0].mxu0
  %v352 = vadd.f32 %v110, %v351
  %v353 = vpop.f32.mrb[0].mxu0
  %v354 = vadd.f32 %v114, %v353
  %355 = vmatprep.mubr.f32.mxu0 0.0
  %356 = vmatmul.mubr.f32.gmra.mrb[0].mxu0 %v143
  %v357 = vpop.f32.mrb[0].mxu0
  %v358 = vadd.f32 %v110, %v357
  %v359 = vpop.f32.mrb[0].mxu0
  %v360 = vadd.f32 %v114, %v359
  %361 = vmatprep.mubr.f32.mxu0 0.0
  %362 = vmatmul.mubr.f32.gmra.mrb[0].mxu0 %v146
  %v363 = vpop.f32.mrb[0].mxu0
  %v364 = vadd.f32 %v110, %v363
  %v365 = vpop.f32.mrb[0].mxu0
  %v366 = vadd.f32 %v114, %v365
  %367 = vmatprep.mubr.f32.mxu0 0.0
  %368 = vmatmul.mubr.f32.gmra.mrb[0].mxu0 %v149
  %v369 = vpop.f32.mrb[0].mxu0
  %v370 = vadd.f32 %v110, %v369
  %v371 = vpop.f32.mrb[0].mxu0
  %v372 = vadd.f32 %v114, %v371
  %373 = vmatprep.mubr.f32.mxu0 0.0
  %374 = vmatmul.mubr.f32.gmra.mrb[0].mxu0 %v152
  %v375 = vpop.f32.mrb[0].mxu0
  %v376 = vadd.f32 %v110, %v375
  %v377 = vpop.f32.mrb[0].mxu0
  %v378 = vadd.f32 %v114, %v377
  %379 = vdwg.mxu0
  %380 = vmatprep.subr.mxu0 %v78
  %381 = vmatpush1.msra.mxu0 %v77
  %382 = vmatprep.subr.mxu0 %v84
  %383 = vmatpush1.msra.mxu0 %v83
  %384 = vmatprep.subr.mxu0 %v90
  %385 = vmatpush1.msra.mxu0 %v89
  %386 = vmatprep.subr.mxu0 %v96
  %387 = vmatpush1.msra.mxu0 %v95
  %388 = vmatprep.subr.mxu0 0.0
  %389 = vmatpush1.msra.mxu0 0.0
  %390 = vmatprep.subr.mxu0 0.0
  %391 = vmatpush1.msra.mxu0 0.0
  %392 = vmatprep.subr.mxu0 0.0
  %393 = vmatpush1.msra.mxu0 0.0
  %394 = vmatprep.subr.mxu0 0.0
  %395 = vmatpush1.msra.mxu0 0.0
  %396 = vmatprep.subr.mxu0 0.0
  %397 = vmatpush1.msra.mxu0 0.0
  %398 = vmatprep.subr.mxu0 0.0
  %399 = vmatpush1.msra.mxu0 0.0
  %400 = vmatprep.subr.mxu0 0.0
  %401 = vmatpush1.msra.mxu0 0.0
  %402 = vmatprep.subr.mxu0 0.0
  %403 = vmatpush1.msra.mxu0 0.0
  %404 = vmatprep.subr.mxu0 0.0
  %405 = vmatpush1.msra.mxu0 0.0
  %406 = vmatprep.subr.mxu0 0.0
  %407 = vmatpush1.msra.mxu0 0.0
  %408 = vmatprep.subr.mxu0 0.0
  %409 = vmatpush1.msra.mxu0 0.0
  %410 = vmatprep.subr.mxu0 0.0
  %411 = vmatpush1.msra.mxu0 0.0
  %412 = vmatprep.subr.mxu0 0.0
  %413 = vmatpush1.msra.mxu0 0.0
  %414 = vmatprep.subr.mxu0 0.0
  %415 = vmatpush1.msra.mxu0 0.0
  %416 = vmatprep.subr.mxu0 0.0
  %417 = vmatpush1.msra.mxu0 0.0
  %418 = vmatprep.subr.mxu0 0.0
  %419 = vmatpush1.msra.mxu0 0.0
  %420 = vmatprep.subr.mxu0 0.0
  %421 = vmatpush1.msra.mxu0 0.0
  %422 = vmatprep.subr.mxu0 0.0
  %423 = vmatpush1.msra.mxu0 0.0
  %424 = vmatprep.subr.mxu0 0.0
  %425 = vmatpush1.msra.mxu0 0.0
  %426 = vmatprep.subr.mxu0 0.0
  %427 = vmatpush1.msra.mxu0 0.0
  %428 = vmatprep.subr.mxu0 0.0
  %429 = vmatpush1.msra.mxu0 0.0
  %430 = vmatprep.subr.mxu0 0.0
  %431 = vmatpush1.msra.mxu0 0.0
  %432 = vmatprep.subr.mxu0 0.0
  %433 = vmatpush1.msra.mxu0 0.0
  %434 = vmatprep.subr.mxu0 0.0
  %435 = vmatpush1.msra.mxu0 0.0
  %436 = vmatprep.subr.mxu0 0.0
  %437 = vmatpush1.msra.mxu0 0.0
  %438 = vmatprep.subr.mxu0 0.0
  %439 = vmatpush1.msra.mxu0 0.0
  %440 = vmatprep.subr.mxu0 0.0
  %441 = vmatpush1.msra.mxu0 0.0
  %442 = vmatprep.subr.mxu0 0.0
  %443 = vmatpush1.msra.mxu0 0.0
  %444 = vmatprep.mubr.f32.mxu0 0.0
  %445 = vmatmul.mubr.f32.gmra.mrb[0].mxu0 %v131
  %v446 = vpop.f32.mrb[0].mxu0
  %v447 = vadd.f32 %v118, %v446
  %v448 = vpop.f32.mrb[0].mxu0
  %v449 = vadd.f32 %v122, %v448
  %450 = vmatprep.mubr.f32.mxu0 0.0
  %451 = vmatmul.mubr.f32.gmra.mrb[0].mxu0 %v134
  %v452 = vpop.f32.mrb[0].mxu0
  %v453 = vadd.f32 %v118, %v452
  %v454 = vpop.f32.mrb[0].mxu0
  %v455 = vadd.f32 %v122, %v454
  %456 = vmatprep.mubr.f32.mxu0 0.0
  %457 = vmatmul.mubr.f32.gmra.mrb[0].mxu0 %v137
  %v458 = vpop.f32.mrb[0].mxu0
  %v459 = vadd.f32 %v118, %v458
  %v460 = vpop.f32.mrb[0].mxu0
  %v461 = vadd.f32 %v122, %v460
  %462 = vmatprep.mubr.f32.mxu0 0.0
  %463 = vmatmul.mubr.f32.gmra.mrb[0].mxu0 %v140
  %v464 = vpop.f32.mrb[0].mxu0
  %v465 = vadd.f32 %v118, %v464
  %v466 = vpop.f32.mrb[0].mxu0
  %v467 = vadd.f32 %v122, %v466
  %468 = vmatprep.mubr.f32.mxu0 0.0
  %469 = vmatmul.mubr.f32.gmra.mrb[0].mxu0 %v143
  %v470 = vpop.f32.mrb[0].mxu0
  %v471 = vadd.f32 %v118, %v470
  %v472 = vpop.f32.mrb[0].mxu0
  %v473 = vadd.f32 %v122, %v472
  %474 = vmatprep.mubr.f32.mxu0 0.0
  %475 = vmatmul.mubr.f32.gmra.mrb[0].mxu0 %v146
  %v476 = vpop.f32.mrb[0].mxu0
  %v477 = vadd.f32 %v118, %v476
  %v478 = vpop.f32.mrb[0].mxu0
  %v479 = vadd.f32 %v122, %v478
  %480 = vmatprep.mubr.f32.mxu0 0.0
  %481 = vmatmul.mubr.f32.gmra.mrb[0].mxu0 %v149
  %v482 = vpop.f32.mrb[0].mxu0
  %v483 = vadd.f32 %v118, %v482
  %v484 = vpop.f32.mrb[0].mxu0
  %v485 = vadd.f32 %v122, %v484
  %486 = vmatprep.mubr.f32.mxu0 0.0
  %487 = vmatmul.mubr.f32.gmra.mrb[0].mxu0 %v152
  %v488 = vpop.f32.mrb[0].mxu0
  %v489 = vadd.f32 %v118, %v488
  %v490 = vpop.f32.mrb[0].mxu0
  %v491 = vadd.f32 %v122, %v490
  %492 = vdwg.mxu0
  %v493 = vmul.f32 %v221, %v34
  %v494 = vmul.f32 %v227, %v35
  %v495 = vmul.f32 %v233, %v36
  %v496 = vmul.f32 %v239, %v37
  %v497 = vmul.f32 %v245, %v38
  %v498 = vmul.f32 %v251, %v39
  %v499 = vmul.f32 %v257, %v40
  %v500 = vmul.f32 %v263, %v41
  %v501 = vmul.f32 %v334, %v43
  %v502 = vmul.f32 %v340, %v44
  %v503 = vmul.f32 %v346, %v45
  %v504 = vmul.f32 %v352, %v46
  %v505 = vmul.f32 %v358, %v47
  %v506 = vmul.f32 %v364, %v48
  %v507 = vmul.f32 %v370, %v49
  %v508 = vmul.f32 %v376, %v50
  %v509 = vadd.f32 %v493, %v501
  %v510 = vadd.f32 %v494, %v502
  %v511 = vadd.f32 %v495, %v503
  %v512 = vadd.f32 %v496, %v504
  %v513 = vadd.f32 %v497, %v505
  %v514 = vadd.f32 %v498, %v506
  %v515 = vadd.f32 %v499, %v507
  %v516 = vadd.f32 %v500, %v508
  %v517 = vmul.f32 %v223, %v34
  %v518 = vmul.f32 %v229, %v35
  %v519 = vmul.f32 %v235, %v36
  %v520 = vmul.f32 %v241, %v37
  %v521 = vmul.f32 %v247, %v38
  %v522 = vmul.f32 %v253, %v39
  %v523 = vmul.f32 %v259, %v40
  %v524 = vmul.f32 %v265, %v41
  %v525 = vmul.f32 %v336, %v43
  %v526 = vmul.f32 %v342, %v44
  %v527 = vmul.f32 %v348, %v45
  %v528 = vmul.f32 %v354, %v46
  %v529 = vmul.f32 %v360, %v47
  %v530 = vmul.f32 %v366, %v48
  %v531 = vmul.f32 %v372, %v49
  %v532 = vmul.f32 %v378, %v50
  %v533 = vadd.f32 %v517, %v525
  %v534 = vadd.f32 %v518, %v526
  %v535 = vadd.f32 %v519, %v527
  %v536 = vadd.f32 %v520, %v528
  %v537 = vadd.f32 %v521, %v529
  %v538 = vadd.f32 %v522, %v530
  %v539 = vadd.f32 %v523, %v531
  %v540 = vadd.f32 %v524, %v532
  %v541 = vmul.f32 %v509, %v57
  %v542 = vmul.f32 %v510, %v57
  %v543 = vmul.f32 %v511, %v57
  %v544 = vmul.f32 %v512, %v57
  %v545 = vmul.f32 %v513, %v57
  %v546 = vmul.f32 %v514, %v57
  %v547 = vmul.f32 %v515, %v57
  %v548 = vmul.f32 %v516, %v57
  %v549 = vmul.f32 %v509, %v62
  %v550 = vmul.f32 %v510, %v62
  %v551 = vmul.f32 %v511, %v62
  %v552 = vmul.f32 %v512, %v62
  %v553 = vmul.f32 %v513, %v62
  %v554 = vmul.f32 %v514, %v62
  %v555 = vmul.f32 %v515, %v62
  %v556 = vmul.f32 %v516, %v62
  %v557 = vmul.f32 %v509, %v67
  %v558 = vmul.f32 %v510, %v67
  %v559 = vmul.f32 %v511, %v67
  %v560 = vmul.f32 %v512, %v67
  %v561 = vmul.f32 %v513, %v67
  %v562 = vmul.f32 %v514, %v67
  %v563 = vmul.f32 %v515, %v67
  %v564 = vmul.f32 %v516, %v67
  %v565 = vmul.f32 %v509, %v72
  %v566 = vmul.f32 %v510, %v72
  %v567 = vmul.f32 %v511, %v72
  %v568 = vmul.f32 %v512, %v72
  %v569 = vmul.f32 %v513, %v72
  %v570 = vmul.f32 %v514, %v72
  %v571 = vmul.f32 %v515, %v72
  %v572 = vmul.f32 %v516, %v72
  %v573 = vmul.f32 %v447, %v57
  %v574 = vmul.f32 %v453, %v57
  %v575 = vmul.f32 %v459, %v57
  %v576 = vmul.f32 %v465, %v57
  %v577 = vmul.f32 %v471, %v57
  %v578 = vmul.f32 %v477, %v57
  %v579 = vmul.f32 %v483, %v57
  %v580 = vmul.f32 %v489, %v57
  %v581 = vmul.f32 %v447, %v62
  %v582 = vmul.f32 %v453, %v62
  %v583 = vmul.f32 %v459, %v62
  %v584 = vmul.f32 %v465, %v62
  %v585 = vmul.f32 %v471, %v62
  %v586 = vmul.f32 %v477, %v62
  %v587 = vmul.f32 %v483, %v62
  %v588 = vmul.f32 %v489, %v62
  %v589 = vmul.f32 %v447, %v67
  %v590 = vmul.f32 %v453, %v67
  %v591 = vmul.f32 %v459, %v67
  %v592 = vmul.f32 %v465, %v67
  %v593 = vmul.f32 %v471, %v67
  %v594 = vmul.f32 %v477, %v67
  %v595 = vmul.f32 %v483, %v67
  %v596 = vmul.f32 %v489, %v67
  %v597 = vmul.f32 %v447, %v72
  %v598 = vmul.f32 %v453, %v72
  %v599 = vmul.f32 %v459, %v72
  %v600 = vmul.f32 %v465, %v72
  %v601 = vmul.f32 %v471, %v72
  %v602 = vmul.f32 %v477, %v72
  %v603 = vmul.f32 %v483, %v72
  %v604 = vmul.f32 %v489, %v72
  %v606 = vsel %vm129, %v541, 0
  %v609 = vsel %vm129, %v542, 0
  %v612 = vsel %vm129, %v533, 0
  %v615 = vsel %vm129, %v534, 0
  %617 = vmatprep.subr.mxu0 0.0
  %618 = vmatpush1.xpose.msra.mxu0 %v612
  %619 = vmatprep.subr.mxu0 0.0
  %620 = vmatpush1.xpose.msra.mxu0 %v615
  %621 = vmatprep.subr.mxu0 0.0
  %622 = vmatpush1.xpose.msra.mxu0 0.0
  %623 = vmatprep.subr.mxu0 0.0
  %624 = vmatpush1.xpose.msra.mxu0 0.0
  %625 = vmatprep.subr.mxu0 0.0
  %626 = vmatpush1.xpose.msra.mxu0 0.0
  %627 = vmatprep.subr.mxu0 0.0
  %628 = vmatpush1.xpose.msra.mxu0 0.0
  %629 = vmatprep.subr.mxu0 0.0
  %630 = vmatpush1.xpose.msra.mxu0 0.0
  %631 = vmatprep.subr.mxu0 0.0
  %632 = vmatpush1.xpose.msra.mxu0 0.0
  %633 = vmatprep.subr.mxu0 0.0
  %634 = vmatpush1.xpose.msra.mxu0 0.0
  %635 = vmatprep.subr.mxu0 0.0
  %636 = vmatpush1.xpose.msra.mxu0 0.0
  %637 = vmatprep.subr.mxu0 0.0
  %638 = vmatpush1.xpose.msra.mxu0 0.0
  %639 = vmatprep.subr.mxu0 0.0
  %640 = vmatpush1.xpose.msra.mxu0 0.0
  %641 = vmatprep.subr.mxu0 0.0
  %642 = vmatpush1.xpose.msra.mxu0 0.0
  %643 = vmatprep.subr.mxu0 0.0
  %644 = vmatpush1.xpose.msra.mxu0 0.0
  %645 = vmatprep.subr.mxu0 0.0
  %646 = vmatpush1.xpose.msra.mxu0 0.0
  %647 = vmatprep.subr.mxu0 0.0
  %648 = vmatpush1.xpose.msra.mxu0 0.0
  %649 = vmatprep.subr.mxu0 0.0
  %650 = vmatpush1.xpose.msra.mxu0 0.0
  %651 = vmatprep.subr.mxu0 0.0
  %652 = vmatpush1.xpose.msra.mxu0 0.0
  %653 = vmatprep.subr.mxu0 0.0
  %654 = vmatpush1.xpose.msra.mxu0 0.0
  %655 = vmatprep.subr.mxu0 0.0
  %656 = vmatpush1.xpose.msra.mxu0 0.0
  %657 = vmatprep.subr.mxu0 0.0
  %658 = vmatpush1.xpose.msra.mxu0 0.0
  %659 = vmatprep.subr.mxu0 0.0
  %660 = vmatpush1.xpose.msra.mxu0 0.0
  %661 = vmatprep.subr.mxu0 0.0
  %662 = vmatpush1.xpose.msra.mxu0 0.0
  %663 = vmatprep.subr.mxu0 0.0
  %664 = vmatpush1.xpose.msra.mxu0 0.0
  %665 = vmatprep.subr.mxu0 0.0
  %666 = vmatpush1.xpose.msra.mxu0 0.0
  %667 = vmatprep.subr.mxu0 0.0
  %668 = vmatpush1.xpose.msra.mxu0 0.0
  %669 = vmatprep.subr.mxu0 0.0
  %670 = vmatpush1.xpose.msra.mxu0 0.0
  %671 = vmatprep.subr.mxu0 0.0
  %672 = vmatpush1.xpose.msra.mxu0 0.0
  %673 = vmatprep.subr.mxu0 0.0
  %674 = vmatpush1.xpose.msra.mxu0 0.0
  %675 = vmatprep.subr.mxu0 0.0
  %676 = vmatpush1.xpose.msra.mxu0 0.0
  %677 = vmatprep.subr.mxu0 0.0
  %678 = vmatpush1.xpose.msra.mxu0 0.0
  %679 = vmatprep.subr.mxu0 0.0
  %680 = vmatpush1.xpose.msra.mxu0 0.0
  %681 = vmatprep.mubr.f32.mxu0 0.0
  %682 = vmatmul.mubr.f32.gmra.mrb[0].mxu0 %v606
  %v683 = vpop.f32.mrb[0].mxu0
  %v684 = vadd.f32 0.0, %v683
  %v685 = vpop.f32.mrb[0].mxu0
  %686 = vmatprep.mubr.f32.mxu0 0.0
  %687 = vmatmul.mubr.f32.gmra.mrb[0].mxu0 %v609
  %v688 = vpop.f32.mrb[0].mxu0
  %v689 = vadd.f32 0.0, %v688
  %v690 = vpop.f32.mrb[0].mxu0
  %691 = vdwg.mxu0
  %vm692 = vcmask 130048
  %v693 = vsel %vm692, %v684, -inf
  %694 = vmax.xlane.f32.xlu0 %v693
  %v695 = vpop.xlane.xlu0 %694
  %v696 = vsel %vm692, %v689, -inf
  %697 = vmax.xlane.f32.xlu0 %v696
  %v698 = vpop.xlane.xlu0 %697
  %v699 = vsub.f32 %v684, %v695
  %v700 = vsub.f32 %v689, %v698
  %v701 = vmul.f32 %v699, 1.442695
  %v702 = vpow.pop %v701
  %v703 = vmul.f32 %v700, 1.442695
  %v704 = vpow.pop %v703
  %v705 = vsel %vm692, %v702, 0.0
  %706 = vadd.xlane.f32.xlu0 %v705
  %v707 = vpop.xlane.xlu0 %706
  %v708 = vsel %vm692, %v704, 0.0
  %709 = vadd.xlane.f32.xlu0 %v708
  %v710 = vpop.xlane.xlu0 %709
  %v711 = vrcp.pop %v707
  %v712 = vrcp.pop %v710
  %v713 = vmul.f32 %v702, %v711
  %v714 = vmul.f32 %v704, %v712
  %v716 = vsel %vm129, %v549, 0
  %v719 = vsel %vm129, %v550, 0
  %721 = vmatprep.subr.mxu0 0.0
  %722 = vmatpush1.xpose.msra.mxu0 %v612
  %723 = vmatprep.subr.mxu0 0.0
  %724 = vmatpush1.xpose.msra.mxu0 %v615
  %725 = vmatprep.subr.mxu0 0.0
  %726 = vmatpush1.xpose.msra.mxu0 0.0
  %727 = vmatprep.subr.mxu0 0.0
  %728 = vmatpush1.xpose.msra.mxu0 0.0
  %729 = vmatprep.subr.mxu0 0.0
  %730 = vmatpush1.xpose.msra.mxu0 0.0
  %731 = vmatprep.subr.mxu0 0.0
  %732 = vmatpush1.xpose.msra.mxu0 0.0
  %733 = vmatprep.subr.mxu0 0.0
  %734 = vmatpush1.xpose.msra.mxu0 0.0
  %735 = vmatprep.subr.mxu0 0.0
  %736 = vmatpush1.xpose.msra.mxu0 0.0
  %737 = vmatprep.subr.mxu0 0.0
  %738 = vmatpush1.xpose.msra.mxu0 0.0
  %739 = vmatprep.subr.mxu0 0.0
  %740 = vmatpush1.xpose.msra.mxu0 0.0
  %741 = vmatprep.subr.mxu0 0.0
  %742 = vmatpush1.xpose.msra.mxu0 0.0
  %743 = vmatprep.subr.mxu0 0.0
  %744 = vmatpush1.xpose.msra.mxu0 0.0
  %745 = vmatprep.subr.mxu0 0.0
  %746 = vmatpush1.xpose.msra.mxu0 0.0
  %747 = vmatprep.subr.mxu0 0.0
  %748 = vmatpush1.xpose.msra.mxu0 0.0
  %749 = vmatprep.subr.mxu0 0.0
  %750 = vmatpush1.xpose.msra.mxu0 0.0
  %751 = vmatprep.subr.mxu0 0.0
  %752 = vmatpush1.xpose.msra.mxu0 0.0
  %753 = vmatprep.subr.mxu0 0.0
  %754 = vmatpush1.xpose.msra.mxu0 0.0
  %755 = vmatprep.subr.mxu0 0.0
  %756 = vmatpush1.xpose.msra.mxu0 0.0
  %757 = vmatprep.subr.mxu0 0.0
  %758 = vmatpush1.xpose.msra.mxu0 0.0
  %759 = vmatprep.subr.mxu0 0.0
  %760 = vmatpush1.xpose.msra.mxu0 0.0
  %761 = vmatprep.subr.mxu0 0.0
  %762 = vmatpush1.xpose.msra.mxu0 0.0
  %763 = vmatprep.subr.mxu0 0.0
  %764 = vmatpush1.xpose.msra.mxu0 0.0
  %765 = vmatprep.subr.mxu0 0.0
  %766 = vmatpush1.xpose.msra.mxu0 0.0
  %767 = vmatprep.subr.mxu0 0.0
  %768 = vmatpush1.xpose.msra.mxu0 0.0
  %769 = vmatprep.subr.mxu0 0.0
  %770 = vmatpush1.xpose.msra.mxu0 0.0
  %771 = vmatprep.subr.mxu0 0.0
  %772 = vmatpush1.xpose.msra.mxu0 0.0
  %773 = vmatprep.subr.mxu0 0.0
  %774 = vmatpush1.xpose.msra.mxu0 0.0
  %775 = vmatprep.subr.mxu0 0.0
  %776 = vmatpush1.xpose.msra.mxu0 0.0
  %777 = vmatprep.subr.mxu0 0.0
  %778 = vmatpush1.xpose.msra.mxu0 0.0
  %779 = vmatprep.subr.mxu0 0.0
  %780 = vmatpush1.xpose.msra.mxu0 0.0
  %781 = vmatprep.subr.mxu0 0.0
  %782 = vmatpush1.xpose.msra.mxu0 0.0
  %783 = vmatprep.subr.mxu0 0.0
  %784 = vmatpush1.xpose.msra.mxu0 0.0
  %785 = vmatprep.mubr.f32.mxu0 0.0
  %786 = vmatmul.mubr.f32.gmra.mrb[0].mxu0 %v716
  %v787 = vpop.f32.mrb[0].mxu0
  %v788 = vadd.f32 0.0, %v787
  %v789 = vpop.f32.mrb[0].mxu0
  %790 = vmatprep.mubr.f32.mxu0 0.0
  %791 = vmatmul.mubr.f32.gmra.mrb[0].mxu0 %v719
  %v792 = vpop.f32.mrb[0].mxu0
  %v793 = vadd.f32 0.0, %v792
  %v794 = vpop.f32.mrb[0].mxu0
  %795 = vdwg.mxu0
  %v796 = vsel %vm692, %v788, -inf
  %797 = vmax.xlane.f32.xlu0 %v796
  %v798 = vpop.xlane.xlu0 %797
  %v799 = vsel %vm692, %v793, -inf
  %800 = vmax.xlane.f32.xlu0 %v799
  %v801 = vpop.xlane.xlu0 %800
  %v802 = vsub.f32 %v788, %v798
  %v803 = vsub.f32 %v793, %v801
  %v804 = vmul.f32 %v802, 1.442695
  %v805 = vpow.pop %v804
  %v806 = vmul.f32 %v803, 1.442695
  %v807 = vpow.pop %v806
  %v808 = vsel %vm692, %v805, 0.0
  %809 = vadd.xlane.f32.xlu0 %v808
  %v810 = vpop.xlane.xlu0 %809
  %v811 = vsel %vm692, %v807, 0.0
  %812 = vadd.xlane.f32.xlu0 %v811
  %v813 = vpop.xlane.xlu0 %812
  %v814 = vrcp.pop %v810
  %v815 = vrcp.pop %v813
  %v816 = vmul.f32 %v805, %v814
  %v817 = vmul.f32 %v807, %v815
  %v819 = vsel %vm692, %v816, 0
  %v822 = vsel %vm692, %v817, 0
  %824 = vmatprep.subr.mxu0 0.0
  %825 = vmatpush1.msra.mxu0 %v581
  %826 = vmatprep.subr.mxu0 0.0
  %827 = vmatpush1.msra.mxu0 %v582
  %828 = vmatprep.subr.mxu0 0.0
  %829 = vmatpush1.msra.mxu0 0.0
  %830 = vmatprep.subr.mxu0 0.0
  %831 = vmatpush1.msra.mxu0 0.0
  %832 = vmatprep.subr.mxu0 0.0
  %833 = vmatpush1.msra.mxu0 0.0
  %834 = vmatprep.subr.mxu0 0.0
  %835 = vmatpush1.msra.mxu0 0.0
  %836 = vmatprep.subr.mxu0 0.0
  %837 = vmatpush1.msra.mxu0 0.0
  %838 = vmatprep.subr.mxu0 0.0
  %839 = vmatpush1.msra.mxu0 0.0
  %840 = vmatprep.subr.mxu0 0.0
  %841 = vmatpush1.msra.mxu0 0.0
  %842 = vmatprep.subr.mxu0 0.0
  %843 = vmatpush1.msra.mxu0 0.0
  %844 = vmatprep.subr.mxu0 0.0
  %845 = vmatpush1.msra.mxu0 0.0
  %846 = vmatprep.subr.mxu0 0.0
  %847 = vmatpush1.msra.mxu0 0.0
  %848 = vmatprep.subr.mxu0 0.0
  %849 = vmatpush1.msra.mxu0 0.0
  %850 = vmatprep.subr.mxu0 0.0
  %851 = vmatpush1.msra.mxu0 0.0
  %852 = vmatprep.subr.mxu0 0.0
  %853 = vmatpush1.msra.mxu0 0.0
  %854 = vmatprep.subr.mxu0 0.0
  %855 = vmatpush1.msra.mxu0 0.0
  %856 = vmatprep.subr.mxu0 0.0
  %857 = vmatpush1.msra.mxu0 0.0
  %858 = vmatprep.subr.mxu0 0.0
  %859 = vmatpush1.msra.mxu0 0.0
  %860 = vmatprep.subr.mxu0 0.0
  %861 = vmatpush1.msra.mxu0 0.0
  %862 = vmatprep.subr.mxu0 0.0
  %863 = vmatpush1.msra.mxu0 0.0
  %864 = vmatprep.subr.mxu0 0.0
  %865 = vmatpush1.msra.mxu0 0.0
  %866 = vmatprep.subr.mxu0 0.0
  %867 = vmatpush1.msra.mxu0 0.0
  %868 = vmatprep.subr.mxu0 0.0
  %869 = vmatpush1.msra.mxu0 0.0
  %870 = vmatprep.subr.mxu0 0.0
  %871 = vmatpush1.msra.mxu0 0.0
  %872 = vmatprep.subr.mxu0 0.0
  %873 = vmatpush1.msra.mxu0 0.0
  %874 = vmatprep.subr.mxu0 0.0
  %875 = vmatpush1.msra.mxu0 0.0
  %876 = vmatprep.subr.mxu0 0.0
  %877 = vmatpush1.msra.mxu0 0.0
  %878 = vmatprep.subr.mxu0 0.0
  %879 = vmatpush1.msra.mxu0 0.0
  %880 = vmatprep.subr.mxu0 0.0
  %881 = vmatpush1.msra.mxu0 0.0
  %882 = vmatprep.subr.mxu0 0.0
  %883 = vmatpush1.msra.mxu0 0.0
  %884 = vmatprep.subr.mxu0 0.0
  %885 = vmatpush1.msra.mxu0 0.0
  %886 = vmatprep.subr.mxu0 0.0
  %887 = vmatpush1.msra.mxu0 0.0
  %888 = vmatprep.mubr.f32.mxu0 0.0
  %889 = vmatmul.mubr.f32.gmra.mrb[0].mxu0 %v819
  %v890 = vpop.f32.mrb[0].mxu0
  %v891 = vadd.f32 0.0, %v890
  %v892 = vpop.f32.mrb[0].mxu0
  %893 = vmatprep.mubr.f32.mxu0 0.0
  %894 = vmatmul.mubr.f32.gmra.mrb[0].mxu0 %v822
  %v895 = vpop.f32.mrb[0].mxu0
  %v896 = vadd.f32 0.0, %v895
  %v897 = vpop.f32.mrb[0].mxu0
  %898 = vdwg.mxu0
  %v900 = vsel %vm692, %v713, 0
  %v903 = vsel %vm692, %v714, 0
  %905 = vmatprep.subr.mxu0 0.0
  %906 = vmatpush1.msra.mxu0 %v573
  %907 = vmatprep.subr.mxu0 0.0
  %908 = vmatpush1.msra.mxu0 %v574
  %909 = vmatprep.subr.mxu0 0.0
  %910 = vmatpush1.msra.mxu0 0.0
  %911 = vmatprep.subr.mxu0 0.0
  %912 = vmatpush1.msra.mxu0 0.0
  %913 = vmatprep.subr.mxu0 0.0
  %914 = vmatpush1.msra.mxu0 0.0
  %915 = vmatprep.subr.mxu0 0.0
  %916 = vmatpush1.msra.mxu0 0.0
  %917 = vmatprep.subr.mxu0 0.0
  %918 = vmatpush1.msra.mxu0 0.0
  %919 = vmatprep.subr.mxu0 0.0
  %920 = vmatpush1.msra.mxu0 0.0
  %921 = vmatprep.subr.mxu0 0.0
  %922 = vmatpush1.msra.mxu0 0.0
  %923 = vmatprep.subr.mxu0 0.0
  %924 = vmatpush1.msra.mxu0 0.0
  %925 = vmatprep.subr.mxu0 0.0
  %926 = vmatpush1.msra.mxu0 0.0
  %927 = vmatprep.subr.mxu0 0.0
  %928 = vmatpush1.msra.mxu0 0.0
  %929 = vmatprep.subr.mxu0 0.0
  %930 = vmatpush1.msra.mxu0 0.0
  %931 = vmatprep.subr.mxu0 0.0
  %932 = vmatpush1.msra.mxu0 0.0
  %933 = vmatprep.subr.mxu0 0.0
  %934 = vmatpush1.msra.mxu0 0.0
  %935 = vmatprep.subr.mxu0 0.0
  %936 = vmatpush1.msra.mxu0 0.0
  %937 = vmatprep.subr.mxu0 0.0
  %938 = vmatpush1.msra.mxu0 0.0
  %939 = vmatprep.subr.mxu0 0.0
  %940 = vmatpush1.msra.mxu0 0.0
  %941 = vmatprep.subr.mxu0 0.0
  %942 = vmatpush1.msra.mxu0 0.0
  %943 = vmatprep.subr.mxu0 0.0
  %944 = vmatpush1.msra.mxu0 0.0
  %945 = vmatprep.subr.mxu0 0.0
  %946 = vmatpush1.msra.mxu0 0.0
  %947 = vmatprep.subr.mxu0 0.0
  %948 = vmatpush1.msra.mxu0 0.0
  %949 = vmatprep.subr.mxu0 0.0
  %950 = vmatpush1.msra.mxu0 0.0
  %951 = vmatprep.subr.mxu0 0.0
  %952 = vmatpush1.msra.mxu0 0.0
  %953 = vmatprep.subr.mxu0 0.0
  %954 = vmatpush1.msra.mxu0 0.0
  %955 = vmatprep.subr.mxu0 0.0
  %956 = vmatpush1.msra.mxu0 0.0
  %957 = vmatprep.subr.mxu0 0.0
  %958 = vmatpush1.msra.mxu0 0.0
  %959 = vmatprep.subr.mxu0 0.0
  %960 = vmatpush1.msra.mxu0 0.0
  %961 = vmatprep.subr.mxu0 0.0
  %962 = vmatpush1.msra.mxu0 0.0
  %963 = vmatprep.subr.mxu0 0.0
  %964 = vmatpush1.msra.mxu0 0.0
  %965 = vmatprep.subr.mxu0 0.0
  %966 = vmatpush1.msra.mxu0 0.0
  %967 = vmatprep.subr.mxu0 0.0
  %968 = vmatpush1.msra.mxu0 0.0
  %969 = vmatprep.mubr.f32.mxu0 0.0
  %970 = vmatmul.mubr.f32.gmra.mrb[0].mxu0 %v900
  %v971 = vpop.f32.mrb[0].mxu0
  %v972 = vadd.f32 %v891, %v971
  %v973 = vpop.f32.mrb[0].mxu0
  %974 = vmatprep.mubr.f32.mxu0 0.0
  %975 = vmatmul.mubr.f32.gmra.mrb[0].mxu0 %v903
  %v976 = vpop.f32.mrb[0].mxu0
  %v977 = vadd.f32 %v896, %v976
  %v978 = vpop.f32.mrb[0].mxu0
  %979 = vdwg.mxu0
  %v981 = vsel %vm129, %v557, 0
  %v984 = vsel %vm129, %v558, 0
  %986 = vmatprep.subr.mxu0 0.0
  %987 = vmatpush1.xpose.msra.mxu0 %v612
  %988 = vmatprep.subr.mxu0 0.0
  %989 = vmatpush1.xpose.msra.mxu0 %v615
  %990 = vmatprep.subr.mxu0 0.0
  %991 = vmatpush1.xpose.msra.mxu0 0.0
  %992 = vmatprep.subr.mxu0 0.0
  %993 = vmatpush1.xpose.msra.mxu0 0.0
  %994 = vmatprep.subr.mxu0 0.0
  %995 = vmatpush1.xpose.msra.mxu0 0.0
  %996 = vmatprep.subr.mxu0 0.0
  %997 = vmatpush1.xpose.msra.mxu0 0.0
  %998 = vmatprep.subr.mxu0 0.0
  %999 = vmatpush1.xpose.msra.mxu0 0.0
  %1000 = vmatprep.subr.mxu0 0.0
  %1001 = vmatpush1.xpose.msra.mxu0 0.0
  %1002 = vmatprep.subr.mxu0 0.0
  %1003 = vmatpush1.xpose.msra.mxu0 0.0
  %1004 = vmatprep.subr.mxu0 0.0
  %1005 = vmatpush1.xpose.msra.mxu0 0.0
  %1006 = vmatprep.subr.mxu0 0.0
  %1007 = vmatpush1.xpose.msra.mxu0 0.0
  %1008 = vmatprep.subr.mxu0 0.0
  %1009 = vmatpush1.xpose.msra.mxu0 0.0
  %1010 = vmatprep.subr.mxu0 0.0
  %1011 = vmatpush1.xpose.msra.mxu0 0.0
  %1012 = vmatprep.subr.mxu0 0.0
  %1013 = vmatpush1.xpose.msra.mxu0 0.0
  %1014 = vmatprep.subr.mxu0 0.0
  %1015 = vmatpush1.xpose.msra.mxu0 0.0
  %1016 = vmatprep.subr.mxu0 0.0
  %1017 = vmatpush1.xpose.msra.mxu0 0.0
  %1018 = vmatprep.subr.mxu0 0.0
  %1019 = vmatpush1.xpose.msra.mxu0 0.0
  %1020 = vmatprep.subr.mxu0 0.0
  %1021 = vmatpush1.xpose.msra.mxu0 0.0
  %1022 = vmatprep.subr.mxu0 0.0
  %1023 = vmatpush1.xpose.msra.mxu0 0.0
  %1024 = vmatprep.subr.mxu0 0.0
  %1025 = vmatpush1.xpose.msra.mxu0 0.0
  %1026 = vmatprep.subr.mxu0 0.0
  %1027 = vmatpush1.xpose.msra.mxu0 0.0
  %1028 = vmatprep.subr.mxu0 0.0
  %1029 = vmatpush1.xpose.msra.mxu0 0.0
  %1030 = vmatprep.subr.mxu0 0.0
  %1031 = vmatpush1.xpose.msra.mxu0 0.0
  %1032 = vmatprep.subr.mxu0 0.0
  %1033 = vmatpush1.xpose.msra.mxu0 0.0
  %1034 = vmatprep.subr.mxu0 0.0
  %1035 = vmatpush1.xpose.msra.mxu0 0.0
  %1036 = vmatprep.subr.mxu0 0.0
  %1037 = vmatpush1.xpose.msra.mxu0 0.0
  %1038 = vmatprep.subr.mxu0 0.0
  %1039 = vmatpush1.xpose.msra.mxu0 0.0
  %1040 = vmatprep.subr.mxu0 0.0
  %1041 = vmatpush1.xpose.msra.mxu0 0.0
  %1042 = vmatprep.subr.mxu0 0.0
  %1043 = vmatpush1.xpose.msra.mxu0 0.0
  %1044 = vmatprep.subr.mxu0 0.0
  %1045 = vmatpush1.xpose.msra.mxu0 0.0
  %1046 = vmatprep.subr.mxu0 0.0
  %1047 = vmatpush1.xpose.msra.mxu0 0.0
  %1048 = vmatprep.subr.mxu0 0.0
  %1049 = vmatpush1.xpose.msra.mxu0 0.0
  %1050 = vmatprep.mubr.f32.mxu0 0.0
  %1051 = vmatmul.mubr.f32.gmra.mrb[0].mxu0 %v981
  %v1052 = vpop.f32.mrb[0].mxu0
  %v1053 = vadd.f32 0.0, %v1052
  %v1054 = vpop.f32.mrb[0].mxu0
  %1055 = vmatprep.mubr.f32.mxu0 0.0
  %1056 = vmatmul.mubr.f32.gmra.mrb[0].mxu0 %v984
  %v1057 = vpop.f32.mrb[0].mxu0
  %v1058 = vadd.f32 0.0, %v1057
  %v1059 = vpop.f32.mrb[0].mxu0
  %1060 = vdwg.mxu0
  %v1061 = vsel %vm692, %v1053, -inf
  %1062 = vmax.xlane.f32.xlu0 %v1061
  %v1063 = vpop.xlane.xlu0 %1062
  %v1064 = vsel %vm692, %v1058, -inf
  %1065 = vmax.xlane.f32.xlu0 %v1064
  %v1066 = vpop.xlane.xlu0 %1065
  %v1067 = vsub.f32 %v1053, %v1063
  %v1068 = vsub.f32 %v1058, %v1066
  %v1069 = vmul.f32 %v1067, 1.442695
  %v1070 = vpow.pop %v1069
  %v1071 = vmul.f32 %v1068, 1.442695
  %v1072 = vpow.pop %v1071
  %v1073 = vsel %vm692, %v1070, 0.0
  %1074 = vadd.xlane.f32.xlu0 %v1073
  %v1075 = vpop.xlane.xlu0 %1074
  %v1076 = vsel %vm692, %v1072, 0.0
  %1077 = vadd.xlane.f32.xlu0 %v1076
  %v1078 = vpop.xlane.xlu0 %1077
  %v1079 = vrcp.pop %v1075
  %v1080 = vrcp.pop %v1078
  %v1081 = vmul.f32 %v1070, %v1079
  %v1082 = vmul.f32 %v1072, %v1080
  %v1084 = vsel %vm692, %v1081, 0
  %v1087 = vsel %vm692, %v1082, 0
  %1089 = vmatprep.subr.mxu0 0.0
  %1090 = vmatpush1.msra.mxu0 %v589
  %1091 = vmatprep.subr.mxu0 0.0
  %1092 = vmatpush1.msra.mxu0 %v590
  %1093 = vmatprep.subr.mxu0 0.0
  %1094 = vmatpush1.msra.mxu0 0.0
  %1095 = vmatprep.subr.mxu0 0.0
  %1096 = vmatpush1.msra.mxu0 0.0
  %1097 = vmatprep.subr.mxu0 0.0
  %1098 = vmatpush1.msra.mxu0 0.0
  %1099 = vmatprep.subr.mxu0 0.0
  %1100 = vmatpush1.msra.mxu0 0.0
  %1101 = vmatprep.subr.mxu0 0.0
  %1102 = vmatpush1.msra.mxu0 0.0
  %1103 = vmatprep.subr.mxu0 0.0
  %1104 = vmatpush1.msra.mxu0 0.0
  %1105 = vmatprep.subr.mxu0 0.0
  %1106 = vmatpush1.msra.mxu0 0.0
  %1107 = vmatprep.subr.mxu0 0.0
  %1108 = vmatpush1.msra.mxu0 0.0
  %1109 = vmatprep.subr.mxu0 0.0
  %1110 = vmatpush1.msra.mxu0 0.0
  %1111 = vmatprep.subr.mxu0 0.0
  %1112 = vmatpush1.msra.mxu0 0.0
  %1113 = vmatprep.subr.mxu0 0.0
  %1114 = vmatpush1.msra.mxu0 0.0
  %1115 = vmatprep.subr.mxu0 0.0
  %1116 = vmatpush1.msra.mxu0 0.0
  %1117 = vmatprep.subr.mxu0 0.0
  %1118 = vmatpush1.msra.mxu0 0.0
  %1119 = vmatprep.subr.mxu0 0.0
  %1120 = vmatpush1.msra.mxu0 0.0
  %1121 = vmatprep.subr.mxu0 0.0
  %1122 = vmatpush1.msra.mxu0 0.0
  %1123 = vmatprep.subr.mxu0 0.0
  %1124 = vmatpush1.msra.mxu0 0.0
  %1125 = vmatprep.subr.mxu0 0.0
  %1126 = vmatpush1.msra.mxu0 0.0
  %1127 = vmatprep.subr.mxu0 0.0
  %1128 = vmatpush1.msra.mxu0 0.0
  %1129 = vmatprep.subr.mxu0 0.0
  %1130 = vmatpush1.msra.mxu0 0.0
  %1131 = vmatprep.subr.mxu0 0.0
  %1132 = vmatpush1.msra.mxu0 0.0
  %1133 = vmatprep.subr.mxu0 0.0
  %1134 = vmatpush1.msra.mxu0 0.0
  %1135 = vmatprep.subr.mxu0 0.0
  %1136 = vmatpush1.msra.mxu0 0.0
  %1137 = vmatprep.subr.mxu0 0.0
  %1138 = vmatpush1.msra.mxu0 0.0
  %1139 = vmatprep.subr.mxu0 0.0
  %1140 = vmatpush1.msra.mxu0 0.0
  %1141 = vmatprep.subr.mxu0 0.0
  %1142 = vmatpush1.msra.mxu0 0.0
  %1143 = vmatprep.subr.mxu0 0.0
  %1144 = vmatpush1.msra.mxu0 0.0
  %1145 = vmatprep.subr.mxu0 0.0
  %1146 = vmatpush1.msra.mxu0 0.0
  %1147 = vmatprep.subr.mxu0 0.0
  %1148 = vmatpush1.msra.mxu0 0.0
  %1149 = vmatprep.subr.mxu0 0.0
  %1150 = vmatpush1.msra.mxu0 0.0
  %1151 = vmatprep.subr.mxu0 0.0
  %1152 = vmatpush1.msra.mxu0 0.0
  %1153 = vmatprep.mubr.f32.mxu0 0.0
  %1154 = vmatmul.mubr.f32.gmra.mrb[0].mxu0 %v1084
  %v1155 = vpop.f32.mrb[0].mxu0
  %v1156 = vadd.f32 0.0, %v1155
  %v1157 = vpop.f32.mrb[0].mxu0
  %1158 = vmatprep.mubr.f32.mxu0 0.0
  %1159 = vmatmul.mubr.f32.gmra.mrb[0].mxu0 %v1087
  %v1160 = vpop.f32.mrb[0].mxu0
  %v1161 = vadd.f32 0.0, %v1160
  %v1162 = vpop.f32.mrb[0].mxu0
  %1163 = vdwg.mxu0
  %v1164 = vadd.f32 %v972, %v1156
  %v1165 = vadd.f32 %v977, %v1161
  %v1167 = vsel %vm129, %v565, 0
  %v1170 = vsel %vm129, %v566, 0
  %1172 = vmatprep.subr.mxu0 0.0
  %1173 = vmatpush1.xpose.msra.mxu0 %v612
  %1174 = vmatprep.subr.mxu0 0.0
  %1175 = vmatpush1.xpose.msra.mxu0 %v615
  %1176 = vmatprep.subr.mxu0 0.0
  %1177 = vmatpush1.xpose.msra.mxu0 0.0
  %1178 = vmatprep.subr.mxu0 0.0
  %1179 = vmatpush1.xpose.msra.mxu0 0.0
  %1180 = vmatprep.subr.mxu0 0.0
  %1181 = vmatpush1.xpose.msra.mxu0 0.0
  %1182 = vmatprep.subr.mxu0 0.0
  %1183 = vmatpush1.xpose.msra.mxu0 0.0
  %1184 = vmatprep.subr.mxu0 0.0
  %1185 = vmatpush1.xpose.msra.mxu0 0.0
  %1186 = vmatprep.subr.mxu0 0.0
  %1187 = vmatpush1.xpose.msra.mxu0 0.0
  %1188 = vmatprep.subr.mxu0 0.0
  %1189 = vmatpush1.xpose.msra.mxu0 0.0
  %1190 = vmatprep.subr.mxu0 0.0
  %1191 = vmatpush1.xpose.msra.mxu0 0.0
  %1192 = vmatprep.subr.mxu0 0.0
  %1193 = vmatpush1.xpose.msra.mxu0 0.0
  %1194 = vmatprep.subr.mxu0 0.0
  %1195 = vmatpush1.xpose.msra.mxu0 0.0
  %1196 = vmatprep.subr.mxu0 0.0
  %1197 = vmatpush1.xpose.msra.mxu0 0.0
  %1198 = vmatprep.subr.mxu0 0.0
  %1199 = vmatpush1.xpose.msra.mxu0 0.0
  %1200 = vmatprep.subr.mxu0 0.0
  %1201 = vmatpush1.xpose.msra.mxu0 0.0
  %1202 = vmatprep.subr.mxu0 0.0
  %1203 = vmatpush1.xpose.msra.mxu0 0.0
  %1204 = vmatprep.subr.mxu0 0.0
  %1205 = vmatpush1.xpose.msra.mxu0 0.0
  %1206 = vmatprep.subr.mxu0 0.0
  %1207 = vmatpush1.xpose.msra.mxu0 0.0
  %1208 = vmatprep.subr.mxu0 0.0
  %1209 = vmatpush1.xpose.msra.mxu0 0.0
  %1210 = vmatprep.subr.mxu0 0.0
  %1211 = vmatpush1.xpose.msra.mxu0 0.0
  %1212 = vmatprep.subr.mxu0 0.0
  %1213 = vmatpush1.xpose.msra.mxu0 0.0
  %1214 = vmatprep.subr.mxu0 0.0
  %1215 = vmatpush1.xpose.msra.mxu0 0.0
  %1216 = vmatprep.subr.mxu0 0.0
  %1217 = vmatpush1.xpose.msra.mxu0 0.0
  %1218 = vmatprep.subr.mxu0 0.0
  %1219 = vmatpush1.xpose.msra.mxu0 0.0
  %1220 = vmatprep.subr.mxu0 0.0
  %1221 = vmatpush1.xpose.msra.mxu0 0.0
  %1222 = vmatprep.subr.mxu0 0.0
  %1223 = vmatpush1.xpose.msra.mxu0 0.0
  %1224 = vmatprep.subr.mxu0 0.0
  %1225 = vmatpush1.xpose.msra.mxu0 0.0
  %1226 = vmatprep.subr.mxu0 0.0
  %1227 = vmatpush1.xpose.msra.mxu0 0.0
  %1228 = vmatprep.subr.mxu0 0.0
  %1229 = vmatpush1.xpose.msra.mxu0 0.0
  %1230 = vmatprep.subr.mxu0 0.0
  %1231 = vmatpush1.xpose.msra.mxu0 0.0
  %1232 = vmatprep.subr.mxu0 0.0
  %1233 = vmatpush1.xpose.msra.mxu0 0.0
  %1234 = vmatprep.subr.mxu0 0.0
  %1235 = vmatpush1.xpose.msra.mxu0 0.0
  %1236 = vmatprep.mubr.f32.mxu0 0.0
  %1237 = vmatmul.mubr.f32.gmra.mrb[0].mxu0 %v1167
  %v1238 = vpop.f32.mrb[0].mxu0
  %v1239 = vadd.f32 0.0, %v1238
  %v1240 = vpop.f32.mrb[0].mxu0
  %1241 = vmatprep.mubr.f32.mxu0 0.0
  %1242 = vmatmul.mubr.f32.gmra.mrb[0].mxu0 %v1170
  %v1243 = vpop.f32.mrb[0].mxu0
  %v1244 = vadd.f32 0.0, %v1243
  %v1245 = vpop.f32.mrb[0].mxu0
  %1246 = vdwg.mxu0
  %v1247 = vsel %vm692, %v1239, -inf
  %1248 = vmax.xlane.f32.xlu0 %v1247
  %v1249 = vpop.xlane.xlu0 %1248
  %v1250 = vsel %vm692, %v1244, -inf
  %1251 = vmax.xlane.f32.xlu0 %v1250
  %v1252 = vpop.xlane.xlu0 %1251
  %v1253 = vsub.f32 %v1239, %v1249
  %v1254 = vsub.f32 %v1244, %v1252
  %v1255 = vmul.f32 %v1253, 1.442695
  %v1256 = vpow.pop %v1255
  %v1257 = vmul.f32 %v1254, 1.442695
  %v1258 = vpow.pop %v1257
  %v1259 = vsel %vm692, %v1256, 0.0
  %1260 = vadd.xlane.f32.xlu0 %v1259
  %v1261 = vpop.xlane.xlu0 %1260
  %v1262 = vsel %vm692, %v1258, 0.0
  %1263 = vadd.xlane.f32.xlu0 %v1262
  %v1264 = vpop.xlane.xlu0 %1263
  %v1265 = vrcp.pop %v1261
  %v1266 = vrcp.pop %v1264
  %v1267 = vmul.f32 %v1256, %v1265
  %v1268 = vmul.f32 %v1258, %v1266
  %v1270 = vsel %vm692, %v1267, 0
  %v1273 = vsel %vm692, %v1268, 0
  %1275 = vmatprep.subr.mxu0 0.0
  %1276 = vmatpush1.msra.mxu0 %v597
  %1277 = vmatprep.subr.mxu0 0.0
  %1278 = vmatpush1.msra.mxu0 %v598
  %1279 = vmatprep.subr.mxu0 0.0
  %1280 = vmatpush1.msra.mxu0 0.0
  %1281 = vmatprep.subr.mxu0 0.0
  %1282 = vmatpush1.msra.mxu0 0.0
  %1283 = vmatprep.subr.mxu0 0.0
  %1284 = vmatpush1.msra.mxu0 0.0
  %1285 = vmatprep.subr.mxu0 0.0
  %1286 = vmatpush1.msra.mxu0 0.0
  %1287 = vmatprep.subr.mxu0 0.0
  %1288 = vmatpush1.msra.mxu0 0.0
  %1289 = vmatprep.subr.mxu0 0.0
  %1290 = vmatpush1.msra.mxu0 0.0
  %1291 = vmatprep.subr.mxu0 0.0
  %1292 = vmatpush1.msra.mxu0 0.0
  %1293 = vmatprep.subr.mxu0 0.0
  %1294 = vmatpush1.msra.mxu0 0.0
  %1295 = vmatprep.subr.mxu0 0.0
  %1296 = vmatpush1.msra.mxu0 0.0
  %1297 = vmatprep.subr.mxu0 0.0
  %1298 = vmatpush1.msra.mxu0 0.0
  %1299 = vmatprep.subr.mxu0 0.0
  %1300 = vmatpush1.msra.mxu0 0.0
  %1301 = vmatprep.subr.mxu0 0.0
  %1302 = vmatpush1.msra.mxu0 0.0
  %1303 = vmatprep.subr.mxu0 0.0
  %1304 = vmatpush1.msra.mxu0 0.0
  %1305 = vmatprep.subr.mxu0 0.0
  %1306 = vmatpush1.msra.mxu0 0.0
  %1307 = vmatprep.subr.mxu0 0.0
  %1308 = vmatpush1.msra.mxu0 0.0
  %1309 = vmatprep.subr.mxu0 0.0
  %1310 = vmatpush1.msra.mxu0 0.0
  %1311 = vmatprep.subr.mxu0 0.0
  %1312 = vmatpush1.msra.mxu0 0.0
  %1313 = vmatprep.subr.mxu0 0.0
  %1314 = vmatpush1.msra.mxu0 0.0
  %1315 = vmatprep.subr.mxu0 0.0
  %1316 = vmatpush1.msra.mxu0 0.0
  %1317 = vmatprep.subr.mxu0 0.0
  %1318 = vmatpush1.msra.mxu0 0.0
  %1319 = vmatprep.subr.mxu0 0.0
  %1320 = vmatpush1.msra.mxu0 0.0
  %1321 = vmatprep.subr.mxu0 0.0
  %1322 = vmatpush1.msra.mxu0 0.0
  %1323 = vmatprep.subr.mxu0 0.0
  %1324 = vmatpush1.msra.mxu0 0.0
  %1325 = vmatprep.subr.mxu0 0.0
  %1326 = vmatpush1.msra.mxu0 0.0
  %1327 = vmatprep.subr.mxu0 0.0
  %1328 = vmatpush1.msra.mxu0 0.0
  %1329 = vmatprep.subr.mxu0 0.0
  %1330 = vmatpush1.msra.mxu0 0.0
  %1331 = vmatprep.subr.mxu0 0.0
  %1332 = vmatpush1.msra.mxu0 0.0
  %1333 = vmatprep.subr.mxu0 0.0
  %1334 = vmatpush1.msra.mxu0 0.0
  %1335 = vmatprep.subr.mxu0 0.0
  %1336 = vmatpush1.msra.mxu0 0.0
  %1337 = vmatprep.subr.mxu0 0.0
  %1338 = vmatpush1.msra.mxu0 0.0
  %1339 = vmatprep.mubr.f32.mxu0 0.0
  %1340 = vmatmul.mubr.f32.gmra.mrb[0].mxu0 %v1270
  %v1341 = vpop.f32.mrb[0].mxu0
  %v1342 = vadd.f32 0.0, %v1341
  %v1343 = vpop.f32.mrb[0].mxu0
  %1344 = vmatprep.mubr.f32.mxu0 0.0
  %1345 = vmatmul.mubr.f32.gmra.mrb[0].mxu0 %v1273
  %v1346 = vpop.f32.mrb[0].mxu0
  %v1347 = vadd.f32 0.0, %v1346
  %v1348 = vpop.f32.mrb[0].mxu0
  %1349 = vdwg.mxu0
  %v1350 = vadd.f32 %v1164, %v1342
  %v1351 = vadd.f32 %v1165, %v1347
  %v1353 = vsel %vm129, %v543, 0
  %v1356 = vsel %vm129, %v544, 0
  %v1359 = vsel %vm129, %v535, 0
  %v1362 = vsel %vm129, %v536, 0
  %1364 = vmatprep.subr.mxu0 0.0
  %1365 = vmatpush1.xpose.msra.mxu0 %v1359
  %1366 = vmatprep.subr.mxu0 0.0
  %1367 = vmatpush1.xpose.msra.mxu0 %v1362
  %1368 = vmatprep.subr.mxu0 0.0
  %1369 = vmatpush1.xpose.msra.mxu0 0.0
  %1370 = vmatprep.subr.mxu0 0.0
  %1371 = vmatpush1.xpose.msra.mxu0 0.0
  %1372 = vmatprep.subr.mxu0 0.0
  %1373 = vmatpush1.xpose.msra.mxu0 0.0
  %1374 = vmatprep.subr.mxu0 0.0
  %1375 = vmatpush1.xpose.msra.mxu0 0.0
  %1376 = vmatprep.subr.mxu0 0.0
  %1377 = vmatpush1.xpose.msra.mxu0 0.0
  %1378 = vmatprep.subr.mxu0 0.0
  %1379 = vmatpush1.xpose.msra.mxu0 0.0
  %1380 = vmatprep.subr.mxu0 0.0
  %1381 = vmatpush1.xpose.msra.mxu0 0.0
  %1382 = vmatprep.subr.mxu0 0.0
  %1383 = vmatpush1.xpose.msra.mxu0 0.0
  %1384 = vmatprep.subr.mxu0 0.0
  %1385 = vmatpush1.xpose.msra.mxu0 0.0
  %1386 = vmatprep.subr.mxu0 0.0
  %1387 = vmatpush1.xpose.msra.mxu0 0.0
  %1388 = vmatprep.subr.mxu0 0.0
  %1389 = vmatpush1.xpose.msra.mxu0 0.0
  %1390 = vmatprep.subr.mxu0 0.0
  %1391 = vmatpush1.xpose.msra.mxu0 0.0
  %1392 = vmatprep.subr.mxu0 0.0
  %1393 = vmatpush1.xpose.msra.mxu0 0.0
  %1394 = vmatprep.subr.mxu0 0.0
  %1395 = vmatpush1.xpose.msra.mxu0 0.0
  %1396 = vmatprep.subr.mxu0 0.0
  %1397 = vmatpush1.xpose.msra.mxu0 0.0
  %1398 = vmatprep.subr.mxu0 0.0
  %1399 = vmatpush1.xpose.msra.mxu0 0.0
  %1400 = vmatprep.subr.mxu0 0.0
  %1401 = vmatpush1.xpose.msra.mxu0 0.0
  %1402 = vmatprep.subr.mxu0 0.0
  %1403 = vmatpush1.xpose.msra.mxu0 0.0
  %1404 = vmatprep.subr.mxu0 0.0
  %1405 = vmatpush1.xpose.msra.mxu0 0.0
  %1406 = vmatprep.subr.mxu0 0.0
  %1407 = vmatpush1.xpose.msra.mxu0 0.0
  %1408 = vmatprep.subr.mxu0 0.0
  %1409 = vmatpush1.xpose.msra.mxu0 0.0
  %1410 = vmatprep.subr.mxu0 0.0
  %1411 = vmatpush1.xpose.msra.mxu0 0.0
  %1412 = vmatprep.subr.mxu0 0.0
  %1413 = vmatpush1.xpose.msra.mxu0 0.0
  %1414 = vmatprep.subr.mxu0 0.0
  %1415 = vmatpush1.xpose.msra.mxu0 0.0
  %1416 = vmatprep.subr.mxu0 0.0
  %1417 = vmatpush1.xpose.msra.mxu0 0.0
  %1418 = vmatprep.subr.mxu0 0.0
  %1419 = vmatpush1.xpose.msra.mxu0 0.0
  %1420 = vmatprep.subr.mxu0 0.0
  %1421 = vmatpush1.xpose.msra.mxu0 0.0
  %1422 = vmatprep.subr.mxu0 0.0
  %1423 = vmatpush1.xpose.msra.mxu0 0.0
  %1424 = vmatprep.subr.mxu0 0.0
  %1425 = vmatpush1.xpose.msra.mxu0 0.0
  %1426 = vmatprep.subr.mxu0 0.0
  %1427 = vmatpush1.xpose.msra.mxu0 0.0
  %1428 = vmatprep.mubr.f32.mxu0 0.0
  %1429 = vmatmul.mubr.f32.gmra.mrb[0].mxu0 %v1353
  %v1430 = vpop.f32.mrb[0].mxu0
  %v1431 = vadd.f32 0.0, %v1430
  %v1432 = vpop.f32.mrb[0].mxu0
  %1433 = vmatprep.mubr.f32.mxu0 0.0
  %1434 = vmatmul.mubr.f32.gmra.mrb[0].mxu0 %v1356
  %v1435 = vpop.f32.mrb[0].mxu0
  %v1436 = vadd.f32 0.0, %v1435
  %v1437 = vpop.f32.mrb[0].mxu0
  %1438 = vdwg.mxu0
  %v1439 = vsel %vm692, %v1431, -inf
  %1440 = vmax.xlane.f32.xlu0 %v1439
  %v1441 = vpop.xlane.xlu0 %1440
  %v1442 = vsel %vm692, %v1436, -inf
  %1443 = vmax.xlane.f32.xlu0 %v1442
  %v1444 = vpop.xlane.xlu0 %1443
  %v1445 = vsub.f32 %v1431, %v1441
  %v1446 = vsub.f32 %v1436, %v1444
  %v1447 = vmul.f32 %v1445, 1.442695
  %v1448 = vpow.pop %v1447
  %v1449 = vmul.f32 %v1446, 1.442695
  %v1450 = vpow.pop %v1449
  %v1451 = vsel %vm692, %v1448, 0.0
  %1452 = vadd.xlane.f32.xlu0 %v1451
  %v1453 = vpop.xlane.xlu0 %1452
  %v1454 = vsel %vm692, %v1450, 0.0
  %1455 = vadd.xlane.f32.xlu0 %v1454
  %v1456 = vpop.xlane.xlu0 %1455
  %v1457 = vrcp.pop %v1453
  %v1458 = vrcp.pop %v1456
  %v1459 = vmul.f32 %v1448, %v1457
  %v1460 = vmul.f32 %v1450, %v1458
  %v1462 = vsel %vm129, %v551, 0
  %v1465 = vsel %vm129, %v552, 0
  %1467 = vmatprep.subr.mxu0 0.0
  %1468 = vmatpush1.xpose.msra.mxu0 %v1359
  %1469 = vmatprep.subr.mxu0 0.0
  %1470 = vmatpush1.xpose.msra.mxu0 %v1362
  %1471 = vmatprep.subr.mxu0 0.0
  %1472 = vmatpush1.xpose.msra.mxu0 0.0
  %1473 = vmatprep.subr.mxu0 0.0
  %1474 = vmatpush1.xpose.msra.mxu0 0.0
  %1475 = vmatprep.subr.mxu0 0.0
  %1476 = vmatpush1.xpose.msra.mxu0 0.0
  %1477 = vmatprep.subr.mxu0 0.0
  %1478 = vmatpush1.xpose.msra.mxu0 0.0
  %1479 = vmatprep.subr.mxu0 0.0
  %1480 = vmatpush1.xpose.msra.mxu0 0.0
  %1481 = vmatprep.subr.mxu0 0.0
  %1482 = vmatpush1.xpose.msra.mxu0 0.0
  %1483 = vmatprep.subr.mxu0 0.0
  %1484 = vmatpush1.xpose.msra.mxu0 0.0
  %1485 = vmatprep.subr.mxu0 0.0
  %1486 = vmatpush1.xpose.msra.mxu0 0.0
  %1487 = vmatprep.subr.mxu0 0.0
  %1488 = vmatpush1.xpose.msra.mxu0 0.0
  %1489 = vmatprep.subr.mxu0 0.0
  %1490 = vmatpush1.xpose.msra.mxu0 0.0
  %1491 = vmatprep.subr.mxu0 0.0
  %1492 = vmatpush1.xpose.msra.mxu0 0.0
  %1493 = vmatprep.subr.mxu0 0.0
  %1494 = vmatpush1.xpose.msra.mxu0 0.0
  %1495 = vmatprep.subr.mxu0 0.0
  %1496 = vmatpush1.xpose.msra.mxu0 0.0
  %1497 = vmatprep.subr.mxu0 0.0
  %1498 = vmatpush1.xpose.msra.mxu0 0.0
  %1499 = vmatprep.subr.mxu0 0.0
  %1500 = vmatpush1.xpose.msra.mxu0 0.0
  %1501 = vmatprep.subr.mxu0 0.0
  %1502 = vmatpush1.xpose.msra.mxu0 0.0
  %1503 = vmatprep.subr.mxu0 0.0
  %1504 = vmatpush1.xpose.msra.mxu0 0.0
  %1505 = vmatprep.subr.mxu0 0.0
  %1506 = vmatpush1.xpose.msra.mxu0 0.0
  %1507 = vmatprep.subr.mxu0 0.0
  %1508 = vmatpush1.xpose.msra.mxu0 0.0
  %1509 = vmatprep.subr.mxu0 0.0
  %1510 = vmatpush1.xpose.msra.mxu0 0.0
  %1511 = vmatprep.subr.mxu0 0.0
  %1512 = vmatpush1.xpose.msra.mxu0 0.0
  %1513 = vmatprep.subr.mxu0 0.0
  %1514 = vmatpush1.xpose.msra.mxu0 0.0
  %1515 = vmatprep.subr.mxu0 0.0
  %1516 = vmatpush1.xpose.msra.mxu0 0.0
  %1517 = vmatprep.subr.mxu0 0.0
  %1518 = vmatpush1.xpose.msra.mxu0 0.0
  %1519 = vmatprep.subr.mxu0 0.0
  %1520 = vmatpush1.xpose.msra.mxu0 0.0
  %1521 = vmatprep.subr.mxu0 0.0
  %1522 = vmatpush1.xpose.msra.mxu0 0.0
  %1523 = vmatprep.subr.mxu0 0.0
  %1524 = vmatpush1.xpose.msra.mxu0 0.0
  %1525 = vmatprep.subr.mxu0 0.0
  %1526 = vmatpush1.xpose.msra.mxu0 0.0
  %1527 = vmatprep.subr.mxu0 0.0
  %1528 = vmatpush1.xpose.msra.mxu0 0.0
  %1529 = vmatprep.subr.mxu0 0.0
  %1530 = vmatpush1.xpose.msra.mxu0 0.0
  %1531 = vmatprep.mubr.f32.mxu0 0.0
  %1532 = vmatmul.mubr.f32.gmra.mrb[0].mxu0 %v1462
  %v1533 = vpop.f32.mrb[0].mxu0
  %v1534 = vadd.f32 0.0, %v1533
  %v1535 = vpop.f32.mrb[0].mxu0
  %1536 = vmatprep.mubr.f32.mxu0 0.0
  %1537 = vmatmul.mubr.f32.gmra.mrb[0].mxu0 %v1465
  %v1538 = vpop.f32.mrb[0].mxu0
  %v1539 = vadd.f32 0.0, %v1538
  %v1540 = vpop.f32.mrb[0].mxu0
  %1541 = vdwg.mxu0
  %v1542 = vsel %vm692, %v1534, -inf
  %1543 = vmax.xlane.f32.xlu0 %v1542
  %v1544 = vpop.xlane.xlu0 %1543
  %v1545 = vsel %vm692, %v1539, -inf
  %1546 = vmax.xlane.f32.xlu0 %v1545
  %v1547 = vpop.xlane.xlu0 %1546
  %v1548 = vsub.f32 %v1534, %v1544
  %v1549 = vsub.f32 %v1539, %v1547
  %v1550 = vmul.f32 %v1548, 1.442695
  %v1551 = vpow.pop %v1550
  %v1552 = vmul.f32 %v1549, 1.442695
  %v1553 = vpow.pop %v1552
  %v1554 = vsel %vm692, %v1551, 0.0
  %1555 = vadd.xlane.f32.xlu0 %v1554
  %v1556 = vpop.xlane.xlu0 %1555
  %v1557 = vsel %vm692, %v1553, 0.0
  %1558 = vadd.xlane.f32.xlu0 %v1557
  %v1559 = vpop.xlane.xlu0 %1558
  %v1560 = vrcp.pop %v1556
  %v1561 = vrcp.pop %v1559
  %v1562 = vmul.f32 %v1551, %v1560
  %v1563 = vmul.f32 %v1553, %v1561
  %v1565 = vsel %vm692, %v1562, 0
  %v1568 = vsel %vm692, %v1563, 0
  %1570 = vmatprep.subr.mxu0 0.0
  %1571 = vmatpush1.msra.mxu0 %v583
  %1572 = vmatprep.subr.mxu0 0.0
  %1573 = vmatpush1.msra.mxu0 %v584
  %1574 = vmatprep.subr.mxu0 0.0
  %1575 = vmatpush1.msra.mxu0 0.0
  %1576 = vmatprep.subr.mxu0 0.0
  %1577 = vmatpush1.msra.mxu0 0.0
  %1578 = vmatprep.subr.mxu0 0.0
  %1579 = vmatpush1.msra.mxu0 0.0
  %1580 = vmatprep.subr.mxu0 0.0
  %1581 = vmatpush1.msra.mxu0 0.0
  %1582 = vmatprep.subr.mxu0 0.0
  %1583 = vmatpush1.msra.mxu0 0.0
  %1584 = vmatprep.subr.mxu0 0.0
  %1585 = vmatpush1.msra.mxu0 0.0
  %1586 = vmatprep.subr.mxu0 0.0
  %1587 = vmatpush1.msra.mxu0 0.0
  %1588 = vmatprep.subr.mxu0 0.0
  %1589 = vmatpush1.msra.mxu0 0.0
  %1590 = vmatprep.subr.mxu0 0.0
  %1591 = vmatpush1.msra.mxu0 0.0
  %1592 = vmatprep.subr.mxu0 0.0
  %1593 = vmatpush1.msra.mxu0 0.0
  %1594 = vmatprep.subr.mxu0 0.0
  %1595 = vmatpush1.msra.mxu0 0.0
  %1596 = vmatprep.subr.mxu0 0.0
  %1597 = vmatpush1.msra.mxu0 0.0
  %1598 = vmatprep.subr.mxu0 0.0
  %1599 = vmatpush1.msra.mxu0 0.0
  %1600 = vmatprep.subr.mxu0 0.0
  %1601 = vmatpush1.msra.mxu0 0.0
  %1602 = vmatprep.subr.mxu0 0.0
  %1603 = vmatpush1.msra.mxu0 0.0
  %1604 = vmatprep.subr.mxu0 0.0
  %1605 = vmatpush1.msra.mxu0 0.0
  %1606 = vmatprep.subr.mxu0 0.0
  %1607 = vmatpush1.msra.mxu0 0.0
  %1608 = vmatprep.subr.mxu0 0.0
  %1609 = vmatpush1.msra.mxu0 0.0
  %1610 = vmatprep.subr.mxu0 0.0
  %1611 = vmatpush1.msra.mxu0 0.0
  %1612 = vmatprep.subr.mxu0 0.0
  %1613 = vmatpush1.msra.mxu0 0.0
  %1614 = vmatprep.subr.mxu0 0.0
  %1615 = vmatpush1.msra.mxu0 0.0
  %1616 = vmatprep.subr.mxu0 0.0
  %1617 = vmatpush1.msra.mxu0 0.0
  %1618 = vmatprep.subr.mxu0 0.0
  %1619 = vmatpush1.msra.mxu0 0.0
  %1620 = vmatprep.subr.mxu0 0.0
  %1621 = vmatpush1.msra.mxu0 0.0
  %1622 = vmatprep.subr.mxu0 0.0
  %1623 = vmatpush1.msra.mxu0 0.0
  %1624 = vmatprep.subr.mxu0 0.0
  %1625 = vmatpush1.msra.mxu0 0.0
  %1626 = vmatprep.subr.mxu0 0.0
  %1627 = vmatpush1.msra.mxu0 0.0
  %1628 = vmatprep.subr.mxu0 0.0
  %1629 = vmatpush1.msra.mxu0 0.0
  %1630 = vmatprep.subr.mxu0 0.0
  %1631 = vmatpush1.msra.mxu0 0.0
  %1632 = vmatprep.subr.mxu0 0.0
  %1633 = vmatpush1.msra.mxu0 0.0
  %1634 = vmatprep.mubr.f32.mxu0 0.0
  %1635 = vmatmul.mubr.f32.gmra.mrb[0].mxu0 %v1565
  %v1636 = vpop.f32.mrb[0].mxu0
  %v1637 = vadd.f32 0.0, %v1636
  %v1638 = vpop.f32.mrb[0].mxu0
  %1639 = vmatprep.mubr.f32.mxu0 0.0
  %1640 = vmatmul.mubr.f32.gmra.mrb[0].mxu0 %v1568
  %v1641 = vpop.f32.mrb[0].mxu0
  %v1642 = vadd.f32 0.0, %v1641
  %v1643 = vpop.f32.mrb[0].mxu0
  %1644 = vdwg.mxu0
  %v1646 = vsel %vm692, %v1459, 0
  %v1649 = vsel %vm692, %v1460, 0
  %1651 = vmatprep.subr.mxu0 0.0
  %1652 = vmatpush1.msra.mxu0 %v575
  %1653 = vmatprep.subr.mxu0 0.0
  %1654 = vmatpush1.msra.mxu0 %v576
  %1655 = vmatprep.subr.mxu0 0.0
  %1656 = vmatpush1.msra.mxu0 0.0
  %1657 = vmatprep.subr.mxu0 0.0
  %1658 = vmatpush1.msra.mxu0 0.0
  %1659 = vmatprep.subr.mxu0 0.0
  %1660 = vmatpush1.msra.mxu0 0.0
  %1661 = vmatprep.subr.mxu0 0.0
  %1662 = vmatpush1.msra.mxu0 0.0
  %1663 = vmatprep.subr.mxu0 0.0
  %1664 = vmatpush1.msra.mxu0 0.0
  %1665 = vmatprep.subr.mxu0 0.0
  %1666 = vmatpush1.msra.mxu0 0.0
  %1667 = vmatprep.subr.mxu0 0.0
  %1668 = vmatpush1.msra.mxu0 0.0
  %1669 = vmatprep.subr.mxu0 0.0
  %1670 = vmatpush1.msra.mxu0 0.0
  %1671 = vmatprep.subr.mxu0 0.0
  %1672 = vmatpush1.msra.mxu0 0.0
  %1673 = vmatprep.subr.mxu0 0.0
  %1674 = vmatpush1.msra.mxu0 0.0
  %1675 = vmatprep.subr.mxu0 0.0
  %1676 = vmatpush1.msra.mxu0 0.0
  %1677 = vmatprep.subr.mxu0 0.0
  %1678 = vmatpush1.msra.mxu0 0.0
  %1679 = vmatprep.subr.mxu0 0.0
  %1680 = vmatpush1.msra.mxu0 0.0
  %1681 = vmatprep.subr.mxu0 0.0
  %1682 = vmatpush1.msra.mxu0 0.0
  %1683 = vmatprep.subr.mxu0 0.0
  %1684 = vmatpush1.msra.mxu0 0.0
  %1685 = vmatprep.subr.mxu0 0.0
  %1686 = vmatpush1.msra.mxu0 0.0
  %1687 = vmatprep.subr.mxu0 0.0
  %1688 = vmatpush1.msra.mxu0 0.0
  %1689 = vmatprep.subr.mxu0 0.0
  %1690 = vmatpush1.msra.mxu0 0.0
  %1691 = vmatprep.subr.mxu0 0.0
  %1692 = vmatpush1.msra.mxu0 0.0
  %1693 = vmatprep.subr.mxu0 0.0
  %1694 = vmatpush1.msra.mxu0 0.0
  %1695 = vmatprep.subr.mxu0 0.0
  %1696 = vmatpush1.msra.mxu0 0.0
  %1697 = vmatprep.subr.mxu0 0.0
  %1698 = vmatpush1.msra.mxu0 0.0
  %1699 = vmatprep.subr.mxu0 0.0
  %1700 = vmatpush1.msra.mxu0 0.0
  %1701 = vmatprep.subr.mxu0 0.0
  %1702 = vmatpush1.msra.mxu0 0.0
  %1703 = vmatprep.subr.mxu0 0.0
  %1704 = vmatpush1.msra.mxu0 0.0
  %1705 = vmatprep.subr.mxu0 0.0
  %1706 = vmatpush1.msra.mxu0 0.0
  %1707 = vmatprep.subr.mxu0 0.0
  %1708 = vmatpush1.msra.mxu0 0.0
  %1709 = vmatprep.subr.mxu0 0.0
  %1710 = vmatpush1.msra.mxu0 0.0
  %1711 = vmatprep.subr.mxu0 0.0
  %1712 = vmatpush1.msra.mxu0 0.0
  %1713 = vmatprep.subr.mxu0 0.0
  %1714 = vmatpush1.msra.mxu0 0.0
  %1715 = vmatprep.mubr.f32.mxu0 0.0
  %1716 = vmatmul.mubr.f32.gmra.mrb[0].mxu0 %v1646
  %v1717 = vpop.f32.mrb[0].mxu0
  %v1718 = vadd.f32 %v1637, %v1717
  %v1719 = vpop.f32.mrb[0].mxu0
  %1720 = vmatprep.mubr.f32.mxu0 0.0
  %1721 = vmatmul.mubr.f32.gmra.mrb[0].mxu0 %v1649
  %v1722 = vpop.f32.mrb[0].mxu0
  %v1723 = vadd.f32 %v1642, %v1722
  %v1724 = vpop.f32.mrb[0].mxu0
  %1725 = vdwg.mxu0
  %v1727 = vsel %vm129, %v559, 0
  %v1730 = vsel %vm129, %v560, 0
  %1732 = vmatprep.subr.mxu0 0.0
  %1733 = vmatpush1.xpose.msra.mxu0 %v1359
  %1734 = vmatprep.subr.mxu0 0.0
  %1735 = vmatpush1.xpose.msra.mxu0 %v1362
  %1736 = vmatprep.subr.mxu0 0.0
  %1737 = vmatpush1.xpose.msra.mxu0 0.0
  %1738 = vmatprep.subr.mxu0 0.0
  %1739 = vmatpush1.xpose.msra.mxu0 0.0
  %1740 = vmatprep.subr.mxu0 0.0
  %1741 = vmatpush1.xpose.msra.mxu0 0.0
  %1742 = vmatprep.subr.mxu0 0.0
  %1743 = vmatpush1.xpose.msra.mxu0 0.0
  %1744 = vmatprep.subr.mxu0 0.0
  %1745 = vmatpush1.xpose.msra.mxu0 0.0
  %1746 = vmatprep.subr.mxu0 0.0
  %1747 = vmatpush1.xpose.msra.mxu0 0.0
  %1748 = vmatprep.subr.mxu0 0.0
  %1749 = vmatpush1.xpose.msra.mxu0 0.0
  %1750 = vmatprep.subr.mxu0 0.0
  %1751 = vmatpush1.xpose.msra.mxu0 0.0
  %1752 = vmatprep.subr.mxu0 0.0
  %1753 = vmatpush1.xpose.msra.mxu0 0.0
  %1754 = vmatprep.subr.mxu0 0.0
  %1755 = vmatpush1.xpose.msra.mxu0 0.0
  %1756 = vmatprep.subr.mxu0 0.0
  %1757 = vmatpush1.xpose.msra.mxu0 0.0
  %1758 = vmatprep.subr.mxu0 0.0
  %1759 = vmatpush1.xpose.msra.mxu0 0.0
  %1760 = vmatprep.subr.mxu0 0.0
  %1761 = vmatpush1.xpose.msra.mxu0 0.0
  %1762 = vmatprep.subr.mxu0 0.0
  %1763 = vmatpush1.xpose.msra.mxu0 0.0
  %1764 = vmatprep.subr.mxu0 0.0
  %1765 = vmatpush1.xpose.msra.mxu0 0.0
  %1766 = vmatprep.subr.mxu0 0.0
  %1767 = vmatpush1.xpose.msra.mxu0 0.0
  %1768 = vmatprep.subr.mxu0 0.0
  %1769 = vmatpush1.xpose.msra.mxu0 0.0
  %1770 = vmatprep.subr.mxu0 0.0
  %1771 = vmatpush1.xpose.msra.mxu0 0.0
  %1772 = vmatprep.subr.mxu0 0.0
  %1773 = vmatpush1.xpose.msra.mxu0 0.0
  %1774 = vmatprep.subr.mxu0 0.0
  %1775 = vmatpush1.xpose.msra.mxu0 0.0
  %1776 = vmatprep.subr.mxu0 0.0
  %1777 = vmatpush1.xpose.msra.mxu0 0.0
  %1778 = vmatprep.subr.mxu0 0.0
  %1779 = vmatpush1.xpose.msra.mxu0 0.0
  %1780 = vmatprep.subr.mxu0 0.0
  %1781 = vmatpush1.xpose.msra.mxu0 0.0
  %1782 = vmatprep.subr.mxu0 0.0
  %1783 = vmatpush1.xpose.msra.mxu0 0.0
  %1784 = vmatprep.subr.mxu0 0.0
  %1785 = vmatpush1.xpose.msra.mxu0 0.0
  %1786 = vmatprep.subr.mxu0 0.0
  %1787 = vmatpush1.xpose.msra.mxu0 0.0
  %1788 = vmatprep.subr.mxu0 0.0
  %1789 = vmatpush1.xpose.msra.mxu0 0.0
  %1790 = vmatprep.subr.mxu0 0.0
  %1791 = vmatpush1.xpose.msra.mxu0 0.0
  %1792 = vmatprep.subr.mxu0 0.0
  %1793 = vmatpush1.xpose.msra.mxu0 0.0
  %1794 = vmatprep.subr.mxu0 0.0
  %1795 = vmatpush1.xpose.msra.mxu0 0.0
  %1796 = vmatprep.mubr.f32.mxu0 0.0
  %1797 = vmatmul.mubr.f32.gmra.mrb[0].mxu0 %v1727
  %v1798 = vpop.f32.mrb[0].mxu0
  %v1799 = vadd.f32 0.0, %v1798
  %v1800 = vpop.f32.mrb[0].mxu0
  %1801 = vmatprep.mubr.f32.mxu0 0.0
  %1802 = vmatmul.mubr.f32.gmra.mrb[0].mxu0 %v1730
  %v1803 = vpop.f32.mrb[0].mxu0
  %v1804 = vadd.f32 0.0, %v1803
  %v1805 = vpop.f32.mrb[0].mxu0
  %1806 = vdwg.mxu0
  %v1807 = vsel %vm692, %v1799, -inf
  %1808 = vmax.xlane.f32.xlu0 %v1807
  %v1809 = vpop.xlane.xlu0 %1808
  %v1810 = vsel %vm692, %v1804, -inf
  %1811 = vmax.xlane.f32.xlu0 %v1810
  %v1812 = vpop.xlane.xlu0 %1811
  %v1813 = vsub.f32 %v1799, %v1809
  %v1814 = vsub.f32 %v1804, %v1812
  %v1815 = vmul.f32 %v1813, 1.442695
  %v1816 = vpow.pop %v1815
  %v1817 = vmul.f32 %v1814, 1.442695
  %v1818 = vpow.pop %v1817
  %v1819 = vsel %vm692, %v1816, 0.0
  %1820 = vadd.xlane.f32.xlu0 %v1819
  %v1821 = vpop.xlane.xlu0 %1820
  %v1822 = vsel %vm692, %v1818, 0.0
  %1823 = vadd.xlane.f32.xlu0 %v1822
  %v1824 = vpop.xlane.xlu0 %1823
  %v1825 = vrcp.pop %v1821
  %v1826 = vrcp.pop %v1824
  %v1827 = vmul.f32 %v1816, %v1825
  %v1828 = vmul.f32 %v1818, %v1826
  %v1830 = vsel %vm692, %v1827, 0
  %v1833 = vsel %vm692, %v1828, 0
  %1835 = vmatprep.subr.mxu0 0.0
  %1836 = vmatpush1.msra.mxu0 %v591
  %1837 = vmatprep.subr.mxu0 0.0
  %1838 = vmatpush1.msra.mxu0 %v592
  %1839 = vmatprep.subr.mxu0 0.0
  %1840 = vmatpush1.msra.mxu0 0.0
  %1841 = vmatprep.subr.mxu0 0.0
  %1842 = vmatpush1.msra.mxu0 0.0
  %1843 = vmatprep.subr.mxu0 0.0
  %1844 = vmatpush1.msra.mxu0 0.0
  %1845 = vmatprep.subr.mxu0 0.0
  %1846 = vmatpush1.msra.mxu0 0.0
  %1847 = vmatprep.subr.mxu0 0.0
  %1848 = vmatpush1.msra.mxu0 0.0
  %1849 = vmatprep.subr.mxu0 0.0
  %1850 = vmatpush1.msra.mxu0 0.0
  %1851 = vmatprep.subr.mxu0 0.0
  %1852 = vmatpush1.msra.mxu0 0.0
  %1853 = vmatprep.subr.mxu0 0.0
  %1854 = vmatpush1.msra.mxu0 0.0
  %1855 = vmatprep.subr.mxu0 0.0
  %1856 = vmatpush1.msra.mxu0 0.0
  %1857 = vmatprep.subr.mxu0 0.0
  %1858 = vmatpush1.msra.mxu0 0.0
  %1859 = vmatprep.subr.mxu0 0.0
  %1860 = vmatpush1.msra.mxu0 0.0
  %1861 = vmatprep.subr.mxu0 0.0
  %1862 = vmatpush1.msra.mxu0 0.0
  %1863 = vmatprep.subr.mxu0 0.0
  %1864 = vmatpush1.msra.mxu0 0.0
  %1865 = vmatprep.subr.mxu0 0.0
  %1866 = vmatpush1.msra.mxu0 0.0
  %1867 = vmatprep.subr.mxu0 0.0
  %1868 = vmatpush1.msra.mxu0 0.0
  %1869 = vmatprep.subr.mxu0 0.0
  %1870 = vmatpush1.msra.mxu0 0.0
  %1871 = vmatprep.subr.mxu0 0.0
  %1872 = vmatpush1.msra.mxu0 0.0
  %1873 = vmatprep.subr.mxu0 0.0
  %1874 = vmatpush1.msra.mxu0 0.0
  %1875 = vmatprep.subr.mxu0 0.0
  %1876 = vmatpush1.msra.mxu0 0.0
  %1877 = vmatprep.subr.mxu0 0.0
  %1878 = vmatpush1.msra.mxu0 0.0
  %1879 = vmatprep.subr.mxu0 0.0
  %1880 = vmatpush1.msra.mxu0 0.0
  %1881 = vmatprep.subr.mxu0 0.0
  %1882 = vmatpush1.msra.mxu0 0.0
  %1883 = vmatprep.subr.mxu0 0.0
  %1884 = vmatpush1.msra.mxu0 0.0
  %1885 = vmatprep.subr.mxu0 0.0
  %1886 = vmatpush1.msra.mxu0 0.0
  %1887 = vmatprep.subr.mxu0 0.0
  %1888 = vmatpush1.msra.mxu0 0.0
  %1889 = vmatprep.subr.mxu0 0.0
  %1890 = vmatpush1.msra.mxu0 0.0
  %1891 = vmatprep.subr.mxu0 0.0
  %1892 = vmatpush1.msra.mxu0 0.0
  %1893 = vmatprep.subr.mxu0 0.0
  %1894 = vmatpush1.msra.mxu0 0.0
  %1895 = vmatprep.subr.mxu0 0.0
  %1896 = vmatpush1.msra.mxu0 0.0
  %1897 = vmatprep.subr.mxu0 0.0
  %1898 = vmatpush1.msra.mxu0 0.0
  %1899 = vmatprep.mubr.f32.mxu0 0.0
  %1900 = vmatmul.mubr.f32.gmra.mrb[0].mxu0 %v1830
  %v1901 = vpop.f32.mrb[0].mxu0
  %v1902 = vadd.f32 0.0, %v1901
  %v1903 = vpop.f32.mrb[0].mxu0
  %1904 = vmatprep.mubr.f32.mxu0 0.0
  %1905 = vmatmul.mubr.f32.gmra.mrb[0].mxu0 %v1833
  %v1906 = vpop.f32.mrb[0].mxu0
  %v1907 = vadd.f32 0.0, %v1906
  %v1908 = vpop.f32.mrb[0].mxu0
  %1909 = vdwg.mxu0
  %v1910 = vadd.f32 %v1718, %v1902
  %v1911 = vadd.f32 %v1723, %v1907
  %v1913 = vsel %vm129, %v567, 0
  %v1916 = vsel %vm129, %v568, 0
  %1918 = vmatprep.subr.mxu0 0.0
  %1919 = vmatpush1.xpose.msra.mxu0 %v1359
  %1920 = vmatprep.subr.mxu0 0.0
  %1921 = vmatpush1.xpose.msra.mxu0 %v1362
  %1922 = vmatprep.subr.mxu0 0.0
  %1923 = vmatpush1.xpose.msra.mxu0 0.0
  %1924 = vmatprep.subr.mxu0 0.0
  %1925 = vmatpush1.xpose.msra.mxu0 0.0
  %1926 = vmatprep.subr.mxu0 0.0
  %1927 = vmatpush1.xpose.msra.mxu0 0.0
  %1928 = vmatprep.subr.mxu0 0.0
  %1929 = vmatpush1.xpose.msra.mxu0 0.0
  %1930 = vmatprep.subr.mxu0 0.0
  %1931 = vmatpush1.xpose.msra.mxu0 0.0
  %1932 = vmatprep.subr.mxu0 0.0
  %1933 = vmatpush1.xpose.msra.mxu0 0.0
  %1934 = vmatprep.subr.mxu0 0.0
  %1935 = vmatpush1.xpose.msra.mxu0 0.0
  %1936 = vmatprep.subr.mxu0 0.0
  %1937 = vmatpush1.xpose.msra.mxu0 0.0
  %1938 = vmatprep.subr.mxu0 0.0
  %1939 = vmatpush1.xpose.msra.mxu0 0.0
  %1940 = vmatprep.subr.mxu0 0.0
  %1941 = vmatpush1.xpose.msra.mxu0 0.0
  %1942 = vmatprep.subr.mxu0 0.0
  %1943 = vmatpush1.xpose.msra.mxu0 0.0
  %1944 = vmatprep.subr.mxu0 0.0
  %1945 = vmatpush1.xpose.msra.mxu0 0.0
  %1946 = vmatprep.subr.mxu0 0.0
  %1947 = vmatpush1.xpose.msra.mxu0 0.0
  %1948 = vmatprep.subr.mxu0 0.0
  %1949 = vmatpush1.xpose.msra.mxu0 0.0
  %1950 = vmatprep.subr.mxu0 0.0
  %1951 = vmatpush1.xpose.msra.mxu0 0.0
  %1952 = vmatprep.subr.mxu0 0.0
  %1953 = vmatpush1.xpose.msra.mxu0 0.0
  %1954 = vmatprep.subr.mxu0 0.0
  %1955 = vmatpush1.xpose.msra.mxu0 0.0
  %1956 = vmatprep.subr.mxu0 0.0
  %1957 = vmatpush1.xpose.msra.mxu0 0.0
  %1958 = vmatprep.subr.mxu0 0.0
  %1959 = vmatpush1.xpose.msra.mxu0 0.0
  %1960 = vmatprep.subr.mxu0 0.0
  %1961 = vmatpush1.xpose.msra.mxu0 0.0
  %1962 = vmatprep.subr.mxu0 0.0
  %1963 = vmatpush1.xpose.msra.mxu0 0.0
  %1964 = vmatprep.subr.mxu0 0.0
  %1965 = vmatpush1.xpose.msra.mxu0 0.0
  %1966 = vmatprep.subr.mxu0 0.0
  %1967 = vmatpush1.xpose.msra.mxu0 0.0
  %1968 = vmatprep.subr.mxu0 0.0
  %1969 = vmatpush1.xpose.msra.mxu0 0.0
  %1970 = vmatprep.subr.mxu0 0.0
  %1971 = vmatpush1.xpose.msra.mxu0 0.0
  %1972 = vmatprep.subr.mxu0 0.0
  %1973 = vmatpush1.xpose.msra.mxu0 0.0
  %1974 = vmatprep.subr.mxu0 0.0
  %1975 = vmatpush1.xpose.msra.mxu0 0.0
  %1976 = vmatprep.subr.mxu0 0.0
  %1977 = vmatpush1.xpose.msra.mxu0 0.0
  %1978 = vmatprep.subr.mxu0 0.0
  %1979 = vmatpush1.xpose.msra.mxu0 0.0
  %1980 = vmatprep.subr.mxu0 0.0
  %1981 = vmatpush1.xpose.msra.mxu0 0.0
  %1982 = vmatprep.mubr.f32.mxu0 0.0
  %1983 = vmatmul.mubr.f32.gmra.mrb[0].mxu0 %v1913
  %v1984 = vpop.f32.mrb[0].mxu0
  %v1985 = vadd.f32 0.0, %v1984
  %v1986 = vpop.f32.mrb[0].mxu0
  %1987 = vmatprep.mubr.f32.mxu0 0.0
  %1988 = vmatmul.mubr.f32.gmra.mrb[0].mxu0 %v1916
  %v1989 = vpop.f32.mrb[0].mxu0
  %v1990 = vadd.f32 0.0, %v1989
  %v1991 = vpop.f32.mrb[0].mxu0
  %1992 = vdwg.mxu0
  %v1993 = vsel %vm692, %v1985, -inf
  %1994 = vmax.xlane.f32.xlu0 %v1993
  %v1995 = vpop.xlane.xlu0 %1994
  %v1996 = vsel %vm692, %v1990, -inf
  %1997 = vmax.xlane.f32.xlu0 %v1996
  %v1998 = vpop.xlane.xlu0 %1997
  %v1999 = vsub.f32 %v1985, %v1995
  %v2000 = vsub.f32 %v1990, %v1998
  %v2001 = vmul.f32 %v1999, 1.442695
  %v2002 = vpow.pop %v2001
  %v2003 = vmul.f32 %v2000, 1.442695
  %v2004 = vpow.pop %v2003
  %v2005 = vsel %vm692, %v2002, 0.0
  %2006 = vadd.xlane.f32.xlu0 %v2005
  %v2007 = vpop.xlane.xlu0 %2006
  %v2008 = vsel %vm692, %v2004, 0.0
  %2009 = vadd.xlane.f32.xlu0 %v2008
  %v2010 = vpop.xlane.xlu0 %2009
  %v2011 = vrcp.pop %v2007
  %v2012 = vrcp.pop %v2010
  %v2013 = vmul.f32 %v2002, %v2011
  %v2014 = vmul.f32 %v2004, %v2012
  %v2016 = vsel %vm692, %v2013, 0
  %v2019 = vsel %vm692, %v2014, 0
  %2021 = vmatprep.subr.mxu0 0.0
  %2022 = vmatpush1.msra.mxu0 %v599
  %2023 = vmatprep.subr.mxu0 0.0
  %2024 = vmatpush1.msra.mxu0 %v600
  %2025 = vmatprep.subr.mxu0 0.0
  %2026 = vmatpush1.msra.mxu0 0.0
  %2027 = vmatprep.subr.mxu0 0.0
  %2028 = vmatpush1.msra.mxu0 0.0
  %2029 = vmatprep.subr.mxu0 0.0
  %2030 = vmatpush1.msra.mxu0 0.0
  %2031 = vmatprep.subr.mxu0 0.0
  %2032 = vmatpush1.msra.mxu0 0.0
  %2033 = vmatprep.subr.mxu0 0.0
  %2034 = vmatpush1.msra.mxu0 0.0
  %2035 = vmatprep.subr.mxu0 0.0
  %2036 = vmatpush1.msra.mxu0 0.0
  %2037 = vmatprep.subr.mxu0 0.0
  %2038 = vmatpush1.msra.mxu0 0.0
  %2039 = vmatprep.subr.mxu0 0.0
  %2040 = vmatpush1.msra.mxu0 0.0
  %2041 = vmatprep.subr.mxu0 0.0
  %2042 = vmatpush1.msra.mxu0 0.0
  %2043 = vmatprep.subr.mxu0 0.0
  %2044 = vmatpush1.msra.mxu0 0.0
  %2045 = vmatprep.subr.mxu0 0.0
  %2046 = vmatpush1.msra.mxu0 0.0
  %2047 = vmatprep.subr.mxu0 0.0
  %2048 = vmatpush1.msra.mxu0 0.0
  %2049 = vmatprep.subr.mxu0 0.0
  %2050 = vmatpush1.msra.mxu0 0.0
  %2051 = vmatprep.subr.mxu0 0.0
  %2052 = vmatpush1.msra.mxu0 0.0
  %2053 = vmatprep.subr.mxu0 0.0
  %2054 = vmatpush1.msra.mxu0 0.0
  %2055 = vmatprep.subr.mxu0 0.0
  %2056 = vmatpush1.msra.mxu0 0.0
  %2057 = vmatprep.subr.mxu0 0.0
  %2058 = vmatpush1.msra.mxu0 0.0
  %2059 = vmatprep.subr.mxu0 0.0
  %2060 = vmatpush1.msra.mxu0 0.0
  %2061 = vmatprep.subr.mxu0 0.0
  %2062 = vmatpush1.msra.mxu0 0.0
  %2063 = vmatprep.subr.mxu0 0.0
  %2064 = vmatpush1.msra.mxu0 0.0
  %2065 = vmatprep.subr.mxu0 0.0
  %2066 = vmatpush1.msra.mxu0 0.0
  %2067 = vmatprep.subr.mxu0 0.0
  %2068 = vmatpush1.msra.mxu0 0.0
  %2069 = vmatprep.subr.mxu0 0.0
  %2070 = vmatpush1.msra.mxu0 0.0
  %2071 = vmatprep.subr.mxu0 0.0
  %2072 = vmatpush1.msra.mxu0 0.0
  %2073 = vmatprep.subr.mxu0 0.0
  %2074 = vmatpush1.msra.mxu0 0.0
  %2075 = vmatprep.subr.mxu0 0.0
  %2076 = vmatpush1.msra.mxu0 0.0
  %2077 = vmatprep.subr.mxu0 0.0
  %2078 = vmatpush1.msra.mxu0 0.0
  %2079 = vmatprep.subr.mxu0 0.0
  %2080 = vmatpush1.msra.mxu0 0.0
  %2081 = vmatprep.subr.mxu0 0.0
  %2082 = vmatpush1.msra.mxu0 0.0
  %2083 = vmatprep.subr.mxu0 0.0
  %2084 = vmatpush1.msra.mxu0 0.0
  %2085 = vmatprep.mubr.f32.mxu0 0.0
  %2086 = vmatmul.mubr.f32.gmra.mrb[0].mxu0 %v2016
  %v2087 = vpop.f32.mrb[0].mxu0
  %v2088 = vadd.f32 0.0, %v2087
  %v2089 = vpop.f32.mrb[0].mxu0
  %2090 = vmatprep.mubr.f32.mxu0 0.0
  %2091 = vmatmul.mubr.f32.gmra.mrb[0].mxu0 %v2019
  %v2092 = vpop.f32.mrb[0].mxu0
  %v2093 = vadd.f32 0.0, %v2092
  %v2094 = vpop.f32.mrb[0].mxu0
  %2095 = vdwg.mxu0
  %v2096 = vadd.f32 %v1910, %v2088
  %v2097 = vadd.f32 %v1911, %v2093
  %v2099 = vsel %vm129, %v545, 0
  %v2102 = vsel %vm129, %v546, 0
  %v2105 = vsel %vm129, %v537, 0
  %v2108 = vsel %vm129, %v538, 0
  %2110 = vmatprep.subr.mxu0 0.0
  %2111 = vmatpush1.xpose.msra.mxu0 %v2105
  %2112 = vmatprep.subr.mxu0 0.0
  %2113 = vmatpush1.xpose.msra.mxu0 %v2108
  %2114 = vmatprep.subr.mxu0 0.0
  %2115 = vmatpush1.xpose.msra.mxu0 0.0
  %2116 = vmatprep.subr.mxu0 0.0
  %2117 = vmatpush1.xpose.msra.mxu0 0.0
  %2118 = vmatprep.subr.mxu0 0.0
  %2119 = vmatpush1.xpose.msra.mxu0 0.0
  %2120 = vmatprep.subr.mxu0 0.0
  %2121 = vmatpush1.xpose.msra.mxu0 0.0
  %2122 = vmatprep.subr.mxu0 0.0
  %2123 = vmatpush1.xpose.msra.mxu0 0.0
  %2124 = vmatprep.subr.mxu0 0.0
  %2125 = vmatpush1.xpose.msra.mxu0 0.0
  %2126 = vmatprep.subr.mxu0 0.0
  %2127 = vmatpush1.xpose.msra.mxu0 0.0
  %2128 = vmatprep.subr.mxu0 0.0
  %2129 = vmatpush1.xpose.msra.mxu0 0.0
  %2130 = vmatprep.subr.mxu0 0.0
  %2131 = vmatpush1.xpose.msra.mxu0 0.0
  %2132 = vmatprep.subr.mxu0 0.0
  %2133 = vmatpush1.xpose.msra.mxu0 0.0
  %2134 = vmatprep.subr.mxu0 0.0
  %2135 = vmatpush1.xpose.msra.mxu0 0.0
  %2136 = vmatprep.subr.mxu0 0.0
  %2137 = vmatpush1.xpose.msra.mxu0 0.0
  %2138 = vmatprep.subr.mxu0 0.0
  %2139 = vmatpush1.xpose.msra.mxu0 0.0
  %2140 = vmatprep.subr.mxu0 0.0
  %2141 = vmatpush1.xpose.msra.mxu0 0.0
  %2142 = vmatprep.subr.mxu0 0.0
  %2143 = vmatpush1.xpose.msra.mxu0 0.0
  %2144 = vmatprep.subr.mxu0 0.0
  %2145 = vmatpush1.xpose.msra.mxu0 0.0
  %2146 = vmatprep.subr.mxu0 0.0
  %2147 = vmatpush1.xpose.msra.mxu0 0.0
  %2148 = vmatprep.subr.mxu0 0.0
  %2149 = vmatpush1.xpose.msra.mxu0 0.0
  %2150 = vmatprep.subr.mxu0 0.0
  %2151 = vmatpush1.xpose.msra.mxu0 0.0
  %2152 = vmatprep.subr.mxu0 0.0
  %2153 = vmatpush1.xpose.msra.mxu0 0.0
  %2154 = vmatprep.subr.mxu0 0.0
  %2155 = vmatpush1.xpose.msra.mxu0 0.0
  %2156 = vmatprep.subr.mxu0 0.0
  %2157 = vmatpush1.xpose.msra.mxu0 0.0
  %2158 = vmatprep.subr.mxu0 0.0
  %2159 = vmatpush1.xpose.msra.mxu0 0.0
  %2160 = vmatprep.subr.mxu0 0.0
  %2161 = vmatpush1.xpose.msra.mxu0 0.0
  %2162 = vmatprep.subr.mxu0 0.0
  %2163 = vmatpush1.xpose.msra.mxu0 0.0
  %2164 = vmatprep.subr.mxu0 0.0
  %2165 = vmatpush1.xpose.msra.mxu0 0.0
  %2166 = vmatprep.subr.mxu0 0.0
  %2167 = vmatpush1.xpose.msra.mxu0 0.0
  %2168 = vmatprep.subr.mxu0 0.0
  %2169 = vmatpush1.xpose.msra.mxu0 0.0
  %2170 = vmatprep.subr.mxu0 0.0
  %2171 = vmatpush1.xpose.msra.mxu0 0.0
  %2172 = vmatprep.subr.mxu0 0.0
  %2173 = vmatpush1.xpose.msra.mxu0 0.0
  %2174 = vmatprep.mubr.f32.mxu0 0.0
  %2175 = vmatmul.mubr.f32.gmra.mrb[0].mxu0 %v2099
  %v2176 = vpop.f32.mrb[0].mxu0
  %v2177 = vadd.f32 0.0, %v2176
  %v2178 = vpop.f32.mrb[0].mxu0
  %2179 = vmatprep.mubr.f32.mxu0 0.0
  %2180 = vmatmul.mubr.f32.gmra.mrb[0].mxu0 %v2102
  %v2181 = vpop.f32.mrb[0].mxu0
  %v2182 = vadd.f32 0.0, %v2181
  %v2183 = vpop.f32.mrb[0].mxu0
  %2184 = vdwg.mxu0
  %v2185 = vsel %vm692, %v2177, -inf
  %2186 = vmax.xlane.f32.xlu0 %v2185
  %v2187 = vpop.xlane.xlu0 %2186
  %v2188 = vsel %vm692, %v2182, -inf
  %2189 = vmax.xlane.f32.xlu0 %v2188
  %v2190 = vpop.xlane.xlu0 %2189
  %v2191 = vsub.f32 %v2177, %v2187
  %v2192 = vsub.f32 %v2182, %v2190
  %v2193 = vmul.f32 %v2191, 1.442695
  %v2194 = vpow.pop %v2193
  %v2195 = vmul.f32 %v2192, 1.442695
  %v2196 = vpow.pop %v2195
  %v2197 = vsel %vm692, %v2194, 0.0
  %2198 = vadd.xlane.f32.xlu0 %v2197
  %v2199 = vpop.xlane.xlu0 %2198
  %v2200 = vsel %vm692, %v2196, 0.0
  %2201 = vadd.xlane.f32.xlu0 %v2200
  %v2202 = vpop.xlane.xlu0 %2201
  %v2203 = vrcp.pop %v2199
  %v2204 = vrcp.pop %v2202
  %v2205 = vmul.f32 %v2194, %v2203
  %v2206 = vmul.f32 %v2196, %v2204
  %v2208 = vsel %vm129, %v553, 0
  %v2211 = vsel %vm129, %v554, 0
  %2213 = vmatprep.subr.mxu0 0.0
  %2214 = vmatpush1.xpose.msra.mxu0 %v2105
  %2215 = vmatprep.subr.mxu0 0.0
  %2216 = vmatpush1.xpose.msra.mxu0 %v2108
  %2217 = vmatprep.subr.mxu0 0.0
  %2218 = vmatpush1.xpose.msra.mxu0 0.0
  %2219 = vmatprep.subr.mxu0 0.0
  %2220 = vmatpush1.xpose.msra.mxu0 0.0
  %2221 = vmatprep.subr.mxu0 0.0
  %2222 = vmatpush1.xpose.msra.mxu0 0.0
  %2223 = vmatprep.subr.mxu0 0.0
  %2224 = vmatpush1.xpose.msra.mxu0 0.0
  %2225 = vmatprep.subr.mxu0 0.0
  %2226 = vmatpush1.xpose.msra.mxu0 0.0
  %2227 = vmatprep.subr.mxu0 0.0
  %2228 = vmatpush1.xpose.msra.mxu0 0.0
  %2229 = vmatprep.subr.mxu0 0.0
  %2230 = vmatpush1.xpose.msra.mxu0 0.0
  %2231 = vmatprep.subr.mxu0 0.0
  %2232 = vmatpush1.xpose.msra.mxu0 0.0
  %2233 = vmatprep.subr.mxu0 0.0
  %2234 = vmatpush1.xpose.msra.mxu0 0.0
  %2235 = vmatprep.subr.mxu0 0.0
  %2236 = vmatpush1.xpose.msra.mxu0 0.0
  %2237 = vmatprep.subr.mxu0 0.0
  %2238 = vmatpush1.xpose.msra.mxu0 0.0
  %2239 = vmatprep.subr.mxu0 0.0
  %2240 = vmatpush1.xpose.msra.mxu0 0.0
  %2241 = vmatprep.subr.mxu0 0.0
  %2242 = vmatpush1.xpose.msra.mxu0 0.0
  %2243 = vmatprep.subr.mxu0 0.0
  %2244 = vmatpush1.xpose.msra.mxu0 0.0
  %2245 = vmatprep.subr.mxu0 0.0
  %2246 = vmatpush1.xpose.msra.mxu0 0.0
  %2247 = vmatprep.subr.mxu0 0.0
  %2248 = vmatpush1.xpose.msra.mxu0 0.0
  %2249 = vmatprep.subr.mxu0 0.0
  %2250 = vmatpush1.xpose.msra.mxu0 0.0
  %2251 = vmatprep.subr.mxu0 0.0
  %2252 = vmatpush1.xpose.msra.mxu0 0.0
  %2253 = vmatprep.subr.mxu0 0.0
  %2254 = vmatpush1.xpose.msra.mxu0 0.0
  %2255 = vmatprep.subr.mxu0 0.0
  %2256 = vmatpush1.xpose.msra.mxu0 0.0
  %2257 = vmatprep.subr.mxu0 0.0
  %2258 = vmatpush1.xpose.msra.mxu0 0.0
  %2259 = vmatprep.subr.mxu0 0.0
  %2260 = vmatpush1.xpose.msra.mxu0 0.0
  %2261 = vmatprep.subr.mxu0 0.0
  %2262 = vmatpush1.xpose.msra.mxu0 0.0
  %2263 = vmatprep.subr.mxu0 0.0
  %2264 = vmatpush1.xpose.msra.mxu0 0.0
  %2265 = vmatprep.subr.mxu0 0.0
  %2266 = vmatpush1.xpose.msra.mxu0 0.0
  %2267 = vmatprep.subr.mxu0 0.0
  %2268 = vmatpush1.xpose.msra.mxu0 0.0
  %2269 = vmatprep.subr.mxu0 0.0
  %2270 = vmatpush1.xpose.msra.mxu0 0.0
  %2271 = vmatprep.subr.mxu0 0.0
  %2272 = vmatpush1.xpose.msra.mxu0 0.0
  %2273 = vmatprep.subr.mxu0 0.0
  %2274 = vmatpush1.xpose.msra.mxu0 0.0
  %2275 = vmatprep.subr.mxu0 0.0
  %2276 = vmatpush1.xpose.msra.mxu0 0.0
  %2277 = vmatprep.mubr.f32.mxu0 0.0
  %2278 = vmatmul.mubr.f32.gmra.mrb[0].mxu0 %v2208
  %v2279 = vpop.f32.mrb[0].mxu0
  %v2280 = vadd.f32 0.0, %v2279
  %v2281 = vpop.f32.mrb[0].mxu0
  %2282 = vmatprep.mubr.f32.mxu0 0.0
  %2283 = vmatmul.mubr.f32.gmra.mrb[0].mxu0 %v2211
  %v2284 = vpop.f32.mrb[0].mxu0
  %v2285 = vadd.f32 0.0, %v2284
  %v2286 = vpop.f32.mrb[0].mxu0
  %2287 = vdwg.mxu0
  %v2288 = vsel %vm692, %v2280, -inf
  %2289 = vmax.xlane.f32.xlu0 %v2288
  %v2290 = vpop.xlane.xlu0 %2289
  %v2291 = vsel %vm692, %v2285, -inf
  %2292 = vmax.xlane.f32.xlu0 %v2291
  %v2293 = vpop.xlane.xlu0 %2292
  %v2294 = vsub.f32 %v2280, %v2290
  %v2295 = vsub.f32 %v2285, %v2293
  %v2296 = vmul.f32 %v2294, 1.442695
  %v2297 = vpow.pop %v2296
  %v2298 = vmul.f32 %v2295, 1.442695
  %v2299 = vpow.pop %v2298
  %v2300 = vsel %vm692, %v2297, 0.0
  %2301 = vadd.xlane.f32.xlu0 %v2300
  %v2302 = vpop.xlane.xlu0 %2301
  %v2303 = vsel %vm692, %v2299, 0.0
  %2304 = vadd.xlane.f32.xlu0 %v2303
  %v2305 = vpop.xlane.xlu0 %2304
  %v2306 = vrcp.pop %v2302
  %v2307 = vrcp.pop %v2305
  %v2308 = vmul.f32 %v2297, %v2306
  %v2309 = vmul.f32 %v2299, %v2307
  %v2311 = vsel %vm692, %v2308, 0
  %v2314 = vsel %vm692, %v2309, 0
  %2316 = vmatprep.subr.mxu0 0.0
  %2317 = vmatpush1.msra.mxu0 %v585
  %2318 = vmatprep.subr.mxu0 0.0
  %2319 = vmatpush1.msra.mxu0 %v586
  %2320 = vmatprep.subr.mxu0 0.0
  %2321 = vmatpush1.msra.mxu0 0.0
  %2322 = vmatprep.subr.mxu0 0.0
  %2323 = vmatpush1.msra.mxu0 0.0
  %2324 = vmatprep.subr.mxu0 0.0
  %2325 = vmatpush1.msra.mxu0 0.0
  %2326 = vmatprep.subr.mxu0 0.0
  %2327 = vmatpush1.msra.mxu0 0.0
  %2328 = vmatprep.subr.mxu0 0.0
  %2329 = vmatpush1.msra.mxu0 0.0
  %2330 = vmatprep.subr.mxu0 0.0
  %2331 = vmatpush1.msra.mxu0 0.0
  %2332 = vmatprep.subr.mxu0 0.0
  %2333 = vmatpush1.msra.mxu0 0.0
  %2334 = vmatprep.subr.mxu0 0.0
  %2335 = vmatpush1.msra.mxu0 0.0
  %2336 = vmatprep.subr.mxu0 0.0
  %2337 = vmatpush1.msra.mxu0 0.0
  %2338 = vmatprep.subr.mxu0 0.0
  %2339 = vmatpush1.msra.mxu0 0.0
  %2340 = vmatprep.subr.mxu0 0.0
  %2341 = vmatpush1.msra.mxu0 0.0
  %2342 = vmatprep.subr.mxu0 0.0
  %2343 = vmatpush1.msra.mxu0 0.0
  %2344 = vmatprep.subr.mxu0 0.0
  %2345 = vmatpush1.msra.mxu0 0.0
  %2346 = vmatprep.subr.mxu0 0.0
  %2347 = vmatpush1.msra.mxu0 0.0
  %2348 = vmatprep.subr.mxu0 0.0
  %2349 = vmatpush1.msra.mxu0 0.0
  %2350 = vmatprep.subr.mxu0 0.0
  %2351 = vmatpush1.msra.mxu0 0.0
  %2352 = vmatprep.subr.mxu0 0.0
  %2353 = vmatpush1.msra.mxu0 0.0
  %2354 = vmatprep.subr.mxu0 0.0
  %2355 = vmatpush1.msra.mxu0 0.0
  %2356 = vmatprep.subr.mxu0 0.0
  %2357 = vmatpush1.msra.mxu0 0.0
  %2358 = vmatprep.subr.mxu0 0.0
  %2359 = vmatpush1.msra.mxu0 0.0
  %2360 = vmatprep.subr.mxu0 0.0
  %2361 = vmatpush1.msra.mxu0 0.0
  %2362 = vmatprep.subr.mxu0 0.0
  %2363 = vmatpush1.msra.mxu0 0.0
  %2364 = vmatprep.subr.mxu0 0.0
  %2365 = vmatpush1.msra.mxu0 0.0
  %2366 = vmatprep.subr.mxu0 0.0
  %2367 = vmatpush1.msra.mxu0 0.0
  %2368 = vmatprep.subr.mxu0 0.0
  %2369 = vmatpush1.msra.mxu0 0.0
  %2370 = vmatprep.subr.mxu0 0.0
  %2371 = vmatpush1.msra.mxu0 0.0
  %2372 = vmatprep.subr.mxu0 0.0
  %2373 = vmatpush1.msra.mxu0 0.0
  %2374 = vmatprep.subr.mxu0 0.0
  %2375 = vmatpush1.msra.mxu0 0.0
  %2376 = vmatprep.subr.mxu0 0.0
  %2377 = vmatpush1.msra.mxu0 0.0
  %2378 = vmatprep.subr.mxu0 0.0
  %2379 = vmatpush1.msra.mxu0 0.0
  %2380 = vmatprep.mubr.f32.mxu0 0.0
  %2381 = vmatmul.mubr.f32.gmra.mrb[0].mxu0 %v2311
  %v2382 = vpop.f32.mrb[0].mxu0
  %v2383 = vadd.f32 0.0, %v2382
  %v2384 = vpop.f32.mrb[0].mxu0
  %2385 = vmatprep.mubr.f32.mxu0 0.0
  %2386 = vmatmul.mubr.f32.gmra.mrb[0].mxu0 %v2314
  %v2387 = vpop.f32.mrb[0].mxu0
  %v2388 = vadd.f32 0.0, %v2387
  %v2389 = vpop.f32.mrb[0].mxu0
  %2390 = vdwg.mxu0
  %v2392 = vsel %vm692, %v2205, 0
  %v2395 = vsel %vm692, %v2206, 0
  %2397 = vmatprep.subr.mxu0 0.0
  %2398 = vmatpush1.msra.mxu0 %v577
  %2399 = vmatprep.subr.mxu0 0.0
  %2400 = vmatpush1.msra.mxu0 %v578
  %2401 = vmatprep.subr.mxu0 0.0
  %2402 = vmatpush1.msra.mxu0 0.0
  %2403 = vmatprep.subr.mxu0 0.0
  %2404 = vmatpush1.msra.mxu0 0.0
  %2405 = vmatprep.subr.mxu0 0.0
  %2406 = vmatpush1.msra.mxu0 0.0
  %2407 = vmatprep.subr.mxu0 0.0
  %2408 = vmatpush1.msra.mxu0 0.0
  %2409 = vmatprep.subr.mxu0 0.0
  %2410 = vmatpush1.msra.mxu0 0.0
  %2411 = vmatprep.subr.mxu0 0.0
  %2412 = vmatpush1.msra.mxu0 0.0
  %2413 = vmatprep.subr.mxu0 0.0
  %2414 = vmatpush1.msra.mxu0 0.0
  %2415 = vmatprep.subr.mxu0 0.0
  %2416 = vmatpush1.msra.mxu0 0.0
  %2417 = vmatprep.subr.mxu0 0.0
  %2418 = vmatpush1.msra.mxu0 0.0
  %2419 = vmatprep.subr.mxu0 0.0
  %2420 = vmatpush1.msra.mxu0 0.0
  %2421 = vmatprep.subr.mxu0 0.0
  %2422 = vmatpush1.msra.mxu0 0.0
  %2423 = vmatprep.subr.mxu0 0.0
  %2424 = vmatpush1.msra.mxu0 0.0
  %2425 = vmatprep.subr.mxu0 0.0
  %2426 = vmatpush1.msra.mxu0 0.0
  %2427 = vmatprep.subr.mxu0 0.0
  %2428 = vmatpush1.msra.mxu0 0.0
  %2429 = vmatprep.subr.mxu0 0.0
  %2430 = vmatpush1.msra.mxu0 0.0
  %2431 = vmatprep.subr.mxu0 0.0
  %2432 = vmatpush1.msra.mxu0 0.0
  %2433 = vmatprep.subr.mxu0 0.0
  %2434 = vmatpush1.msra.mxu0 0.0
  %2435 = vmatprep.subr.mxu0 0.0
  %2436 = vmatpush1.msra.mxu0 0.0
  %2437 = vmatprep.subr.mxu0 0.0
  %2438 = vmatpush1.msra.mxu0 0.0
  %2439 = vmatprep.subr.mxu0 0.0
  %2440 = vmatpush1.msra.mxu0 0.0
  %2441 = vmatprep.subr.mxu0 0.0
  %2442 = vmatpush1.msra.mxu0 0.0
  %2443 = vmatprep.subr.mxu0 0.0
  %2444 = vmatpush1.msra.mxu0 0.0
  %2445 = vmatprep.subr.mxu0 0.0
  %2446 = vmatpush1.msra.mxu0 0.0
  %2447 = vmatprep.subr.mxu0 0.0
  %2448 = vmatpush1.msra.mxu0 0.0
  %2449 = vmatprep.subr.mxu0 0.0
  %2450 = vmatpush1.msra.mxu0 0.0
  %2451 = vmatprep.subr.mxu0 0.0
  %2452 = vmatpush1.msra.mxu0 0.0
  %2453 = vmatprep.subr.mxu0 0.0
  %2454 = vmatpush1.msra.mxu0 0.0
  %2455 = vmatprep.subr.mxu0 0.0
  %2456 = vmatpush1.msra.mxu0 0.0
  %2457 = vmatprep.subr.mxu0 0.0
  %2458 = vmatpush1.msra.mxu0 0.0
  %2459 = vmatprep.subr.mxu0 0.0
  %2460 = vmatpush1.msra.mxu0 0.0
  %2461 = vmatprep.mubr.f32.mxu0 0.0
  %2462 = vmatmul.mubr.f32.gmra.mrb[0].mxu0 %v2392
  %v2463 = vpop.f32.mrb[0].mxu0
  %v2464 = vadd.f32 %v2383, %v2463
  %v2465 = vpop.f32.mrb[0].mxu0
  %2466 = vmatprep.mubr.f32.mxu0 0.0
  %2467 = vmatmul.mubr.f32.gmra.mrb[0].mxu0 %v2395
  %v2468 = vpop.f32.mrb[0].mxu0
  %v2469 = vadd.f32 %v2388, %v2468
  %v2470 = vpop.f32.mrb[0].mxu0
  %2471 = vdwg.mxu0
  %v2473 = vsel %vm129, %v561, 0
  %v2476 = vsel %vm129, %v562, 0
  %2478 = vmatprep.subr.mxu0 0.0
  %2479 = vmatpush1.xpose.msra.mxu0 %v2105
  %2480 = vmatprep.subr.mxu0 0.0
  %2481 = vmatpush1.xpose.msra.mxu0 %v2108
  %2482 = vmatprep.subr.mxu0 0.0
  %2483 = vmatpush1.xpose.msra.mxu0 0.0
  %2484 = vmatprep.subr.mxu0 0.0
  %2485 = vmatpush1.xpose.msra.mxu0 0.0
  %2486 = vmatprep.subr.mxu0 0.0
  %2487 = vmatpush1.xpose.msra.mxu0 0.0
  %2488 = vmatprep.subr.mxu0 0.0
  %2489 = vmatpush1.xpose.msra.mxu0 0.0
  %2490 = vmatprep.subr.mxu0 0.0
  %2491 = vmatpush1.xpose.msra.mxu0 0.0
  %2492 = vmatprep.subr.mxu0 0.0
  %2493 = vmatpush1.xpose.msra.mxu0 0.0
  %2494 = vmatprep.subr.mxu0 0.0
  %2495 = vmatpush1.xpose.msra.mxu0 0.0
  %2496 = vmatprep.subr.mxu0 0.0
  %2497 = vmatpush1.xpose.msra.mxu0 0.0
  %2498 = vmatprep.subr.mxu0 0.0
  %2499 = vmatpush1.xpose.msra.mxu0 0.0
  %2500 = vmatprep.subr.mxu0 0.0
  %2501 = vmatpush1.xpose.msra.mxu0 0.0
  %2502 = vmatprep.subr.mxu0 0.0
  %2503 = vmatpush1.xpose.msra.mxu0 0.0
  %2504 = vmatprep.subr.mxu0 0.0
  %2505 = vmatpush1.xpose.msra.mxu0 0.0
  %2506 = vmatprep.subr.mxu0 0.0
  %2507 = vmatpush1.xpose.msra.mxu0 0.0
  %2508 = vmatprep.subr.mxu0 0.0
  %2509 = vmatpush1.xpose.msra.mxu0 0.0
  %2510 = vmatprep.subr.mxu0 0.0
  %2511 = vmatpush1.xpose.msra.mxu0 0.0
  %2512 = vmatprep.subr.mxu0 0.0
  %2513 = vmatpush1.xpose.msra.mxu0 0.0
  %2514 = vmatprep.subr.mxu0 0.0
  %2515 = vmatpush1.xpose.msra.mxu0 0.0
  %2516 = vmatprep.subr.mxu0 0.0
  %2517 = vmatpush1.xpose.msra.mxu0 0.0
  %2518 = vmatprep.subr.mxu0 0.0
  %2519 = vmatpush1.xpose.msra.mxu0 0.0
  %2520 = vmatprep.subr.mxu0 0.0
  %2521 = vmatpush1.xpose.msra.mxu0 0.0
  %2522 = vmatprep.subr.mxu0 0.0
  %2523 = vmatpush1.xpose.msra.mxu0 0.0
  %2524 = vmatprep.subr.mxu0 0.0
  %2525 = vmatpush1.xpose.msra.mxu0 0.0
  %2526 = vmatprep.subr.mxu0 0.0
  %2527 = vmatpush1.xpose.msra.mxu0 0.0
  %2528 = vmatprep.subr.mxu0 0.0
  %2529 = vmatpush1.xpose.msra.mxu0 0.0
  %2530 = vmatprep.subr.mxu0 0.0
  %2531 = vmatpush1.xpose.msra.mxu0 0.0
  %2532 = vmatprep.subr.mxu0 0.0
  %2533 = vmatpush1.xpose.msra.mxu0 0.0
  %2534 = vmatprep.subr.mxu0 0.0
  %2535 = vmatpush1.xpose.msra.mxu0 0.0
  %2536 = vmatprep.subr.mxu0 0.0
  %2537 = vmatpush1.xpose.msra.mxu0 0.0
  %2538 = vmatprep.subr.mxu0 0.0
  %2539 = vmatpush1.xpose.msra.mxu0 0.0
  %2540 = vmatprep.subr.mxu0 0.0
  %2541 = vmatpush1.xpose.msra.mxu0 0.0
  %2542 = vmatprep.mubr.f32.mxu0 0.0
  %2543 = vmatmul.mubr.f32.gmra.mrb[0].mxu0 %v2473
  %v2544 = vpop.f32.mrb[0].mxu0
  %v2545 = vadd.f32 0.0, %v2544
  %v2546 = vpop.f32.mrb[0].mxu0
  %2547 = vmatprep.mubr.f32.mxu0 0.0
  %2548 = vmatmul.mubr.f32.gmra.mrb[0].mxu0 %v2476
  %v2549 = vpop.f32.mrb[0].mxu0
  %v2550 = vadd.f32 0.0, %v2549
  %v2551 = vpop.f32.mrb[0].mxu0
  %2552 = vdwg.mxu0
  %v2553 = vsel %vm692, %v2545, -inf
  %2554 = vmax.xlane.f32.xlu0 %v2553
  %v2555 = vpop.xlane.xlu0 %2554
  %v2556 = vsel %vm692, %v2550, -inf
  %2557 = vmax.xlane.f32.xlu0 %v2556
  %v2558 = vpop.xlane.xlu0 %2557
  %v2559 = vsub.f32 %v2545, %v2555
  %v2560 = vsub.f32 %v2550, %v2558
  %v2561 = vmul.f32 %v2559, 1.442695
  %v2562 = vpow.pop %v2561
  %v2563 = vmul.f32 %v2560, 1.442695
  %v2564 = vpow.pop %v2563
  %v2565 = vsel %vm692, %v2562, 0.0
  %2566 = vadd.xlane.f32.xlu0 %v2565
  %v2567 = vpop.xlane.xlu0 %2566
  %v2568 = vsel %vm692, %v2564, 0.0
  %2569 = vadd.xlane.f32.xlu0 %v2568
  %v2570 = vpop.xlane.xlu0 %2569
  %v2571 = vrcp.pop %v2567
  %v2572 = vrcp.pop %v2570
  %v2573 = vmul.f32 %v2562, %v2571
  %v2574 = vmul.f32 %v2564, %v2572
  %v2576 = vsel %vm692, %v2573, 0
  %v2579 = vsel %vm692, %v2574, 0
  %2581 = vmatprep.subr.mxu0 0.0
  %2582 = vmatpush1.msra.mxu0 %v593
  %2583 = vmatprep.subr.mxu0 0.0
  %2584 = vmatpush1.msra.mxu0 %v594
  %2585 = vmatprep.subr.mxu0 0.0
  %2586 = vmatpush1.msra.mxu0 0.0
  %2587 = vmatprep.subr.mxu0 0.0
  %2588 = vmatpush1.msra.mxu0 0.0
  %2589 = vmatprep.subr.mxu0 0.0
  %2590 = vmatpush1.msra.mxu0 0.0
  %2591 = vmatprep.subr.mxu0 0.0
  %2592 = vmatpush1.msra.mxu0 0.0
  %2593 = vmatprep.subr.mxu0 0.0
  %2594 = vmatpush1.msra.mxu0 0.0
  %2595 = vmatprep.subr.mxu0 0.0
  %2596 = vmatpush1.msra.mxu0 0.0
  %2597 = vmatprep.subr.mxu0 0.0
  %2598 = vmatpush1.msra.mxu0 0.0
  %2599 = vmatprep.subr.mxu0 0.0
  %2600 = vmatpush1.msra.mxu0 0.0
  %2601 = vmatprep.subr.mxu0 0.0
  %2602 = vmatpush1.msra.mxu0 0.0
  %2603 = vmatprep.subr.mxu0 0.0
  %2604 = vmatpush1.msra.mxu0 0.0
  %2605 = vmatprep.subr.mxu0 0.0
  %2606 = vmatpush1.msra.mxu0 0.0
  %2607 = vmatprep.subr.mxu0 0.0
  %2608 = vmatpush1.msra.mxu0 0.0
  %2609 = vmatprep.subr.mxu0 0.0
  %2610 = vmatpush1.msra.mxu0 0.0
  %2611 = vmatprep.subr.mxu0 0.0
  %2612 = vmatpush1.msra.mxu0 0.0
  %2613 = vmatprep.subr.mxu0 0.0
  %2614 = vmatpush1.msra.mxu0 0.0
  %2615 = vmatprep.subr.mxu0 0.0
  %2616 = vmatpush1.msra.mxu0 0.0
  %2617 = vmatprep.subr.mxu0 0.0
  %2618 = vmatpush1.msra.mxu0 0.0
  %2619 = vmatprep.subr.mxu0 0.0
  %2620 = vmatpush1.msra.mxu0 0.0
  %2621 = vmatprep.subr.mxu0 0.0
  %2622 = vmatpush1.msra.mxu0 0.0
  %2623 = vmatprep.subr.mxu0 0.0
  %2624 = vmatpush1.msra.mxu0 0.0
  %2625 = vmatprep.subr.mxu0 0.0
  %2626 = vmatpush1.msra.mxu0 0.0
  %2627 = vmatprep.subr.mxu0 0.0
  %2628 = vmatpush1.msra.mxu0 0.0
  %2629 = vmatprep.subr.mxu0 0.0
  %2630 = vmatpush1.msra.mxu0 0.0
  %2631 = vmatprep.subr.mxu0 0.0
  %2632 = vmatpush1.msra.mxu0 0.0
  %2633 = vmatprep.subr.mxu0 0.0
  %2634 = vmatpush1.msra.mxu0 0.0
  %2635 = vmatprep.subr.mxu0 0.0
  %2636 = vmatpush1.msra.mxu0 0.0
  %2637 = vmatprep.subr.mxu0 0.0
  %2638 = vmatpush1.msra.mxu0 0.0
  %2639 = vmatprep.subr.mxu0 0.0
  %2640 = vmatpush1.msra.mxu0 0.0
  %2641 = vmatprep.subr.mxu0 0.0
  %2642 = vmatpush1.msra.mxu0 0.0
  %2643 = vmatprep.subr.mxu0 0.0
  %2644 = vmatpush1.msra.mxu0 0.0
  %2645 = vmatprep.mubr.f32.mxu0 0.0
  %2646 = vmatmul.mubr.f32.gmra.mrb[0].mxu0 %v2576
  %v2647 = vpop.f32.mrb[0].mxu0
  %v2648 = vadd.f32 0.0, %v2647
  %v2649 = vpop.f32.mrb[0].mxu0
  %2650 = vmatprep.mubr.f32.mxu0 0.0
  %2651 = vmatmul.mubr.f32.gmra.mrb[0].mxu0 %v2579
  %v2652 = vpop.f32.mrb[0].mxu0
  %v2653 = vadd.f32 0.0, %v2652
  %v2654 = vpop.f32.mrb[0].mxu0
  %2655 = vdwg.mxu0
  %v2656 = vadd.f32 %v2464, %v2648
  %v2657 = vadd.f32 %v2469, %v2653
  %v2659 = vsel %vm129, %v569, 0
  %v2662 = vsel %vm129, %v570, 0
  %2664 = vmatprep.subr.mxu0 0.0
  %2665 = vmatpush1.xpose.msra.mxu0 %v2105
  %2666 = vmatprep.subr.mxu0 0.0
  %2667 = vmatpush1.xpose.msra.mxu0 %v2108
  %2668 = vmatprep.subr.mxu0 0.0
  %2669 = vmatpush1.xpose.msra.mxu0 0.0
  %2670 = vmatprep.subr.mxu0 0.0
  %2671 = vmatpush1.xpose.msra.mxu0 0.0
  %2672 = vmatprep.subr.mxu0 0.0
  %2673 = vmatpush1.xpose.msra.mxu0 0.0
  %2674 = vmatprep.subr.mxu0 0.0
  %2675 = vmatpush1.xpose.msra.mxu0 0.0
  %2676 = vmatprep.subr.mxu0 0.0
  %2677 = vmatpush1.xpose.msra.mxu0 0.0
  %2678 = vmatprep.subr.mxu0 0.0
  %2679 = vmatpush1.xpose.msra.mxu0 0.0
  %2680 = vmatprep.subr.mxu0 0.0
  %2681 = vmatpush1.xpose.msra.mxu0 0.0
  %2682 = vmatprep.subr.mxu0 0.0
  %2683 = vmatpush1.xpose.msra.mxu0 0.0
  %2684 = vmatprep.subr.mxu0 0.0
  %2685 = vmatpush1.xpose.msra.mxu0 0.0
  %2686 = vmatprep.subr.mxu0 0.0
  %2687 = vmatpush1.xpose.msra.mxu0 0.0
  %2688 = vmatprep.subr.mxu0 0.0
  %2689 = vmatpush1.xpose.msra.mxu0 0.0
  %2690 = vmatprep.subr.mxu0 0.0
  %2691 = vmatpush1.xpose.msra.mxu0 0.0
  %2692 = vmatprep.subr.mxu0 0.0
  %2693 = vmatpush1.xpose.msra.mxu0 0.0
  %2694 = vmatprep.subr.mxu0 0.0
  %2695 = vmatpush1.xpose.msra.mxu0 0.0
  %2696 = vmatprep.subr.mxu0 0.0
  %2697 = vmatpush1.xpose.msra.mxu0 0.0
  %2698 = vmatprep.subr.mxu0 0.0
  %2699 = vmatpush1.xpose.msra.mxu0 0.0
  %2700 = vmatprep.subr.mxu0 0.0
  %2701 = vmatpush1.xpose.msra.mxu0 0.0
  %2702 = vmatprep.subr.mxu0 0.0
  %2703 = vmatpush1.xpose.msra.mxu0 0.0
  %2704 = vmatprep.subr.mxu0 0.0
  %2705 = vmatpush1.xpose.msra.mxu0 0.0
  %2706 = vmatprep.subr.mxu0 0.0
  %2707 = vmatpush1.xpose.msra.mxu0 0.0
  %2708 = vmatprep.subr.mxu0 0.0
  %2709 = vmatpush1.xpose.msra.mxu0 0.0
  %2710 = vmatprep.subr.mxu0 0.0
  %2711 = vmatpush1.xpose.msra.mxu0 0.0
  %2712 = vmatprep.subr.mxu0 0.0
  %2713 = vmatpush1.xpose.msra.mxu0 0.0
  %2714 = vmatprep.subr.mxu0 0.0
  %2715 = vmatpush1.xpose.msra.mxu0 0.0
  %2716 = vmatprep.subr.mxu0 0.0
  %2717 = vmatpush1.xpose.msra.mxu0 0.0
  %2718 = vmatprep.subr.mxu0 0.0
  %2719 = vmatpush1.xpose.msra.mxu0 0.0
  %2720 = vmatprep.subr.mxu0 0.0
  %2721 = vmatpush1.xpose.msra.mxu0 0.0
  %2722 = vmatprep.subr.mxu0 0.0
  %2723 = vmatpush1.xpose.msra.mxu0 0.0
  %2724 = vmatprep.subr.mxu0 0.0
  %2725 = vmatpush1.xpose.msra.mxu0 0.0
  %2726 = vmatprep.subr.mxu0 0.0
  %2727 = vmatpush1.xpose.msra.mxu0 0.0
  %2728 = vmatprep.mubr.f32.mxu0 0.0
  %2729 = vmatmul.mubr.f32.gmra.mrb[0].mxu0 %v2659
  %v2730 = vpop.f32.mrb[0].mxu0
  %v2731 = vadd.f32 0.0, %v2730
  %v2732 = vpop.f32.mrb[0].mxu0
  %2733 = vmatprep.mubr.f32.mxu0 0.0
  %2734 = vmatmul.mubr.f32.gmra.mrb[0].mxu0 %v2662
  %v2735 = vpop.f32.mrb[0].mxu0
  %v2736 = vadd.f32 0.0, %v2735
  %v2737 = vpop.f32.mrb[0].mxu0
  %2738 = vdwg.mxu0
  %v2739 = vsel %vm692, %v2731, -inf
  %2740 = vmax.xlane.f32.xlu0 %v2739
  %v2741 = vpop.xlane.xlu0 %2740
  %v2742 = vsel %vm692, %v2736, -inf
  %2743 = vmax.xlane.f32.xlu0 %v2742
  %v2744 = vpop.xlane.xlu0 %2743
  %v2745 = vsub.f32 %v2731, %v2741
  %v2746 = vsub.f32 %v2736, %v2744
  %v2747 = vmul.f32 %v2745, 1.442695
  %v2748 = vpow.pop %v2747
  %v2749 = vmul.f32 %v2746, 1.442695
  %v2750 = vpow.pop %v2749
  %v2751 = vsel %vm692, %v2748, 0.0
  %2752 = vadd.xlane.f32.xlu0 %v2751
  %v2753 = vpop.xlane.xlu0 %2752
  %v2754 = vsel %vm692, %v2750, 0.0
  %2755 = vadd.xlane.f32.xlu0 %v2754
  %v2756 = vpop.xlane.xlu0 %2755
  %v2757 = vrcp.pop %v2753
  %v2758 = vrcp.pop %v2756
  %v2759 = vmul.f32 %v2748, %v2757
  %v2760 = vmul.f32 %v2750, %v2758
  %v2762 = vsel %vm692, %v2759, 0
  %v2765 = vsel %vm692, %v2760, 0
  %2767 = vmatprep.subr.mxu0 0.0
  %2768 = vmatpush1.msra.mxu0 %v601
  %2769 = vmatprep.subr.mxu0 0.0
  %2770 = vmatpush1.msra.mxu0 %v602
  %2771 = vmatprep.subr.mxu0 0.0
  %2772 = vmatpush1.msra.mxu0 0.0
  %2773 = vmatprep.subr.mxu0 0.0
  %2774 = vmatpush1.msra.mxu0 0.0
  %2775 = vmatprep.subr.mxu0 0.0
  %2776 = vmatpush1.msra.mxu0 0.0
  %2777 = vmatprep.subr.mxu0 0.0
  %2778 = vmatpush1.msra.mxu0 0.0
  %2779 = vmatprep.subr.mxu0 0.0
  %2780 = vmatpush1.msra.mxu0 0.0
  %2781 = vmatprep.subr.mxu0 0.0
  %2782 = vmatpush1.msra.mxu0 0.0
  %2783 = vmatprep.subr.mxu0 0.0
  %2784 = vmatpush1.msra.mxu0 0.0
  %2785 = vmatprep.subr.mxu0 0.0
  %2786 = vmatpush1.msra.mxu0 0.0
  %2787 = vmatprep.subr.mxu0 0.0
  %2788 = vmatpush1.msra.mxu0 0.0
  %2789 = vmatprep.subr.mxu0 0.0
  %2790 = vmatpush1.msra.mxu0 0.0
  %2791 = vmatprep.subr.mxu0 0.0
  %2792 = vmatpush1.msra.mxu0 0.0
  %2793 = vmatprep.subr.mxu0 0.0
  %2794 = vmatpush1.msra.mxu0 0.0
  %2795 = vmatprep.subr.mxu0 0.0
  %2796 = vmatpush1.msra.mxu0 0.0
  %2797 = vmatprep.subr.mxu0 0.0
  %2798 = vmatpush1.msra.mxu0 0.0
  %2799 = vmatprep.subr.mxu0 0.0
  %2800 = vmatpush1.msra.mxu0 0.0
  %2801 = vmatprep.subr.mxu0 0.0
  %2802 = vmatpush1.msra.mxu0 0.0
  %2803 = vmatprep.subr.mxu0 0.0
  %2804 = vmatpush1.msra.mxu0 0.0
  %2805 = vmatprep.subr.mxu0 0.0
  %2806 = vmatpush1.msra.mxu0 0.0
  %2807 = vmatprep.subr.mxu0 0.0
  %2808 = vmatpush1.msra.mxu0 0.0
  %2809 = vmatprep.subr.mxu0 0.0
  %2810 = vmatpush1.msra.mxu0 0.0
  %2811 = vmatprep.subr.mxu0 0.0
  %2812 = vmatpush1.msra.mxu0 0.0
  %2813 = vmatprep.subr.mxu0 0.0
  %2814 = vmatpush1.msra.mxu0 0.0
  %2815 = vmatprep.subr.mxu0 0.0
  %2816 = vmatpush1.msra.mxu0 0.0
  %2817 = vmatprep.subr.mxu0 0.0
  %2818 = vmatpush1.msra.mxu0 0.0
  %2819 = vmatprep.subr.mxu0 0.0
  %2820 = vmatpush1.msra.mxu0 0.0
  %2821 = vmatprep.subr.mxu0 0.0
  %2822 = vmatpush1.msra.mxu0 0.0
  %2823 = vmatprep.subr.mxu0 0.0
  %2824 = vmatpush1.msra.mxu0 0.0
  %2825 = vmatprep.subr.mxu0 0.0
  %2826 = vmatpush1.msra.mxu0 0.0
  %2827 = vmatprep.subr.mxu0 0.0
  %2828 = vmatpush1.msra.mxu0 0.0
  %2829 = vmatprep.subr.mxu0 0.0
  %2830 = vmatpush1.msra.mxu0 0.0
  %2831 = vmatprep.mubr.f32.mxu0 0.0
  %2832 = vmatmul.mubr.f32.gmra.mrb[0].mxu0 %v2762
  %v2833 = vpop.f32.mrb[0].mxu0
  %v2834 = vadd.f32 0.0, %v2833
  %v2835 = vpop.f32.mrb[0].mxu0
  %2836 = vmatprep.mubr.f32.mxu0 0.0
  %2837 = vmatmul.mubr.f32.gmra.mrb[0].mxu0 %v2765
  %v2838 = vpop.f32.mrb[0].mxu0
  %v2839 = vadd.f32 0.0, %v2838
  %v2840 = vpop.f32.mrb[0].mxu0
  %2841 = vdwg.mxu0
  %v2842 = vadd.f32 %v2656, %v2834
  %v2843 = vadd.f32 %v2657, %v2839
  %v2845 = vsel %vm129, %v547, 0
  %v2848 = vsel %vm129, %v548, 0
  %v2851 = vsel %vm129, %v539, 0
  %v2854 = vsel %vm129, %v540, 0
  %2856 = vmatprep.subr.mxu0 0.0
  %2857 = vmatpush1.xpose.msra.mxu0 %v2851
  %2858 = vmatprep.subr.mxu0 0.0
  %2859 = vmatpush1.xpose.msra.mxu0 %v2854
  %2860 = vmatprep.subr.mxu0 0.0
  %2861 = vmatpush1.xpose.msra.mxu0 0.0
  %2862 = vmatprep.subr.mxu0 0.0
  %2863 = vmatpush1.xpose.msra.mxu0 0.0
  %2864 = vmatprep.subr.mxu0 0.0
  %2865 = vmatpush1.xpose.msra.mxu0 0.0
  %2866 = vmatprep.subr.mxu0 0.0
  %2867 = vmatpush1.xpose.msra.mxu0 0.0
  %2868 = vmatprep.subr.mxu0 0.0
  %2869 = vmatpush1.xpose.msra.mxu0 0.0
  %2870 = vmatprep.subr.mxu0 0.0
  %2871 = vmatpush1.xpose.msra.mxu0 0.0
  %2872 = vmatprep.subr.mxu0 0.0
  %2873 = vmatpush1.xpose.msra.mxu0 0.0
  %2874 = vmatprep.subr.mxu0 0.0
  %2875 = vmatpush1.xpose.msra.mxu0 0.0
  %2876 = vmatprep.subr.mxu0 0.0
  %2877 = vmatpush1.xpose.msra.mxu0 0.0
  %2878 = vmatprep.subr.mxu0 0.0
  %2879 = vmatpush1.xpose.msra.mxu0 0.0
  %2880 = vmatprep.subr.mxu0 0.0
  %2881 = vmatpush1.xpose.msra.mxu0 0.0
  %2882 = vmatprep.subr.mxu0 0.0
  %2883 = vmatpush1.xpose.msra.mxu0 0.0
  %2884 = vmatprep.subr.mxu0 0.0
  %2885 = vmatpush1.xpose.msra.mxu0 0.0
  %2886 = vmatprep.subr.mxu0 0.0
  %2887 = vmatpush1.xpose.msra.mxu0 0.0
  %2888 = vmatprep.subr.mxu0 0.0
  %2889 = vmatpush1.xpose.msra.mxu0 0.0
  %2890 = vmatprep.subr.mxu0 0.0
  %2891 = vmatpush1.xpose.msra.mxu0 0.0
  %2892 = vmatprep.subr.mxu0 0.0
  %2893 = vmatpush1.xpose.msra.mxu0 0.0
  %2894 = vmatprep.subr.mxu0 0.0
  %2895 = vmatpush1.xpose.msra.mxu0 0.0
  %2896 = vmatprep.subr.mxu0 0.0
  %2897 = vmatpush1.xpose.msra.mxu0 0.0
  %2898 = vmatprep.subr.mxu0 0.0
  %2899 = vmatpush1.xpose.msra.mxu0 0.0
  %2900 = vmatprep.subr.mxu0 0.0
  %2901 = vmatpush1.xpose.msra.mxu0 0.0
  %2902 = vmatprep.subr.mxu0 0.0
  %2903 = vmatpush1.xpose.msra.mxu0 0.0
  %2904 = vmatprep.subr.mxu0 0.0
  %2905 = vmatpush1.xpose.msra.mxu0 0.0
  %2906 = vmatprep.subr.mxu0 0.0
  %2907 = vmatpush1.xpose.msra.mxu0 0.0
  %2908 = vmatprep.subr.mxu0 0.0
  %2909 = vmatpush1.xpose.msra.mxu0 0.0
  %2910 = vmatprep.subr.mxu0 0.0
  %2911 = vmatpush1.xpose.msra.mxu0 0.0
  %2912 = vmatprep.subr.mxu0 0.0
  %2913 = vmatpush1.xpose.msra.mxu0 0.0
  %2914 = vmatprep.subr.mxu0 0.0
  %2915 = vmatpush1.xpose.msra.mxu0 0.0
  %2916 = vmatprep.subr.mxu0 0.0
  %2917 = vmatpush1.xpose.msra.mxu0 0.0
  %2918 = vmatprep.subr.mxu0 0.0
  %2919 = vmatpush1.xpose.msra.mxu0 0.0
  %2920 = vmatprep.mubr.f32.mxu0 0.0
  %2921 = vmatmul.mubr.f32.gmra.mrb[0].mxu0 %v2845
  %v2922 = vpop.f32.mrb[0].mxu0
  %v2923 = vadd.f32 0.0, %v2922
  %v2924 = vpop.f32.mrb[0].mxu0
  %2925 = vmatprep.mubr.f32.mxu0 0.0
  %2926 = vmatmul.mubr.f32.gmra.mrb[0].mxu0 %v2848
  %v2927 = vpop.f32.mrb[0].mxu0
  %v2928 = vadd.f32 0.0, %v2927
  %v2929 = vpop.f32.mrb[0].mxu0
  %2930 = vdwg.mxu0
  %v2931 = vsel %vm692, %v2923, -inf
  %2932 = vmax.xlane.f32.xlu0 %v2931
  %v2933 = vpop.xlane.xlu0 %2932
  %v2934 = vsel %vm692, %v2928, -inf
  %2935 = vmax.xlane.f32.xlu0 %v2934
  %v2936 = vpop.xlane.xlu0 %2935
  %v2937 = vsub.f32 %v2923, %v2933
  %v2938 = vsub.f32 %v2928, %v2936
  %v2939 = vmul.f32 %v2937, 1.442695
  %v2940 = vpow.pop %v2939
  %v2941 = vmul.f32 %v2938, 1.442695
  %v2942 = vpow.pop %v2941
  %v2943 = vsel %vm692, %v2940, 0.0
  %2944 = vadd.xlane.f32.xlu0 %v2943
  %v2945 = vpop.xlane.xlu0 %2944
  %v2946 = vsel %vm692, %v2942, 0.0
  %2947 = vadd.xlane.f32.xlu0 %v2946
  %v2948 = vpop.xlane.xlu0 %2947
  %v2949 = vrcp.pop %v2945
  %v2950 = vrcp.pop %v2948
  %v2951 = vmul.f32 %v2940, %v2949
  %v2952 = vmul.f32 %v2942, %v2950
  %v2954 = vsel %vm129, %v555, 0
  %v2957 = vsel %vm129, %v556, 0
  %2959 = vmatprep.subr.mxu0 0.0
  %2960 = vmatpush1.xpose.msra.mxu0 %v2851
  %2961 = vmatprep.subr.mxu0 0.0
  %2962 = vmatpush1.xpose.msra.mxu0 %v2854
  %2963 = vmatprep.subr.mxu0 0.0
  %2964 = vmatpush1.xpose.msra.mxu0 0.0
  %2965 = vmatprep.subr.mxu0 0.0
  %2966 = vmatpush1.xpose.msra.mxu0 0.0
  %2967 = vmatprep.subr.mxu0 0.0
  %2968 = vmatpush1.xpose.msra.mxu0 0.0
  %2969 = vmatprep.subr.mxu0 0.0
  %2970 = vmatpush1.xpose.msra.mxu0 0.0
  %2971 = vmatprep.subr.mxu0 0.0
  %2972 = vmatpush1.xpose.msra.mxu0 0.0
  %2973 = vmatprep.subr.mxu0 0.0
  %2974 = vmatpush1.xpose.msra.mxu0 0.0
  %2975 = vmatprep.subr.mxu0 0.0
  %2976 = vmatpush1.xpose.msra.mxu0 0.0
  %2977 = vmatprep.subr.mxu0 0.0
  %2978 = vmatpush1.xpose.msra.mxu0 0.0
  %2979 = vmatprep.subr.mxu0 0.0
  %2980 = vmatpush1.xpose.msra.mxu0 0.0
  %2981 = vmatprep.subr.mxu0 0.0
  %2982 = vmatpush1.xpose.msra.mxu0 0.0
  %2983 = vmatprep.subr.mxu0 0.0
  %2984 = vmatpush1.xpose.msra.mxu0 0.0
  %2985 = vmatprep.subr.mxu0 0.0
  %2986 = vmatpush1.xpose.msra.mxu0 0.0
  %2987 = vmatprep.subr.mxu0 0.0
  %2988 = vmatpush1.xpose.msra.mxu0 0.0
  %2989 = vmatprep.subr.mxu0 0.0
  %2990 = vmatpush1.xpose.msra.mxu0 0.0
  %2991 = vmatprep.subr.mxu0 0.0
  %2992 = vmatpush1.xpose.msra.mxu0 0.0
  %2993 = vmatprep.subr.mxu0 0.0
  %2994 = vmatpush1.xpose.msra.mxu0 0.0
  %2995 = vmatprep.subr.mxu0 0.0
  %2996 = vmatpush1.xpose.msra.mxu0 0.0
  %2997 = vmatprep.subr.mxu0 0.0
  %2998 = vmatpush1.xpose.msra.mxu0 0.0
  %2999 = vmatprep.subr.mxu0 0.0
  %3000 = vmatpush1.xpose.msra.mxu0 0.0
  %3001 = vmatprep.subr.mxu0 0.0
  %3002 = vmatpush1.xpose.msra.mxu0 0.0
  %3003 = vmatprep.subr.mxu0 0.0
  %3004 = vmatpush1.xpose.msra.mxu0 0.0
  %3005 = vmatprep.subr.mxu0 0.0
  %3006 = vmatpush1.xpose.msra.mxu0 0.0
  %3007 = vmatprep.subr.mxu0 0.0
  %3008 = vmatpush1.xpose.msra.mxu0 0.0
  %3009 = vmatprep.subr.mxu0 0.0
  %3010 = vmatpush1.xpose.msra.mxu0 0.0
  %3011 = vmatprep.subr.mxu0 0.0
  %3012 = vmatpush1.xpose.msra.mxu0 0.0
  %3013 = vmatprep.subr.mxu0 0.0
  %3014 = vmatpush1.xpose.msra.mxu0 0.0
  %3015 = vmatprep.subr.mxu0 0.0
  %3016 = vmatpush1.xpose.msra.mxu0 0.0
  %3017 = vmatprep.subr.mxu0 0.0
  %3018 = vmatpush1.xpose.msra.mxu0 0.0
  %3019 = vmatprep.subr.mxu0 0.0
  %3020 = vmatpush1.xpose.msra.mxu0 0.0
  %3021 = vmatprep.subr.mxu0 0.0
  %3022 = vmatpush1.xpose.msra.mxu0 0.0
  %3023 = vmatprep.mubr.f32.mxu0 0.0
  %3024 = vmatmul.mubr.f32.gmra.mrb[0].mxu0 %v2954
  %v3025 = vpop.f32.mrb[0].mxu0
  %v3026 = vadd.f32 0.0, %v3025
  %v3027 = vpop.f32.mrb[0].mxu0
  %3028 = vmatprep.mubr.f32.mxu0 0.0
  %3029 = vmatmul.mubr.f32.gmra.mrb[0].mxu0 %v2957
  %v3030 = vpop.f32.mrb[0].mxu0
  %v3031 = vadd.f32 0.0, %v3030
  %v3032 = vpop.f32.mrb[0].mxu0
  %3033 = vdwg.mxu0
  %v3034 = vsel %vm692, %v3026, -inf
  %3035 = vmax.xlane.f32.xlu0 %v3034
  %v3036 = vpop.xlane.xlu0 %3035
  %v3037 = vsel %vm692, %v3031, -inf
  %3038 = vmax.xlane.f32.xlu0 %v3037
  %v3039 = vpop.xlane.xlu0 %3038
  %v3040 = vsub.f32 %v3026, %v3036
  %v3041 = vsub.f32 %v3031, %v3039
  %v3042 = vmul.f32 %v3040, 1.442695
  %v3043 = vpow.pop %v3042
  %v3044 = vmul.f32 %v3041, 1.442695
  %v3045 = vpow.pop %v3044
  %v3046 = vsel %vm692, %v3043, 0.0
  %3047 = vadd.xlane.f32.xlu0 %v3046
  %v3048 = vpop.xlane.xlu0 %3047
  %v3049 = vsel %vm692, %v3045, 0.0
  %3050 = vadd.xlane.f32.xlu0 %v3049
  %v3051 = vpop.xlane.xlu0 %3050
  %v3052 = vrcp.pop %v3048
  %v3053 = vrcp.pop %v3051
  %v3054 = vmul.f32 %v3043, %v3052
  %v3055 = vmul.f32 %v3045, %v3053
  %v3057 = vsel %vm692, %v3054, 0
  %v3060 = vsel %vm692, %v3055, 0
  %3062 = vmatprep.subr.mxu0 0.0
  %3063 = vmatpush1.msra.mxu0 %v587
  %3064 = vmatprep.subr.mxu0 0.0
  %3065 = vmatpush1.msra.mxu0 %v588
  %3066 = vmatprep.subr.mxu0 0.0
  %3067 = vmatpush1.msra.mxu0 0.0
  %3068 = vmatprep.subr.mxu0 0.0
  %3069 = vmatpush1.msra.mxu0 0.0
  %3070 = vmatprep.subr.mxu0 0.0
  %3071 = vmatpush1.msra.mxu0 0.0
  %3072 = vmatprep.subr.mxu0 0.0
  %3073 = vmatpush1.msra.mxu0 0.0
  %3074 = vmatprep.subr.mxu0 0.0
  %3075 = vmatpush1.msra.mxu0 0.0
  %3076 = vmatprep.subr.mxu0 0.0
  %3077 = vmatpush1.msra.mxu0 0.0
  %3078 = vmatprep.subr.mxu0 0.0
  %3079 = vmatpush1.msra.mxu0 0.0
  %3080 = vmatprep.subr.mxu0 0.0
  %3081 = vmatpush1.msra.mxu0 0.0
  %3082 = vmatprep.subr.mxu0 0.0
  %3083 = vmatpush1.msra.mxu0 0.0
  %3084 = vmatprep.subr.mxu0 0.0
  %3085 = vmatpush1.msra.mxu0 0.0
  %3086 = vmatprep.subr.mxu0 0.0
  %3087 = vmatpush1.msra.mxu0 0.0
  %3088 = vmatprep.subr.mxu0 0.0
  %3089 = vmatpush1.msra.mxu0 0.0
  %3090 = vmatprep.subr.mxu0 0.0
  %3091 = vmatpush1.msra.mxu0 0.0
  %3092 = vmatprep.subr.mxu0 0.0
  %3093 = vmatpush1.msra.mxu0 0.0
  %3094 = vmatprep.subr.mxu0 0.0
  %3095 = vmatpush1.msra.mxu0 0.0
  %3096 = vmatprep.subr.mxu0 0.0
  %3097 = vmatpush1.msra.mxu0 0.0
  %3098 = vmatprep.subr.mxu0 0.0
  %3099 = vmatpush1.msra.mxu0 0.0
  %3100 = vmatprep.subr.mxu0 0.0
  %3101 = vmatpush1.msra.mxu0 0.0
  %3102 = vmatprep.subr.mxu0 0.0
  %3103 = vmatpush1.msra.mxu0 0.0
  %3104 = vmatprep.subr.mxu0 0.0
  %3105 = vmatpush1.msra.mxu0 0.0
  %3106 = vmatprep.subr.mxu0 0.0
  %3107 = vmatpush1.msra.mxu0 0.0
  %3108 = vmatprep.subr.mxu0 0.0
  %3109 = vmatpush1.msra.mxu0 0.0
  %3110 = vmatprep.subr.mxu0 0.0
  %3111 = vmatpush1.msra.mxu0 0.0
  %3112 = vmatprep.subr.mxu0 0.0
  %3113 = vmatpush1.msra.mxu0 0.0
  %3114 = vmatprep.subr.mxu0 0.0
  %3115 = vmatpush1.msra.mxu0 0.0
  %3116 = vmatprep.subr.mxu0 0.0
  %3117 = vmatpush1.msra.mxu0 0.0
  %3118 = vmatprep.subr.mxu0 0.0
  %3119 = vmatpush1.msra.mxu0 0.0
  %3120 = vmatprep.subr.mxu0 0.0
  %3121 = vmatpush1.msra.mxu0 0.0
  %3122 = vmatprep.subr.mxu0 0.0
  %3123 = vmatpush1.msra.mxu0 0.0
  %3124 = vmatprep.subr.mxu0 0.0
  %3125 = vmatpush1.msra.mxu0 0.0
  %3126 = vmatprep.mubr.f32.mxu0 0.0
  %3127 = vmatmul.mubr.f32.gmra.mrb[0].mxu0 %v3057
  %v3128 = vpop.f32.mrb[0].mxu0
  %v3129 = vadd.f32 0.0, %v3128
  %v3130 = vpop.f32.mrb[0].mxu0
  %3131 = vmatprep.mubr.f32.mxu0 0.0
  %3132 = vmatmul.mubr.f32.gmra.mrb[0].mxu0 %v3060
  %v3133 = vpop.f32.mrb[0].mxu0
  %v3134 = vadd.f32 0.0, %v3133
  %v3135 = vpop.f32.mrb[0].mxu0
  %3136 = vdwg.mxu0
  %v3138 = vsel %vm692, %v2951, 0
  %v3141 = vsel %vm692, %v2952, 0
  %3143 = vmatprep.subr.mxu0 0.0
  %3144 = vmatpush1.msra.mxu0 %v579
  %3145 = vmatprep.subr.mxu0 0.0
  %3146 = vmatpush1.msra.mxu0 %v580
  %3147 = vmatprep.subr.mxu0 0.0
  %3148 = vmatpush1.msra.mxu0 0.0
  %3149 = vmatprep.subr.mxu0 0.0
  %3150 = vmatpush1.msra.mxu0 0.0
  %3151 = vmatprep.subr.mxu0 0.0
  %3152 = vmatpush1.msra.mxu0 0.0
  %3153 = vmatprep.subr.mxu0 0.0
  %3154 = vmatpush1.msra.mxu0 0.0
  %3155 = vmatprep.subr.mxu0 0.0
  %3156 = vmatpush1.msra.mxu0 0.0
  %3157 = vmatprep.subr.mxu0 0.0
  %3158 = vmatpush1.msra.mxu0 0.0
  %3159 = vmatprep.subr.mxu0 0.0
  %3160 = vmatpush1.msra.mxu0 0.0
  %3161 = vmatprep.subr.mxu0 0.0
  %3162 = vmatpush1.msra.mxu0 0.0
  %3163 = vmatprep.subr.mxu0 0.0
  %3164 = vmatpush1.msra.mxu0 0.0
  %3165 = vmatprep.subr.mxu0 0.0
  %3166 = vmatpush1.msra.mxu0 0.0
  %3167 = vmatprep.subr.mxu0 0.0
  %3168 = vmatpush1.msra.mxu0 0.0
  %3169 = vmatprep.subr.mxu0 0.0
  %3170 = vmatpush1.msra.mxu0 0.0
  %3171 = vmatprep.subr.mxu0 0.0
  %3172 = vmatpush1.msra.mxu0 0.0
  %3173 = vmatprep.subr.mxu0 0.0
  %3174 = vmatpush1.msra.mxu0 0.0
  %3175 = vmatprep.subr.mxu0 0.0
  %3176 = vmatpush1.msra.mxu0 0.0
  %3177 = vmatprep.subr.mxu0 0.0
  %3178 = vmatpush1.msra.mxu0 0.0
  %3179 = vmatprep.subr.mxu0 0.0
  %3180 = vmatpush1.msra.mxu0 0.0
  %3181 = vmatprep.subr.mxu0 0.0
  %3182 = vmatpush1.msra.mxu0 0.0
  %3183 = vmatprep.subr.mxu0 0.0
  %3184 = vmatpush1.msra.mxu0 0.0
  %3185 = vmatprep.subr.mxu0 0.0
  %3186 = vmatpush1.msra.mxu0 0.0
  %3187 = vmatprep.subr.mxu0 0.0
  %3188 = vmatpush1.msra.mxu0 0.0
  %3189 = vmatprep.subr.mxu0 0.0
  %3190 = vmatpush1.msra.mxu0 0.0
  %3191 = vmatprep.subr.mxu0 0.0
  %3192 = vmatpush1.msra.mxu0 0.0
  %3193 = vmatprep.subr.mxu0 0.0
  %3194 = vmatpush1.msra.mxu0 0.0
  %3195 = vmatprep.subr.mxu0 0.0
  %3196 = vmatpush1.msra.mxu0 0.0
  %3197 = vmatprep.subr.mxu0 0.0
  %3198 = vmatpush1.msra.mxu0 0.0
  %3199 = vmatprep.subr.mxu0 0.0
  %3200 = vmatpush1.msra.mxu0 0.0
  %3201 = vmatprep.subr.mxu0 0.0
  %3202 = vmatpush1.msra.mxu0 0.0
  %3203 = vmatprep.subr.mxu0 0.0
  %3204 = vmatpush1.msra.mxu0 0.0
  %3205 = vmatprep.subr.mxu0 0.0
  %3206 = vmatpush1.msra.mxu0 0.0
  %3207 = vmatprep.mubr.f32.mxu0 0.0
  %3208 = vmatmul.mubr.f32.gmra.mrb[0].mxu0 %v3138
  %v3209 = vpop.f32.mrb[0].mxu0
  %v3210 = vadd.f32 %v3129, %v3209
  %v3211 = vpop.f32.mrb[0].mxu0
  %3212 = vmatprep.mubr.f32.mxu0 0.0
  %3213 = vmatmul.mubr.f32.gmra.mrb[0].mxu0 %v3141
  %v3214 = vpop.f32.mrb[0].mxu0
  %v3215 = vadd.f32 %v3134, %v3214
  %v3216 = vpop.f32.mrb[0].mxu0
  %3217 = vdwg.mxu0
  %v3219 = vsel %vm129, %v563, 0
  %v3222 = vsel %vm129, %v564, 0
  %3224 = vmatprep.subr.mxu0 0.0
  %3225 = vmatpush1.xpose.msra.mxu0 %v2851
  %3226 = vmatprep.subr.mxu0 0.0
  %3227 = vmatpush1.xpose.msra.mxu0 %v2854
  %3228 = vmatprep.subr.mxu0 0.0
  %3229 = vmatpush1.xpose.msra.mxu0 0.0
  %3230 = vmatprep.subr.mxu0 0.0
  %3231 = vmatpush1.xpose.msra.mxu0 0.0
  %3232 = vmatprep.subr.mxu0 0.0
  %3233 = vmatpush1.xpose.msra.mxu0 0.0
  %3234 = vmatprep.subr.mxu0 0.0
  %3235 = vmatpush1.xpose.msra.mxu0 0.0
  %3236 = vmatprep.subr.mxu0 0.0
  %3237 = vmatpush1.xpose.msra.mxu0 0.0
  %3238 = vmatprep.subr.mxu0 0.0
  %3239 = vmatpush1.xpose.msra.mxu0 0.0
  %3240 = vmatprep.subr.mxu0 0.0
  %3241 = vmatpush1.xpose.msra.mxu0 0.0
  %3242 = vmatprep.subr.mxu0 0.0
  %3243 = vmatpush1.xpose.msra.mxu0 0.0
  %3244 = vmatprep.subr.mxu0 0.0
  %3245 = vmatpush1.xpose.msra.mxu0 0.0
  %3246 = vmatprep.subr.mxu0 0.0
  %3247 = vmatpush1.xpose.msra.mxu0 0.0
  %3248 = vmatprep.subr.mxu0 0.0
  %3249 = vmatpush1.xpose.msra.mxu0 0.0
  %3250 = vmatprep.subr.mxu0 0.0
  %3251 = vmatpush1.xpose.msra.mxu0 0.0
  %3252 = vmatprep.subr.mxu0 0.0
  %3253 = vmatpush1.xpose.msra.mxu0 0.0
  %3254 = vmatprep.subr.mxu0 0.0
  %3255 = vmatpush1.xpose.msra.mxu0 0.0
  %3256 = vmatprep.subr.mxu0 0.0
  %3257 = vmatpush1.xpose.msra.mxu0 0.0
  %3258 = vmatprep.subr.mxu0 0.0
  %3259 = vmatpush1.xpose.msra.mxu0 0.0
  %3260 = vmatprep.subr.mxu0 0.0
  %3261 = vmatpush1.xpose.msra.mxu0 0.0
  %3262 = vmatprep.subr.mxu0 0.0
  %3263 = vmatpush1.xpose.msra.mxu0 0.0
  %3264 = vmatprep.subr.mxu0 0.0
  %3265 = vmatpush1.xpose.msra.mxu0 0.0
  %3266 = vmatprep.subr.mxu0 0.0
  %3267 = vmatpush1.xpose.msra.mxu0 0.0
  %3268 = vmatprep.subr.mxu0 0.0
  %3269 = vmatpush1.xpose.msra.mxu0 0.0
  %3270 = vmatprep.subr.mxu0 0.0
  %3271 = vmatpush1.xpose.msra.mxu0 0.0
  %3272 = vmatprep.subr.mxu0 0.0
  %3273 = vmatpush1.xpose.msra.mxu0 0.0
  %3274 = vmatprep.subr.mxu0 0.0
  %3275 = vmatpush1.xpose.msra.mxu0 0.0
  %3276 = vmatprep.subr.mxu0 0.0
  %3277 = vmatpush1.xpose.msra.mxu0 0.0
  %3278 = vmatprep.subr.mxu0 0.0
  %3279 = vmatpush1.xpose.msra.mxu0 0.0
  %3280 = vmatprep.subr.mxu0 0.0
  %3281 = vmatpush1.xpose.msra.mxu0 0.0
  %3282 = vmatprep.subr.mxu0 0.0
  %3283 = vmatpush1.xpose.msra.mxu0 0.0
  %3284 = vmatprep.subr.mxu0 0.0
  %3285 = vmatpush1.xpose.msra.mxu0 0.0
  %3286 = vmatprep.subr.mxu0 0.0
  %3287 = vmatpush1.xpose.msra.mxu0 0.0
  %3288 = vmatprep.mubr.f32.mxu0 0.0
  %3289 = vmatmul.mubr.f32.gmra.mrb[0].mxu0 %v3219
  %v3290 = vpop.f32.mrb[0].mxu0
  %v3291 = vadd.f32 0.0, %v3290
  %v3292 = vpop.f32.mrb[0].mxu0
  %3293 = vmatprep.mubr.f32.mxu0 0.0
  %3294 = vmatmul.mubr.f32.gmra.mrb[0].mxu0 %v3222
  %v3295 = vpop.f32.mrb[0].mxu0
  %v3296 = vadd.f32 0.0, %v3295
  %v3297 = vpop.f32.mrb[0].mxu0
  %3298 = vdwg.mxu0
  %v3299 = vsel %vm692, %v3291, -inf
  %3300 = vmax.xlane.f32.xlu0 %v3299
  %v3301 = vpop.xlane.xlu0 %3300
  %v3302 = vsel %vm692, %v3296, -inf
  %3303 = vmax.xlane.f32.xlu0 %v3302
  %v3304 = vpop.xlane.xlu0 %3303
  %v3305 = vsub.f32 %v3291, %v3301
  %v3306 = vsub.f32 %v3296, %v3304
  %v3307 = vmul.f32 %v3305, 1.442695
  %v3308 = vpow.pop %v3307
  %v3309 = vmul.f32 %v3306, 1.442695
  %v3310 = vpow.pop %v3309
  %v3311 = vsel %vm692, %v3308, 0.0
  %3312 = vadd.xlane.f32.xlu0 %v3311
  %v3313 = vpop.xlane.xlu0 %3312
  %v3314 = vsel %vm692, %v3310, 0.0
  %3315 = vadd.xlane.f32.xlu0 %v3314
  %v3316 = vpop.xlane.xlu0 %3315
  %v3317 = vrcp.pop %v3313
  %v3318 = vrcp.pop %v3316
  %v3319 = vmul.f32 %v3308, %v3317
  %v3320 = vmul.f32 %v3310, %v3318
  %v3322 = vsel %vm692, %v3319, 0
  %v3325 = vsel %vm692, %v3320, 0
  %3327 = vmatprep.subr.mxu0 0.0
  %3328 = vmatpush1.msra.mxu0 %v595
  %3329 = vmatprep.subr.mxu0 0.0
  %3330 = vmatpush1.msra.mxu0 %v596
  %3331 = vmatprep.subr.mxu0 0.0
  %3332 = vmatpush1.msra.mxu0 0.0
  %3333 = vmatprep.subr.mxu0 0.0
  %3334 = vmatpush1.msra.mxu0 0.0
  %3335 = vmatprep.subr.mxu0 0.0
  %3336 = vmatpush1.msra.mxu0 0.0
  %3337 = vmatprep.subr.mxu0 0.0
  %3338 = vmatpush1.msra.mxu0 0.0
  %3339 = vmatprep.subr.mxu0 0.0
  %3340 = vmatpush1.msra.mxu0 0.0
  %3341 = vmatprep.subr.mxu0 0.0
  %3342 = vmatpush1.msra.mxu0 0.0
  %3343 = vmatprep.subr.mxu0 0.0
  %3344 = vmatpush1.msra.mxu0 0.0
  %3345 = vmatprep.subr.mxu0 0.0
  %3346 = vmatpush1.msra.mxu0 0.0
  %3347 = vmatprep.subr.mxu0 0.0
  %3348 = vmatpush1.msra.mxu0 0.0
  %3349 = vmatprep.subr.mxu0 0.0
  %3350 = vmatpush1.msra.mxu0 0.0
  %3351 = vmatprep.subr.mxu0 0.0
  %3352 = vmatpush1.msra.mxu0 0.0
  %3353 = vmatprep.subr.mxu0 0.0
  %3354 = vmatpush1.msra.mxu0 0.0
  %3355 = vmatprep.subr.mxu0 0.0
  %3356 = vmatpush1.msra.mxu0 0.0
  %3357 = vmatprep.subr.mxu0 0.0
  %3358 = vmatpush1.msra.mxu0 0.0
  %3359 = vmatprep.subr.mxu0 0.0
  %3360 = vmatpush1.msra.mxu0 0.0
  %3361 = vmatprep.subr.mxu0 0.0
  %3362 = vmatpush1.msra.mxu0 0.0
  %3363 = vmatprep.subr.mxu0 0.0
  %3364 = vmatpush1.msra.mxu0 0.0
  %3365 = vmatprep.subr.mxu0 0.0
  %3366 = vmatpush1.msra.mxu0 0.0
  %3367 = vmatprep.subr.mxu0 0.0
  %3368 = vmatpush1.msra.mxu0 0.0
  %3369 = vmatprep.subr.mxu0 0.0
  %3370 = vmatpush1.msra.mxu0 0.0
  %3371 = vmatprep.subr.mxu0 0.0
  %3372 = vmatpush1.msra.mxu0 0.0
  %3373 = vmatprep.subr.mxu0 0.0
  %3374 = vmatpush1.msra.mxu0 0.0
  %3375 = vmatprep.subr.mxu0 0.0
  %3376 = vmatpush1.msra.mxu0 0.0
  %3377 = vmatprep.subr.mxu0 0.0
  %3378 = vmatpush1.msra.mxu0 0.0
  %3379 = vmatprep.subr.mxu0 0.0
  %3380 = vmatpush1.msra.mxu0 0.0
  %3381 = vmatprep.subr.mxu0 0.0
  %3382 = vmatpush1.msra.mxu0 0.0
  %3383 = vmatprep.subr.mxu0 0.0
  %3384 = vmatpush1.msra.mxu0 0.0
  %3385 = vmatprep.subr.mxu0 0.0
  %3386 = vmatpush1.msra.mxu0 0.0
  %3387 = vmatprep.subr.mxu0 0.0
  %3388 = vmatpush1.msra.mxu0 0.0
  %3389 = vmatprep.subr.mxu0 0.0
  %3390 = vmatpush1.msra.mxu0 0.0
  %3391 = vmatprep.mubr.f32.mxu0 0.0
  %3392 = vmatmul.mubr.f32.gmra.mrb[0].mxu0 %v3322
  %v3393 = vpop.f32.mrb[0].mxu0
  %v3394 = vadd.f32 0.0, %v3393
  %v3395 = vpop.f32.mrb[0].mxu0
  %3396 = vmatprep.mubr.f32.mxu0 0.0
  %3397 = vmatmul.mubr.f32.gmra.mrb[0].mxu0 %v3325
  %v3398 = vpop.f32.mrb[0].mxu0
  %v3399 = vadd.f32 0.0, %v3398
  %v3400 = vpop.f32.mrb[0].mxu0
  %3401 = vdwg.mxu0
  %v3402 = vadd.f32 %v3210, %v3394
  %v3403 = vadd.f32 %v3215, %v3399
  %v3405 = vsel %vm129, %v571, 0
  %v3408 = vsel %vm129, %v572, 0
  %3410 = vmatprep.subr.mxu0 0.0
  %3411 = vmatpush1.xpose.msra.mxu0 %v2851
  %3412 = vmatprep.subr.mxu0 0.0
  %3413 = vmatpush1.xpose.msra.mxu0 %v2854
  %3414 = vmatprep.subr.mxu0 0.0
  %3415 = vmatpush1.xpose.msra.mxu0 0.0
  %3416 = vmatprep.subr.mxu0 0.0
  %3417 = vmatpush1.xpose.msra.mxu0 0.0
  %3418 = vmatprep.subr.mxu0 0.0
  %3419 = vmatpush1.xpose.msra.mxu0 0.0
  %3420 = vmatprep.subr.mxu0 0.0
  %3421 = vmatpush1.xpose.msra.mxu0 0.0
  %3422 = vmatprep.subr.mxu0 0.0
  %3423 = vmatpush1.xpose.msra.mxu0 0.0
  %3424 = vmatprep.subr.mxu0 0.0
  %3425 = vmatpush1.xpose.msra.mxu0 0.0
  %3426 = vmatprep.subr.mxu0 0.0
  %3427 = vmatpush1.xpose.msra.mxu0 0.0
  %3428 = vmatprep.subr.mxu0 0.0
  %3429 = vmatpush1.xpose.msra.mxu0 0.0
  %3430 = vmatprep.subr.mxu0 0.0
  %3431 = vmatpush1.xpose.msra.mxu0 0.0
  %3432 = vmatprep.subr.mxu0 0.0
  %3433 = vmatpush1.xpose.msra.mxu0 0.0
  %3434 = vmatprep.subr.mxu0 0.0
  %3435 = vmatpush1.xpose.msra.mxu0 0.0
  %3436 = vmatprep.subr.mxu0 0.0
  %3437 = vmatpush1.xpose.msra.mxu0 0.0
  %3438 = vmatprep.subr.mxu0 0.0
  %3439 = vmatpush1.xpose.msra.mxu0 0.0
  %3440 = vmatprep.subr.mxu0 0.0
  %3441 = vmatpush1.xpose.msra.mxu0 0.0
  %3442 = vmatprep.subr.mxu0 0.0
  %3443 = vmatpush1.xpose.msra.mxu0 0.0
  %3444 = vmatprep.subr.mxu0 0.0
  %3445 = vmatpush1.xpose.msra.mxu0 0.0
  %3446 = vmatprep.subr.mxu0 0.0
  %3447 = vmatpush1.xpose.msra.mxu0 0.0
  %3448 = vmatprep.subr.mxu0 0.0
  %3449 = vmatpush1.xpose.msra.mxu0 0.0
  %3450 = vmatprep.subr.mxu0 0.0
  %3451 = vmatpush1.xpose.msra.mxu0 0.0
  %3452 = vmatprep.subr.mxu0 0.0
  %3453 = vmatpush1.xpose.msra.mxu0 0.0
  %3454 = vmatprep.subr.mxu0 0.0
  %3455 = vmatpush1.xpose.msra.mxu0 0.0
  %3456 = vmatprep.subr.mxu0 0.0
  %3457 = vmatpush1.xpose.msra.mxu0 0.0
  %3458 = vmatprep.subr.mxu0 0.0
  %3459 = vmatpush1.xpose.msra.mxu0 0.0
  %3460 = vmatprep.subr.mxu0 0.0
  %3461 = vmatpush1.xpose.msra.mxu0 0.0
  %3462 = vmatprep.subr.mxu0 0.0
  %3463 = vmatpush1.xpose.msra.mxu0 0.0
  %3464 = vmatprep.subr.mxu0 0.0
  %3465 = vmatpush1.xpose.msra.mxu0 0.0
  %3466 = vmatprep.subr.mxu0 0.0
  %3467 = vmatpush1.xpose.msra.mxu0 0.0
  %3468 = vmatprep.subr.mxu0 0.0
  %3469 = vmatpush1.xpose.msra.mxu0 0.0
  %3470 = vmatprep.subr.mxu0 0.0
  %3471 = vmatpush1.xpose.msra.mxu0 0.0
  %3472 = vmatprep.subr.mxu0 0.0
  %3473 = vmatpush1.xpose.msra.mxu0 0.0
  %3474 = vmatprep.mubr.f32.mxu0 0.0
  %3475 = vmatmul.mubr.f32.gmra.mrb[0].mxu0 %v3405
  %v3476 = vpop.f32.mrb[0].mxu0
  %v3477 = vadd.f32 0.0, %v3476
  %v3478 = vpop.f32.mrb[0].mxu0
  %3479 = vmatprep.mubr.f32.mxu0 0.0
  %3480 = vmatmul.mubr.f32.gmra.mrb[0].mxu0 %v3408
  %v3481 = vpop.f32.mrb[0].mxu0
  %v3482 = vadd.f32 0.0, %v3481
  %v3483 = vpop.f32.mrb[0].mxu0
  %3484 = vdwg.mxu0
  %v3485 = vsel %vm692, %v3477, -inf
  %3486 = vmax.xlane.f32.xlu0 %v3485
  %v3487 = vpop.xlane.xlu0 %3486
  %v3488 = vsel %vm692, %v3482, -inf
  %3489 = vmax.xlane.f32.xlu0 %v3488
  %v3490 = vpop.xlane.xlu0 %3489
  %v3491 = vsub.f32 %v3477, %v3487
  %v3492 = vsub.f32 %v3482, %v3490
  %v3493 = vmul.f32 %v3491, 1.442695
  %v3494 = vpow.pop %v3493
  %v3495 = vmul.f32 %v3492, 1.442695
  %v3496 = vpow.pop %v3495
  %v3497 = vsel %vm692, %v3494, 0.0
  %3498 = vadd.xlane.f32.xlu0 %v3497
  %v3499 = vpop.xlane.xlu0 %3498
  %v3500 = vsel %vm692, %v3496, 0.0
  %3501 = vadd.xlane.f32.xlu0 %v3500
  %v3502 = vpop.xlane.xlu0 %3501
  %v3503 = vrcp.pop %v3499
  %v3504 = vrcp.pop %v3502
  %v3505 = vmul.f32 %v3494, %v3503
  %v3506 = vmul.f32 %v3496, %v3504
  %v3508 = vsel %vm692, %v3505, 0
  %v3511 = vsel %vm692, %v3506, 0
  %3513 = vmatprep.subr.mxu0 0.0
  %3514 = vmatpush1.msra.mxu0 %v603
  %3515 = vmatprep.subr.mxu0 0.0
  %3516 = vmatpush1.msra.mxu0 %v604
  %3517 = vmatprep.subr.mxu0 0.0
  %3518 = vmatpush1.msra.mxu0 0.0
  %3519 = vmatprep.subr.mxu0 0.0
  %3520 = vmatpush1.msra.mxu0 0.0
  %3521 = vmatprep.subr.mxu0 0.0
  %3522 = vmatpush1.msra.mxu0 0.0
  %3523 = vmatprep.subr.mxu0 0.0
  %3524 = vmatpush1.msra.mxu0 0.0
  %3525 = vmatprep.subr.mxu0 0.0
  %3526 = vmatpush1.msra.mxu0 0.0
  %3527 = vmatprep.subr.mxu0 0.0
  %3528 = vmatpush1.msra.mxu0 0.0
  %3529 = vmatprep.subr.mxu0 0.0
  %3530 = vmatpush1.msra.mxu0 0.0
  %3531 = vmatprep.subr.mxu0 0.0
  %3532 = vmatpush1.msra.mxu0 0.0
  %3533 = vmatprep.subr.mxu0 0.0
  %3534 = vmatpush1.msra.mxu0 0.0
  %3535 = vmatprep.subr.mxu0 0.0
  %3536 = vmatpush1.msra.mxu0 0.0
  %3537 = vmatprep.subr.mxu0 0.0
  %3538 = vmatpush1.msra.mxu0 0.0
  %3539 = vmatprep.subr.mxu0 0.0
  %3540 = vmatpush1.msra.mxu0 0.0
  %3541 = vmatprep.subr.mxu0 0.0
  %3542 = vmatpush1.msra.mxu0 0.0
  %3543 = vmatprep.subr.mxu0 0.0
  %3544 = vmatpush1.msra.mxu0 0.0
  %3545 = vmatprep.subr.mxu0 0.0
  %3546 = vmatpush1.msra.mxu0 0.0
  %3547 = vmatprep.subr.mxu0 0.0
  %3548 = vmatpush1.msra.mxu0 0.0
  %3549 = vmatprep.subr.mxu0 0.0
  %3550 = vmatpush1.msra.mxu0 0.0
  %3551 = vmatprep.subr.mxu0 0.0
  %3552 = vmatpush1.msra.mxu0 0.0
  %3553 = vmatprep.subr.mxu0 0.0
  %3554 = vmatpush1.msra.mxu0 0.0
  %3555 = vmatprep.subr.mxu0 0.0
  %3556 = vmatpush1.msra.mxu0 0.0
  %3557 = vmatprep.subr.mxu0 0.0
  %3558 = vmatpush1.msra.mxu0 0.0
  %3559 = vmatprep.subr.mxu0 0.0
  %3560 = vmatpush1.msra.mxu0 0.0
  %3561 = vmatprep.subr.mxu0 0.0
  %3562 = vmatpush1.msra.mxu0 0.0
  %3563 = vmatprep.subr.mxu0 0.0
  %3564 = vmatpush1.msra.mxu0 0.0
  %3565 = vmatprep.subr.mxu0 0.0
  %3566 = vmatpush1.msra.mxu0 0.0
  %3567 = vmatprep.subr.mxu0 0.0
  %3568 = vmatpush1.msra.mxu0 0.0
  %3569 = vmatprep.subr.mxu0 0.0
  %3570 = vmatpush1.msra.mxu0 0.0
  %3571 = vmatprep.subr.mxu0 0.0
  %3572 = vmatpush1.msra.mxu0 0.0
  %3573 = vmatprep.subr.mxu0 0.0
  %3574 = vmatpush1.msra.mxu0 0.0
  %3575 = vmatprep.subr.mxu0 0.0
  %3576 = vmatpush1.msra.mxu0 0.0
  %3577 = vmatprep.mubr.f32.mxu0 0.0
  %3578 = vmatmul.mubr.f32.gmra.mrb[0].mxu0 %v3508
  %v3579 = vpop.f32.mrb[0].mxu0
  %v3580 = vadd.f32 0.0, %v3579
  %v3581 = vpop.f32.mrb[0].mxu0
  %3582 = vmatprep.mubr.f32.mxu0 0.0
  %3583 = vmatmul.mubr.f32.gmra.mrb[0].mxu0 %v3511
  %v3584 = vpop.f32.mrb[0].mxu0
  %v3585 = vadd.f32 0.0, %v3584
  %v3586 = vpop.f32.mrb[0].mxu0
  %3587 = vdwg.mxu0
  %v3588 = vadd.f32 %v3402, %v3580
  %v3589 = vadd.f32 %v3403, %v3585
  %v3590 = vld [vmem:[%s4] sm:$0xff]
  %v3591 = vld [vmem:[%s4 + $0x8] sm:$0xff]
  %v3592 = vld [vmem:[%s4 + $0x10] sm:$0xff]
  %v3593 = vld [vmem:[%s4 + $0x18] sm:$0xff]
  %v3595 = vsel %vm129, %v1350, 0
  %v3598 = vsel %vm129, %v1351, 0
  %v3601 = vsel %vm129, %v2096, 0
  %v3604 = vsel %vm129, %v2097, 0
  %v3607 = vsel %vm129, %v2842, 0
  %v3610 = vsel %vm129, %v2843, 0
  %v3613 = vsel %vm129, %v3588, 0
  %v3616 = vsel %vm129, %v3589, 0
  %3618 = vmatprep.subr.mxu0 0.0
  %3619 = vmatpush1.msra.mxu0 %v3590
  %3620 = vmatprep.subr.mxu0 0.0
  %3621 = vmatpush1.msra.mxu0 %v3591
  %3622 = vmatprep.subr.mxu0 0.0
  %3623 = vmatpush1.msra.mxu0 %v3592
  %3624 = vmatprep.subr.mxu0 0.0
  %3625 = vmatpush1.msra.mxu0 %v3593
  %3626 = vmatprep.subr.mxu0 0.0
  %3627 = vmatpush1.msra.mxu0 0.0
  %3628 = vmatprep.subr.mxu0 0.0
  %3629 = vmatpush1.msra.mxu0 0.0
  %3630 = vmatprep.subr.mxu0 0.0
  %3631 = vmatpush1.msra.mxu0 0.0
  %3632 = vmatprep.subr.mxu0 0.0
  %3633 = vmatpush1.msra.mxu0 0.0
  %3634 = vmatprep.subr.mxu0 0.0
  %3635 = vmatpush1.msra.mxu0 0.0
  %3636 = vmatprep.subr.mxu0 0.0
  %3637 = vmatpush1.msra.mxu0 0.0
  %3638 = vmatprep.subr.mxu0 0.0
  %3639 = vmatpush1.msra.mxu0 0.0
  %3640 = vmatprep.subr.mxu0 0.0
  %3641 = vmatpush1.msra.mxu0 0.0
  %3642 = vmatprep.subr.mxu0 0.0
  %3643 = vmatpush1.msra.mxu0 0.0
  %3644 = vmatprep.subr.mxu0 0.0
  %3645 = vmatpush1.msra.mxu0 0.0
  %3646 = vmatprep.subr.mxu0 0.0
  %3647 = vmatpush1.msra.mxu0 0.0
  %3648 = vmatprep.subr.mxu0 0.0
  %3649 = vmatpush1.msra.mxu0 0.0
  %3650 = vmatprep.subr.mxu0 0.0
  %3651 = vmatpush1.msra.mxu0 0.0
  %3652 = vmatprep.subr.mxu0 0.0
  %3653 = vmatpush1.msra.mxu0 0.0
  %3654 = vmatprep.subr.mxu0 0.0
  %3655 = vmatpush1.msra.mxu0 0.0
  %3656 = vmatprep.subr.mxu0 0.0
  %3657 = vmatpush1.msra.mxu0 0.0
  %3658 = vmatprep.subr.mxu0 0.0
  %3659 = vmatpush1.msra.mxu0 0.0
  %3660 = vmatprep.subr.mxu0 0.0
  %3661 = vmatpush1.msra.mxu0 0.0
  %3662 = vmatprep.subr.mxu0 0.0
  %3663 = vmatpush1.msra.mxu0 0.0
  %3664 = vmatprep.subr.mxu0 0.0
  %3665 = vmatpush1.msra.mxu0 0.0
  %3666 = vmatprep.subr.mxu0 0.0
  %3667 = vmatpush1.msra.mxu0 0.0
  %3668 = vmatprep.subr.mxu0 0.0
  %3669 = vmatpush1.msra.mxu0 0.0
  %3670 = vmatprep.subr.mxu0 0.0
  %3671 = vmatpush1.msra.mxu0 0.0
  %3672 = vmatprep.subr.mxu0 0.0
  %3673 = vmatpush1.msra.mxu0 0.0
  %3674 = vmatprep.subr.mxu0 0.0
  %3675 = vmatpush1.msra.mxu0 0.0
  %3676 = vmatprep.subr.mxu0 0.0
  %3677 = vmatpush1.msra.mxu0 0.0
  %3678 = vmatprep.subr.mxu0 0.0
  %3679 = vmatpush1.msra.mxu0 0.0
  %3680 = vmatprep.subr.mxu0 0.0
  %3681 = vmatpush1.msra.mxu0 0.0
  %3682 = vmatprep.mubr.f32.mxu0 0.0
  %3683 = vmatmul.mubr.f32.gmra.mrb[0].mxu0 %v3595
  %v3684 = vpop.f32.mrb[0].mxu0
  %v3685 = vadd.f32 0.0, %v3684
  %v3686 = vpop.f32.mrb[0].mxu0
  %3687 = vmatprep.mubr.f32.mxu0 0.0
  %3688 = vmatmul.mubr.f32.gmra.mrb[0].mxu0 %v3598
  %v3689 = vpop.f32.mrb[0].mxu0
  %v3690 = vadd.f32 0.0, %v3689
  %v3691 = vpop.f32.mrb[0].mxu0
  %3692 = vmatprep.mubr.f32.mxu0 0.0
  %3693 = vmatmul.mubr.f32.gmra.mrb[0].mxu0 %v3601
  %v3694 = vpop.f32.mrb[0].mxu0
  %v3695 = vadd.f32 0.0, %v3694
  %v3696 = vpop.f32.mrb[0].mxu0
  %3697 = vmatprep.mubr.f32.mxu0 0.0
  %3698 = vmatmul.mubr.f32.gmra.mrb[0].mxu0 %v3604
  %v3699 = vpop.f32.mrb[0].mxu0
  %v3700 = vadd.f32 0.0, %v3699
  %v3701 = vpop.f32.mrb[0].mxu0
  %3702 = vmatprep.mubr.f32.mxu0 0.0
  %3703 = vmatmul.mubr.f32.gmra.mrb[0].mxu0 %v3607
  %v3704 = vpop.f32.mrb[0].mxu0
  %v3705 = vadd.f32 0.0, %v3704
  %v3706 = vpop.f32.mrb[0].mxu0
  %3707 = vmatprep.mubr.f32.mxu0 0.0
  %3708 = vmatmul.mubr.f32.gmra.mrb[0].mxu0 %v3610
  %v3709 = vpop.f32.mrb[0].mxu0
  %v3710 = vadd.f32 0.0, %v3709
  %v3711 = vpop.f32.mrb[0].mxu0
  %3712 = vmatprep.mubr.f32.mxu0 0.0
  %3713 = vmatmul.mubr.f32.gmra.mrb[0].mxu0 %v3613
  %v3714 = vpop.f32.mrb[0].mxu0
  %v3715 = vadd.f32 0.0, %v3714
  %v3716 = vpop.f32.mrb[0].mxu0
  %3717 = vmatprep.mubr.f32.mxu0 0.0
  %3718 = vmatmul.mubr.f32.gmra.mrb[0].mxu0 %v3616
  %v3719 = vpop.f32.mrb[0].mxu0
  %v3720 = vadd.f32 0.0, %v3719
  %v3721 = vpop.f32.mrb[0].mxu0
  %3722 = vdwg.mxu0
  %v3723 = vadd.f32 %v449, %v3685
  %v3724 = vadd.f32 %v455, %v3690
  %v3725 = vadd.f32 %v461, %v3695
  %v3726 = vadd.f32 %v467, %v3700
  %v3727 = vadd.f32 %v473, %v3705
  %v3728 = vadd.f32 %v479, %v3710
  %v3729 = vadd.f32 %v485, %v3715
  %v3730 = vadd.f32 %v491, %v3720
  %v3731 = vld [vmem:[%s6] sm:$0x1]
  %v3732 = vld [vmem:[%s6 + $0x1] sm:$0x1]
  %v3733 = vld [vmem:[%s5] sm:$0xff]
  %v3734 = vld [vmem:[%s5 + $0x8] sm:$0xff]
  %v3735 = vld [vmem:[%s5 + $0x10] sm:$0xff]
  %v3736 = vld [vmem:[%s5 + $0x18] sm:$0xff]
  %v3737 = vld [vmem:[%s5 + $0x20] sm:$0xff]
  %v3738 = vld [vmem:[%s5 + $0x28] sm:$0xff]
  %v3739 = vld [vmem:[%s5 + $0x30] sm:$0xff]
  %v3740 = vld [vmem:[%s5 + $0x38] sm:$0xff]
  %v3741 = vld [vmem:[%s6 + $0x2] sm:$0x1]
  %vm3742 = vcmask 523264
  %v3743 = vsel %vm3742, %v3723, 0.0
  %3744 = vadd.xlane.f32.xlu0 %v3743
  %v3745 = vpop.xlane.xlu0 %3744
  %v3746 = vsel %vm3742, %v3724, 0.0
  %3747 = vadd.xlane.f32.xlu0 %v3746
  %v3748 = vpop.xlane.xlu0 %3747
  %v3749 = vsel %vm3742, %v3725, 0.0
  %3750 = vadd.xlane.f32.xlu0 %v3749
  %v3751 = vpop.xlane.xlu0 %3750
  %v3752 = vsel %vm3742, %v3726, 0.0
  %3753 = vadd.xlane.f32.xlu0 %v3752
  %v3754 = vpop.xlane.xlu0 %3753
  %v3755 = vsel %vm3742, %v3727, 0.0
  %3756 = vadd.xlane.f32.xlu0 %v3755
  %v3757 = vpop.xlane.xlu0 %3756
  %v3758 = vsel %vm3742, %v3728, 0.0
  %3759 = vadd.xlane.f32.xlu0 %v3758
  %v3760 = vpop.xlane.xlu0 %3759
  %v3761 = vsel %vm3742, %v3729, 0.0
  %3762 = vadd.xlane.f32.xlu0 %v3761
  %v3763 = vpop.xlane.xlu0 %3762
  %v3764 = vsel %vm3742, %v3730, 0.0
  %3765 = vadd.xlane.f32.xlu0 %v3764
  %v3766 = vpop.xlane.xlu0 %3765
  %v3767 = vrcp.pop 64.0
  %v3768 = vmul.f32 %v3745, %v3767
  %v3769 = vmul.f32 %v3748, %v3767
  %v3770 = vmul.f32 %v3751, %v3767
  %v3771 = vmul.f32 %v3754, %v3767
  %v3772 = vmul.f32 %v3757, %v3767
  %v3773 = vmul.f32 %v3760, %v3767
  %v3774 = vmul.f32 %v3763, %v3767
  %v3775 = vmul.f32 %v3766, %v3767
  %v3776 = vsub.f32 %v3723, %v3768
  %v3777 = vsub.f32 %v3724, %v3769
  %v3778 = vsub.f32 %v3725, %v3770
  %v3779 = vsub.f32 %v3726, %v3771
  %v3780 = vsub.f32 %v3727, %v3772
  %v3781 = vsub.f32 %v3728, %v3773
  %v3782 = vsub.f32 %v3729, %v3774
  %v3783 = vsub.f32 %v3730, %v3775
  %v3784 = vmul.f32 %v3776, %v3776
  %v3785 = vmul.f32 %v3777, %v3777
  %v3786 = vmul.f32 %v3778, %v3778
  %v3787 = vmul.f32 %v3779, %v3779
  %v3788 = vmul.f32 %v3780, %v3780
  %v3789 = vmul.f32 %v3781, %v3781
  %v3790 = vmul.f32 %v3782, %v3782
  %v3791 = vmul.f32 %v3783, %v3783
  %v3792 = vsel %vm3742, %v3784, 0.0
  %3793 = vadd.xlane.f32.xlu0 %v3792
  %v3794 = vpop.xlane.xlu0 %3793
  %v3795 = vsel %vm3742, %v3785, 0.0
  %3796 = vadd.xlane.f32.xlu0 %v3795
  %v3797 = vpop.xlane.xlu0 %3796
  %v3798 = vsel %vm3742, %v3786, 0.0
  %3799 = vadd.xlane.f32.xlu0 %v3798
  %v3800 = vpop.xlane.xlu0 %3799
  %v3801 = vsel %vm3742, %v3787, 0.0
  %3802 = vadd.xlane.f32.xlu0 %v3801
  %v3803 = vpop.xlane.xlu0 %3802
  %v3804 = vsel %vm3742, %v3788, 0.0
  %3805 = vadd.xlane.f32.xlu0 %v3804
  %v3806 = vpop.xlane.xlu0 %3805
  %v3807 = vsel %vm3742, %v3789, 0.0
  %3808 = vadd.xlane.f32.xlu0 %v3807
  %v3809 = vpop.xlane.xlu0 %3808
  %v3810 = vsel %vm3742, %v3790, 0.0
  %3811 = vadd.xlane.f32.xlu0 %v3810
  %v3812 = vpop.xlane.xlu0 %3811
  %v3813 = vsel %vm3742, %v3791, 0.0
  %3814 = vadd.xlane.f32.xlu0 %v3813
  %v3815 = vpop.xlane.xlu0 %3814
  %v3816 = vmul.f32 %v3794, %v3767
  %v3817 = vmul.f32 %v3797, %v3767
  %v3818 = vmul.f32 %v3800, %v3767
  %v3819 = vmul.f32 %v3803, %v3767
  %v3820 = vmul.f32 %v3806, %v3767
  %v3821 = vmul.f32 %v3809, %v3767
  %v3822 = vmul.f32 %v3812, %v3767
  %v3823 = vmul.f32 %v3815, %v3767
  %v3824 = vadd.f32 %v3816, 1e-05
  %v3825 = vadd.f32 %v3817, 1e-05
  %v3826 = vadd.f32 %v3818, 1e-05
  %v3827 = vadd.f32 %v3819, 1e-05
  %v3828 = vadd.f32 %v3820, 1e-05
  %v3829 = vadd.f32 %v3821, 1e-05
  %v3830 = vadd.f32 %v3822, 1e-05
  %v3831 = vadd.f32 %v3823, 1e-05
  %v3832 = vrsqrt.pop %v3824
  %v3833 = vrsqrt.pop %v3825
  %v3834 = vrsqrt.pop %v3826
  %v3835 = vrsqrt.pop %v3827
  %v3836 = vrsqrt.pop %v3828
  %v3837 = vrsqrt.pop %v3829
  %v3838 = vrsqrt.pop %v3830
  %v3839 = vrsqrt.pop %v3831
  %v3840 = vmul.f32 %v3776, %v3832
  %v3841 = vmul.f32 %v3777, %v3833
  %v3842 = vmul.f32 %v3778, %v3834
  %v3843 = vmul.f32 %v3779, %v3835
  %v3844 = vmul.f32 %v3780, %v3836
  %v3845 = vmul.f32 %v3781, %v3837
  %v3846 = vmul.f32 %v3782, %v3838
  %v3847 = vmul.f32 %v3783, %v3839
  %v3848 = vlaneseq
  %v3849 = vshrl.u32 %v3848, 7
  %v3850 = vsub.s32 0, %v3849
  %v3851 = vrot.slane %v3731, %v3850
  %v3852 = vmul.f32 %v3840, %v3851
  %v3853 = vmul.f32 %v3841, %v3851
  %v3854 = vmul.f32 %v3842, %v3851
  %v3855 = vmul.f32 %v3843, %v3851
  %v3856 = vmul.f32 %v3844, %v3851
  %v3857 = vmul.f32 %v3845, %v3851
  %v3858 = vmul.f32 %v3846, %v3851
  %v3859 = vmul.f32 %v3847, %v3851
  %v3860 = vlaneseq
  %v3861 = vshrl.u32 %v3860, 7
  %v3862 = vsub.s32 0, %v3861
  %v3863 = vrot.slane %v3732, %v3862
  %v3864 = vadd.f32 %v3852, %v3863
  %v3865 = vadd.f32 %v3853, %v3863
  %v3866 = vadd.f32 %v3854, %v3863
  %v3867 = vadd.f32 %v3855, %v3863
  %v3868 = vadd.f32 %v3856, %v3863
  %v3869 = vadd.f32 %v3857, %v3863
  %v3870 = vadd.f32 %v3858, %v3863
  %v3871 = vadd.f32 %v3859, %v3863
  %v3872 = vmul.f32 %v3864, 0.5
  %v3873 = vmul.f32 %v3865, 0.5
  %v3874 = vmul.f32 %v3866, 0.5
  %v3875 = vmul.f32 %v3867, 0.5
  %v3876 = vmul.f32 %v3868, 0.5
  %v3877 = vmul.f32 %v3869, 0.5
  %v3878 = vmul.f32 %v3870, 0.5
  %v3879 = vmul.f32 %v3871, 0.5
  %v3880 = vmul.f32 %v3864, 0.70710677
  %v3881 = vmul.f32 %v3865, 0.70710677
  %v3882 = vmul.f32 %v3866, 0.70710677
  %v3883 = vmul.f32 %v3867, 0.70710677
  %v3884 = vmul.f32 %v3868, 0.70710677
  %v3885 = vmul.f32 %v3869, 0.70710677
  %v3886 = vmul.f32 %v3870, 0.70710677
  %v3887 = vmul.f32 %v3871, 0.70710677
  %v3888 = vand.u32 2147483647, %v3880
  %v3889 = vand.u32 2147483647, %v3881
  %v3890 = vand.u32 2147483647, %v3882
  %v3891 = vand.u32 2147483647, %v3883
  %v3892 = vand.u32 2147483647, %v3884
  %v3893 = vand.u32 2147483647, %v3885
  %v3894 = vand.u32 2147483647, %v3886
  %v3895 = vand.u32 2147483647, %v3887
  %v3896 = vmul.f32 %v3888, 0.3275911
  %v3897 = vmul.f32 %v3889, 0.3275911
  %v3898 = vmul.f32 %v3890, 0.3275911
  %v3899 = vmul.f32 %v3891, 0.3275911
  %v3900 = vmul.f32 %v3892, 0.3275911
  %v3901 = vmul.f32 %v3893, 0.3275911
  %v3902 = vmul.f32 %v3894, 0.3275911
  %v3903 = vmul.f32 %v3895, 0.3275911
  %v3904 = vadd.f32 %v3896, 1.0
  %v3905 = vadd.f32 %v3897, 1.0
  %v3906 = vadd.f32 %v3898, 1.0
  %v3907 = vadd.f32 %v3899, 1.0
  %v3908 = vadd.f32 %v3900, 1.0
  %v3909 = vadd.f32 %v3901, 1.0
  %v3910 = vadd.f32 %v3902, 1.0
  %v3911 = vadd.f32 %v3903, 1.0
  %v3912 = vrcp.pop %v3904
  %v3913 = vmul.f32 1.0, %v3912
  %v3914 = vrcp.pop %v3905
  %v3915 = vmul.f32 1.0, %v3914
  %v3916 = vrcp.pop %v3906
  %v3917 = vmul.f32 1.0, %v3916
  %v3918 = vrcp.pop %v3907
  %v3919 = vmul.f32 1.0, %v3918
  %v3920 = vrcp.pop %v3908
  %v3921 = vmul.f32 1.0, %v3920
  %v3922 = vrcp.pop %v3909
  %v3923 = vmul.f32 1.0, %v3922
  %v3924 = vrcp.pop %v3910
  %v3925 = vmul.f32 1.0, %v3924
  %v3926 = vrcp.pop %v3911
  %v3927 = vmul.f32 1.0, %v3926
  %v3928 = vmul.f32 %v3913, 1.0614054
  %v3929 = vmul.f32 %v3915, 1.0614054
  %v3930 = vmul.f32 %v3917, 1.0614054
  %v3931 = vmul.f32 %v3919, 1.0614054
  %v3932 = vmul.f32 %v3921, 1.0614054
  %v3933 = vmul.f32 %v3923, 1.0614054
  %v3934 = vmul.f32 %v3925, 1.0614054
  %v3935 = vmul.f32 %v3927, 1.0614054
  %v3936 = vadd.f32 %v3928, -1.4531521
  %v3937 = vadd.f32 %v3929, -1.4531521
  %v3938 = vadd.f32 %v3930, -1.4531521
  %v3939 = vadd.f32 %v3931, -1.4531521
  %v3940 = vadd.f32 %v3932, -1.4531521
  %v3941 = vadd.f32 %v3933, -1.4531521
  %v3942 = vadd.f32 %v3934, -1.4531521
  %v3943 = vadd.f32 %v3935, -1.4531521
  %v3944 = vmul.f32 %v3936, %v3913
  %v3945 = vmul.f32 %v3937, %v3915
  %v3946 = vmul.f32 %v3938, %v3917
  %v3947 = vmul.f32 %v3939, %v3919
  %v3948 = vmul.f32 %v3940, %v3921
  %v3949 = vmul.f32 %v3941, %v3923
  %v3950 = vmul.f32 %v3942, %v3925
  %v3951 = vmul.f32 %v3943, %v3927
  %v3952 = vadd.f32 %v3944, 1.4214138
  %v3953 = vadd.f32 %v3945, 1.4214138
  %v3954 = vadd.f32 %v3946, 1.4214138
  %v3955 = vadd.f32 %v3947, 1.4214138
  %v3956 = vadd.f32 %v3948, 1.4214138
  %v3957 = vadd.f32 %v3949, 1.4214138
  %v3958 = vadd.f32 %v3950, 1.4214138
  %v3959 = vadd.f32 %v3951, 1.4214138
  %v3960 = vmul.f32 %v3952, %v3913
  %v3961 = vmul.f32 %v3953, %v3915
  %v3962 = vmul.f32 %v3954, %v3917
  %v3963 = vmul.f32 %v3955, %v3919
  %v3964 = vmul.f32 %v3956, %v3921
  %v3965 = vmul.f32 %v3957, %v3923
  %v3966 = vmul.f32 %v3958, %v3925
  %v3967 = vmul.f32 %v3959, %v3927
  %v3968 = vadd.f32 %v3960, -0.28449672
  %v3969 = vadd.f32 %v3961, -0.28449672
  %v3970 = vadd.f32 %v3962, -0.28449672
  %v3971 = vadd.f32 %v3963, -0.28449672
  %v3972 = vadd.f32 %v3964, -0.28449672
  %v3973 = vadd.f32 %v3965, -0.28449672
  %v3974 = vadd.f32 %v3966, -0.28449672
  %v3975 = vadd.f32 %v3967, -0.28449672
  %v3976 = vmul.f32 %v3968, %v3913
  %v3977 = vmul.f32 %v3969, %v3915
  %v3978 = vmul.f32 %v3970, %v3917
  %v3979 = vmul.f32 %v3971, %v3919
  %v3980 = vmul.f32 %v3972, %v3921
  %v3981 = vmul.f32 %v3973, %v3923
  %v3982 = vmul.f32 %v3974, %v3925
  %v3983 = vmul.f32 %v3975, %v3927
  %v3984 = vadd.f32 %v3976, 0.2548296
  %v3985 = vadd.f32 %v3977, 0.2548296
  %v3986 = vadd.f32 %v3978, 0.2548296
  %v3987 = vadd.f32 %v3979, 0.2548296
  %v3988 = vadd.f32 %v3980, 0.2548296
  %v3989 = vadd.f32 %v3981, 0.2548296
  %v3990 = vadd.f32 %v3982, 0.2548296
  %v3991 = vadd.f32 %v3983, 0.2548296
  %v3992 = vmul.f32 %v3984, %v3913
  %v3993 = vmul.f32 %v3985, %v3915
  %v3994 = vmul.f32 %v3986, %v3917
  %v3995 = vmul.f32 %v3987, %v3919
  %v3996 = vmul.f32 %v3988, %v3921
  %v3997 = vmul.f32 %v3989, %v3923
  %v3998 = vmul.f32 %v3990, %v3925
  %v3999 = vmul.f32 %v3991, %v3927
  %v4000 = vsub.f32 0.0, %v3888
  %v4001 = vsub.f32 0.0, %v3889
  %v4002 = vsub.f32 0.0, %v3890
  %v4003 = vsub.f32 0.0, %v3891
  %v4004 = vsub.f32 0.0, %v3892
  %v4005 = vsub.f32 0.0, %v3893
  %v4006 = vsub.f32 0.0, %v3894
  %v4007 = vsub.f32 0.0, %v3895
  %v4008 = vmul.f32 %v4000, %v3888
  %v4009 = vmul.f32 %v4001, %v3889
  %v4010 = vmul.f32 %v4002, %v3890
  %v4011 = vmul.f32 %v4003, %v3891
  %v4012 = vmul.f32 %v4004, %v3892
  %v4013 = vmul.f32 %v4005, %v3893
  %v4014 = vmul.f32 %v4006, %v3894
  %v4015 = vmul.f32 %v4007, %v3895
  %v4016 = vmul.f32 %v4008, 1.442695
  %v4017 = vpow.pop %v4016
  %v4018 = vmul.f32 %v4009, 1.442695
  %v4019 = vpow.pop %v4018
  %v4020 = vmul.f32 %v4010, 1.442695
  %v4021 = vpow.pop %v4020
  %v4022 = vmul.f32 %v4011, 1.442695
  %v4023 = vpow.pop %v4022
  %v4024 = vmul.f32 %v4012, 1.442695
  %v4025 = vpow.pop %v4024
  %v4026 = vmul.f32 %v4013, 1.442695
  %v4027 = vpow.pop %v4026
  %v4028 = vmul.f32 %v4014, 1.442695
  %v4029 = vpow.pop %v4028
  %v4030 = vmul.f32 %v4015, 1.442695
  %v4031 = vpow.pop %v4030
  %v4032 = vmul.f32 %v3992, %v4017
  %v4033 = vmul.f32 %v3993, %v4019
  %v4034 = vmul.f32 %v3994, %v4021
  %v4035 = vmul.f32 %v3995, %v4023
  %v4036 = vmul.f32 %v3996, %v4025
  %v4037 = vmul.f32 %v3997, %v4027
  %v4038 = vmul.f32 %v3998, %v4029
  %v4039 = vmul.f32 %v3999, %v4031
  %v4040 = vsub.f32 1.0, %v4032
  %v4041 = vsub.f32 1.0, %v4033
  %v4042 = vsub.f32 1.0, %v4034
  %v4043 = vsub.f32 1.0, %v4035
  %v4044 = vsub.f32 1.0, %v4036
  %v4045 = vsub.f32 1.0, %v4037
  %v4046 = vsub.f32 1.0, %v4038
  %v4047 = vsub.f32 1.0, %v4039
  %vm4048 = vcmp.lt.f32.partialorder %v3880, 0.0
  %vm4049 = vcmp.lt.f32.partialorder %v3881, 0.0
  %vm4050 = vcmp.lt.f32.partialorder %v3882, 0.0
  %vm4051 = vcmp.lt.f32.partialorder %v3883, 0.0
  %vm4052 = vcmp.lt.f32.partialorder %v3884, 0.0
  %vm4053 = vcmp.lt.f32.partialorder %v3885, 0.0
  %vm4054 = vcmp.lt.f32.partialorder %v3886, 0.0
  %vm4055 = vcmp.lt.f32.partialorder %v3887, 0.0
  %v4056 = vsub.f32 0.0, %v4040
  %v4057 = vsub.f32 0.0, %v4041
  %v4058 = vsub.f32 0.0, %v4042
  %v4059 = vsub.f32 0.0, %v4043
  %v4060 = vsub.f32 0.0, %v4044
  %v4061 = vsub.f32 0.0, %v4045
  %v4062 = vsub.f32 0.0, %v4046
  %v4063 = vsub.f32 0.0, %v4047
  %v4064 = vsel %vm4048, %v4056, %v4040
  %v4065 = vsel %vm4049, %v4057, %v4041
  %v4066 = vsel %vm4050, %v4058, %v4042
  %v4067 = vsel %vm4051, %v4059, %v4043
  %v4068 = vsel %vm4052, %v4060, %v4044
  %v4069 = vsel %vm4053, %v4061, %v4045
  %v4070 = vsel %vm4054, %v4062, %v4046
  %v4071 = vsel %vm4055, %v4063, %v4047
  %v4072 = vadd.f32 %v4064, 1.0
  %v4073 = vadd.f32 %v4065, 1.0
  %v4074 = vadd.f32 %v4066, 1.0
  %v4075 = vadd.f32 %v4067, 1.0
  %v4076 = vadd.f32 %v4068, 1.0
  %v4077 = vadd.f32 %v4069, 1.0
  %v4078 = vadd.f32 %v4070, 1.0
  %v4079 = vadd.f32 %v4071, 1.0
  %v4080 = vmul.f32 %v3872, %v4072
  %v4081 = vmul.f32 %v3873, %v4073
  %v4082 = vmul.f32 %v3874, %v4074
  %v4083 = vmul.f32 %v3875, %v4075
  %v4084 = vmul.f32 %v3876, %v4076
  %v4085 = vmul.f32 %v3877, %v4077
  %v4086 = vmul.f32 %v3878, %v4078
  %v4087 = vmul.f32 %v3879, %v4079
  %v4089 = vsel %vm3742, %v4080, 0
  %v4092 = vsel %vm3742, %v4081, 0
  %v4095 = vsel %vm3742, %v4082, 0
  %v4098 = vsel %vm3742, %v4083, 0
  %v4101 = vsel %vm3742, %v4084, 0
  %v4104 = vsel %vm3742, %v4085, 0
  %v4107 = vsel %vm3742, %v4086, 0
  %v4110 = vsel %vm3742, %v4087, 0
  %4112 = vmatprep.subr.mxu0 0.0
  %4113 = vmatpush1.msra.mxu0 %v3733
  %4114 = vmatprep.subr.mxu0 0.0
  %4115 = vmatpush1.msra.mxu0 %v3734
  %4116 = vmatprep.subr.mxu0 0.0
  %4117 = vmatpush1.msra.mxu0 %v3735
  %4118 = vmatprep.subr.mxu0 0.0
  %4119 = vmatpush1.msra.mxu0 %v3736
  %4120 = vmatprep.subr.mxu0 0.0
  %4121 = vmatpush1.msra.mxu0 %v3737
  %4122 = vmatprep.subr.mxu0 0.0
  %4123 = vmatpush1.msra.mxu0 %v3738
  %4124 = vmatprep.subr.mxu0 0.0
  %4125 = vmatpush1.msra.mxu0 %v3739
  %4126 = vmatprep.subr.mxu0 0.0
  %4127 = vmatpush1.msra.mxu0 %v3740
  %4128 = vmatprep.subr.mxu0 0.0
  %4129 = vmatpush1.msra.mxu0 0.0
  %4130 = vmatprep.subr.mxu0 0.0
  %4131 = vmatpush1.msra.mxu0 0.0
  %4132 = vmatprep.subr.mxu0 0.0
  %4133 = vmatpush1.msra.mxu0 0.0
  %4134 = vmatprep.subr.mxu0 0.0
  %4135 = vmatpush1.msra.mxu0 0.0
  %4136 = vmatprep.subr.mxu0 0.0
  %4137 = vmatpush1.msra.mxu0 0.0
  %4138 = vmatprep.subr.mxu0 0.0
  %4139 = vmatpush1.msra.mxu0 0.0
  %4140 = vmatprep.subr.mxu0 0.0
  %4141 = vmatpush1.msra.mxu0 0.0
  %4142 = vmatprep.subr.mxu0 0.0
  %4143 = vmatpush1.msra.mxu0 0.0
  %4144 = vmatprep.subr.mxu0 0.0
  %4145 = vmatpush1.msra.mxu0 0.0
  %4146 = vmatprep.subr.mxu0 0.0
  %4147 = vmatpush1.msra.mxu0 0.0
  %4148 = vmatprep.subr.mxu0 0.0
  %4149 = vmatpush1.msra.mxu0 0.0
  %4150 = vmatprep.subr.mxu0 0.0
  %4151 = vmatpush1.msra.mxu0 0.0
  %4152 = vmatprep.subr.mxu0 0.0
  %4153 = vmatpush1.msra.mxu0 0.0
  %4154 = vmatprep.subr.mxu0 0.0
  %4155 = vmatpush1.msra.mxu0 0.0
  %4156 = vmatprep.subr.mxu0 0.0
  %4157 = vmatpush1.msra.mxu0 0.0
  %4158 = vmatprep.subr.mxu0 0.0
  %4159 = vmatpush1.msra.mxu0 0.0
  %4160 = vmatprep.subr.mxu0 0.0
  %4161 = vmatpush1.msra.mxu0 0.0
  %4162 = vmatprep.subr.mxu0 0.0
  %4163 = vmatpush1.msra.mxu0 0.0
  %4164 = vmatprep.subr.mxu0 0.0
  %4165 = vmatpush1.msra.mxu0 0.0
  %4166 = vmatprep.subr.mxu0 0.0
  %4167 = vmatpush1.msra.mxu0 0.0
  %4168 = vmatprep.subr.mxu0 0.0
  %4169 = vmatpush1.msra.mxu0 0.0
  %4170 = vmatprep.subr.mxu0 0.0
  %4171 = vmatpush1.msra.mxu0 0.0
  %4172 = vmatprep.subr.mxu0 0.0
  %4173 = vmatpush1.msra.mxu0 0.0
  %4174 = vmatprep.subr.mxu0 0.0
  %4175 = vmatpush1.msra.mxu0 0.0
  %4176 = vmatprep.mubr.f32.mxu0 0.0
  %4177 = vmatmul.mubr.f32.gmra.mrb[0].mxu0 %v4089
  %v4178 = vpop.f32.mrb[0].mxu0
  %v4179 = vadd.f32 0.0, %v4178
  %v4180 = vpop.f32.mrb[0].mxu0
  %4181 = vmatprep.mubr.f32.mxu0 0.0
  %4182 = vmatmul.mubr.f32.gmra.mrb[0].mxu0 %v4092
  %v4183 = vpop.f32.mrb[0].mxu0
  %v4184 = vadd.f32 0.0, %v4183
  %v4185 = vpop.f32.mrb[0].mxu0
  %4186 = vmatprep.mubr.f32.mxu0 0.0
  %4187 = vmatmul.mubr.f32.gmra.mrb[0].mxu0 %v4095
  %v4188 = vpop.f32.mrb[0].mxu0
  %v4189 = vadd.f32 0.0, %v4188
  %v4190 = vpop.f32.mrb[0].mxu0
  %4191 = vmatprep.mubr.f32.mxu0 0.0
  %4192 = vmatmul.mubr.f32.gmra.mrb[0].mxu0 %v4098
  %v4193 = vpop.f32.mrb[0].mxu0
  %v4194 = vadd.f32 0.0, %v4193
  %v4195 = vpop.f32.mrb[0].mxu0
  %4196 = vmatprep.mubr.f32.mxu0 0.0
  %4197 = vmatmul.mubr.f32.gmra.mrb[0].mxu0 %v4101
  %v4198 = vpop.f32.mrb[0].mxu0
  %v4199 = vadd.f32 0.0, %v4198
  %v4200 = vpop.f32.mrb[0].mxu0
  %4201 = vmatprep.mubr.f32.mxu0 0.0
  %4202 = vmatmul.mubr.f32.gmra.mrb[0].mxu0 %v4104
  %v4203 = vpop.f32.mrb[0].mxu0
  %v4204 = vadd.f32 0.0, %v4203
  %v4205 = vpop.f32.mrb[0].mxu0
  %4206 = vmatprep.mubr.f32.mxu0 0.0
  %4207 = vmatmul.mubr.f32.gmra.mrb[0].mxu0 %v4107
  %v4208 = vpop.f32.mrb[0].mxu0
  %v4209 = vadd.f32 0.0, %v4208
  %v4210 = vpop.f32.mrb[0].mxu0
  %4211 = vmatprep.mubr.f32.mxu0 0.0
  %4212 = vmatmul.mubr.f32.gmra.mrb[0].mxu0 %v4110
  %v4213 = vpop.f32.mrb[0].mxu0
  %v4214 = vadd.f32 0.0, %v4213
  %v4215 = vpop.f32.mrb[0].mxu0
  %4216 = vdwg.mxu0
  %v4217 = vadd.f32 %v26, %v4179
  %v4218 = vadd.f32 %v27, %v4184
  %v4219 = vadd.f32 %v28, %v4189
  %v4220 = vadd.f32 %v29, %v4194
  %v4221 = vadd.f32 %v30, %v4199
  %v4222 = vadd.f32 %v31, %v4204
  %v4223 = vadd.f32 %v32, %v4209
  %v4224 = vadd.f32 %v33, %v4214
  %v4225 = vlaneseq
  %v4226 = vshrl.u32 %v4225, 7
  %v4227 = vsub.s32 0, %v4226
  %v4228 = vrot.slane %v3741, %v4227
  %v4229 = vadd.f32 %v4217, %v4228
  %v4230 = vadd.f32 %v4218, %v4228
  %v4231 = vadd.f32 %v4219, %v4228
  %v4232 = vadd.f32 %v4220, %v4228
  %v4233 = vadd.f32 %v4221, %v4228
  %v4234 = vadd.f32 %v4222, %v4228
  %v4235 = vadd.f32 %v4223, %v4228
  %v4236 = vadd.f32 %v4224, %v4228
  %v4237 = vld [vmem:[%s2 + $0x30] sm:$0xff]
  %v4238 = vld [vmem:[%s2 + $0x38] sm:$0xff]
  %v4239 = vld [vmem:[%s2 + $0x40] sm:$0xff]
  %v4240 = vld [vmem:[%s2 + $0x78] sm:$0xff]
  %v4241 = vld [vmem:[%s2 + $0x80] sm:$0xff]
  %v4242 = vld [vmem:[%s2 + $0x88] sm:$0xff]
  %v4243 = vld [vmem:[%s2 + $0xc0] sm:$0xff]
  %v4244 = vld [vmem:[%s2 + $0xc8] sm:$0xff]
  %v4245 = vld [vmem:[%s2 + $0xd0] sm:$0xff]
  %v4246 = vld [vmem:[%s2 + $0x108] sm:$0xff]
  %v4247 = vld [vmem:[%s2 + $0x110] sm:$0xff]
  %v4248 = vld [vmem:[%s2 + $0x118] sm:$0xff]
  %v4249 = vld [vmem:[%s3 + $0x6] sm:$0x7]
  %v4251 = vlaneseq
  %v4252 = vshrl.u32 %v4251, 7
  %v4253 = vsub.s32 0, %v4252
  %v4254 = vrot.slane %v4249, %v4253
  %v4255 = vlaneseq
  %v4256 = vshrl.u32 %v4255, 7
  %v4257 = vsub.s32 1, %v4256
  %v4258 = vrot.slane %v4249, %v4257
  %v4259 = vlaneseq
  %v4260 = vshrl.u32 %v4259, 7
  %v4261 = vsub.s32 2, %v4260
  %v4262 = vrot.slane %v4249, %v4261
  %v4267 = vsel %vm129, %v4229, 0
  %v4270 = vsel %vm129, %v4230, 0
  %v4273 = vsel %vm129, %v4231, 0
  %v4276 = vsel %vm129, %v4232, 0
  %v4279 = vsel %vm129, %v4233, 0
  %v4282 = vsel %vm129, %v4234, 0
  %v4285 = vsel %vm129, %v4235, 0
  %v4288 = vsel %vm129, %v4236, 0
  %4290 = vmatprep.subr.mxu0 %v4238
  %4291 = vmatpush1.msra.mxu0 %v4237
  %4292 = vmatprep.subr.mxu0 %v4241
  %4293 = vmatpush1.msra.mxu0 %v4240
  %4294 = vmatprep.subr.mxu0 %v4244
  %4295 = vmatpush1.msra.mxu0 %v4243
  %4296 = vmatprep.subr.mxu0 %v4247
  %4297 = vmatpush1.msra.mxu0 %v4246
  %4298 = vmatprep.subr.mxu0 0.0
  %4299 = vmatpush1.msra.mxu0 0.0
  %4300 = vmatprep.subr.mxu0 0.0
  %4301 = vmatpush1.msra.mxu0 0.0
  %4302 = vmatprep.subr.mxu0 0.0
  %4303 = vmatpush1.msra.mxu0 0.0
  %4304 = vmatprep.subr.mxu0 0.0
  %4305 = vmatpush1.msra.mxu0 0.0
  %4306 = vmatprep.subr.mxu0 0.0
  %4307 = vmatpush1.msra.mxu0 0.0
  %4308 = vmatprep.subr.mxu0 0.0
  %4309 = vmatpush1.msra.mxu0 0.0
  %4310 = vmatprep.subr.mxu0 0.0
  %4311 = vmatpush1.msra.mxu0 0.0
  %4312 = vmatprep.subr.mxu0 0.0
  %4313 = vmatpush1.msra.mxu0 0.0
  %4314 = vmatprep.subr.mxu0 0.0
  %4315 = vmatpush1.msra.mxu0 0.0
  %4316 = vmatprep.subr.mxu0 0.0
  %4317 = vmatpush1.msra.mxu0 0.0
  %4318 = vmatprep.subr.mxu0 0.0
  %4319 = vmatpush1.msra.mxu0 0.0
  %4320 = vmatprep.subr.mxu0 0.0
  %4321 = vmatpush1.msra.mxu0 0.0
  %4322 = vmatprep.subr.mxu0 0.0
  %4323 = vmatpush1.msra.mxu0 0.0
  %4324 = vmatprep.subr.mxu0 0.0
  %4325 = vmatpush1.msra.mxu0 0.0
  %4326 = vmatprep.subr.mxu0 0.0
  %4327 = vmatpush1.msra.mxu0 0.0
  %4328 = vmatprep.subr.mxu0 0.0
  %4329 = vmatpush1.msra.mxu0 0.0
  %4330 = vmatprep.subr.mxu0 0.0
  %4331 = vmatpush1.msra.mxu0 0.0
  %4332 = vmatprep.subr.mxu0 0.0
  %4333 = vmatpush1.msra.mxu0 0.0
  %4334 = vmatprep.subr.mxu0 0.0
  %4335 = vmatpush1.msra.mxu0 0.0
  %4336 = vmatprep.subr.mxu0 0.0
  %4337 = vmatpush1.msra.mxu0 0.0
  %4338 = vmatprep.subr.mxu0 0.0
  %4339 = vmatpush1.msra.mxu0 0.0
  %4340 = vmatprep.subr.mxu0 0.0
  %4341 = vmatpush1.msra.mxu0 0.0
  %4342 = vmatprep.subr.mxu0 0.0
  %4343 = vmatpush1.msra.mxu0 0.0
  %4344 = vmatprep.subr.mxu0 0.0
  %4345 = vmatpush1.msra.mxu0 0.0
  %4346 = vmatprep.subr.mxu0 0.0
  %4347 = vmatpush1.msra.mxu0 0.0
  %4348 = vmatprep.subr.mxu0 0.0
  %4349 = vmatpush1.msra.mxu0 0.0
  %4350 = vmatprep.subr.mxu0 0.0
  %4351 = vmatpush1.msra.mxu0 0.0
  %4352 = vmatprep.subr.mxu0 0.0
  %4353 = vmatpush1.msra.mxu0 0.0
  %4354 = vmatprep.mubr.f32.mxu0 0.0
  %4355 = vmatmul.mubr.f32.gmra.mrb[0].mxu0 %v4267
  %v4356 = vpop.f32.mrb[0].mxu0
  %v4357 = vadd.f32 %v4254, %v4356
  %v4358 = vpop.f32.mrb[0].mxu0
  %v4359 = vadd.f32 %v4258, %v4358
  %4360 = vmatprep.mubr.f32.mxu0 0.0
  %4361 = vmatmul.mubr.f32.gmra.mrb[0].mxu0 %v4270
  %v4362 = vpop.f32.mrb[0].mxu0
  %v4363 = vadd.f32 %v4254, %v4362
  %v4364 = vpop.f32.mrb[0].mxu0
  %v4365 = vadd.f32 %v4258, %v4364
  %4366 = vmatprep.mubr.f32.mxu0 0.0
  %4367 = vmatmul.mubr.f32.gmra.mrb[0].mxu0 %v4273
  %v4368 = vpop.f32.mrb[0].mxu0
  %v4369 = vadd.f32 %v4254, %v4368
  %v4370 = vpop.f32.mrb[0].mxu0
  %v4371 = vadd.f32 %v4258, %v4370
  %4372 = vmatprep.mubr.f32.mxu0 0.0
  %4373 = vmatmul.mubr.f32.gmra.mrb[0].mxu0 %v4276
  %v4374 = vpop.f32.mrb[0].mxu0
  %v4375 = vadd.f32 %v4254, %v4374
  %v4376 = vpop.f32.mrb[0].mxu0
  %v4377 = vadd.f32 %v4258, %v4376
  %4378 = vmatprep.mubr.f32.mxu0 0.0
  %4379 = vmatmul.mubr.f32.gmra.mrb[0].mxu0 %v4279
  %v4380 = vpop.f32.mrb[0].mxu0
  %v4381 = vadd.f32 %v4254, %v4380
  %v4382 = vpop.f32.mrb[0].mxu0
  %v4383 = vadd.f32 %v4258, %v4382
  %4384 = vmatprep.mubr.f32.mxu0 0.0
  %4385 = vmatmul.mubr.f32.gmra.mrb[0].mxu0 %v4282
  %v4386 = vpop.f32.mrb[0].mxu0
  %v4387 = vadd.f32 %v4254, %v4386
  %v4388 = vpop.f32.mrb[0].mxu0
  %v4389 = vadd.f32 %v4258, %v4388
  %4390 = vmatprep.mubr.f32.mxu0 0.0
  %4391 = vmatmul.mubr.f32.gmra.mrb[0].mxu0 %v4285
  %v4392 = vpop.f32.mrb[0].mxu0
  %v4393 = vadd.f32 %v4254, %v4392
  %v4394 = vpop.f32.mrb[0].mxu0
  %v4395 = vadd.f32 %v4258, %v4394
  %4396 = vmatprep.mubr.f32.mxu0 0.0
  %4397 = vmatmul.mubr.f32.gmra.mrb[0].mxu0 %v4288
  %v4398 = vpop.f32.mrb[0].mxu0
  %v4399 = vadd.f32 %v4254, %v4398
  %v4400 = vpop.f32.mrb[0].mxu0
  %v4401 = vadd.f32 %v4258, %v4400
  %4402 = vdwg.mxu0
  %4403 = vmatprep.subr.mxu0 0.0
  %4404 = vmatpush1.msra.mxu0 %v4239
  %4405 = vmatprep.subr.mxu0 0.0
  %4406 = vmatpush1.msra.mxu0 %v4242
  %4407 = vmatprep.subr.mxu0 0.0
  %4408 = vmatpush1.msra.mxu0 %v4245
  %4409 = vmatprep.subr.mxu0 0.0
  %4410 = vmatpush1.msra.mxu0 %v4248
  %4411 = vmatprep.subr.mxu0 0.0
  %4412 = vmatpush1.msra.mxu0 0.0
  %4413 = vmatprep.subr.mxu0 0.0
  %4414 = vmatpush1.msra.mxu0 0.0
  %4415 = vmatprep.subr.mxu0 0.0
  %4416 = vmatpush1.msra.mxu0 0.0
  %4417 = vmatprep.subr.mxu0 0.0
  %4418 = vmatpush1.msra.mxu0 0.0
  %4419 = vmatprep.subr.mxu0 0.0
  %4420 = vmatpush1.msra.mxu0 0.0
  %4421 = vmatprep.subr.mxu0 0.0
  %4422 = vmatpush1.msra.mxu0 0.0
  %4423 = vmatprep.subr.mxu0 0.0
  %4424 = vmatpush1.msra.mxu0 0.0
  %4425 = vmatprep.subr.mxu0 0.0
  %4426 = vmatpush1.msra.mxu0 0.0
  %4427 = vmatprep.subr.mxu0 0.0
  %4428 = vmatpush1.msra.mxu0 0.0
  %4429 = vmatprep.subr.mxu0 0.0
  %4430 = vmatpush1.msra.mxu0 0.0
  %4431 = vmatprep.subr.mxu0 0.0
  %4432 = vmatpush1.msra.mxu0 0.0
  %4433 = vmatprep.subr.mxu0 0.0
  %4434 = vmatpush1.msra.mxu0 0.0
  %4435 = vmatprep.subr.mxu0 0.0
  %4436 = vmatpush1.msra.mxu0 0.0
  %4437 = vmatprep.subr.mxu0 0.0
  %4438 = vmatpush1.msra.mxu0 0.0
  %4439 = vmatprep.subr.mxu0 0.0
  %4440 = vmatpush1.msra.mxu0 0.0
  %4441 = vmatprep.subr.mxu0 0.0
  %4442 = vmatpush1.msra.mxu0 0.0
  %4443 = vmatprep.subr.mxu0 0.0
  %4444 = vmatpush1.msra.mxu0 0.0
  %4445 = vmatprep.subr.mxu0 0.0
  %4446 = vmatpush1.msra.mxu0 0.0
  %4447 = vmatprep.subr.mxu0 0.0
  %4448 = vmatpush1.msra.mxu0 0.0
  %4449 = vmatprep.subr.mxu0 0.0
  %4450 = vmatpush1.msra.mxu0 0.0
  %4451 = vmatprep.subr.mxu0 0.0
  %4452 = vmatpush1.msra.mxu0 0.0
  %4453 = vmatprep.subr.mxu0 0.0
  %4454 = vmatpush1.msra.mxu0 0.0
  %4455 = vmatprep.subr.mxu0 0.0
  %4456 = vmatpush1.msra.mxu0 0.0
  %4457 = vmatprep.subr.mxu0 0.0
  %4458 = vmatpush1.msra.mxu0 0.0
  %4459 = vmatprep.subr.mxu0 0.0
  %4460 = vmatpush1.msra.mxu0 0.0
  %4461 = vmatprep.subr.mxu0 0.0
  %4462 = vmatpush1.msra.mxu0 0.0
  %4463 = vmatprep.subr.mxu0 0.0
  %4464 = vmatpush1.msra.mxu0 0.0
  %4465 = vmatprep.subr.mxu0 0.0
  %4466 = vmatpush1.msra.mxu0 0.0
  %4467 = vmatprep.mubr.f32.mxu0 0.0
  %4468 = vmatmul.mubr.f32.gmra.mrb[0].mxu0 %v4267
  %v4469 = vpop.f32.mrb[0].mxu0
  %v4470 = vadd.f32 %v4262, %v4469
  %v4471 = vpop.f32.mrb[0].mxu0
  %4472 = vmatprep.mubr.f32.mxu0 0.0
  %4473 = vmatmul.mubr.f32.gmra.mrb[0].mxu0 %v4270
  %v4474 = vpop.f32.mrb[0].mxu0
  %v4475 = vadd.f32 %v4262, %v4474
  %v4476 = vpop.f32.mrb[0].mxu0
  %4477 = vmatprep.mubr.f32.mxu0 0.0
  %4478 = vmatmul.mubr.f32.gmra.mrb[0].mxu0 %v4273
  %v4479 = vpop.f32.mrb[0].mxu0
  %v4480 = vadd.f32 %v4262, %v4479
  %v4481 = vpop.f32.mrb[0].mxu0
  %4482 = vmatprep.mubr.f32.mxu0 0.0
  %4483 = vmatmul.mubr.f32.gmra.mrb[0].mxu0 %v4276
  %v4484 = vpop.f32.mrb[0].mxu0
  %v4485 = vadd.f32 %v4262, %v4484
  %v4486 = vpop.f32.mrb[0].mxu0
  %4487 = vmatprep.mubr.f32.mxu0 0.0
  %4488 = vmatmul.mubr.f32.gmra.mrb[0].mxu0 %v4279
  %v4489 = vpop.f32.mrb[0].mxu0
  %v4490 = vadd.f32 %v4262, %v4489
  %v4491 = vpop.f32.mrb[0].mxu0
  %4492 = vmatprep.mubr.f32.mxu0 0.0
  %4493 = vmatmul.mubr.f32.gmra.mrb[0].mxu0 %v4282
  %v4494 = vpop.f32.mrb[0].mxu0
  %v4495 = vadd.f32 %v4262, %v4494
  %v4496 = vpop.f32.mrb[0].mxu0
  %4497 = vmatprep.mubr.f32.mxu0 0.0
  %4498 = vmatmul.mubr.f32.gmra.mrb[0].mxu0 %v4285
  %v4499 = vpop.f32.mrb[0].mxu0
  %v4500 = vadd.f32 %v4262, %v4499
  %v4501 = vpop.f32.mrb[0].mxu0
  %4502 = vmatprep.mubr.f32.mxu0 0.0
  %4503 = vmatmul.mubr.f32.gmra.mrb[0].mxu0 %v4288
  %v4504 = vpop.f32.mrb[0].mxu0
  %v4505 = vadd.f32 %v4262, %v4504
  %v4506 = vpop.f32.mrb[0].mxu0
  %4507 = vdwg.mxu0
  %v4508 = vmul.f32 %v4357, %v57
  %v4509 = vmul.f32 %v4363, %v57
  %v4510 = vmul.f32 %v4369, %v57
  %v4511 = vmul.f32 %v4375, %v57
  %v4512 = vmul.f32 %v4381, %v57
  %v4513 = vmul.f32 %v4387, %v57
  %v4514 = vmul.f32 %v4393, %v57
  %v4515 = vmul.f32 %v4399, %v57
  %v4516 = vmul.f32 %v4357, %v62
  %v4517 = vmul.f32 %v4363, %v62
  %v4518 = vmul.f32 %v4369, %v62
  %v4519 = vmul.f32 %v4375, %v62
  %v4520 = vmul.f32 %v4381, %v62
  %v4521 = vmul.f32 %v4387, %v62
  %v4522 = vmul.f32 %v4393, %v62
  %v4523 = vmul.f32 %v4399, %v62
  %v4524 = vmul.f32 %v4357, %v67
  %v4525 = vmul.f32 %v4363, %v67
  %v4526 = vmul.f32 %v4369, %v67
  %v4527 = vmul.f32 %v4375, %v67
  %v4528 = vmul.f32 %v4381, %v67
  %v4529 = vmul.f32 %v4387, %v67
  %v4530 = vmul.f32 %v4393, %v67
  %v4531 = vmul.f32 %v4399, %v67
  %v4532 = vmul.f32 %v4357, %v72
  %v4533 = vmul.f32 %v4363, %v72
  %v4534 = vmul.f32 %v4369, %v72
  %v4535 = vmul.f32 %v4375, %v72
  %v4536 = vmul.f32 %v4381, %v72
  %v4537 = vmul.f32 %v4387, %v72
  %v4538 = vmul.f32 %v4393, %v72
  %v4539 = vmul.f32 %v4399, %v72
  %v4540 = vmul.f32 %v4359, %v57
  %v4541 = vmul.f32 %v4365, %v57
  %v4542 = vmul.f32 %v4371, %v57
  %v4543 = vmul.f32 %v4377, %v57
  %v4544 = vmul.f32 %v4383, %v57
  %v4545 = vmul.f32 %v4389, %v57
  %v4546 = vmul.f32 %v4395, %v57
  %v4547 = vmul.f32 %v4401, %v57
  %v4548 = vmul.f32 %v4359, %v62
  %v4549 = vmul.f32 %v4365, %v62
  %v4550 = vmul.f32 %v4371, %v62
  %v4551 = vmul.f32 %v4377, %v62
  %v4552 = vmul.f32 %v4383, %v62
  %v4553 = vmul.f32 %v4389, %v62
  %v4554 = vmul.f32 %v4395, %v62
  %v4555 = vmul.f32 %v4401, %v62
  %v4556 = vmul.f32 %v4359, %v67
  %v4557 = vmul.f32 %v4365, %v67
  %v4558 = vmul.f32 %v4371, %v67
  %v4559 = vmul.f32 %v4377, %v67
  %v4560 = vmul.f32 %v4383, %v67
  %v4561 = vmul.f32 %v4389, %v67
  %v4562 = vmul.f32 %v4395, %v67
  %v4563 = vmul.f32 %v4401, %v67
  %v4564 = vmul.f32 %v4359, %v72
  %v4565 = vmul.f32 %v4365, %v72
  %v4566 = vmul.f32 %v4371, %v72
  %v4567 = vmul.f32 %v4377, %v72
  %v4568 = vmul.f32 %v4383, %v72
  %v4569 = vmul.f32 %v4389, %v72
  %v4570 = vmul.f32 %v4395, %v72
  %v4571 = vmul.f32 %v4401, %v72
  %v4573 = vsel %vm129, %v4508, 0
  %v4576 = vsel %vm129, %v4509, 0
  %v4579 = vsel %vm129, %v4381, 0
  %v4582 = vsel %vm129, %v4387, 0
  %4584 = vmatprep.subr.mxu0 0.0
  %4585 = vmatpush1.xpose.msra.mxu0 %v4579
  %4586 = vmatprep.subr.mxu0 0.0
  %4587 = vmatpush1.xpose.msra.mxu0 %v4582
  %4588 = vmatprep.subr.mxu0 0.0
  %4589 = vmatpush1.xpose.msra.mxu0 0.0
  %4590 = vmatprep.subr.mxu0 0.0
  %4591 = vmatpush1.xpose.msra.mxu0 0.0
  %4592 = vmatprep.subr.mxu0 0.0
  %4593 = vmatpush1.xpose.msra.mxu0 0.0
  %4594 = vmatprep.subr.mxu0 0.0
  %4595 = vmatpush1.xpose.msra.mxu0 0.0
  %4596 = vmatprep.subr.mxu0 0.0
  %4597 = vmatpush1.xpose.msra.mxu0 0.0
  %4598 = vmatprep.subr.mxu0 0.0
  %4599 = vmatpush1.xpose.msra.mxu0 0.0
  %4600 = vmatprep.subr.mxu0 0.0
  %4601 = vmatpush1.xpose.msra.mxu0 0.0
  %4602 = vmatprep.subr.mxu0 0.0
  %4603 = vmatpush1.xpose.msra.mxu0 0.0
  %4604 = vmatprep.subr.mxu0 0.0
  %4605 = vmatpush1.xpose.msra.mxu0 0.0
  %4606 = vmatprep.subr.mxu0 0.0
  %4607 = vmatpush1.xpose.msra.mxu0 0.0
  %4608 = vmatprep.subr.mxu0 0.0
  %4609 = vmatpush1.xpose.msra.mxu0 0.0
  %4610 = vmatprep.subr.mxu0 0.0
  %4611 = vmatpush1.xpose.msra.mxu0 0.0
  %4612 = vmatprep.subr.mxu0 0.0
  %4613 = vmatpush1.xpose.msra.mxu0 0.0
  %4614 = vmatprep.subr.mxu0 0.0
  %4615 = vmatpush1.xpose.msra.mxu0 0.0
  %4616 = vmatprep.subr.mxu0 0.0
  %4617 = vmatpush1.xpose.msra.mxu0 0.0
  %4618 = vmatprep.subr.mxu0 0.0
  %4619 = vmatpush1.xpose.msra.mxu0 0.0
  %4620 = vmatprep.subr.mxu0 0.0
  %4621 = vmatpush1.xpose.msra.mxu0 0.0
  %4622 = vmatprep.subr.mxu0 0.0
  %4623 = vmatpush1.xpose.msra.mxu0 0.0
  %4624 = vmatprep.subr.mxu0 0.0
  %4625 = vmatpush1.xpose.msra.mxu0 0.0
  %4626 = vmatprep.subr.mxu0 0.0
  %4627 = vmatpush1.xpose.msra.mxu0 0.0
  %4628 = vmatprep.subr.mxu0 0.0
  %4629 = vmatpush1.xpose.msra.mxu0 0.0
  %4630 = vmatprep.subr.mxu0 0.0
  %4631 = vmatpush1.xpose.msra.mxu0 0.0
  %4632 = vmatprep.subr.mxu0 0.0
  %4633 = vmatpush1.xpose.msra.mxu0 0.0
  %4634 = vmatprep.subr.mxu0 0.0
  %4635 = vmatpush1.xpose.msra.mxu0 0.0
  %4636 = vmatprep.subr.mxu0 0.0
  %4637 = vmatpush1.xpose.msra.mxu0 0.0
  %4638 = vmatprep.subr.mxu0 0.0
  %4639 = vmatpush1.xpose.msra.mxu0 0.0
  %4640 = vmatprep.subr.mxu0 0.0
  %4641 = vmatpush1.xpose.msra.mxu0 0.0
  %4642 = vmatprep.subr.mxu0 0.0
  %4643 = vmatpush1.xpose.msra.mxu0 0.0
  %4644 = vmatprep.subr.mxu0 0.0
  %4645 = vmatpush1.xpose.msra.mxu0 0.0
  %4646 = vmatprep.subr.mxu0 0.0
  %4647 = vmatpush1.xpose.msra.mxu0 0.0
  %4648 = vmatprep.mubr.f32.mxu0 0.0
  %4649 = vmatmul.mubr.f32.gmra.mrb[0].mxu0 %v4573
  %v4650 = vpop.f32.mrb[0].mxu0
  %v4651 = vadd.f32 0.0, %v4650
  %v4652 = vpop.f32.mrb[0].mxu0
  %4653 = vmatprep.mubr.f32.mxu0 0.0
  %4654 = vmatmul.mubr.f32.gmra.mrb[0].mxu0 %v4576
  %v4655 = vpop.f32.mrb[0].mxu0
  %v4656 = vadd.f32 0.0, %v4655
  %v4657 = vpop.f32.mrb[0].mxu0
  %4658 = vdwg.mxu0
  %v4660 = vsel %vm129, %v4512, 0
  %v4663 = vsel %vm129, %v4513, 0
  %v4666 = vsel %vm129, %v4357, 0
  %v4669 = vsel %vm129, %v4363, 0
  %4671 = vmatprep.subr.mxu0 0.0
  %4672 = vmatpush1.xpose.msra.mxu0 %v4666
  %4673 = vmatprep.subr.mxu0 0.0
  %4674 = vmatpush1.xpose.msra.mxu0 %v4669
  %4675 = vmatprep.subr.mxu0 0.0
  %4676 = vmatpush1.xpose.msra.mxu0 0.0
  %4677 = vmatprep.subr.mxu0 0.0
  %4678 = vmatpush1.xpose.msra.mxu0 0.0
  %4679 = vmatprep.subr.mxu0 0.0
  %4680 = vmatpush1.xpose.msra.mxu0 0.0
  %4681 = vmatprep.subr.mxu0 0.0
  %4682 = vmatpush1.xpose.msra.mxu0 0.0
  %4683 = vmatprep.subr.mxu0 0.0
  %4684 = vmatpush1.xpose.msra.mxu0 0.0
  %4685 = vmatprep.subr.mxu0 0.0
  %4686 = vmatpush1.xpose.msra.mxu0 0.0
  %4687 = vmatprep.subr.mxu0 0.0
  %4688 = vmatpush1.xpose.msra.mxu0 0.0
  %4689 = vmatprep.subr.mxu0 0.0
  %4690 = vmatpush1.xpose.msra.mxu0 0.0
  %4691 = vmatprep.subr.mxu0 0.0
  %4692 = vmatpush1.xpose.msra.mxu0 0.0
  %4693 = vmatprep.subr.mxu0 0.0
  %4694 = vmatpush1.xpose.msra.mxu0 0.0
  %4695 = vmatprep.subr.mxu0 0.0
  %4696 = vmatpush1.xpose.msra.mxu0 0.0
  %4697 = vmatprep.subr.mxu0 0.0
  %4698 = vmatpush1.xpose.msra.mxu0 0.0
  %4699 = vmatprep.subr.mxu0 0.0
  %4700 = vmatpush1.xpose.msra.mxu0 0.0
  %4701 = vmatprep.subr.mxu0 0.0
  %4702 = vmatpush1.xpose.msra.mxu0 0.0
  %4703 = vmatprep.subr.mxu0 0.0
  %4704 = vmatpush1.xpose.msra.mxu0 0.0
  %4705 = vmatprep.subr.mxu0 0.0
  %4706 = vmatpush1.xpose.msra.mxu0 0.0
  %4707 = vmatprep.subr.mxu0 0.0
  %4708 = vmatpush1.xpose.msra.mxu0 0.0
  %4709 = vmatprep.subr.mxu0 0.0
  %4710 = vmatpush1.xpose.msra.mxu0 0.0
  %4711 = vmatprep.subr.mxu0 0.0
  %4712 = vmatpush1.xpose.msra.mxu0 0.0
  %4713 = vmatprep.subr.mxu0 0.0
  %4714 = vmatpush1.xpose.msra.mxu0 0.0
  %4715 = vmatprep.subr.mxu0 0.0
  %4716 = vmatpush1.xpose.msra.mxu0 0.0
  %4717 = vmatprep.subr.mxu0 0.0
  %4718 = vmatpush1.xpose.msra.mxu0 0.0
  %4719 = vmatprep.subr.mxu0 0.0
  %4720 = vmatpush1.xpose.msra.mxu0 0.0
  %4721 = vmatprep.subr.mxu0 0.0
  %4722 = vmatpush1.xpose.msra.mxu0 0.0
  %4723 = vmatprep.subr.mxu0 0.0
  %4724 = vmatpush1.xpose.msra.mxu0 0.0
  %4725 = vmatprep.subr.mxu0 0.0
  %4726 = vmatpush1.xpose.msra.mxu0 0.0
  %4727 = vmatprep.subr.mxu0 0.0
  %4728 = vmatpush1.xpose.msra.mxu0 0.0
  %4729 = vmatprep.subr.mxu0 0.0
  %4730 = vmatpush1.xpose.msra.mxu0 0.0
  %4731 = vmatprep.subr.mxu0 0.0
  %4732 = vmatpush1.xpose.msra.mxu0 0.0
  %4733 = vmatprep.subr.mxu0 0.0
  %4734 = vmatpush1.xpose.msra.mxu0 0.0
  %4735 = vmatprep.mubr.f32.mxu0 0.0
  %4736 = vmatmul.mubr.f32.gmra.mrb[0].mxu0 %v4660
  %v4737 = vpop.f32.mrb[0].mxu0
  %v4738 = vadd.f32 0.0, %v4737
  %v4739 = vpop.f32.mrb[0].mxu0
  %4740 = vmatprep.mubr.f32.mxu0 0.0
  %4741 = vmatmul.mubr.f32.gmra.mrb[0].mxu0 %v4663
  %v4742 = vpop.f32.mrb[0].mxu0
  %v4743 = vadd.f32 0.0, %v4742
  %v4744 = vpop.f32.mrb[0].mxu0
  %4745 = vdwg.mxu0
  %v4746 = vsel %vm692, %v4651, -inf
  %4747 = vmax.xlane.f32.xlu0 %v4746
  %v4748 = vpop.xlane.xlu0 %4747
  %v4749 = vsel %vm692, %v4656, -inf
  %4750 = vmax.xlane.f32.xlu0 %v4749
  %v4751 = vpop.xlane.xlu0 %4750
  %v4752 = vsub.f32 %v4651, %v4748
  %v4753 = vsub.f32 %v4656, %v4751
  %v4754 = vmul.f32 %v4752, 1.442695
  %v4755 = vpow.pop %v4754
  %v4756 = vmul.f32 %v4753, 1.442695
  %v4757 = vpow.pop %v4756
  %v4758 = vsel %vm692, %v4755, 0.0
  %4759 = vadd.xlane.f32.xlu0 %v4758
  %v4760 = vpop.xlane.xlu0 %4759
  %v4761 = vsel %vm692, %v4757, 0.0
  %4762 = vadd.xlane.f32.xlu0 %v4761
  %v4763 = vpop.xlane.xlu0 %4762
  %v4764 = vrcp.pop %v4760
  %v4765 = vrcp.pop %v4763
  %v4766 = vmul.f32 %v4755, %v4764
  %v4767 = vmul.f32 %v4757, %v4765
  %v4768 = vsel %vm692, %v4738, -inf
  %4769 = vmax.xlane.f32.xlu0 %v4768
  %v4770 = vpop.xlane.xlu0 %4769
  %v4771 = vsel %vm692, %v4743, -inf
  %4772 = vmax.xlane.f32.xlu0 %v4771
  %v4773 = vpop.xlane.xlu0 %4772
  %v4774 = vsub.f32 %v4738, %v4770
  %v4775 = vsub.f32 %v4743, %v4773
  %v4776 = vmul.f32 %v4774, 1.442695
  %v4777 = vpow.pop %v4776
  %v4778 = vmul.f32 %v4775, 1.442695
  %v4779 = vpow.pop %v4778
  %v4780 = vsel %vm692, %v4777, 0.0
  %4781 = vadd.xlane.f32.xlu0 %v4780
  %v4782 = vpop.xlane.xlu0 %4781
  %v4783 = vsel %vm692, %v4779, 0.0
  %4784 = vadd.xlane.f32.xlu0 %v4783
  %v4785 = vpop.xlane.xlu0 %4784
  %v4786 = vrcp.pop %v4782
  %v4787 = vrcp.pop %v4785
  %v4788 = vmul.f32 %v4777, %v4786
  %v4789 = vmul.f32 %v4779, %v4787
  %v4791 = vsel %vm129, %v4516, 0
  %v4794 = vsel %vm129, %v4517, 0
  %4796 = vmatprep.subr.mxu0 0.0
  %4797 = vmatpush1.xpose.msra.mxu0 %v4579
  %4798 = vmatprep.subr.mxu0 0.0
  %4799 = vmatpush1.xpose.msra.mxu0 %v4582
  %4800 = vmatprep.subr.mxu0 0.0
  %4801 = vmatpush1.xpose.msra.mxu0 0.0
  %4802 = vmatprep.subr.mxu0 0.0
  %4803 = vmatpush1.xpose.msra.mxu0 0.0
  %4804 = vmatprep.subr.mxu0 0.0
  %4805 = vmatpush1.xpose.msra.mxu0 0.0
  %4806 = vmatprep.subr.mxu0 0.0
  %4807 = vmatpush1.xpose.msra.mxu0 0.0
  %4808 = vmatprep.subr.mxu0 0.0
  %4809 = vmatpush1.xpose.msra.mxu0 0.0
  %4810 = vmatprep.subr.mxu0 0.0
  %4811 = vmatpush1.xpose.msra.mxu0 0.0
  %4812 = vmatprep.subr.mxu0 0.0
  %4813 = vmatpush1.xpose.msra.mxu0 0.0
  %4814 = vmatprep.subr.mxu0 0.0
  %4815 = vmatpush1.xpose.msra.mxu0 0.0
  %4816 = vmatprep.subr.mxu0 0.0
  %4817 = vmatpush1.xpose.msra.mxu0 0.0
  %4818 = vmatprep.subr.mxu0 0.0
  %4819 = vmatpush1.xpose.msra.mxu0 0.0
  %4820 = vmatprep.subr.mxu0 0.0
  %4821 = vmatpush1.xpose.msra.mxu0 0.0
  %4822 = vmatprep.subr.mxu0 0.0
  %4823 = vmatpush1.xpose.msra.mxu0 0.0
  %4824 = vmatprep.subr.mxu0 0.0
  %4825 = vmatpush1.xpose.msra.mxu0 0.0
  %4826 = vmatprep.subr.mxu0 0.0
  %4827 = vmatpush1.xpose.msra.mxu0 0.0
  %4828 = vmatprep.subr.mxu0 0.0
  %4829 = vmatpush1.xpose.msra.mxu0 0.0
  %4830 = vmatprep.subr.mxu0 0.0
  %4831 = vmatpush1.xpose.msra.mxu0 0.0
  %4832 = vmatprep.subr.mxu0 0.0
  %4833 = vmatpush1.xpose.msra.mxu0 0.0
  %4834 = vmatprep.subr.mxu0 0.0
  %4835 = vmatpush1.xpose.msra.mxu0 0.0
  %4836 = vmatprep.subr.mxu0 0.0
  %4837 = vmatpush1.xpose.msra.mxu0 0.0
  %4838 = vmatprep.subr.mxu0 0.0
  %4839 = vmatpush1.xpose.msra.mxu0 0.0
  %4840 = vmatprep.subr.mxu0 0.0
  %4841 = vmatpush1.xpose.msra.mxu0 0.0
  %4842 = vmatprep.subr.mxu0 0.0
  %4843 = vmatpush1.xpose.msra.mxu0 0.0
  %4844 = vmatprep.subr.mxu0 0.0
  %4845 = vmatpush1.xpose.msra.mxu0 0.0
  %4846 = vmatprep.subr.mxu0 0.0
  %4847 = vmatpush1.xpose.msra.mxu0 0.0
  %4848 = vmatprep.subr.mxu0 0.0
  %4849 = vmatpush1.xpose.msra.mxu0 0.0
  %4850 = vmatprep.subr.mxu0 0.0
  %4851 = vmatpush1.xpose.msra.mxu0 0.0
  %4852 = vmatprep.subr.mxu0 0.0
  %4853 = vmatpush1.xpose.msra.mxu0 0.0
  %4854 = vmatprep.subr.mxu0 0.0
  %4855 = vmatpush1.xpose.msra.mxu0 0.0
  %4856 = vmatprep.subr.mxu0 0.0
  %4857 = vmatpush1.xpose.msra.mxu0 0.0
  %4858 = vmatprep.subr.mxu0 0.0
  %4859 = vmatpush1.xpose.msra.mxu0 0.0
  %4860 = vmatprep.mubr.f32.mxu0 0.0
  %4861 = vmatmul.mubr.f32.gmra.mrb[0].mxu0 %v4791
  %v4862 = vpop.f32.mrb[0].mxu0
  %v4863 = vadd.f32 0.0, %v4862
  %v4864 = vpop.f32.mrb[0].mxu0
  %4865 = vmatprep.mubr.f32.mxu0 0.0
  %4866 = vmatmul.mubr.f32.gmra.mrb[0].mxu0 %v4794
  %v4867 = vpop.f32.mrb[0].mxu0
  %v4868 = vadd.f32 0.0, %v4867
  %v4869 = vpop.f32.mrb[0].mxu0
  %4870 = vdwg.mxu0
  %v4872 = vsel %vm129, %v4520, 0
  %v4875 = vsel %vm129, %v4521, 0
  %4877 = vmatprep.subr.mxu0 0.0
  %4878 = vmatpush1.xpose.msra.mxu0 %v4666
  %4879 = vmatprep.subr.mxu0 0.0
  %4880 = vmatpush1.xpose.msra.mxu0 %v4669
  %4881 = vmatprep.subr.mxu0 0.0
  %4882 = vmatpush1.xpose.msra.mxu0 0.0
  %4883 = vmatprep.subr.mxu0 0.0
  %4884 = vmatpush1.xpose.msra.mxu0 0.0
  %4885 = vmatprep.subr.mxu0 0.0
  %4886 = vmatpush1.xpose.msra.mxu0 0.0
  %4887 = vmatprep.subr.mxu0 0.0
  %4888 = vmatpush1.xpose.msra.mxu0 0.0
  %4889 = vmatprep.subr.mxu0 0.0
  %4890 = vmatpush1.xpose.msra.mxu0 0.0
  %4891 = vmatprep.subr.mxu0 0.0
  %4892 = vmatpush1.xpose.msra.mxu0 0.0
  %4893 = vmatprep.subr.mxu0 0.0
  %4894 = vmatpush1.xpose.msra.mxu0 0.0
  %4895 = vmatprep.subr.mxu0 0.0
  %4896 = vmatpush1.xpose.msra.mxu0 0.0
  %4897 = vmatprep.subr.mxu0 0.0
  %4898 = vmatpush1.xpose.msra.mxu0 0.0
  %4899 = vmatprep.subr.mxu0 0.0
  %4900 = vmatpush1.xpose.msra.mxu0 0.0
  %4901 = vmatprep.subr.mxu0 0.0
  %4902 = vmatpush1.xpose.msra.mxu0 0.0
  %4903 = vmatprep.subr.mxu0 0.0
  %4904 = vmatpush1.xpose.msra.mxu0 0.0
  %4905 = vmatprep.subr.mxu0 0.0
  %4906 = vmatpush1.xpose.msra.mxu0 0.0
  %4907 = vmatprep.subr.mxu0 0.0
  %4908 = vmatpush1.xpose.msra.mxu0 0.0
  %4909 = vmatprep.subr.mxu0 0.0
  %4910 = vmatpush1.xpose.msra.mxu0 0.0
  %4911 = vmatprep.subr.mxu0 0.0
  %4912 = vmatpush1.xpose.msra.mxu0 0.0
  %4913 = vmatprep.subr.mxu0 0.0
  %4914 = vmatpush1.xpose.msra.mxu0 0.0
  %4915 = vmatprep.subr.mxu0 0.0
  %4916 = vmatpush1.xpose.msra.mxu0 0.0
  %4917 = vmatprep.subr.mxu0 0.0
  %4918 = vmatpush1.xpose.msra.mxu0 0.0
  %4919 = vmatprep.subr.mxu0 0.0
  %4920 = vmatpush1.xpose.msra.mxu0 0.0
  %4921 = vmatprep.subr.mxu0 0.0
  %4922 = vmatpush1.xpose.msra.mxu0 0.0
  %4923 = vmatprep.subr.mxu0 0.0
  %4924 = vmatpush1.xpose.msra.mxu0 0.0
  %4925 = vmatprep.subr.mxu0 0.0
  %4926 = vmatpush1.xpose.msra.mxu0 0.0
  %4927 = vmatprep.subr.mxu0 0.0
  %4928 = vmatpush1.xpose.msra.mxu0 0.0
  %4929 = vmatprep.subr.mxu0 0.0
  %4930 = vmatpush1.xpose.msra.mxu0 0.0
  %4931 = vmatprep.subr.mxu0 0.0
  %4932 = vmatpush1.xpose.msra.mxu0 0.0
  %4933 = vmatprep.subr.mxu0 0.0
  %4934 = vmatpush1.xpose.msra.mxu0 0.0
  %4935 = vmatprep.subr.mxu0 0.0
  %4936 = vmatpush1.xpose.msra.mxu0 0.0
  %4937 = vmatprep.subr.mxu0 0.0
  %4938 = vmatpush1.xpose.msra.mxu0 0.0
  %4939 = vmatprep.subr.mxu0 0.0
  %4940 = vmatpush1.xpose.msra.mxu0 0.0
  %4941 = vmatprep.mubr.f32.mxu0 0.0
  %4942 = vmatmul.mubr.f32.gmra.mrb[0].mxu0 %v4872
  %v4943 = vpop.f32.mrb[0].mxu0
  %v4944 = vadd.f32 0.0, %v4943
  %v4945 = vpop.f32.mrb[0].mxu0
  %4946 = vmatprep.mubr.f32.mxu0 0.0
  %4947 = vmatmul.mubr.f32.gmra.mrb[0].mxu0 %v4875
  %v4948 = vpop.f32.mrb[0].mxu0
  %v4949 = vadd.f32 0.0, %v4948
  %v4950 = vpop.f32.mrb[0].mxu0
  %4951 = vdwg.mxu0
  %v4952 = vsel %vm692, %v4863, -inf
  %4953 = vmax.xlane.f32.xlu0 %v4952
  %v4954 = vpop.xlane.xlu0 %4953
  %v4955 = vsel %vm692, %v4868, -inf
  %4956 = vmax.xlane.f32.xlu0 %v4955
  %v4957 = vpop.xlane.xlu0 %4956
  %v4958 = vsub.f32 %v4863, %v4954
  %v4959 = vsub.f32 %v4868, %v4957
  %v4960 = vmul.f32 %v4958, 1.442695
  %v4961 = vpow.pop %v4960
  %v4962 = vmul.f32 %v4959, 1.442695
  %v4963 = vpow.pop %v4962
  %v4964 = vsel %vm692, %v4961, 0.0
  %4965 = vadd.xlane.f32.xlu0 %v4964
  %v4966 = vpop.xlane.xlu0 %4965
  %v4967 = vsel %vm692, %v4963, 0.0
  %4968 = vadd.xlane.f32.xlu0 %v4967
  %v4969 = vpop.xlane.xlu0 %4968
  %v4970 = vrcp.pop %v4966
  %v4971 = vrcp.pop %v4969
  %v4972 = vmul.f32 %v4961, %v4970
  %v4973 = vmul.f32 %v4963, %v4971
  %v4975 = vsel %vm692, %v4972, 0
  %v4978 = vsel %vm692, %v4973, 0
  %4980 = vmatprep.subr.mxu0 0.0
  %4981 = vmatpush1.msra.mxu0 %v4552
  %4982 = vmatprep.subr.mxu0 0.0
  %4983 = vmatpush1.msra.mxu0 %v4553
  %4984 = vmatprep.subr.mxu0 0.0
  %4985 = vmatpush1.msra.mxu0 0.0
  %4986 = vmatprep.subr.mxu0 0.0
  %4987 = vmatpush1.msra.mxu0 0.0
  %4988 = vmatprep.subr.mxu0 0.0
  %4989 = vmatpush1.msra.mxu0 0.0
  %4990 = vmatprep.subr.mxu0 0.0
  %4991 = vmatpush1.msra.mxu0 0.0
  %4992 = vmatprep.subr.mxu0 0.0
  %4993 = vmatpush1.msra.mxu0 0.0
  %4994 = vmatprep.subr.mxu0 0.0
  %4995 = vmatpush1.msra.mxu0 0.0
  %4996 = vmatprep.subr.mxu0 0.0
  %4997 = vmatpush1.msra.mxu0 0.0
  %4998 = vmatprep.subr.mxu0 0.0
  %4999 = vmatpush1.msra.mxu0 0.0
  %5000 = vmatprep.subr.mxu0 0.0
  %5001 = vmatpush1.msra.mxu0 0.0
  %5002 = vmatprep.subr.mxu0 0.0
  %5003 = vmatpush1.msra.mxu0 0.0
  %5004 = vmatprep.subr.mxu0 0.0
  %5005 = vmatpush1.msra.mxu0 0.0
  %5006 = vmatprep.subr.mxu0 0.0
  %5007 = vmatpush1.msra.mxu0 0.0
  %5008 = vmatprep.subr.mxu0 0.0
  %5009 = vmatpush1.msra.mxu0 0.0
  %5010 = vmatprep.subr.mxu0 0.0
  %5011 = vmatpush1.msra.mxu0 0.0
  %5012 = vmatprep.subr.mxu0 0.0
  %5013 = vmatpush1.msra.mxu0 0.0
  %5014 = vmatprep.subr.mxu0 0.0
  %5015 = vmatpush1.msra.mxu0 0.0
  %5016 = vmatprep.subr.mxu0 0.0
  %5017 = vmatpush1.msra.mxu0 0.0
  %5018 = vmatprep.subr.mxu0 0.0
  %5019 = vmatpush1.msra.mxu0 0.0
  %5020 = vmatprep.subr.mxu0 0.0
  %5021 = vmatpush1.msra.mxu0 0.0
  %5022 = vmatprep.subr.mxu0 0.0
  %5023 = vmatpush1.msra.mxu0 0.0
  %5024 = vmatprep.subr.mxu0 0.0
  %5025 = vmatpush1.msra.mxu0 0.0
  %5026 = vmatprep.subr.mxu0 0.0
  %5027 = vmatpush1.msra.mxu0 0.0
  %5028 = vmatprep.subr.mxu0 0.0
  %5029 = vmatpush1.msra.mxu0 0.0
  %5030 = vmatprep.subr.mxu0 0.0
  %5031 = vmatpush1.msra.mxu0 0.0
  %5032 = vmatprep.subr.mxu0 0.0
  %5033 = vmatpush1.msra.mxu0 0.0
  %5034 = vmatprep.subr.mxu0 0.0
  %5035 = vmatpush1.msra.mxu0 0.0
  %5036 = vmatprep.subr.mxu0 0.0
  %5037 = vmatpush1.msra.mxu0 0.0
  %5038 = vmatprep.subr.mxu0 0.0
  %5039 = vmatpush1.msra.mxu0 0.0
  %5040 = vmatprep.subr.mxu0 0.0
  %5041 = vmatpush1.msra.mxu0 0.0
  %5042 = vmatprep.subr.mxu0 0.0
  %5043 = vmatpush1.msra.mxu0 0.0
  %5044 = vmatprep.mubr.f32.mxu0 0.0
  %5045 = vmatmul.mubr.f32.gmra.mrb[0].mxu0 %v4975
  %v5046 = vpop.f32.mrb[0].mxu0
  %v5047 = vadd.f32 0.0, %v5046
  %v5048 = vpop.f32.mrb[0].mxu0
  %5049 = vmatprep.mubr.f32.mxu0 0.0
  %5050 = vmatmul.mubr.f32.gmra.mrb[0].mxu0 %v4978
  %v5051 = vpop.f32.mrb[0].mxu0
  %v5052 = vadd.f32 0.0, %v5051
  %v5053 = vpop.f32.mrb[0].mxu0
  %5054 = vdwg.mxu0
  %v5056 = vsel %vm692, %v4766, 0
  %v5059 = vsel %vm692, %v4767, 0
  %5061 = vmatprep.subr.mxu0 0.0
  %5062 = vmatpush1.msra.mxu0 %v4544
  %5063 = vmatprep.subr.mxu0 0.0
  %5064 = vmatpush1.msra.mxu0 %v4545
  %5065 = vmatprep.subr.mxu0 0.0
  %5066 = vmatpush1.msra.mxu0 0.0
  %5067 = vmatprep.subr.mxu0 0.0
  %5068 = vmatpush1.msra.mxu0 0.0
  %5069 = vmatprep.subr.mxu0 0.0
  %5070 = vmatpush1.msra.mxu0 0.0
  %5071 = vmatprep.subr.mxu0 0.0
  %5072 = vmatpush1.msra.mxu0 0.0
  %5073 = vmatprep.subr.mxu0 0.0
  %5074 = vmatpush1.msra.mxu0 0.0
  %5075 = vmatprep.subr.mxu0 0.0
  %5076 = vmatpush1.msra.mxu0 0.0
  %5077 = vmatprep.subr.mxu0 0.0
  %5078 = vmatpush1.msra.mxu0 0.0
  %5079 = vmatprep.subr.mxu0 0.0
  %5080 = vmatpush1.msra.mxu0 0.0
  %5081 = vmatprep.subr.mxu0 0.0
  %5082 = vmatpush1.msra.mxu0 0.0
  %5083 = vmatprep.subr.mxu0 0.0
  %5084 = vmatpush1.msra.mxu0 0.0
  %5085 = vmatprep.subr.mxu0 0.0
  %5086 = vmatpush1.msra.mxu0 0.0
  %5087 = vmatprep.subr.mxu0 0.0
  %5088 = vmatpush1.msra.mxu0 0.0
  %5089 = vmatprep.subr.mxu0 0.0
  %5090 = vmatpush1.msra.mxu0 0.0
  %5091 = vmatprep.subr.mxu0 0.0
  %5092 = vmatpush1.msra.mxu0 0.0
  %5093 = vmatprep.subr.mxu0 0.0
  %5094 = vmatpush1.msra.mxu0 0.0
  %5095 = vmatprep.subr.mxu0 0.0
  %5096 = vmatpush1.msra.mxu0 0.0
  %5097 = vmatprep.subr.mxu0 0.0
  %5098 = vmatpush1.msra.mxu0 0.0
  %5099 = vmatprep.subr.mxu0 0.0
  %5100 = vmatpush1.msra.mxu0 0.0
  %5101 = vmatprep.subr.mxu0 0.0
  %5102 = vmatpush1.msra.mxu0 0.0
  %5103 = vmatprep.subr.mxu0 0.0
  %5104 = vmatpush1.msra.mxu0 0.0
  %5105 = vmatprep.subr.mxu0 0.0
  %5106 = vmatpush1.msra.mxu0 0.0
  %5107 = vmatprep.subr.mxu0 0.0
  %5108 = vmatpush1.msra.mxu0 0.0
  %5109 = vmatprep.subr.mxu0 0.0
  %5110 = vmatpush1.msra.mxu0 0.0
  %5111 = vmatprep.subr.mxu0 0.0
  %5112 = vmatpush1.msra.mxu0 0.0
  %5113 = vmatprep.subr.mxu0 0.0
  %5114 = vmatpush1.msra.mxu0 0.0
  %5115 = vmatprep.subr.mxu0 0.0
  %5116 = vmatpush1.msra.mxu0 0.0
  %5117 = vmatprep.subr.mxu0 0.0
  %5118 = vmatpush1.msra.mxu0 0.0
  %5119 = vmatprep.subr.mxu0 0.0
  %5120 = vmatpush1.msra.mxu0 0.0
  %5121 = vmatprep.subr.mxu0 0.0
  %5122 = vmatpush1.msra.mxu0 0.0
  %5123 = vmatprep.subr.mxu0 0.0
  %5124 = vmatpush1.msra.mxu0 0.0
  %5125 = vmatprep.mubr.f32.mxu0 0.0
  %5126 = vmatmul.mubr.f32.gmra.mrb[0].mxu0 %v5056
  %v5127 = vpop.f32.mrb[0].mxu0
  %v5128 = vadd.f32 %v5047, %v5127
  %v5129 = vpop.f32.mrb[0].mxu0
  %5130 = vmatprep.mubr.f32.mxu0 0.0
  %5131 = vmatmul.mubr.f32.gmra.mrb[0].mxu0 %v5059
  %v5132 = vpop.f32.mrb[0].mxu0
  %v5133 = vadd.f32 %v5052, %v5132
  %v5134 = vpop.f32.mrb[0].mxu0
  %5135 = vdwg.mxu0
  %v5136 = vsel %vm692, %v4944, -inf
  %5137 = vmax.xlane.f32.xlu0 %v5136
  %v5138 = vpop.xlane.xlu0 %5137
  %v5139 = vsel %vm692, %v4949, -inf
  %5140 = vmax.xlane.f32.xlu0 %v5139
  %v5141 = vpop.xlane.xlu0 %5140
  %v5142 = vsub.f32 %v4944, %v5138
  %v5143 = vsub.f32 %v4949, %v5141
  %v5144 = vmul.f32 %v5142, 1.442695
  %v5145 = vpow.pop %v5144
  %v5146 = vmul.f32 %v5143, 1.442695
  %v5147 = vpow.pop %v5146
  %v5148 = vsel %vm692, %v5145, 0.0
  %5149 = vadd.xlane.f32.xlu0 %v5148
  %v5150 = vpop.xlane.xlu0 %5149
  %v5151 = vsel %vm692, %v5147, 0.0
  %5152 = vadd.xlane.f32.xlu0 %v5151
  %v5153 = vpop.xlane.xlu0 %5152
  %v5154 = vrcp.pop %v5150
  %v5155 = vrcp.pop %v5153
  %v5156 = vmul.f32 %v5145, %v5154
  %v5157 = vmul.f32 %v5147, %v5155
  %v5159 = vsel %vm692, %v5156, 0
  %v5162 = vsel %vm692, %v5157, 0
  %5164 = vmatprep.subr.mxu0 0.0
  %5165 = vmatpush1.msra.mxu0 %v4548
  %5166 = vmatprep.subr.mxu0 0.0
  %5167 = vmatpush1.msra.mxu0 %v4549
  %5168 = vmatprep.subr.mxu0 0.0
  %5169 = vmatpush1.msra.mxu0 0.0
  %5170 = vmatprep.subr.mxu0 0.0
  %5171 = vmatpush1.msra.mxu0 0.0
  %5172 = vmatprep.subr.mxu0 0.0
  %5173 = vmatpush1.msra.mxu0 0.0
  %5174 = vmatprep.subr.mxu0 0.0
  %5175 = vmatpush1.msra.mxu0 0.0
  %5176 = vmatprep.subr.mxu0 0.0
  %5177 = vmatpush1.msra.mxu0 0.0
  %5178 = vmatprep.subr.mxu0 0.0
  %5179 = vmatpush1.msra.mxu0 0.0
  %5180 = vmatprep.subr.mxu0 0.0
  %5181 = vmatpush1.msra.mxu0 0.0
  %5182 = vmatprep.subr.mxu0 0.0
  %5183 = vmatpush1.msra.mxu0 0.0
  %5184 = vmatprep.subr.mxu0 0.0
  %5185 = vmatpush1.msra.mxu0 0.0
  %5186 = vmatprep.subr.mxu0 0.0
  %5187 = vmatpush1.msra.mxu0 0.0
  %5188 = vmatprep.subr.mxu0 0.0
  %5189 = vmatpush1.msra.mxu0 0.0
  %5190 = vmatprep.subr.mxu0 0.0
  %5191 = vmatpush1.msra.mxu0 0.0
  %5192 = vmatprep.subr.mxu0 0.0
  %5193 = vmatpush1.msra.mxu0 0.0
  %5194 = vmatprep.subr.mxu0 0.0
  %5195 = vmatpush1.msra.mxu0 0.0
  %5196 = vmatprep.subr.mxu0 0.0
  %5197 = vmatpush1.msra.mxu0 0.0
  %5198 = vmatprep.subr.mxu0 0.0
  %5199 = vmatpush1.msra.mxu0 0.0
  %5200 = vmatprep.subr.mxu0 0.0
  %5201 = vmatpush1.msra.mxu0 0.0
  %5202 = vmatprep.subr.mxu0 0.0
  %5203 = vmatpush1.msra.mxu0 0.0
  %5204 = vmatprep.subr.mxu0 0.0
  %5205 = vmatpush1.msra.mxu0 0.0
  %5206 = vmatprep.subr.mxu0 0.0
  %5207 = vmatpush1.msra.mxu0 0.0
  %5208 = vmatprep.subr.mxu0 0.0
  %5209 = vmatpush1.msra.mxu0 0.0
  %5210 = vmatprep.subr.mxu0 0.0
  %5211 = vmatpush1.msra.mxu0 0.0
  %5212 = vmatprep.subr.mxu0 0.0
  %5213 = vmatpush1.msra.mxu0 0.0
  %5214 = vmatprep.subr.mxu0 0.0
  %5215 = vmatpush1.msra.mxu0 0.0
  %5216 = vmatprep.subr.mxu0 0.0
  %5217 = vmatpush1.msra.mxu0 0.0
  %5218 = vmatprep.subr.mxu0 0.0
  %5219 = vmatpush1.msra.mxu0 0.0
  %5220 = vmatprep.subr.mxu0 0.0
  %5221 = vmatpush1.msra.mxu0 0.0
  %5222 = vmatprep.subr.mxu0 0.0
  %5223 = vmatpush1.msra.mxu0 0.0
  %5224 = vmatprep.subr.mxu0 0.0
  %5225 = vmatpush1.msra.mxu0 0.0
  %5226 = vmatprep.subr.mxu0 0.0
  %5227 = vmatpush1.msra.mxu0 0.0
  %5228 = vmatprep.mubr.f32.mxu0 0.0
  %5229 = vmatmul.mubr.f32.gmra.mrb[0].mxu0 %v5159
  %v5230 = vpop.f32.mrb[0].mxu0
  %v5231 = vadd.f32 0.0, %v5230
  %v5232 = vpop.f32.mrb[0].mxu0
  %5233 = vmatprep.mubr.f32.mxu0 0.0
  %5234 = vmatmul.mubr.f32.gmra.mrb[0].mxu0 %v5162
  %v5235 = vpop.f32.mrb[0].mxu0
  %v5236 = vadd.f32 0.0, %v5235
  %v5237 = vpop.f32.mrb[0].mxu0
  %5238 = vdwg.mxu0
  %v5240 = vsel %vm692, %v4788, 0
  %v5243 = vsel %vm692, %v4789, 0
  %5245 = vmatprep.subr.mxu0 0.0
  %5246 = vmatpush1.msra.mxu0 %v4540
  %5247 = vmatprep.subr.mxu0 0.0
  %5248 = vmatpush1.msra.mxu0 %v4541
  %5249 = vmatprep.subr.mxu0 0.0
  %5250 = vmatpush1.msra.mxu0 0.0
  %5251 = vmatprep.subr.mxu0 0.0
  %5252 = vmatpush1.msra.mxu0 0.0
  %5253 = vmatprep.subr.mxu0 0.0
  %5254 = vmatpush1.msra.mxu0 0.0
  %5255 = vmatprep.subr.mxu0 0.0
  %5256 = vmatpush1.msra.mxu0 0.0
  %5257 = vmatprep.subr.mxu0 0.0
  %5258 = vmatpush1.msra.mxu0 0.0
  %5259 = vmatprep.subr.mxu0 0.0
  %5260 = vmatpush1.msra.mxu0 0.0
  %5261 = vmatprep.subr.mxu0 0.0
  %5262 = vmatpush1.msra.mxu0 0.0
  %5263 = vmatprep.subr.mxu0 0.0
  %5264 = vmatpush1.msra.mxu0 0.0
  %5265 = vmatprep.subr.mxu0 0.0
  %5266 = vmatpush1.msra.mxu0 0.0
  %5267 = vmatprep.subr.mxu0 0.0
  %5268 = vmatpush1.msra.mxu0 0.0
  %5269 = vmatprep.subr.mxu0 0.0
  %5270 = vmatpush1.msra.mxu0 0.0
  %5271 = vmatprep.subr.mxu0 0.0
  %5272 = vmatpush1.msra.mxu0 0.0
  %5273 = vmatprep.subr.mxu0 0.0
  %5274 = vmatpush1.msra.mxu0 0.0
  %5275 = vmatprep.subr.mxu0 0.0
  %5276 = vmatpush1.msra.mxu0 0.0
  %5277 = vmatprep.subr.mxu0 0.0
  %5278 = vmatpush1.msra.mxu0 0.0
  %5279 = vmatprep.subr.mxu0 0.0
  %5280 = vmatpush1.msra.mxu0 0.0
  %5281 = vmatprep.subr.mxu0 0.0
  %5282 = vmatpush1.msra.mxu0 0.0
  %5283 = vmatprep.subr.mxu0 0.0
  %5284 = vmatpush1.msra.mxu0 0.0
  %5285 = vmatprep.subr.mxu0 0.0
  %5286 = vmatpush1.msra.mxu0 0.0
  %5287 = vmatprep.subr.mxu0 0.0
  %5288 = vmatpush1.msra.mxu0 0.0
  %5289 = vmatprep.subr.mxu0 0.0
  %5290 = vmatpush1.msra.mxu0 0.0
  %5291 = vmatprep.subr.mxu0 0.0
  %5292 = vmatpush1.msra.mxu0 0.0
  %5293 = vmatprep.subr.mxu0 0.0
  %5294 = vmatpush1.msra.mxu0 0.0
  %5295 = vmatprep.subr.mxu0 0.0
  %5296 = vmatpush1.msra.mxu0 0.0
  %5297 = vmatprep.subr.mxu0 0.0
  %5298 = vmatpush1.msra.mxu0 0.0
  %5299 = vmatprep.subr.mxu0 0.0
  %5300 = vmatpush1.msra.mxu0 0.0
  %5301 = vmatprep.subr.mxu0 0.0
  %5302 = vmatpush1.msra.mxu0 0.0
  %5303 = vmatprep.subr.mxu0 0.0
  %5304 = vmatpush1.msra.mxu0 0.0
  %5305 = vmatprep.subr.mxu0 0.0
  %5306 = vmatpush1.msra.mxu0 0.0
  %5307 = vmatprep.subr.mxu0 0.0
  %5308 = vmatpush1.msra.mxu0 0.0
  %5309 = vmatprep.mubr.f32.mxu0 0.0
  %5310 = vmatmul.mubr.f32.gmra.mrb[0].mxu0 %v5240
  %v5311 = vpop.f32.mrb[0].mxu0
  %v5312 = vadd.f32 %v5231, %v5311
  %v5313 = vpop.f32.mrb[0].mxu0
  %5314 = vmatprep.mubr.f32.mxu0 0.0
  %5315 = vmatmul.mubr.f32.gmra.mrb[0].mxu0 %v5243
  %v5316 = vpop.f32.mrb[0].mxu0
  %v5317 = vadd.f32 %v5236, %v5316
  %v5318 = vpop.f32.mrb[0].mxu0
  %5319 = vdwg.mxu0
  %v5321 = vsel %vm129, %v4524, 0
  %v5324 = vsel %vm129, %v4525, 0
  %5326 = vmatprep.subr.mxu0 0.0
  %5327 = vmatpush1.xpose.msra.mxu0 %v4579
  %5328 = vmatprep.subr.mxu0 0.0
  %5329 = vmatpush1.xpose.msra.mxu0 %v4582
  %5330 = vmatprep.subr.mxu0 0.0
  %5331 = vmatpush1.xpose.msra.mxu0 0.0
  %5332 = vmatprep.subr.mxu0 0.0
  %5333 = vmatpush1.xpose.msra.mxu0 0.0
  %5334 = vmatprep.subr.mxu0 0.0
  %5335 = vmatpush1.xpose.msra.mxu0 0.0
  %5336 = vmatprep.subr.mxu0 0.0
  %5337 = vmatpush1.xpose.msra.mxu0 0.0
  %5338 = vmatprep.subr.mxu0 0.0
  %5339 = vmatpush1.xpose.msra.mxu0 0.0
  %5340 = vmatprep.subr.mxu0 0.0
  %5341 = vmatpush1.xpose.msra.mxu0 0.0
  %5342 = vmatprep.subr.mxu0 0.0
  %5343 = vmatpush1.xpose.msra.mxu0 0.0
  %5344 = vmatprep.subr.mxu0 0.0
  %5345 = vmatpush1.xpose.msra.mxu0 0.0
  %5346 = vmatprep.subr.mxu0 0.0
  %5347 = vmatpush1.xpose.msra.mxu0 0.0
  %5348 = vmatprep.subr.mxu0 0.0
  %5349 = vmatpush1.xpose.msra.mxu0 0.0
  %5350 = vmatprep.subr.mxu0 0.0
  %5351 = vmatpush1.xpose.msra.mxu0 0.0
  %5352 = vmatprep.subr.mxu0 0.0
  %5353 = vmatpush1.xpose.msra.mxu0 0.0
  %5354 = vmatprep.subr.mxu0 0.0
  %5355 = vmatpush1.xpose.msra.mxu0 0.0
  %5356 = vmatprep.subr.mxu0 0.0
  %5357 = vmatpush1.xpose.msra.mxu0 0.0
  %5358 = vmatprep.subr.mxu0 0.0
  %5359 = vmatpush1.xpose.msra.mxu0 0.0
  %5360 = vmatprep.subr.mxu0 0.0
  %5361 = vmatpush1.xpose.msra.mxu0 0.0
  %5362 = vmatprep.subr.mxu0 0.0
  %5363 = vmatpush1.xpose.msra.mxu0 0.0
  %5364 = vmatprep.subr.mxu0 0.0
  %5365 = vmatpush1.xpose.msra.mxu0 0.0
  %5366 = vmatprep.subr.mxu0 0.0
  %5367 = vmatpush1.xpose.msra.mxu0 0.0
  %5368 = vmatprep.subr.mxu0 0.0
  %5369 = vmatpush1.xpose.msra.mxu0 0.0
  %5370 = vmatprep.subr.mxu0 0.0
  %5371 = vmatpush1.xpose.msra.mxu0 0.0
  %5372 = vmatprep.subr.mxu0 0.0
  %5373 = vmatpush1.xpose.msra.mxu0 0.0
  %5374 = vmatprep.subr.mxu0 0.0
  %5375 = vmatpush1.xpose.msra.mxu0 0.0
  %5376 = vmatprep.subr.mxu0 0.0
  %5377 = vmatpush1.xpose.msra.mxu0 0.0
  %5378 = vmatprep.subr.mxu0 0.0
  %5379 = vmatpush1.xpose.msra.mxu0 0.0
  %5380 = vmatprep.subr.mxu0 0.0
  %5381 = vmatpush1.xpose.msra.mxu0 0.0
  %5382 = vmatprep.subr.mxu0 0.0
  %5383 = vmatpush1.xpose.msra.mxu0 0.0
  %5384 = vmatprep.subr.mxu0 0.0
  %5385 = vmatpush1.xpose.msra.mxu0 0.0
  %5386 = vmatprep.subr.mxu0 0.0
  %5387 = vmatpush1.xpose.msra.mxu0 0.0
  %5388 = vmatprep.subr.mxu0 0.0
  %5389 = vmatpush1.xpose.msra.mxu0 0.0
  %5390 = vmatprep.mubr.f32.mxu0 0.0
  %5391 = vmatmul.mubr.f32.gmra.mrb[0].mxu0 %v5321
  %v5392 = vpop.f32.mrb[0].mxu0
  %v5393 = vadd.f32 0.0, %v5392
  %v5394 = vpop.f32.mrb[0].mxu0
  %5395 = vmatprep.mubr.f32.mxu0 0.0
  %5396 = vmatmul.mubr.f32.gmra.mrb[0].mxu0 %v5324
  %v5397 = vpop.f32.mrb[0].mxu0
  %v5398 = vadd.f32 0.0, %v5397
  %v5399 = vpop.f32.mrb[0].mxu0
  %5400 = vdwg.mxu0
  %v5402 = vsel %vm129, %v4528, 0
  %v5405 = vsel %vm129, %v4529, 0
  %5407 = vmatprep.subr.mxu0 0.0
  %5408 = vmatpush1.xpose.msra.mxu0 %v4666
  %5409 = vmatprep.subr.mxu0 0.0
  %5410 = vmatpush1.xpose.msra.mxu0 %v4669
  %5411 = vmatprep.subr.mxu0 0.0
  %5412 = vmatpush1.xpose.msra.mxu0 0.0
  %5413 = vmatprep.subr.mxu0 0.0
  %5414 = vmatpush1.xpose.msra.mxu0 0.0
  %5415 = vmatprep.subr.mxu0 0.0
  %5416 = vmatpush1.xpose.msra.mxu0 0.0
  %5417 = vmatprep.subr.mxu0 0.0
  %5418 = vmatpush1.xpose.msra.mxu0 0.0
  %5419 = vmatprep.subr.mxu0 0.0
  %5420 = vmatpush1.xpose.msra.mxu0 0.0
  %5421 = vmatprep.subr.mxu0 0.0
  %5422 = vmatpush1.xpose.msra.mxu0 0.0
  %5423 = vmatprep.subr.mxu0 0.0
  %5424 = vmatpush1.xpose.msra.mxu0 0.0
  %5425 = vmatprep.subr.mxu0 0.0
  %5426 = vmatpush1.xpose.msra.mxu0 0.0
  %5427 = vmatprep.subr.mxu0 0.0
  %5428 = vmatpush1.xpose.msra.mxu0 0.0
  %5429 = vmatprep.subr.mxu0 0.0
  %5430 = vmatpush1.xpose.msra.mxu0 0.0
  %5431 = vmatprep.subr.mxu0 0.0
  %5432 = vmatpush1.xpose.msra.mxu0 0.0
  %5433 = vmatprep.subr.mxu0 0.0
  %5434 = vmatpush1.xpose.msra.mxu0 0.0
  %5435 = vmatprep.subr.mxu0 0.0
  %5436 = vmatpush1.xpose.msra.mxu0 0.0
  %5437 = vmatprep.subr.mxu0 0.0
  %5438 = vmatpush1.xpose.msra.mxu0 0.0
  %5439 = vmatprep.subr.mxu0 0.0
  %5440 = vmatpush1.xpose.msra.mxu0 0.0
  %5441 = vmatprep.subr.mxu0 0.0
  %5442 = vmatpush1.xpose.msra.mxu0 0.0
  %5443 = vmatprep.subr.mxu0 0.0
  %5444 = vmatpush1.xpose.msra.mxu0 0.0
  %5445 = vmatprep.subr.mxu0 0.0
  %5446 = vmatpush1.xpose.msra.mxu0 0.0
  %5447 = vmatprep.subr.mxu0 0.0
  %5448 = vmatpush1.xpose.msra.mxu0 0.0
  %5449 = vmatprep.subr.mxu0 0.0
  %5450 = vmatpush1.xpose.msra.mxu0 0.0
  %5451 = vmatprep.subr.mxu0 0.0
  %5452 = vmatpush1.xpose.msra.mxu0 0.0
  %5453 = vmatprep.subr.mxu0 0.0
  %5454 = vmatpush1.xpose.msra.mxu0 0.0
  %5455 = vmatprep.subr.mxu0 0.0
  %5456 = vmatpush1.xpose.msra.mxu0 0.0
  %5457 = vmatprep.subr.mxu0 0.0
  %5458 = vmatpush1.xpose.msra.mxu0 0.0
  %5459 = vmatprep.subr.mxu0 0.0
  %5460 = vmatpush1.xpose.msra.mxu0 0.0
  %5461 = vmatprep.subr.mxu0 0.0
  %5462 = vmatpush1.xpose.msra.mxu0 0.0
  %5463 = vmatprep.subr.mxu0 0.0
  %5464 = vmatpush1.xpose.msra.mxu0 0.0
  %5465 = vmatprep.subr.mxu0 0.0
  %5466 = vmatpush1.xpose.msra.mxu0 0.0
  %5467 = vmatprep.subr.mxu0 0.0
  %5468 = vmatpush1.xpose.msra.mxu0 0.0
  %5469 = vmatprep.subr.mxu0 0.0
  %5470 = vmatpush1.xpose.msra.mxu0 0.0
  %5471 = vmatprep.mubr.f32.mxu0 0.0
  %5472 = vmatmul.mubr.f32.gmra.mrb[0].mxu0 %v5402
  %v5473 = vpop.f32.mrb[0].mxu0
  %v5474 = vadd.f32 0.0, %v5473
  %v5475 = vpop.f32.mrb[0].mxu0
  %5476 = vmatprep.mubr.f32.mxu0 0.0
  %5477 = vmatmul.mubr.f32.gmra.mrb[0].mxu0 %v5405
  %v5478 = vpop.f32.mrb[0].mxu0
  %v5479 = vadd.f32 0.0, %v5478
  %v5480 = vpop.f32.mrb[0].mxu0
  %5481 = vdwg.mxu0
  %v5482 = vsel %vm692, %v5393, -inf
  %5483 = vmax.xlane.f32.xlu0 %v5482
  %v5484 = vpop.xlane.xlu0 %5483
  %v5485 = vsel %vm692, %v5398, -inf
  %5486 = vmax.xlane.f32.xlu0 %v5485
  %v5487 = vpop.xlane.xlu0 %5486
  %v5488 = vsub.f32 %v5393, %v5484
  %v5489 = vsub.f32 %v5398, %v5487
  %v5490 = vmul.f32 %v5488, 1.442695
  %v5491 = vpow.pop %v5490
  %v5492 = vmul.f32 %v5489, 1.442695
  %v5493 = vpow.pop %v5492
  %v5494 = vsel %vm692, %v5491, 0.0
  %5495 = vadd.xlane.f32.xlu0 %v5494
  %v5496 = vpop.xlane.xlu0 %5495
  %v5497 = vsel %vm692, %v5493, 0.0
  %5498 = vadd.xlane.f32.xlu0 %v5497
  %v5499 = vpop.xlane.xlu0 %5498
  %v5500 = vrcp.pop %v5496
  %v5501 = vrcp.pop %v5499
  %v5502 = vmul.f32 %v5491, %v5500
  %v5503 = vmul.f32 %v5493, %v5501
  %v5505 = vsel %vm692, %v5502, 0
  %v5508 = vsel %vm692, %v5503, 0
  %5510 = vmatprep.subr.mxu0 0.0
  %5511 = vmatpush1.msra.mxu0 %v4560
  %5512 = vmatprep.subr.mxu0 0.0
  %5513 = vmatpush1.msra.mxu0 %v4561
  %5514 = vmatprep.subr.mxu0 0.0
  %5515 = vmatpush1.msra.mxu0 0.0
  %5516 = vmatprep.subr.mxu0 0.0
  %5517 = vmatpush1.msra.mxu0 0.0
  %5518 = vmatprep.subr.mxu0 0.0
  %5519 = vmatpush1.msra.mxu0 0.0
  %5520 = vmatprep.subr.mxu0 0.0
  %5521 = vmatpush1.msra.mxu0 0.0
  %5522 = vmatprep.subr.mxu0 0.0
  %5523 = vmatpush1.msra.mxu0 0.0
  %5524 = vmatprep.subr.mxu0 0.0
  %5525 = vmatpush1.msra.mxu0 0.0
  %5526 = vmatprep.subr.mxu0 0.0
  %5527 = vmatpush1.msra.mxu0 0.0
  %5528 = vmatprep.subr.mxu0 0.0
  %5529 = vmatpush1.msra.mxu0 0.0
  %5530 = vmatprep.subr.mxu0 0.0
  %5531 = vmatpush1.msra.mxu0 0.0
  %5532 = vmatprep.subr.mxu0 0.0
  %5533 = vmatpush1.msra.mxu0 0.0
  %5534 = vmatprep.subr.mxu0 0.0
  %5535 = vmatpush1.msra.mxu0 0.0
  %5536 = vmatprep.subr.mxu0 0.0
  %5537 = vmatpush1.msra.mxu0 0.0
  %5538 = vmatprep.subr.mxu0 0.0
  %5539 = vmatpush1.msra.mxu0 0.0
  %5540 = vmatprep.subr.mxu0 0.0
  %5541 = vmatpush1.msra.mxu0 0.0
  %5542 = vmatprep.subr.mxu0 0.0
  %5543 = vmatpush1.msra.mxu0 0.0
  %5544 = vmatprep.subr.mxu0 0.0
  %5545 = vmatpush1.msra.mxu0 0.0
  %5546 = vmatprep.subr.mxu0 0.0
  %5547 = vmatpush1.msra.mxu0 0.0
  %5548 = vmatprep.subr.mxu0 0.0
  %5549 = vmatpush1.msra.mxu0 0.0
  %5550 = vmatprep.subr.mxu0 0.0
  %5551 = vmatpush1.msra.mxu0 0.0
  %5552 = vmatprep.subr.mxu0 0.0
  %5553 = vmatpush1.msra.mxu0 0.0
  %5554 = vmatprep.subr.mxu0 0.0
  %5555 = vmatpush1.msra.mxu0 0.0
  %5556 = vmatprep.subr.mxu0 0.0
  %5557 = vmatpush1.msra.mxu0 0.0
  %5558 = vmatprep.subr.mxu0 0.0
  %5559 = vmatpush1.msra.mxu0 0.0
  %5560 = vmatprep.subr.mxu0 0.0
  %5561 = vmatpush1.msra.mxu0 0.0
  %5562 = vmatprep.subr.mxu0 0.0
  %5563 = vmatpush1.msra.mxu0 0.0
  %5564 = vmatprep.subr.mxu0 0.0
  %5565 = vmatpush1.msra.mxu0 0.0
  %5566 = vmatprep.subr.mxu0 0.0
  %5567 = vmatpush1.msra.mxu0 0.0
  %5568 = vmatprep.subr.mxu0 0.0
  %5569 = vmatpush1.msra.mxu0 0.0
  %5570 = vmatprep.subr.mxu0 0.0
  %5571 = vmatpush1.msra.mxu0 0.0
  %5572 = vmatprep.subr.mxu0 0.0
  %5573 = vmatpush1.msra.mxu0 0.0
  %5574 = vmatprep.mubr.f32.mxu0 0.0
  %5575 = vmatmul.mubr.f32.gmra.mrb[0].mxu0 %v5505
  %v5576 = vpop.f32.mrb[0].mxu0
  %v5577 = vadd.f32 0.0, %v5576
  %v5578 = vpop.f32.mrb[0].mxu0
  %5579 = vmatprep.mubr.f32.mxu0 0.0
  %5580 = vmatmul.mubr.f32.gmra.mrb[0].mxu0 %v5508
  %v5581 = vpop.f32.mrb[0].mxu0
  %v5582 = vadd.f32 0.0, %v5581
  %v5583 = vpop.f32.mrb[0].mxu0
  %5584 = vdwg.mxu0
  %v5585 = vadd.f32 %v5128, %v5577
  %v5586 = vadd.f32 %v5133, %v5582
  %v5587 = vsel %vm692, %v5474, -inf
  %5588 = vmax.xlane.f32.xlu0 %v5587
  %v5589 = vpop.xlane.xlu0 %5588
  %v5590 = vsel %vm692, %v5479, -inf
  %5591 = vmax.xlane.f32.xlu0 %v5590
  %v5592 = vpop.xlane.xlu0 %5591
  %v5593 = vsub.f32 %v5474, %v5589
  %v5594 = vsub.f32 %v5479, %v5592
  %v5595 = vmul.f32 %v5593, 1.442695
  %v5596 = vpow.pop %v5595
  %v5597 = vmul.f32 %v5594, 1.442695
  %v5598 = vpow.pop %v5597
  %v5599 = vsel %vm692, %v5596, 0.0
  %5600 = vadd.xlane.f32.xlu0 %v5599
  %v5601 = vpop.xlane.xlu0 %5600
  %v5602 = vsel %vm692, %v5598, 0.0
  %5603 = vadd.xlane.f32.xlu0 %v5602
  %v5604 = vpop.xlane.xlu0 %5603
  %v5605 = vrcp.pop %v5601
  %v5606 = vrcp.pop %v5604
  %v5607 = vmul.f32 %v5596, %v5605
  %v5608 = vmul.f32 %v5598, %v5606
  %v5610 = vsel %vm692, %v5607, 0
  %v5613 = vsel %vm692, %v5608, 0
  %5615 = vmatprep.subr.mxu0 0.0
  %5616 = vmatpush1.msra.mxu0 %v4556
  %5617 = vmatprep.subr.mxu0 0.0
  %5618 = vmatpush1.msra.mxu0 %v4557
  %5619 = vmatprep.subr.mxu0 0.0
  %5620 = vmatpush1.msra.mxu0 0.0
  %5621 = vmatprep.subr.mxu0 0.0
  %5622 = vmatpush1.msra.mxu0 0.0
  %5623 = vmatprep.subr.mxu0 0.0
  %5624 = vmatpush1.msra.mxu0 0.0
  %5625 = vmatprep.subr.mxu0 0.0
  %5626 = vmatpush1.msra.mxu0 0.0
  %5627 = vmatprep.subr.mxu0 0.0
  %5628 = vmatpush1.msra.mxu0 0.0
  %5629 = vmatprep.subr.mxu0 0.0
  %5630 = vmatpush1.msra.mxu0 0.0
  %5631 = vmatprep.subr.mxu0 0.0
  %5632 = vmatpush1.msra.mxu0 0.0
  %5633 = vmatprep.subr.mxu0 0.0
  %5634 = vmatpush1.msra.mxu0 0.0
  %5635 = vmatprep.subr.mxu0 0.0
  %5636 = vmatpush1.msra.mxu0 0.0
  %5637 = vmatprep.subr.mxu0 0.0
  %5638 = vmatpush1.msra.mxu0 0.0
  %5639 = vmatprep.subr.mxu0 0.0
  %5640 = vmatpush1.msra.mxu0 0.0
  %5641 = vmatprep.subr.mxu0 0.0
  %5642 = vmatpush1.msra.mxu0 0.0
  %5643 = vmatprep.subr.mxu0 0.0
  %5644 = vmatpush1.msra.mxu0 0.0
  %5645 = vmatprep.subr.mxu0 0.0
  %5646 = vmatpush1.msra.mxu0 0.0
  %5647 = vmatprep.subr.mxu0 0.0
  %5648 = vmatpush1.msra.mxu0 0.0
  %5649 = vmatprep.subr.mxu0 0.0
  %5650 = vmatpush1.msra.mxu0 0.0
  %5651 = vmatprep.subr.mxu0 0.0
  %5652 = vmatpush1.msra.mxu0 0.0
  %5653 = vmatprep.subr.mxu0 0.0
  %5654 = vmatpush1.msra.mxu0 0.0
  %5655 = vmatprep.subr.mxu0 0.0
  %5656 = vmatpush1.msra.mxu0 0.0
  %5657 = vmatprep.subr.mxu0 0.0
  %5658 = vmatpush1.msra.mxu0 0.0
  %5659 = vmatprep.subr.mxu0 0.0
  %5660 = vmatpush1.msra.mxu0 0.0
  %5661 = vmatprep.subr.mxu0 0.0
  %5662 = vmatpush1.msra.mxu0 0.0
  %5663 = vmatprep.subr.mxu0 0.0
  %5664 = vmatpush1.msra.mxu0 0.0
  %5665 = vmatprep.subr.mxu0 0.0
  %5666 = vmatpush1.msra.mxu0 0.0
  %5667 = vmatprep.subr.mxu0 0.0
  %5668 = vmatpush1.msra.mxu0 0.0
  %5669 = vmatprep.subr.mxu0 0.0
  %5670 = vmatpush1.msra.mxu0 0.0
  %5671 = vmatprep.subr.mxu0 0.0
  %5672 = vmatpush1.msra.mxu0 0.0
  %5673 = vmatprep.subr.mxu0 0.0
  %5674 = vmatpush1.msra.mxu0 0.0
  %5675 = vmatprep.subr.mxu0 0.0
  %5676 = vmatpush1.msra.mxu0 0.0
  %5677 = vmatprep.subr.mxu0 0.0
  %5678 = vmatpush1.msra.mxu0 0.0
  %5679 = vmatprep.mubr.f32.mxu0 0.0
  %5680 = vmatmul.mubr.f32.gmra.mrb[0].mxu0 %v5610
  %v5681 = vpop.f32.mrb[0].mxu0
  %v5682 = vadd.f32 0.0, %v5681
  %v5683 = vpop.f32.mrb[0].mxu0
  %5684 = vmatprep.mubr.f32.mxu0 0.0
  %5685 = vmatmul.mubr.f32.gmra.mrb[0].mxu0 %v5613
  %v5686 = vpop.f32.mrb[0].mxu0
  %v5687 = vadd.f32 0.0, %v5686
  %v5688 = vpop.f32.mrb[0].mxu0
  %5689 = vdwg.mxu0
  %v5690 = vadd.f32 %v5312, %v5682
  %v5691 = vadd.f32 %v5317, %v5687
  %v5693 = vsel %vm129, %v4532, 0
  %v5696 = vsel %vm129, %v4533, 0
  %5698 = vmatprep.subr.mxu0 0.0
  %5699 = vmatpush1.xpose.msra.mxu0 %v4579
  %5700 = vmatprep.subr.mxu0 0.0
  %5701 = vmatpush1.xpose.msra.mxu0 %v4582
  %5702 = vmatprep.subr.mxu0 0.0
  %5703 = vmatpush1.xpose.msra.mxu0 0.0
  %5704 = vmatprep.subr.mxu0 0.0
  %5705 = vmatpush1.xpose.msra.mxu0 0.0
  %5706 = vmatprep.subr.mxu0 0.0
  %5707 = vmatpush1.xpose.msra.mxu0 0.0
  %5708 = vmatprep.subr.mxu0 0.0
  %5709 = vmatpush1.xpose.msra.mxu0 0.0
  %5710 = vmatprep.subr.mxu0 0.0
  %5711 = vmatpush1.xpose.msra.mxu0 0.0
  %5712 = vmatprep.subr.mxu0 0.0
  %5713 = vmatpush1.xpose.msra.mxu0 0.0
  %5714 = vmatprep.subr.mxu0 0.0
  %5715 = vmatpush1.xpose.msra.mxu0 0.0
  %5716 = vmatprep.subr.mxu0 0.0
  %5717 = vmatpush1.xpose.msra.mxu0 0.0
  %5718 = vmatprep.subr.mxu0 0.0
  %5719 = vmatpush1.xpose.msra.mxu0 0.0
  %5720 = vmatprep.subr.mxu0 0.0
  %5721 = vmatpush1.xpose.msra.mxu0 0.0
  %5722 = vmatprep.subr.mxu0 0.0
  %5723 = vmatpush1.xpose.msra.mxu0 0.0
  %5724 = vmatprep.subr.mxu0 0.0
  %5725 = vmatpush1.xpose.msra.mxu0 0.0
  %5726 = vmatprep.subr.mxu0 0.0
  %5727 = vmatpush1.xpose.msra.mxu0 0.0
  %5728 = vmatprep.subr.mxu0 0.0
  %5729 = vmatpush1.xpose.msra.mxu0 0.0
  %5730 = vmatprep.subr.mxu0 0.0
  %5731 = vmatpush1.xpose.msra.mxu0 0.0
  %5732 = vmatprep.subr.mxu0 0.0
  %5733 = vmatpush1.xpose.msra.mxu0 0.0
  %5734 = vmatprep.subr.mxu0 0.0
  %5735 = vmatpush1.xpose.msra.mxu0 0.0
  %5736 = vmatprep.subr.mxu0 0.0
  %5737 = vmatpush1.xpose.msra.mxu0 0.0
  %5738 = vmatprep.subr.mxu0 0.0
  %5739 = vmatpush1.xpose.msra.mxu0 0.0
  %5740 = vmatprep.subr.mxu0 0.0
  %5741 = vmatpush1.xpose.msra.mxu0 0.0
  %5742 = vmatprep.subr.mxu0 0.0
  %5743 = vmatpush1.xpose.msra.mxu0 0.0
  %5744 = vmatprep.subr.mxu0 0.0
  %5745 = vmatpush1.xpose.msra.mxu0 0.0
  %5746 = vmatprep.subr.mxu0 0.0
  %5747 = vmatpush1.xpose.msra.mxu0 0.0
  %5748 = vmatprep.subr.mxu0 0.0
  %5749 = vmatpush1.xpose.msra.mxu0 0.0
  %5750 = vmatprep.subr.mxu0 0.0
  %5751 = vmatpush1.xpose.msra.mxu0 0.0
  %5752 = vmatprep.subr.mxu0 0.0
  %5753 = vmatpush1.xpose.msra.mxu0 0.0
  %5754 = vmatprep.subr.mxu0 0.0
  %5755 = vmatpush1.xpose.msra.mxu0 0.0
  %5756 = vmatprep.subr.mxu0 0.0
  %5757 = vmatpush1.xpose.msra.mxu0 0.0
  %5758 = vmatprep.subr.mxu0 0.0
  %5759 = vmatpush1.xpose.msra.mxu0 0.0
  %5760 = vmatprep.subr.mxu0 0.0
  %5761 = vmatpush1.xpose.msra.mxu0 0.0
  %5762 = vmatprep.mubr.f32.mxu0 0.0
  %5763 = vmatmul.mubr.f32.gmra.mrb[0].mxu0 %v5693
  %v5764 = vpop.f32.mrb[0].mxu0
  %v5765 = vadd.f32 0.0, %v5764
  %v5766 = vpop.f32.mrb[0].mxu0
  %5767 = vmatprep.mubr.f32.mxu0 0.0
  %5768 = vmatmul.mubr.f32.gmra.mrb[0].mxu0 %v5696
  %v5769 = vpop.f32.mrb[0].mxu0
  %v5770 = vadd.f32 0.0, %v5769
  %v5771 = vpop.f32.mrb[0].mxu0
  %5772 = vdwg.mxu0
  %v5774 = vsel %vm129, %v4536, 0
  %v5777 = vsel %vm129, %v4537, 0
  %5779 = vmatprep.subr.mxu0 0.0
  %5780 = vmatpush1.xpose.msra.mxu0 %v4666
  %5781 = vmatprep.subr.mxu0 0.0
  %5782 = vmatpush1.xpose.msra.mxu0 %v4669
  %5783 = vmatprep.subr.mxu0 0.0
  %5784 = vmatpush1.xpose.msra.mxu0 0.0
  %5785 = vmatprep.subr.mxu0 0.0
  %5786 = vmatpush1.xpose.msra.mxu0 0.0
  %5787 = vmatprep.subr.mxu0 0.0
  %5788 = vmatpush1.xpose.msra.mxu0 0.0
  %5789 = vmatprep.subr.mxu0 0.0
  %5790 = vmatpush1.xpose.msra.mxu0 0.0
  %5791 = vmatprep.subr.mxu0 0.0
  %5792 = vmatpush1.xpose.msra.mxu0 0.0
  %5793 = vmatprep.subr.mxu0 0.0
  %5794 = vmatpush1.xpose.msra.mxu0 0.0
  %5795 = vmatprep.subr.mxu0 0.0
  %5796 = vmatpush1.xpose.msra.mxu0 0.0
  %5797 = vmatprep.subr.mxu0 0.0
  %5798 = vmatpush1.xpose.msra.mxu0 0.0
  %5799 = vmatprep.subr.mxu0 0.0
  %5800 = vmatpush1.xpose.msra.mxu0 0.0
  %5801 = vmatprep.subr.mxu0 0.0
  %5802 = vmatpush1.xpose.msra.mxu0 0.0
  %5803 = vmatprep.subr.mxu0 0.0
  %5804 = vmatpush1.xpose.msra.mxu0 0.0
  %5805 = vmatprep.subr.mxu0 0.0
  %5806 = vmatpush1.xpose.msra.mxu0 0.0
  %5807 = vmatprep.subr.mxu0 0.0
  %5808 = vmatpush1.xpose.msra.mxu0 0.0
  %5809 = vmatprep.subr.mxu0 0.0
  %5810 = vmatpush1.xpose.msra.mxu0 0.0
  %5811 = vmatprep.subr.mxu0 0.0
  %5812 = vmatpush1.xpose.msra.mxu0 0.0
  %5813 = vmatprep.subr.mxu0 0.0
  %5814 = vmatpush1.xpose.msra.mxu0 0.0
  %5815 = vmatprep.subr.mxu0 0.0
  %5816 = vmatpush1.xpose.msra.mxu0 0.0
  %5817 = vmatprep.subr.mxu0 0.0
  %5818 = vmatpush1.xpose.msra.mxu0 0.0
  %5819 = vmatprep.subr.mxu0 0.0
  %5820 = vmatpush1.xpose.msra.mxu0 0.0
  %5821 = vmatprep.subr.mxu0 0.0
  %5822 = vmatpush1.xpose.msra.mxu0 0.0
  %5823 = vmatprep.subr.mxu0 0.0
  %5824 = vmatpush1.xpose.msra.mxu0 0.0
  %5825 = vmatprep.subr.mxu0 0.0
  %5826 = vmatpush1.xpose.msra.mxu0 0.0
  %5827 = vmatprep.subr.mxu0 0.0
  %5828 = vmatpush1.xpose.msra.mxu0 0.0
  %5829 = vmatprep.subr.mxu0 0.0
  %5830 = vmatpush1.xpose.msra.mxu0 0.0
  %5831 = vmatprep.subr.mxu0 0.0
  %5832 = vmatpush1.xpose.msra.mxu0 0.0
  %5833 = vmatprep.subr.mxu0 0.0
  %5834 = vmatpush1.xpose.msra.mxu0 0.0
  %5835 = vmatprep.subr.mxu0 0.0
  %5836 = vmatpush1.xpose.msra.mxu0 0.0
  %5837 = vmatprep.subr.mxu0 0.0
  %5838 = vmatpush1.xpose.msra.mxu0 0.0
  %5839 = vmatprep.subr.mxu0 0.0
  %5840 = vmatpush1.xpose.msra.mxu0 0.0
  %5841 = vmatprep.subr.mxu0 0.0
  %5842 = vmatpush1.xpose.msra.mxu0 0.0
  %5843 = vmatprep.mubr.f32.mxu0 0.0
  %5844 = vmatmul.mubr.f32.gmra.mrb[0].mxu0 %v5774
  %v5845 = vpop.f32.mrb[0].mxu0
  %v5846 = vadd.f32 0.0, %v5845
  %v5847 = vpop.f32.mrb[0].mxu0
  %5848 = vmatprep.mubr.f32.mxu0 0.0
  %5849 = vmatmul.mubr.f32.gmra.mrb[0].mxu0 %v5777
  %v5850 = vpop.f32.mrb[0].mxu0
  %v5851 = vadd.f32 0.0, %v5850
  %v5852 = vpop.f32.mrb[0].mxu0
  %5853 = vdwg.mxu0
  %v5854 = vsel %vm692, %v5765, -inf
  %5855 = vmax.xlane.f32.xlu0 %v5854
  %v5856 = vpop.xlane.xlu0 %5855
  %v5857 = vsel %vm692, %v5770, -inf
  %5858 = vmax.xlane.f32.xlu0 %v5857
  %v5859 = vpop.xlane.xlu0 %5858
  %v5860 = vsub.f32 %v5765, %v5856
  %v5861 = vsub.f32 %v5770, %v5859
  %v5862 = vmul.f32 %v5860, 1.442695
  %v5863 = vpow.pop %v5862
  %v5864 = vmul.f32 %v5861, 1.442695
  %v5865 = vpow.pop %v5864
  %v5866 = vsel %vm692, %v5863, 0.0
  %5867 = vadd.xlane.f32.xlu0 %v5866
  %v5868 = vpop.xlane.xlu0 %5867
  %v5869 = vsel %vm692, %v5865, 0.0
  %5870 = vadd.xlane.f32.xlu0 %v5869
  %v5871 = vpop.xlane.xlu0 %5870
  %v5872 = vrcp.pop %v5868
  %v5873 = vrcp.pop %v5871
  %v5874 = vmul.f32 %v5863, %v5872
  %v5875 = vmul.f32 %v5865, %v5873
  %v5877 = vsel %vm692, %v5874, 0
  %v5880 = vsel %vm692, %v5875, 0
  %5882 = vmatprep.subr.mxu0 0.0
  %5883 = vmatpush1.msra.mxu0 %v4568
  %5884 = vmatprep.subr.mxu0 0.0
  %5885 = vmatpush1.msra.mxu0 %v4569
  %5886 = vmatprep.subr.mxu0 0.0
  %5887 = vmatpush1.msra.mxu0 0.0
  %5888 = vmatprep.subr.mxu0 0.0
  %5889 = vmatpush1.msra.mxu0 0.0
  %5890 = vmatprep.subr.mxu0 0.0
  %5891 = vmatpush1.msra.mxu0 0.0
  %5892 = vmatprep.subr.mxu0 0.0
  %5893 = vmatpush1.msra.mxu0 0.0
  %5894 = vmatprep.subr.mxu0 0.0
  %5895 = vmatpush1.msra.mxu0 0.0
  %5896 = vmatprep.subr.mxu0 0.0
  %5897 = vmatpush1.msra.mxu0 0.0
  %5898 = vmatprep.subr.mxu0 0.0
  %5899 = vmatpush1.msra.mxu0 0.0
  %5900 = vmatprep.subr.mxu0 0.0
  %5901 = vmatpush1.msra.mxu0 0.0
  %5902 = vmatprep.subr.mxu0 0.0
  %5903 = vmatpush1.msra.mxu0 0.0
  %5904 = vmatprep.subr.mxu0 0.0
  %5905 = vmatpush1.msra.mxu0 0.0
  %5906 = vmatprep.subr.mxu0 0.0
  %5907 = vmatpush1.msra.mxu0 0.0
  %5908 = vmatprep.subr.mxu0 0.0
  %5909 = vmatpush1.msra.mxu0 0.0
  %5910 = vmatprep.subr.mxu0 0.0
  %5911 = vmatpush1.msra.mxu0 0.0
  %5912 = vmatprep.subr.mxu0 0.0
  %5913 = vmatpush1.msra.mxu0 0.0
  %5914 = vmatprep.subr.mxu0 0.0
  %5915 = vmatpush1.msra.mxu0 0.0
  %5916 = vmatprep.subr.mxu0 0.0
  %5917 = vmatpush1.msra.mxu0 0.0
  %5918 = vmatprep.subr.mxu0 0.0
  %5919 = vmatpush1.msra.mxu0 0.0
  %5920 = vmatprep.subr.mxu0 0.0
  %5921 = vmatpush1.msra.mxu0 0.0
  %5922 = vmatprep.subr.mxu0 0.0
  %5923 = vmatpush1.msra.mxu0 0.0
  %5924 = vmatprep.subr.mxu0 0.0
  %5925 = vmatpush1.msra.mxu0 0.0
  %5926 = vmatprep.subr.mxu0 0.0
  %5927 = vmatpush1.msra.mxu0 0.0
  %5928 = vmatprep.subr.mxu0 0.0
  %5929 = vmatpush1.msra.mxu0 0.0
  %5930 = vmatprep.subr.mxu0 0.0
  %5931 = vmatpush1.msra.mxu0 0.0
  %5932 = vmatprep.subr.mxu0 0.0
  %5933 = vmatpush1.msra.mxu0 0.0
  %5934 = vmatprep.subr.mxu0 0.0
  %5935 = vmatpush1.msra.mxu0 0.0
  %5936 = vmatprep.subr.mxu0 0.0
  %5937 = vmatpush1.msra.mxu0 0.0
  %5938 = vmatprep.subr.mxu0 0.0
  %5939 = vmatpush1.msra.mxu0 0.0
  %5940 = vmatprep.subr.mxu0 0.0
  %5941 = vmatpush1.msra.mxu0 0.0
  %5942 = vmatprep.subr.mxu0 0.0
  %5943 = vmatpush1.msra.mxu0 0.0
  %5944 = vmatprep.subr.mxu0 0.0
  %5945 = vmatpush1.msra.mxu0 0.0
  %5946 = vmatprep.mubr.f32.mxu0 0.0
  %5947 = vmatmul.mubr.f32.gmra.mrb[0].mxu0 %v5877
  %v5948 = vpop.f32.mrb[0].mxu0
  %v5949 = vadd.f32 0.0, %v5948
  %v5950 = vpop.f32.mrb[0].mxu0
  %5951 = vmatprep.mubr.f32.mxu0 0.0
  %5952 = vmatmul.mubr.f32.gmra.mrb[0].mxu0 %v5880
  %v5953 = vpop.f32.mrb[0].mxu0
  %v5954 = vadd.f32 0.0, %v5953
  %v5955 = vpop.f32.mrb[0].mxu0
  %5956 = vdwg.mxu0
  %v5957 = vadd.f32 %v5585, %v5949
  %v5958 = vadd.f32 %v5586, %v5954
  %v5959 = vsel %vm692, %v5846, -inf
  %5960 = vmax.xlane.f32.xlu0 %v5959
  %v5961 = vpop.xlane.xlu0 %5960
  %v5962 = vsel %vm692, %v5851, -inf
  %5963 = vmax.xlane.f32.xlu0 %v5962
  %v5964 = vpop.xlane.xlu0 %5963
  %v5965 = vsub.f32 %v5846, %v5961
  %v5966 = vsub.f32 %v5851, %v5964
  %v5967 = vmul.f32 %v5965, 1.442695
  %v5968 = vpow.pop %v5967
  %v5969 = vmul.f32 %v5966, 1.442695
  %v5970 = vpow.pop %v5969
  %v5971 = vsel %vm692, %v5968, 0.0
  %5972 = vadd.xlane.f32.xlu0 %v5971
  %v5973 = vpop.xlane.xlu0 %5972
  %v5974 = vsel %vm692, %v5970, 0.0
  %5975 = vadd.xlane.f32.xlu0 %v5974
  %v5976 = vpop.xlane.xlu0 %5975
  %v5977 = vrcp.pop %v5973
  %v5978 = vrcp.pop %v5976
  %v5979 = vmul.f32 %v5968, %v5977
  %v5980 = vmul.f32 %v5970, %v5978
  %v5982 = vsel %vm692, %v5979, 0
  %v5985 = vsel %vm692, %v5980, 0
  %5987 = vmatprep.subr.mxu0 0.0
  %5988 = vmatpush1.msra.mxu0 %v4564
  %5989 = vmatprep.subr.mxu0 0.0
  %5990 = vmatpush1.msra.mxu0 %v4565
  %5991 = vmatprep.subr.mxu0 0.0
  %5992 = vmatpush1.msra.mxu0 0.0
  %5993 = vmatprep.subr.mxu0 0.0
  %5994 = vmatpush1.msra.mxu0 0.0
  %5995 = vmatprep.subr.mxu0 0.0
  %5996 = vmatpush1.msra.mxu0 0.0
  %5997 = vmatprep.subr.mxu0 0.0
  %5998 = vmatpush1.msra.mxu0 0.0
  %5999 = vmatprep.subr.mxu0 0.0
  %6000 = vmatpush1.msra.mxu0 0.0
  %6001 = vmatprep.subr.mxu0 0.0
  %6002 = vmatpush1.msra.mxu0 0.0
  %6003 = vmatprep.subr.mxu0 0.0
  %6004 = vmatpush1.msra.mxu0 0.0
  %6005 = vmatprep.subr.mxu0 0.0
  %6006 = vmatpush1.msra.mxu0 0.0
  %6007 = vmatprep.subr.mxu0 0.0
  %6008 = vmatpush1.msra.mxu0 0.0
  %6009 = vmatprep.subr.mxu0 0.0
  %6010 = vmatpush1.msra.mxu0 0.0
  %6011 = vmatprep.subr.mxu0 0.0
  %6012 = vmatpush1.msra.mxu0 0.0
  %6013 = vmatprep.subr.mxu0 0.0
  %6014 = vmatpush1.msra.mxu0 0.0
  %6015 = vmatprep.subr.mxu0 0.0
  %6016 = vmatpush1.msra.mxu0 0.0
  %6017 = vmatprep.subr.mxu0 0.0
  %6018 = vmatpush1.msra.mxu0 0.0
  %6019 = vmatprep.subr.mxu0 0.0
  %6020 = vmatpush1.msra.mxu0 0.0
  %6021 = vmatprep.subr.mxu0 0.0
  %6022 = vmatpush1.msra.mxu0 0.0
  %6023 = vmatprep.subr.mxu0 0.0
  %6024 = vmatpush1.msra.mxu0 0.0
  %6025 = vmatprep.subr.mxu0 0.0
  %6026 = vmatpush1.msra.mxu0 0.0
  %6027 = vmatprep.subr.mxu0 0.0
  %6028 = vmatpush1.msra.mxu0 0.0
  %6029 = vmatprep.subr.mxu0 0.0
  %6030 = vmatpush1.msra.mxu0 0.0
  %6031 = vmatprep.subr.mxu0 0.0
  %6032 = vmatpush1.msra.mxu0 0.0
  %6033 = vmatprep.subr.mxu0 0.0
  %6034 = vmatpush1.msra.mxu0 0.0
  %6035 = vmatprep.subr.mxu0 0.0
  %6036 = vmatpush1.msra.mxu0 0.0
  %6037 = vmatprep.subr.mxu0 0.0
  %6038 = vmatpush1.msra.mxu0 0.0
  %6039 = vmatprep.subr.mxu0 0.0
  %6040 = vmatpush1.msra.mxu0 0.0
  %6041 = vmatprep.subr.mxu0 0.0
  %6042 = vmatpush1.msra.mxu0 0.0
  %6043 = vmatprep.subr.mxu0 0.0
  %6044 = vmatpush1.msra.mxu0 0.0
  %6045 = vmatprep.subr.mxu0 0.0
  %6046 = vmatpush1.msra.mxu0 0.0
  %6047 = vmatprep.subr.mxu0 0.0
  %6048 = vmatpush1.msra.mxu0 0.0
  %6049 = vmatprep.subr.mxu0 0.0
  %6050 = vmatpush1.msra.mxu0 0.0
  %6051 = vmatprep.mubr.f32.mxu0 0.0
  %6052 = vmatmul.mubr.f32.gmra.mrb[0].mxu0 %v5982
  %v6053 = vpop.f32.mrb[0].mxu0
  %v6054 = vadd.f32 0.0, %v6053
  %v6055 = vpop.f32.mrb[0].mxu0
  %6056 = vmatprep.mubr.f32.mxu0 0.0
  %6057 = vmatmul.mubr.f32.gmra.mrb[0].mxu0 %v5985
  %v6058 = vpop.f32.mrb[0].mxu0
  %v6059 = vadd.f32 0.0, %v6058
  %v6060 = vpop.f32.mrb[0].mxu0
  %6061 = vdwg.mxu0
  %v6062 = vadd.f32 %v5690, %v6054
  %v6063 = vadd.f32 %v5691, %v6059
  %v6065 = vsel %vm129, %v4510, 0
  %v6068 = vsel %vm129, %v4511, 0
  %v6071 = vsel %vm129, %v4393, 0
  %v6074 = vsel %vm129, %v4399, 0
  %6076 = vmatprep.subr.mxu0 0.0
  %6077 = vmatpush1.xpose.msra.mxu0 %v6071
  %6078 = vmatprep.subr.mxu0 0.0
  %6079 = vmatpush1.xpose.msra.mxu0 %v6074
  %6080 = vmatprep.subr.mxu0 0.0
  %6081 = vmatpush1.xpose.msra.mxu0 0.0
  %6082 = vmatprep.subr.mxu0 0.0
  %6083 = vmatpush1.xpose.msra.mxu0 0.0
  %6084 = vmatprep.subr.mxu0 0.0
  %6085 = vmatpush1.xpose.msra.mxu0 0.0
  %6086 = vmatprep.subr.mxu0 0.0
  %6087 = vmatpush1.xpose.msra.mxu0 0.0
  %6088 = vmatprep.subr.mxu0 0.0
  %6089 = vmatpush1.xpose.msra.mxu0 0.0
  %6090 = vmatprep.subr.mxu0 0.0
  %6091 = vmatpush1.xpose.msra.mxu0 0.0
  %6092 = vmatprep.subr.mxu0 0.0
  %6093 = vmatpush1.xpose.msra.mxu0 0.0
  %6094 = vmatprep.subr.mxu0 0.0
  %6095 = vmatpush1.xpose.msra.mxu0 0.0
  %6096 = vmatprep.subr.mxu0 0.0
  %6097 = vmatpush1.xpose.msra.mxu0 0.0
  %6098 = vmatprep.subr.mxu0 0.0
  %6099 = vmatpush1.xpose.msra.mxu0 0.0
  %6100 = vmatprep.subr.mxu0 0.0
  %6101 = vmatpush1.xpose.msra.mxu0 0.0
  %6102 = vmatprep.subr.mxu0 0.0
  %6103 = vmatpush1.xpose.msra.mxu0 0.0
  %6104 = vmatprep.subr.mxu0 0.0
  %6105 = vmatpush1.xpose.msra.mxu0 0.0
  %6106 = vmatprep.subr.mxu0 0.0
  %6107 = vmatpush1.xpose.msra.mxu0 0.0
  %6108 = vmatprep.subr.mxu0 0.0
  %6109 = vmatpush1.xpose.msra.mxu0 0.0
  %6110 = vmatprep.subr.mxu0 0.0
  %6111 = vmatpush1.xpose.msra.mxu0 0.0
  %6112 = vmatprep.subr.mxu0 0.0
  %6113 = vmatpush1.xpose.msra.mxu0 0.0
  %6114 = vmatprep.subr.mxu0 0.0
  %6115 = vmatpush1.xpose.msra.mxu0 0.0
  %6116 = vmatprep.subr.mxu0 0.0
  %6117 = vmatpush1.xpose.msra.mxu0 0.0
  %6118 = vmatprep.subr.mxu0 0.0
  %6119 = vmatpush1.xpose.msra.mxu0 0.0
  %6120 = vmatprep.subr.mxu0 0.0
  %6121 = vmatpush1.xpose.msra.mxu0 0.0
  %6122 = vmatprep.subr.mxu0 0.0
  %6123 = vmatpush1.xpose.msra.mxu0 0.0
  %6124 = vmatprep.subr.mxu0 0.0
  %6125 = vmatpush1.xpose.msra.mxu0 0.0
  %6126 = vmatprep.subr.mxu0 0.0
  %6127 = vmatpush1.xpose.msra.mxu0 0.0
  %6128 = vmatprep.subr.mxu0 0.0
  %6129 = vmatpush1.xpose.msra.mxu0 0.0
  %6130 = vmatprep.subr.mxu0 0.0
  %6131 = vmatpush1.xpose.msra.mxu0 0.0
  %6132 = vmatprep.subr.mxu0 0.0
  %6133 = vmatpush1.xpose.msra.mxu0 0.0
  %6134 = vmatprep.subr.mxu0 0.0
  %6135 = vmatpush1.xpose.msra.mxu0 0.0
  %6136 = vmatprep.subr.mxu0 0.0
  %6137 = vmatpush1.xpose.msra.mxu0 0.0
  %6138 = vmatprep.subr.mxu0 0.0
  %6139 = vmatpush1.xpose.msra.mxu0 0.0
  %6140 = vmatprep.mubr.f32.mxu0 0.0
  %6141 = vmatmul.mubr.f32.gmra.mrb[0].mxu0 %v6065
  %v6142 = vpop.f32.mrb[0].mxu0
  %v6143 = vadd.f32 0.0, %v6142
  %v6144 = vpop.f32.mrb[0].mxu0
  %6145 = vmatprep.mubr.f32.mxu0 0.0
  %6146 = vmatmul.mubr.f32.gmra.mrb[0].mxu0 %v6068
  %v6147 = vpop.f32.mrb[0].mxu0
  %v6148 = vadd.f32 0.0, %v6147
  %v6149 = vpop.f32.mrb[0].mxu0
  %6150 = vdwg.mxu0
  %v6152 = vsel %vm129, %v4514, 0
  %v6155 = vsel %vm129, %v4515, 0
  %v6158 = vsel %vm129, %v4369, 0
  %v6161 = vsel %vm129, %v4375, 0
  %6163 = vmatprep.subr.mxu0 0.0
  %6164 = vmatpush1.xpose.msra.mxu0 %v6158
  %6165 = vmatprep.subr.mxu0 0.0
  %6166 = vmatpush1.xpose.msra.mxu0 %v6161
  %6167 = vmatprep.subr.mxu0 0.0
  %6168 = vmatpush1.xpose.msra.mxu0 0.0
  %6169 = vmatprep.subr.mxu0 0.0
  %6170 = vmatpush1.xpose.msra.mxu0 0.0
  %6171 = vmatprep.subr.mxu0 0.0
  %6172 = vmatpush1.xpose.msra.mxu0 0.0
  %6173 = vmatprep.subr.mxu0 0.0
  %6174 = vmatpush1.xpose.msra.mxu0 0.0
  %6175 = vmatprep.subr.mxu0 0.0
  %6176 = vmatpush1.xpose.msra.mxu0 0.0
  %6177 = vmatprep.subr.mxu0 0.0
  %6178 = vmatpush1.xpose.msra.mxu0 0.0
  %6179 = vmatprep.subr.mxu0 0.0
  %6180 = vmatpush1.xpose.msra.mxu0 0.0
  %6181 = vmatprep.subr.mxu0 0.0
  %6182 = vmatpush1.xpose.msra.mxu0 0.0
  %6183 = vmatprep.subr.mxu0 0.0
  %6184 = vmatpush1.xpose.msra.mxu0 0.0
  %6185 = vmatprep.subr.mxu0 0.0
  %6186 = vmatpush1.xpose.msra.mxu0 0.0
  %6187 = vmatprep.subr.mxu0 0.0
  %6188 = vmatpush1.xpose.msra.mxu0 0.0
  %6189 = vmatprep.subr.mxu0 0.0
  %6190 = vmatpush1.xpose.msra.mxu0 0.0
  %6191 = vmatprep.subr.mxu0 0.0
  %6192 = vmatpush1.xpose.msra.mxu0 0.0
  %6193 = vmatprep.subr.mxu0 0.0
  %6194 = vmatpush1.xpose.msra.mxu0 0.0
  %6195 = vmatprep.subr.mxu0 0.0
  %6196 = vmatpush1.xpose.msra.mxu0 0.0
  %6197 = vmatprep.subr.mxu0 0.0
  %6198 = vmatpush1.xpose.msra.mxu0 0.0
  %6199 = vmatprep.subr.mxu0 0.0
  %6200 = vmatpush1.xpose.msra.mxu0 0.0
  %6201 = vmatprep.subr.mxu0 0.0
  %6202 = vmatpush1.xpose.msra.mxu0 0.0
  %6203 = vmatprep.subr.mxu0 0.0
  %6204 = vmatpush1.xpose.msra.mxu0 0.0
  %6205 = vmatprep.subr.mxu0 0.0
  %6206 = vmatpush1.xpose.msra.mxu0 0.0
  %6207 = vmatprep.subr.mxu0 0.0
  %6208 = vmatpush1.xpose.msra.mxu0 0.0
  %6209 = vmatprep.subr.mxu0 0.0
  %6210 = vmatpush1.xpose.msra.mxu0 0.0
  %6211 = vmatprep.subr.mxu0 0.0
  %6212 = vmatpush1.xpose.msra.mxu0 0.0
  %6213 = vmatprep.subr.mxu0 0.0
  %6214 = vmatpush1.xpose.msra.mxu0 0.0
  %6215 = vmatprep.subr.mxu0 0.0
  %6216 = vmatpush1.xpose.msra.mxu0 0.0
  %6217 = vmatprep.subr.mxu0 0.0
  %6218 = vmatpush1.xpose.msra.mxu0 0.0
  %6219 = vmatprep.subr.mxu0 0.0
  %6220 = vmatpush1.xpose.msra.mxu0 0.0
  %6221 = vmatprep.subr.mxu0 0.0
  %6222 = vmatpush1.xpose.msra.mxu0 0.0
  %6223 = vmatprep.subr.mxu0 0.0
  %6224 = vmatpush1.xpose.msra.mxu0 0.0
  %6225 = vmatprep.subr.mxu0 0.0
  %6226 = vmatpush1.xpose.msra.mxu0 0.0
  %6227 = vmatprep.mubr.f32.mxu0 0.0
  %6228 = vmatmul.mubr.f32.gmra.mrb[0].mxu0 %v6152
  %v6229 = vpop.f32.mrb[0].mxu0
  %v6230 = vadd.f32 0.0, %v6229
  %v6231 = vpop.f32.mrb[0].mxu0
  %6232 = vmatprep.mubr.f32.mxu0 0.0
  %6233 = vmatmul.mubr.f32.gmra.mrb[0].mxu0 %v6155
  %v6234 = vpop.f32.mrb[0].mxu0
  %v6235 = vadd.f32 0.0, %v6234
  %v6236 = vpop.f32.mrb[0].mxu0
  %6237 = vdwg.mxu0
  %v6238 = vsel %vm692, %v6143, -inf
  %6239 = vmax.xlane.f32.xlu0 %v6238
  %v6240 = vpop.xlane.xlu0 %6239
  %v6241 = vsel %vm692, %v6148, -inf
  %6242 = vmax.xlane.f32.xlu0 %v6241
  %v6243 = vpop.xlane.xlu0 %6242
  %v6244 = vsub.f32 %v6143, %v6240
  %v6245 = vsub.f32 %v6148, %v6243
  %v6246 = vmul.f32 %v6244, 1.442695
  %v6247 = vpow.pop %v6246
  %v6248 = vmul.f32 %v6245, 1.442695
  %v6249 = vpow.pop %v6248
  %v6250 = vsel %vm692, %v6247, 0.0
  %6251 = vadd.xlane.f32.xlu0 %v6250
  %v6252 = vpop.xlane.xlu0 %6251
  %v6253 = vsel %vm692, %v6249, 0.0
  %6254 = vadd.xlane.f32.xlu0 %v6253
  %v6255 = vpop.xlane.xlu0 %6254
  %v6256 = vrcp.pop %v6252
  %v6257 = vrcp.pop %v6255
  %v6258 = vmul.f32 %v6247, %v6256
  %v6259 = vmul.f32 %v6249, %v6257
  %v6260 = vsel %vm692, %v6230, -inf
  %6261 = vmax.xlane.f32.xlu0 %v6260
  %v6262 = vpop.xlane.xlu0 %6261
  %v6263 = vsel %vm692, %v6235, -inf
  %6264 = vmax.xlane.f32.xlu0 %v6263
  %v6265 = vpop.xlane.xlu0 %6264
  %v6266 = vsub.f32 %v6230, %v6262
  %v6267 = vsub.f32 %v6235, %v6265
  %v6268 = vmul.f32 %v6266, 1.442695
  %v6269 = vpow.pop %v6268
  %v6270 = vmul.f32 %v6267, 1.442695
  %v6271 = vpow.pop %v6270
  %v6272 = vsel %vm692, %v6269, 0.0
  %6273 = vadd.xlane.f32.xlu0 %v6272
  %v6274 = vpop.xlane.xlu0 %6273
  %v6275 = vsel %vm692, %v6271, 0.0
  %6276 = vadd.xlane.f32.xlu0 %v6275
  %v6277 = vpop.xlane.xlu0 %6276
  %v6278 = vrcp.pop %v6274
  %v6279 = vrcp.pop %v6277
  %v6280 = vmul.f32 %v6269, %v6278
  %v6281 = vmul.f32 %v6271, %v6279
  %v6283 = vsel %vm129, %v4518, 0
  %v6286 = vsel %vm129, %v4519, 0
  %6288 = vmatprep.subr.mxu0 0.0
  %6289 = vmatpush1.xpose.msra.mxu0 %v6071
  %6290 = vmatprep.subr.mxu0 0.0
  %6291 = vmatpush1.xpose.msra.mxu0 %v6074
  %6292 = vmatprep.subr.mxu0 0.0
  %6293 = vmatpush1.xpose.msra.mxu0 0.0
  %6294 = vmatprep.subr.mxu0 0.0
  %6295 = vmatpush1.xpose.msra.mxu0 0.0
  %6296 = vmatprep.subr.mxu0 0.0
  %6297 = vmatpush1.xpose.msra.mxu0 0.0
  %6298 = vmatprep.subr.mxu0 0.0
  %6299 = vmatpush1.xpose.msra.mxu0 0.0
  %6300 = vmatprep.subr.mxu0 0.0
  %6301 = vmatpush1.xpose.msra.mxu0 0.0
  %6302 = vmatprep.subr.mxu0 0.0
  %6303 = vmatpush1.xpose.msra.mxu0 0.0
  %6304 = vmatprep.subr.mxu0 0.0
  %6305 = vmatpush1.xpose.msra.mxu0 0.0
  %6306 = vmatprep.subr.mxu0 0.0
  %6307 = vmatpush1.xpose.msra.mxu0 0.0
  %6308 = vmatprep.subr.mxu0 0.0
  %6309 = vmatpush1.xpose.msra.mxu0 0.0
  %6310 = vmatprep.subr.mxu0 0.0
  %6311 = vmatpush1.xpose.msra.mxu0 0.0
  %6312 = vmatprep.subr.mxu0 0.0
  %6313 = vmatpush1.xpose.msra.mxu0 0.0
  %6314 = vmatprep.subr.mxu0 0.0
  %6315 = vmatpush1.xpose.msra.mxu0 0.0
  %6316 = vmatprep.subr.mxu0 0.0
  %6317 = vmatpush1.xpose.msra.mxu0 0.0
  %6318 = vmatprep.subr.mxu0 0.0
  %6319 = vmatpush1.xpose.msra.mxu0 0.0
  %6320 = vmatprep.subr.mxu0 0.0
  %6321 = vmatpush1.xpose.msra.mxu0 0.0
  %6322 = vmatprep.subr.mxu0 0.0
  %6323 = vmatpush1.xpose.msra.mxu0 0.0
  %6324 = vmatprep.subr.mxu0 0.0
  %6325 = vmatpush1.xpose.msra.mxu0 0.0
  %6326 = vmatprep.subr.mxu0 0.0
  %6327 = vmatpush1.xpose.msra.mxu0 0.0
  %6328 = vmatprep.subr.mxu0 0.0
  %6329 = vmatpush1.xpose.msra.mxu0 0.0
  %6330 = vmatprep.subr.mxu0 0.0
  %6331 = vmatpush1.xpose.msra.mxu0 0.0
  %6332 = vmatprep.subr.mxu0 0.0
  %6333 = vmatpush1.xpose.msra.mxu0 0.0
  %6334 = vmatprep.subr.mxu0 0.0
  %6335 = vmatpush1.xpose.msra.mxu0 0.0
  %6336 = vmatprep.subr.mxu0 0.0
  %6337 = vmatpush1.xpose.msra.mxu0 0.0
  %6338 = vmatprep.subr.mxu0 0.0
  %6339 = vmatpush1.xpose.msra.mxu0 0.0
  %6340 = vmatprep.subr.mxu0 0.0
  %6341 = vmatpush1.xpose.msra.mxu0 0.0
  %6342 = vmatprep.subr.mxu0 0.0
  %6343 = vmatpush1.xpose.msra.mxu0 0.0
  %6344 = vmatprep.subr.mxu0 0.0
  %6345 = vmatpush1.xpose.msra.mxu0 0.0
  %6346 = vmatprep.subr.mxu0 0.0
  %6347 = vmatpush1.xpose.msra.mxu0 0.0
  %6348 = vmatprep.subr.mxu0 0.0
  %6349 = vmatpush1.xpose.msra.mxu0 0.0
  %6350 = vmatprep.subr.mxu0 0.0
  %6351 = vmatpush1.xpose.msra.mxu0 0.0
  %6352 = vmatprep.mubr.f32.mxu0 0.0
  %6353 = vmatmul.mubr.f32.gmra.mrb[0].mxu0 %v6283
  %v6354 = vpop.f32.mrb[0].mxu0
  %v6355 = vadd.f32 0.0, %v6354
  %v6356 = vpop.f32.mrb[0].mxu0
  %6357 = vmatprep.mubr.f32.mxu0 0.0
  %6358 = vmatmul.mubr.f32.gmra.mrb[0].mxu0 %v6286
  %v6359 = vpop.f32.mrb[0].mxu0
  %v6360 = vadd.f32 0.0, %v6359
  %v6361 = vpop.f32.mrb[0].mxu0
  %6362 = vdwg.mxu0
  %v6364 = vsel %vm129, %v4522, 0
  %v6367 = vsel %vm129, %v4523, 0
  %6369 = vmatprep.subr.mxu0 0.0
  %6370 = vmatpush1.xpose.msra.mxu0 %v6158
  %6371 = vmatprep.subr.mxu0 0.0
  %6372 = vmatpush1.xpose.msra.mxu0 %v6161
  %6373 = vmatprep.subr.mxu0 0.0
  %6374 = vmatpush1.xpose.msra.mxu0 0.0
  %6375 = vmatprep.subr.mxu0 0.0
  %6376 = vmatpush1.xpose.msra.mxu0 0.0
  %6377 = vmatprep.subr.mxu0 0.0
  %6378 = vmatpush1.xpose.msra.mxu0 0.0
  %6379 = vmatprep.subr.mxu0 0.0
  %6380 = vmatpush1.xpose.msra.mxu0 0.0
  %6381 = vmatprep.subr.mxu0 0.0
  %6382 = vmatpush1.xpose.msra.mxu0 0.0
  %6383 = vmatprep.subr.mxu0 0.0
  %6384 = vmatpush1.xpose.msra.mxu0 0.0
  %6385 = vmatprep.subr.mxu0 0.0
  %6386 = vmatpush1.xpose.msra.mxu0 0.0
  %6387 = vmatprep.subr.mxu0 0.0
  %6388 = vmatpush1.xpose.msra.mxu0 0.0
  %6389 = vmatprep.subr.mxu0 0.0
  %6390 = vmatpush1.xpose.msra.mxu0 0.0
  %6391 = vmatprep.subr.mxu0 0.0
  %6392 = vmatpush1.xpose.msra.mxu0 0.0
  %6393 = vmatprep.subr.mxu0 0.0
  %6394 = vmatpush1.xpose.msra.mxu0 0.0
  %6395 = vmatprep.subr.mxu0 0.0
  %6396 = vmatpush1.xpose.msra.mxu0 0.0
  %6397 = vmatprep.subr.mxu0 0.0
  %6398 = vmatpush1.xpose.msra.mxu0 0.0
  %6399 = vmatprep.subr.mxu0 0.0
  %6400 = vmatpush1.xpose.msra.mxu0 0.0
  %6401 = vmatprep.subr.mxu0 0.0
  %6402 = vmatpush1.xpose.msra.mxu0 0.0
  %6403 = vmatprep.subr.mxu0 0.0
  %6404 = vmatpush1.xpose.msra.mxu0 0.0
  %6405 = vmatprep.subr.mxu0 0.0
  %6406 = vmatpush1.xpose.msra.mxu0 0.0
  %6407 = vmatprep.subr.mxu0 0.0
  %6408 = vmatpush1.xpose.msra.mxu0 0.0
  %6409 = vmatprep.subr.mxu0 0.0
  %6410 = vmatpush1.xpose.msra.mxu0 0.0
  %6411 = vmatprep.subr.mxu0 0.0
  %6412 = vmatpush1.xpose.msra.mxu0 0.0
  %6413 = vmatprep.subr.mxu0 0.0
  %6414 = vmatpush1.xpose.msra.mxu0 0.0
  %6415 = vmatprep.subr.mxu0 0.0
  %6416 = vmatpush1.xpose.msra.mxu0 0.0
  %6417 = vmatprep.subr.mxu0 0.0
  %6418 = vmatpush1.xpose.msra.mxu0 0.0
  %6419 = vmatprep.subr.mxu0 0.0
  %6420 = vmatpush1.xpose.msra.mxu0 0.0
  %6421 = vmatprep.subr.mxu0 0.0
  %6422 = vmatpush1.xpose.msra.mxu0 0.0
  %6423 = vmatprep.subr.mxu0 0.0
  %6424 = vmatpush1.xpose.msra.mxu0 0.0
  %6425 = vmatprep.subr.mxu0 0.0
  %6426 = vmatpush1.xpose.msra.mxu0 0.0
  %6427 = vmatprep.subr.mxu0 0.0
  %6428 = vmatpush1.xpose.msra.mxu0 0.0
  %6429 = vmatprep.subr.mxu0 0.0
  %6430 = vmatpush1.xpose.msra.mxu0 0.0
  %6431 = vmatprep.subr.mxu0 0.0
  %6432 = vmatpush1.xpose.msra.mxu0 0.0
  %6433 = vmatprep.mubr.f32.mxu0 0.0
  %6434 = vmatmul.mubr.f32.gmra.mrb[0].mxu0 %v6364
  %v6435 = vpop.f32.mrb[0].mxu0
  %v6436 = vadd.f32 0.0, %v6435
  %v6437 = vpop.f32.mrb[0].mxu0
  %6438 = vmatprep.mubr.f32.mxu0 0.0
  %6439 = vmatmul.mubr.f32.gmra.mrb[0].mxu0 %v6367
  %v6440 = vpop.f32.mrb[0].mxu0
  %v6441 = vadd.f32 0.0, %v6440
  %v6442 = vpop.f32.mrb[0].mxu0
  %6443 = vdwg.mxu0
  %v6444 = vsel %vm692, %v6355, -inf
  %6445 = vmax.xlane.f32.xlu0 %v6444
  %v6446 = vpop.xlane.xlu0 %6445
  %v6447 = vsel %vm692, %v6360, -inf
  %6448 = vmax.xlane.f32.xlu0 %v6447
  %v6449 = vpop.xlane.xlu0 %6448
  %v6450 = vsub.f32 %v6355, %v6446
  %v6451 = vsub.f32 %v6360, %v6449
  %v6452 = vmul.f32 %v6450, 1.442695
  %v6453 = vpow.pop %v6452
  %v6454 = vmul.f32 %v6451, 1.442695
  %v6455 = vpow.pop %v6454
  %v6456 = vsel %vm692, %v6453, 0.0
  %6457 = vadd.xlane.f32.xlu0 %v6456
  %v6458 = vpop.xlane.xlu0 %6457
  %v6459 = vsel %vm692, %v6455, 0.0
  %6460 = vadd.xlane.f32.xlu0 %v6459
  %v6461 = vpop.xlane.xlu0 %6460
  %v6462 = vrcp.pop %v6458
  %v6463 = vrcp.pop %v6461
  %v6464 = vmul.f32 %v6453, %v6462
  %v6465 = vmul.f32 %v6455, %v6463
  %v6467 = vsel %vm692, %v6464, 0
  %v6470 = vsel %vm692, %v6465, 0
  %6472 = vmatprep.subr.mxu0 0.0
  %6473 = vmatpush1.msra.mxu0 %v4554
  %6474 = vmatprep.subr.mxu0 0.0
  %6475 = vmatpush1.msra.mxu0 %v4555
  %6476 = vmatprep.subr.mxu0 0.0
  %6477 = vmatpush1.msra.mxu0 0.0
  %6478 = vmatprep.subr.mxu0 0.0
  %6479 = vmatpush1.msra.mxu0 0.0
  %6480 = vmatprep.subr.mxu0 0.0
  %6481 = vmatpush1.msra.mxu0 0.0
  %6482 = vmatprep.subr.mxu0 0.0
  %6483 = vmatpush1.msra.mxu0 0.0
  %6484 = vmatprep.subr.mxu0 0.0
  %6485 = vmatpush1.msra.mxu0 0.0
  %6486 = vmatprep.subr.mxu0 0.0
  %6487 = vmatpush1.msra.mxu0 0.0
  %6488 = vmatprep.subr.mxu0 0.0
  %6489 = vmatpush1.msra.mxu0 0.0
  %6490 = vmatprep.subr.mxu0 0.0
  %6491 = vmatpush1.msra.mxu0 0.0
  %6492 = vmatprep.subr.mxu0 0.0
  %6493 = vmatpush1.msra.mxu0 0.0
  %6494 = vmatprep.subr.mxu0 0.0
  %6495 = vmatpush1.msra.mxu0 0.0
  %6496 = vmatprep.subr.mxu0 0.0
  %6497 = vmatpush1.msra.mxu0 0.0
  %6498 = vmatprep.subr.mxu0 0.0
  %6499 = vmatpush1.msra.mxu0 0.0
  %6500 = vmatprep.subr.mxu0 0.0
  %6501 = vmatpush1.msra.mxu0 0.0
  %6502 = vmatprep.subr.mxu0 0.0
  %6503 = vmatpush1.msra.mxu0 0.0
  %6504 = vmatprep.subr.mxu0 0.0
  %6505 = vmatpush1.msra.mxu0 0.0
  %6506 = vmatprep.subr.mxu0 0.0
  %6507 = vmatpush1.msra.mxu0 0.0
  %6508 = vmatprep.subr.mxu0 0.0
  %6509 = vmatpush1.msra.mxu0 0.0
  %6510 = vmatprep.subr.mxu0 0.0
  %6511 = vmatpush1.msra.mxu0 0.0
  %6512 = vmatprep.subr.mxu0 0.0
  %6513 = vmatpush1.msra.mxu0 0.0
  %6514 = vmatprep.subr.mxu0 0.0
  %6515 = vmatpush1.msra.mxu0 0.0
  %6516 = vmatprep.subr.mxu0 0.0
  %6517 = vmatpush1.msra.mxu0 0.0
  %6518 = vmatprep.subr.mxu0 0.0
  %6519 = vmatpush1.msra.mxu0 0.0
  %6520 = vmatprep.subr.mxu0 0.0
  %6521 = vmatpush1.msra.mxu0 0.0
  %6522 = vmatprep.subr.mxu0 0.0
  %6523 = vmatpush1.msra.mxu0 0.0
  %6524 = vmatprep.subr.mxu0 0.0
  %6525 = vmatpush1.msra.mxu0 0.0
  %6526 = vmatprep.subr.mxu0 0.0
  %6527 = vmatpush1.msra.mxu0 0.0
  %6528 = vmatprep.subr.mxu0 0.0
  %6529 = vmatpush1.msra.mxu0 0.0
  %6530 = vmatprep.subr.mxu0 0.0
  %6531 = vmatpush1.msra.mxu0 0.0
  %6532 = vmatprep.subr.mxu0 0.0
  %6533 = vmatpush1.msra.mxu0 0.0
  %6534 = vmatprep.subr.mxu0 0.0
  %6535 = vmatpush1.msra.mxu0 0.0
  %6536 = vmatprep.mubr.f32.mxu0 0.0
  %6537 = vmatmul.mubr.f32.gmra.mrb[0].mxu0 %v6467
  %v6538 = vpop.f32.mrb[0].mxu0
  %v6539 = vadd.f32 0.0, %v6538
  %v6540 = vpop.f32.mrb[0].mxu0
  %6541 = vmatprep.mubr.f32.mxu0 0.0
  %6542 = vmatmul.mubr.f32.gmra.mrb[0].mxu0 %v6470
  %v6543 = vpop.f32.mrb[0].mxu0
  %v6544 = vadd.f32 0.0, %v6543
  %v6545 = vpop.f32.mrb[0].mxu0
  %6546 = vdwg.mxu0
  %v6548 = vsel %vm692, %v6258, 0
  %v6551 = vsel %vm692, %v6259, 0
  %6553 = vmatprep.subr.mxu0 0.0
  %6554 = vmatpush1.msra.mxu0 %v4546
  %6555 = vmatprep.subr.mxu0 0.0
  %6556 = vmatpush1.msra.mxu0 %v4547
  %6557 = vmatprep.subr.mxu0 0.0
  %6558 = vmatpush1.msra.mxu0 0.0
  %6559 = vmatprep.subr.mxu0 0.0
  %6560 = vmatpush1.msra.mxu0 0.0
  %6561 = vmatprep.subr.mxu0 0.0
  %6562 = vmatpush1.msra.mxu0 0.0
  %6563 = vmatprep.subr.mxu0 0.0
  %6564 = vmatpush1.msra.mxu0 0.0
  %6565 = vmatprep.subr.mxu0 0.0
  %6566 = vmatpush1.msra.mxu0 0.0
  %6567 = vmatprep.subr.mxu0 0.0
  %6568 = vmatpush1.msra.mxu0 0.0
  %6569 = vmatprep.subr.mxu0 0.0
  %6570 = vmatpush1.msra.mxu0 0.0
  %6571 = vmatprep.subr.mxu0 0.0
  %6572 = vmatpush1.msra.mxu0 0.0
  %6573 = vmatprep.subr.mxu0 0.0
  %6574 = vmatpush1.msra.mxu0 0.0
  %6575 = vmatprep.subr.mxu0 0.0
  %6576 = vmatpush1.msra.mxu0 0.0
  %6577 = vmatprep.subr.mxu0 0.0
  %6578 = vmatpush1.msra.mxu0 0.0
  %6579 = vmatprep.subr.mxu0 0.0
  %6580 = vmatpush1.msra.mxu0 0.0
  %6581 = vmatprep.subr.mxu0 0.0
  %6582 = vmatpush1.msra.mxu0 0.0
  %6583 = vmatprep.subr.mxu0 0.0
  %6584 = vmatpush1.msra.mxu0 0.0
  %6585 = vmatprep.subr.mxu0 0.0
  %6586 = vmatpush1.msra.mxu0 0.0
  %6587 = vmatprep.subr.mxu0 0.0
  %6588 = vmatpush1.msra.mxu0 0.0
  %6589 = vmatprep.subr.mxu0 0.0
  %6590 = vmatpush1.msra.mxu0 0.0
  %6591 = vmatprep.subr.mxu0 0.0
  %6592 = vmatpush1.msra.mxu0 0.0
  %6593 = vmatprep.subr.mxu0 0.0
  %6594 = vmatpush1.msra.mxu0 0.0
  %6595 = vmatprep.subr.mxu0 0.0
  %6596 = vmatpush1.msra.mxu0 0.0
  %6597 = vmatprep.subr.mxu0 0.0
  %6598 = vmatpush1.msra.mxu0 0.0
  %6599 = vmatprep.subr.mxu0 0.0
  %6600 = vmatpush1.msra.mxu0 0.0
  %6601 = vmatprep.subr.mxu0 0.0
  %6602 = vmatpush1.msra.mxu0 0.0
  %6603 = vmatprep.subr.mxu0 0.0
  %6604 = vmatpush1.msra.mxu0 0.0
  %6605 = vmatprep.subr.mxu0 0.0
  %6606 = vmatpush1.msra.mxu0 0.0
  %6607 = vmatprep.subr.mxu0 0.0
  %6608 = vmatpush1.msra.mxu0 0.0
  %6609 = vmatprep.subr.mxu0 0.0
  %6610 = vmatpush1.msra.mxu0 0.0
  %6611 = vmatprep.subr.mxu0 0.0
  %6612 = vmatpush1.msra.mxu0 0.0
  %6613 = vmatprep.subr.mxu0 0.0
  %6614 = vmatpush1.msra.mxu0 0.0
  %6615 = vmatprep.subr.mxu0 0.0
  %6616 = vmatpush1.msra.mxu0 0.0
  %6617 = vmatprep.mubr.f32.mxu0 0.0
  %6618 = vmatmul.mubr.f32.gmra.mrb[0].mxu0 %v6548
  %v6619 = vpop.f32.mrb[0].mxu0
  %v6620 = vadd.f32 %v6539, %v6619
  %v6621 = vpop.f32.mrb[0].mxu0
  %6622 = vmatprep.mubr.f32.mxu0 0.0
  %6623 = vmatmul.mubr.f32.gmra.mrb[0].mxu0 %v6551
  %v6624 = vpop.f32.mrb[0].mxu0
  %v6625 = vadd.f32 %v6544, %v6624
  %v6626 = vpop.f32.mrb[0].mxu0
  %6627 = vdwg.mxu0
  %v6628 = vsel %vm692, %v6436, -inf
  %6629 = vmax.xlane.f32.xlu0 %v6628
  %v6630 = vpop.xlane.xlu0 %6629
  %v6631 = vsel %vm692, %v6441, -inf
  %6632 = vmax.xlane.f32.xlu0 %v6631
  %v6633 = vpop.xlane.xlu0 %6632
  %v6634 = vsub.f32 %v6436, %v6630
  %v6635 = vsub.f32 %v6441, %v6633
  %v6636 = vmul.f32 %v6634, 1.442695
  %v6637 = vpow.pop %v6636
  %v6638 = vmul.f32 %v6635, 1.442695
  %v6639 = vpow.pop %v6638
  %v6640 = vsel %vm692, %v6637, 0.0
  %6641 = vadd.xlane.f32.xlu0 %v6640
  %v6642 = vpop.xlane.xlu0 %6641
  %v6643 = vsel %vm692, %v6639, 0.0
  %6644 = vadd.xlane.f32.xlu0 %v6643
  %v6645 = vpop.xlane.xlu0 %6644
  %v6646 = vrcp.pop %v6642
  %v6647 = vrcp.pop %v6645
  %v6648 = vmul.f32 %v6637, %v6646
  %v6649 = vmul.f32 %v6639, %v6647
  %v6651 = vsel %vm692, %v6648, 0
  %v6654 = vsel %vm692, %v6649, 0
  %6656 = vmatprep.subr.mxu0 0.0
  %6657 = vmatpush1.msra.mxu0 %v4550
  %6658 = vmatprep.subr.mxu0 0.0
  %6659 = vmatpush1.msra.mxu0 %v4551
  %6660 = vmatprep.subr.mxu0 0.0
  %6661 = vmatpush1.msra.mxu0 0.0
  %6662 = vmatprep.subr.mxu0 0.0
  %6663 = vmatpush1.msra.mxu0 0.0
  %6664 = vmatprep.subr.mxu0 0.0
  %6665 = vmatpush1.msra.mxu0 0.0
  %6666 = vmatprep.subr.mxu0 0.0
  %6667 = vmatpush1.msra.mxu0 0.0
  %6668 = vmatprep.subr.mxu0 0.0
  %6669 = vmatpush1.msra.mxu0 0.0
  %6670 = vmatprep.subr.mxu0 0.0
  %6671 = vmatpush1.msra.mxu0 0.0
  %6672 = vmatprep.subr.mxu0 0.0
  %6673 = vmatpush1.msra.mxu0 0.0
  %6674 = vmatprep.subr.mxu0 0.0
  %6675 = vmatpush1.msra.mxu0 0.0
  %6676 = vmatprep.subr.mxu0 0.0
  %6677 = vmatpush1.msra.mxu0 0.0
  %6678 = vmatprep.subr.mxu0 0.0
  %6679 = vmatpush1.msra.mxu0 0.0
  %6680 = vmatprep.subr.mxu0 0.0
  %6681 = vmatpush1.msra.mxu0 0.0
  %6682 = vmatprep.subr.mxu0 0.0
  %6683 = vmatpush1.msra.mxu0 0.0
  %6684 = vmatprep.subr.mxu0 0.0
  %6685 = vmatpush1.msra.mxu0 0.0
  %6686 = vmatprep.subr.mxu0 0.0
  %6687 = vmatpush1.msra.mxu0 0.0
  %6688 = vmatprep.subr.mxu0 0.0
  %6689 = vmatpush1.msra.mxu0 0.0
  %6690 = vmatprep.subr.mxu0 0.0
  %6691 = vmatpush1.msra.mxu0 0.0
  %6692 = vmatprep.subr.mxu0 0.0
  %6693 = vmatpush1.msra.mxu0 0.0
  %6694 = vmatprep.subr.mxu0 0.0
  %6695 = vmatpush1.msra.mxu0 0.0
  %6696 = vmatprep.subr.mxu0 0.0
  %6697 = vmatpush1.msra.mxu0 0.0
  %6698 = vmatprep.subr.mxu0 0.0
  %6699 = vmatpush1.msra.mxu0 0.0
  %6700 = vmatprep.subr.mxu0 0.0
  %6701 = vmatpush1.msra.mxu0 0.0
  %6702 = vmatprep.subr.mxu0 0.0
  %6703 = vmatpush1.msra.mxu0 0.0
  %6704 = vmatprep.subr.mxu0 0.0
  %6705 = vmatpush1.msra.mxu0 0.0
  %6706 = vmatprep.subr.mxu0 0.0
  %6707 = vmatpush1.msra.mxu0 0.0
  %6708 = vmatprep.subr.mxu0 0.0
  %6709 = vmatpush1.msra.mxu0 0.0
  %6710 = vmatprep.subr.mxu0 0.0
  %6711 = vmatpush1.msra.mxu0 0.0
  %6712 = vmatprep.subr.mxu0 0.0
  %6713 = vmatpush1.msra.mxu0 0.0
  %6714 = vmatprep.subr.mxu0 0.0
  %6715 = vmatpush1.msra.mxu0 0.0
  %6716 = vmatprep.subr.mxu0 0.0
  %6717 = vmatpush1.msra.mxu0 0.0
  %6718 = vmatprep.subr.mxu0 0.0
  %6719 = vmatpush1.msra.mxu0 0.0
  %6720 = vmatprep.mubr.f32.mxu0 0.0
  %6721 = vmatmul.mubr.f32.gmra.mrb[0].mxu0 %v6651
  %v6722 = vpop.f32.mrb[0].mxu0
  %v6723 = vadd.f32 0.0, %v6722
  %v6724 = vpop.f32.mrb[0].mxu0
  %6725 = vmatprep.mubr.f32.mxu0 0.0
  %6726 = vmatmul.mubr.f32.gmra.mrb[0].mxu0 %v6654
  %v6727 = vpop.f32.mrb[0].mxu0
  %v6728 = vadd.f32 0.0, %v6727
  %v6729 = vpop.f32.mrb[0].mxu0
  %6730 = vdwg.mxu0
  %v6732 = vsel %vm692, %v6280, 0
  %v6735 = vsel %vm692, %v6281, 0
  %6737 = vmatprep.subr.mxu0 0.0
  %6738 = vmatpush1.msra.mxu0 %v4542
  %6739 = vmatprep.subr.mxu0 0.0
  %6740 = vmatpush1.msra.mxu0 %v4543
  %6741 = vmatprep.subr.mxu0 0.0
  %6742 = vmatpush1.msra.mxu0 0.0
  %6743 = vmatprep.subr.mxu0 0.0
  %6744 = vmatpush1.msra.mxu0 0.0
  %6745 = vmatprep.subr.mxu0 0.0
  %6746 = vmatpush1.msra.mxu0 0.0
  %6747 = vmatprep.subr.mxu0 0.0
  %6748 = vmatpush1.msra.mxu0 0.0
  %6749 = vmatprep.subr.mxu0 0.0
  %6750 = vmatpush1.msra.mxu0 0.0
  %6751 = vmatprep.subr.mxu0 0.0
  %6752 = vmatpush1.msra.mxu0 0.0
  %6753 = vmatprep.subr.mxu0 0.0
  %6754 = vmatpush1.msra.mxu0 0.0
  %6755 = vmatprep.subr.mxu0 0.0
  %6756 = vmatpush1.msra.mxu0 0.0
  %6757 = vmatprep.subr.mxu0 0.0
  %6758 = vmatpush1.msra.mxu0 0.0
  %6759 = vmatprep.subr.mxu0 0.0
  %6760 = vmatpush1.msra.mxu0 0.0
  %6761 = vmatprep.subr.mxu0 0.0
  %6762 = vmatpush1.msra.mxu0 0.0
  %6763 = vmatprep.subr.mxu0 0.0
  %6764 = vmatpush1.msra.mxu0 0.0
  %6765 = vmatprep.subr.mxu0 0.0
  %6766 = vmatpush1.msra.mxu0 0.0
  %6767 = vmatprep.subr.mxu0 0.0
  %6768 = vmatpush1.msra.mxu0 0.0
  %6769 = vmatprep.subr.mxu0 0.0
  %6770 = vmatpush1.msra.mxu0 0.0
  %6771 = vmatprep.subr.mxu0 0.0
  %6772 = vmatpush1.msra.mxu0 0.0
  %6773 = vmatprep.subr.mxu0 0.0
  %6774 = vmatpush1.msra.mxu0 0.0
  %6775 = vmatprep.subr.mxu0 0.0
  %6776 = vmatpush1.msra.mxu0 0.0
  %6777 = vmatprep.subr.mxu0 0.0
  %6778 = vmatpush1.msra.mxu0 0.0
  %6779 = vmatprep.subr.mxu0 0.0
  %6780 = vmatpush1.msra.mxu0 0.0
  %6781 = vmatprep.subr.mxu0 0.0
  %6782 = vmatpush1.msra.mxu0 0.0
  %6783 = vmatprep.subr.mxu0 0.0
  %6784 = vmatpush1.msra.mxu0 0.0
  %6785 = vmatprep.subr.mxu0 0.0
  %6786 = vmatpush1.msra.mxu0 0.0
  %6787 = vmatprep.subr.mxu0 0.0
  %6788 = vmatpush1.msra.mxu0 0.0
  %6789 = vmatprep.subr.mxu0 0.0
  %6790 = vmatpush1.msra.mxu0 0.0
  %6791 = vmatprep.subr.mxu0 0.0
  %6792 = vmatpush1.msra.mxu0 0.0
  %6793 = vmatprep.subr.mxu0 0.0
  %6794 = vmatpush1.msra.mxu0 0.0
  %6795 = vmatprep.subr.mxu0 0.0
  %6796 = vmatpush1.msra.mxu0 0.0
  %6797 = vmatprep.subr.mxu0 0.0
  %6798 = vmatpush1.msra.mxu0 0.0
  %6799 = vmatprep.subr.mxu0 0.0
  %6800 = vmatpush1.msra.mxu0 0.0
  %6801 = vmatprep.mubr.f32.mxu0 0.0
  %6802 = vmatmul.mubr.f32.gmra.mrb[0].mxu0 %v6732
  %v6803 = vpop.f32.mrb[0].mxu0
  %v6804 = vadd.f32 %v6723, %v6803
  %v6805 = vpop.f32.mrb[0].mxu0
  %6806 = vmatprep.mubr.f32.mxu0 0.0
  %6807 = vmatmul.mubr.f32.gmra.mrb[0].mxu0 %v6735
  %v6808 = vpop.f32.mrb[0].mxu0
  %v6809 = vadd.f32 %v6728, %v6808
  %v6810 = vpop.f32.mrb[0].mxu0
  %6811 = vdwg.mxu0
  %v6813 = vsel %vm129, %v4526, 0
  %v6816 = vsel %vm129, %v4527, 0
  %6818 = vmatprep.subr.mxu0 0.0
  %6819 = vmatpush1.xpose.msra.mxu0 %v6071
  %6820 = vmatprep.subr.mxu0 0.0
  %6821 = vmatpush1.xpose.msra.mxu0 %v6074
  %6822 = vmatprep.subr.mxu0 0.0
  %6823 = vmatpush1.xpose.msra.mxu0 0.0
  %6824 = vmatprep.subr.mxu0 0.0
  %6825 = vmatpush1.xpose.msra.mxu0 0.0
  %6826 = vmatprep.subr.mxu0 0.0
  %6827 = vmatpush1.xpose.msra.mxu0 0.0
  %6828 = vmatprep.subr.mxu0 0.0
  %6829 = vmatpush1.xpose.msra.mxu0 0.0
  %6830 = vmatprep.subr.mxu0 0.0
  %6831 = vmatpush1.xpose.msra.mxu0 0.0
  %6832 = vmatprep.subr.mxu0 0.0
  %6833 = vmatpush1.xpose.msra.mxu0 0.0
  %6834 = vmatprep.subr.mxu0 0.0
  %6835 = vmatpush1.xpose.msra.mxu0 0.0
  %6836 = vmatprep.subr.mxu0 0.0
  %6837 = vmatpush1.xpose.msra.mxu0 0.0
  %6838 = vmatprep.subr.mxu0 0.0
  %6839 = vmatpush1.xpose.msra.mxu0 0.0
  %6840 = vmatprep.subr.mxu0 0.0
  %6841 = vmatpush1.xpose.msra.mxu0 0.0
  %6842 = vmatprep.subr.mxu0 0.0
  %6843 = vmatpush1.xpose.msra.mxu0 0.0
  %6844 = vmatprep.subr.mxu0 0.0
  %6845 = vmatpush1.xpose.msra.mxu0 0.0
  %6846 = vmatprep.subr.mxu0 0.0
  %6847 = vmatpush1.xpose.msra.mxu0 0.0
  %6848 = vmatprep.subr.mxu0 0.0
  %6849 = vmatpush1.xpose.msra.mxu0 0.0
  %6850 = vmatprep.subr.mxu0 0.0
  %6851 = vmatpush1.xpose.msra.mxu0 0.0
  %6852 = vmatprep.subr.mxu0 0.0
  %6853 = vmatpush1.xpose.msra.mxu0 0.0
  %6854 = vmatprep.subr.mxu0 0.0
  %6855 = vmatpush1.xpose.msra.mxu0 0.0
  %6856 = vmatprep.subr.mxu0 0.0
  %6857 = vmatpush1.xpose.msra.mxu0 0.0
  %6858 = vmatprep.subr.mxu0 0.0
  %6859 = vmatpush1.xpose.msra.mxu0 0.0
  %6860 = vmatprep.subr.mxu0 0.0
  %6861 = vmatpush1.xpose.msra.mxu0 0.0
  %6862 = vmatprep.subr.mxu0 0.0
  %6863 = vmatpush1.xpose.msra.mxu0 0.0
  %6864 = vmatprep.subr.mxu0 0.0
  %6865 = vmatpush1.xpose.msra.mxu0 0.0
  %6866 = vmatprep.subr.mxu0 0.0
  %6867 = vmatpush1.xpose.msra.mxu0 0.0
  %6868 = vmatprep.subr.mxu0 0.0
  %6869 = vmatpush1.xpose.msra.mxu0 0.0
  %6870 = vmatprep.subr.mxu0 0.0
  %6871 = vmatpush1.xpose.msra.mxu0 0.0
  %6872 = vmatprep.subr.mxu0 0.0
  %6873 = vmatpush1.xpose.msra.mxu0 0.0
  %6874 = vmatprep.subr.mxu0 0.0
  %6875 = vmatpush1.xpose.msra.mxu0 0.0
  %6876 = vmatprep.subr.mxu0 0.0
  %6877 = vmatpush1.xpose.msra.mxu0 0.0
  %6878 = vmatprep.subr.mxu0 0.0
  %6879 = vmatpush1.xpose.msra.mxu0 0.0
  %6880 = vmatprep.subr.mxu0 0.0
  %6881 = vmatpush1.xpose.msra.mxu0 0.0
  %6882 = vmatprep.mubr.f32.mxu0 0.0
  %6883 = vmatmul.mubr.f32.gmra.mrb[0].mxu0 %v6813
  %v6884 = vpop.f32.mrb[0].mxu0
  %v6885 = vadd.f32 0.0, %v6884
  %v6886 = vpop.f32.mrb[0].mxu0
  %6887 = vmatprep.mubr.f32.mxu0 0.0
  %6888 = vmatmul.mubr.f32.gmra.mrb[0].mxu0 %v6816
  %v6889 = vpop.f32.mrb[0].mxu0
  %v6890 = vadd.f32 0.0, %v6889
  %v6891 = vpop.f32.mrb[0].mxu0
  %6892 = vdwg.mxu0
  %v6894 = vsel %vm129, %v4530, 0
  %v6897 = vsel %vm129, %v4531, 0
  %6899 = vmatprep.subr.mxu0 0.0
  %6900 = vmatpush1.xpose.msra.mxu0 %v6158
  %6901 = vmatprep.subr.mxu0 0.0
  %6902 = vmatpush1.xpose.msra.mxu0 %v6161
  %6903 = vmatprep.subr.mxu0 0.0
  %6904 = vmatpush1.xpose.msra.mxu0 0.0
  %6905 = vmatprep.subr.mxu0 0.0
  %6906 = vmatpush1.xpose.msra.mxu0 0.0
  %6907 = vmatprep.subr.mxu0 0.0
  %6908 = vmatpush1.xpose.msra.mxu0 0.0
  %6909 = vmatprep.subr.mxu0 0.0
  %6910 = vmatpush1.xpose.msra.mxu0 0.0
  %6911 = vmatprep.subr.mxu0 0.0
  %6912 = vmatpush1.xpose.msra.mxu0 0.0
  %6913 = vmatprep.subr.mxu0 0.0
  %6914 = vmatpush1.xpose.msra.mxu0 0.0
  %6915 = vmatprep.subr.mxu0 0.0
  %6916 = vmatpush1.xpose.msra.mxu0 0.0
  %6917 = vmatprep.subr.mxu0 0.0
  %6918 = vmatpush1.xpose.msra.mxu0 0.0
  %6919 = vmatprep.subr.mxu0 0.0
  %6920 = vmatpush1.xpose.msra.mxu0 0.0
  %6921 = vmatprep.subr.mxu0 0.0
  %6922 = vmatpush1.xpose.msra.mxu0 0.0
  %6923 = vmatprep.subr.mxu0 0.0
  %6924 = vmatpush1.xpose.msra.mxu0 0.0
  %6925 = vmatprep.subr.mxu0 0.0
  %6926 = vmatpush1.xpose.msra.mxu0 0.0
  %6927 = vmatprep.subr.mxu0 0.0
  %6928 = vmatpush1.xpose.msra.mxu0 0.0
  %6929 = vmatprep.subr.mxu0 0.0
  %6930 = vmatpush1.xpose.msra.mxu0 0.0
  %6931 = vmatprep.subr.mxu0 0.0
  %6932 = vmatpush1.xpose.msra.mxu0 0.0
  %6933 = vmatprep.subr.mxu0 0.0
  %6934 = vmatpush1.xpose.msra.mxu0 0.0
  %6935 = vmatprep.subr.mxu0 0.0
  %6936 = vmatpush1.xpose.msra.mxu0 0.0
  %6937 = vmatprep.subr.mxu0 0.0
  %6938 = vmatpush1.xpose.msra.mxu0 0.0
  %6939 = vmatprep.subr.mxu0 0.0
  %6940 = vmatpush1.xpose.msra.mxu0 0.0
  %6941 = vmatprep.subr.mxu0 0.0
  %6942 = vmatpush1.xpose.msra.mxu0 0.0
  %6943 = vmatprep.subr.mxu0 0.0
  %6944 = vmatpush1.xpose.msra.mxu0 0.0
  %6945 = vmatprep.subr.mxu0 0.0
  %6946 = vmatpush1.xpose.msra.mxu0 0.0
  %6947 = vmatprep.subr.mxu0 0.0
  %6948 = vmatpush1.xpose.msra.mxu0 0.0
  %6949 = vmatprep.subr.mxu0 0.0
  %6950 = vmatpush1.xpose.msra.mxu0 0.0
  %6951 = vmatprep.subr.mxu0 0.0
  %6952 = vmatpush1.xpose.msra.mxu0 0.0
  %6953 = vmatprep.subr.mxu0 0.0
  %6954 = vmatpush1.xpose.msra.mxu0 0.0
  %6955 = vmatprep.subr.mxu0 0.0
  %6956 = vmatpush1.xpose.msra.mxu0 0.0
  %6957 = vmatprep.subr.mxu0 0.0
  %6958 = vmatpush1.xpose.msra.mxu0 0.0
  %6959 = vmatprep.subr.mxu0 0.0
  %6960 = vmatpush1.xpose.msra.mxu0 0.0
  %6961 = vmatprep.subr.mxu0 0.0
  %6962 = vmatpush1.xpose.msra.mxu0 0.0
  %6963 = vmatprep.mubr.f32.mxu0 0.0
  %6964 = vmatmul.mubr.f32.gmra.mrb[0].mxu0 %v6894
  %v6965 = vpop.f32.mrb[0].mxu0
  %v6966 = vadd.f32 0.0, %v6965
  %v6967 = vpop.f32.mrb[0].mxu0
  %6968 = vmatprep.mubr.f32.mxu0 0.0
  %6969 = vmatmul.mubr.f32.gmra.mrb[0].mxu0 %v6897
  %v6970 = vpop.f32.mrb[0].mxu0
  %v6971 = vadd.f32 0.0, %v6970
  %v6972 = vpop.f32.mrb[0].mxu0
  %6973 = vdwg.mxu0
  %v6974 = vsel %vm692, %v6885, -inf
  %6975 = vmax.xlane.f32.xlu0 %v6974
  %v6976 = vpop.xlane.xlu0 %6975
  %v6977 = vsel %vm692, %v6890, -inf
  %6978 = vmax.xlane.f32.xlu0 %v6977
  %v6979 = vpop.xlane.xlu0 %6978
  %v6980 = vsub.f32 %v6885, %v6976
  %v6981 = vsub.f32 %v6890, %v6979
  %v6982 = vmul.f32 %v6980, 1.442695
  %v6983 = vpow.pop %v6982
  %v6984 = vmul.f32 %v6981, 1.442695
  %v6985 = vpow.pop %v6984
  %v6986 = vsel %vm692, %v6983, 0.0
  %6987 = vadd.xlane.f32.xlu0 %v6986
  %v6988 = vpop.xlane.xlu0 %6987
  %v6989 = vsel %vm692, %v6985, 0.0
  %6990 = vadd.xlane.f32.xlu0 %v6989
  %v6991 = vpop.xlane.xlu0 %6990
  %v6992 = vrcp.pop %v6988
  %v6993 = vrcp.pop %v6991
  %v6994 = vmul.f32 %v6983, %v6992
  %v6995 = vmul.f32 %v6985, %v6993
  %v6997 = vsel %vm692, %v6994, 0
  %v7000 = vsel %vm692, %v6995, 0
  %7002 = vmatprep.subr.mxu0 0.0
  %7003 = vmatpush1.msra.mxu0 %v4562
  %7004 = vmatprep.subr.mxu0 0.0
  %7005 = vmatpush1.msra.mxu0 %v4563
  %7006 = vmatprep.subr.mxu0 0.0
  %7007 = vmatpush1.msra.mxu0 0.0
  %7008 = vmatprep.subr.mxu0 0.0
  %7009 = vmatpush1.msra.mxu0 0.0
  %7010 = vmatprep.subr.mxu0 0.0
  %7011 = vmatpush1.msra.mxu0 0.0
  %7012 = vmatprep.subr.mxu0 0.0
  %7013 = vmatpush1.msra.mxu0 0.0
  %7014 = vmatprep.subr.mxu0 0.0
  %7015 = vmatpush1.msra.mxu0 0.0
  %7016 = vmatprep.subr.mxu0 0.0
  %7017 = vmatpush1.msra.mxu0 0.0
  %7018 = vmatprep.subr.mxu0 0.0
  %7019 = vmatpush1.msra.mxu0 0.0
  %7020 = vmatprep.subr.mxu0 0.0
  %7021 = vmatpush1.msra.mxu0 0.0
  %7022 = vmatprep.subr.mxu0 0.0
  %7023 = vmatpush1.msra.mxu0 0.0
  %7024 = vmatprep.subr.mxu0 0.0
  %7025 = vmatpush1.msra.mxu0 0.0
  %7026 = vmatprep.subr.mxu0 0.0
  %7027 = vmatpush1.msra.mxu0 0.0
  %7028 = vmatprep.subr.mxu0 0.0
  %7029 = vmatpush1.msra.mxu0 0.0
  %7030 = vmatprep.subr.mxu0 0.0
  %7031 = vmatpush1.msra.mxu0 0.0
  %7032 = vmatprep.subr.mxu0 0.0
  %7033 = vmatpush1.msra.mxu0 0.0
  %7034 = vmatprep.subr.mxu0 0.0
  %7035 = vmatpush1.msra.mxu0 0.0
  %7036 = vmatprep.subr.mxu0 0.0
  %7037 = vmatpush1.msra.mxu0 0.0
  %7038 = vmatprep.subr.mxu0 0.0
  %7039 = vmatpush1.msra.mxu0 0.0
  %7040 = vmatprep.subr.mxu0 0.0
  %7041 = vmatpush1.msra.mxu0 0.0
  %7042 = vmatprep.subr.mxu0 0.0
  %7043 = vmatpush1.msra.mxu0 0.0
  %7044 = vmatprep.subr.mxu0 0.0
  %7045 = vmatpush1.msra.mxu0 0.0
  %7046 = vmatprep.subr.mxu0 0.0
  %7047 = vmatpush1.msra.mxu0 0.0
  %7048 = vmatprep.subr.mxu0 0.0
  %7049 = vmatpush1.msra.mxu0 0.0
  %7050 = vmatprep.subr.mxu0 0.0
  %7051 = vmatpush1.msra.mxu0 0.0
  %7052 = vmatprep.subr.mxu0 0.0
  %7053 = vmatpush1.msra.mxu0 0.0
  %7054 = vmatprep.subr.mxu0 0.0
  %7055 = vmatpush1.msra.mxu0 0.0
  %7056 = vmatprep.subr.mxu0 0.0
  %7057 = vmatpush1.msra.mxu0 0.0
  %7058 = vmatprep.subr.mxu0 0.0
  %7059 = vmatpush1.msra.mxu0 0.0
  %7060 = vmatprep.subr.mxu0 0.0
  %7061 = vmatpush1.msra.mxu0 0.0
  %7062 = vmatprep.subr.mxu0 0.0
  %7063 = vmatpush1.msra.mxu0 0.0
  %7064 = vmatprep.subr.mxu0 0.0
  %7065 = vmatpush1.msra.mxu0 0.0
  %7066 = vmatprep.mubr.f32.mxu0 0.0
  %7067 = vmatmul.mubr.f32.gmra.mrb[0].mxu0 %v6997
  %v7068 = vpop.f32.mrb[0].mxu0
  %v7069 = vadd.f32 0.0, %v7068
  %v7070 = vpop.f32.mrb[0].mxu0
  %7071 = vmatprep.mubr.f32.mxu0 0.0
  %7072 = vmatmul.mubr.f32.gmra.mrb[0].mxu0 %v7000
  %v7073 = vpop.f32.mrb[0].mxu0
  %v7074 = vadd.f32 0.0, %v7073
  %v7075 = vpop.f32.mrb[0].mxu0
  %7076 = vdwg.mxu0
  %v7077 = vadd.f32 %v6620, %v7069
  %v7078 = vadd.f32 %v6625, %v7074
  %v7079 = vsel %vm692, %v6966, -inf
  %7080 = vmax.xlane.f32.xlu0 %v7079
  %v7081 = vpop.xlane.xlu0 %7080
  %v7082 = vsel %vm692, %v6971, -inf
  %7083 = vmax.xlane.f32.xlu0 %v7082
  %v7084 = vpop.xlane.xlu0 %7083
  %v7085 = vsub.f32 %v6966, %v7081
  %v7086 = vsub.f32 %v6971, %v7084
  %v7087 = vmul.f32 %v7085, 1.442695
  %v7088 = vpow.pop %v7087
  %v7089 = vmul.f32 %v7086, 1.442695
  %v7090 = vpow.pop %v7089
  %v7091 = vsel %vm692, %v7088, 0.0
  %7092 = vadd.xlane.f32.xlu0 %v7091
  %v7093 = vpop.xlane.xlu0 %7092
  %v7094 = vsel %vm692, %v7090, 0.0
  %7095 = vadd.xlane.f32.xlu0 %v7094
  %v7096 = vpop.xlane.xlu0 %7095
  %v7097 = vrcp.pop %v7093
  %v7098 = vrcp.pop %v7096
  %v7099 = vmul.f32 %v7088, %v7097
  %v7100 = vmul.f32 %v7090, %v7098
  %v7102 = vsel %vm692, %v7099, 0
  %v7105 = vsel %vm692, %v7100, 0
  %7107 = vmatprep.subr.mxu0 0.0
  %7108 = vmatpush1.msra.mxu0 %v4558
  %7109 = vmatprep.subr.mxu0 0.0
  %7110 = vmatpush1.msra.mxu0 %v4559
  %7111 = vmatprep.subr.mxu0 0.0
  %7112 = vmatpush1.msra.mxu0 0.0
  %7113 = vmatprep.subr.mxu0 0.0
  %7114 = vmatpush1.msra.mxu0 0.0
  %7115 = vmatprep.subr.mxu0 0.0
  %7116 = vmatpush1.msra.mxu0 0.0
  %7117 = vmatprep.subr.mxu0 0.0
  %7118 = vmatpush1.msra.mxu0 0.0
  %7119 = vmatprep.subr.mxu0 0.0
  %7120 = vmatpush1.msra.mxu0 0.0
  %7121 = vmatprep.subr.mxu0 0.0
  %7122 = vmatpush1.msra.mxu0 0.0
  %7123 = vmatprep.subr.mxu0 0.0
  %7124 = vmatpush1.msra.mxu0 0.0
  %7125 = vmatprep.subr.mxu0 0.0
  %7126 = vmatpush1.msra.mxu0 0.0
  %7127 = vmatprep.subr.mxu0 0.0
  %7128 = vmatpush1.msra.mxu0 0.0
  %7129 = vmatprep.subr.mxu0 0.0
  %7130 = vmatpush1.msra.mxu0 0.0
  %7131 = vmatprep.subr.mxu0 0.0
  %7132 = vmatpush1.msra.mxu0 0.0
  %7133 = vmatprep.subr.mxu0 0.0
  %7134 = vmatpush1.msra.mxu0 0.0
  %7135 = vmatprep.subr.mxu0 0.0
  %7136 = vmatpush1.msra.mxu0 0.0
  %7137 = vmatprep.subr.mxu0 0.0
  %7138 = vmatpush1.msra.mxu0 0.0
  %7139 = vmatprep.subr.mxu0 0.0
  %7140 = vmatpush1.msra.mxu0 0.0
  %7141 = vmatprep.subr.mxu0 0.0
  %7142 = vmatpush1.msra.mxu0 0.0
  %7143 = vmatprep.subr.mxu0 0.0
  %7144 = vmatpush1.msra.mxu0 0.0
  %7145 = vmatprep.subr.mxu0 0.0
  %7146 = vmatpush1.msra.mxu0 0.0
  %7147 = vmatprep.subr.mxu0 0.0
  %7148 = vmatpush1.msra.mxu0 0.0
  %7149 = vmatprep.subr.mxu0 0.0
  %7150 = vmatpush1.msra.mxu0 0.0
  %7151 = vmatprep.subr.mxu0 0.0
  %7152 = vmatpush1.msra.mxu0 0.0
  %7153 = vmatprep.subr.mxu0 0.0
  %7154 = vmatpush1.msra.mxu0 0.0
  %7155 = vmatprep.subr.mxu0 0.0
  %7156 = vmatpush1.msra.mxu0 0.0
  %7157 = vmatprep.subr.mxu0 0.0
  %7158 = vmatpush1.msra.mxu0 0.0
  %7159 = vmatprep.subr.mxu0 0.0
  %7160 = vmatpush1.msra.mxu0 0.0
  %7161 = vmatprep.subr.mxu0 0.0
  %7162 = vmatpush1.msra.mxu0 0.0
  %7163 = vmatprep.subr.mxu0 0.0
  %7164 = vmatpush1.msra.mxu0 0.0
  %7165 = vmatprep.subr.mxu0 0.0
  %7166 = vmatpush1.msra.mxu0 0.0
  %7167 = vmatprep.subr.mxu0 0.0
  %7168 = vmatpush1.msra.mxu0 0.0
  %7169 = vmatprep.subr.mxu0 0.0
  %7170 = vmatpush1.msra.mxu0 0.0
  %7171 = vmatprep.mubr.f32.mxu0 0.0
  %7172 = vmatmul.mubr.f32.gmra.mrb[0].mxu0 %v7102
  %v7173 = vpop.f32.mrb[0].mxu0
  %v7174 = vadd.f32 0.0, %v7173
  %v7175 = vpop.f32.mrb[0].mxu0
  %7176 = vmatprep.mubr.f32.mxu0 0.0
  %7177 = vmatmul.mubr.f32.gmra.mrb[0].mxu0 %v7105
  %v7178 = vpop.f32.mrb[0].mxu0
  %v7179 = vadd.f32 0.0, %v7178
  %v7180 = vpop.f32.mrb[0].mxu0
  %7181 = vdwg.mxu0
  %v7182 = vadd.f32 %v6804, %v7174
  %v7183 = vadd.f32 %v6809, %v7179
  %v7185 = vsel %vm129, %v4534, 0
  %v7188 = vsel %vm129, %v4535, 0
  %7190 = vmatprep.subr.mxu0 0.0
  %7191 = vmatpush1.xpose.msra.mxu0 %v6071
  %7192 = vmatprep.subr.mxu0 0.0
  %7193 = vmatpush1.xpose.msra.mxu0 %v6074
  %7194 = vmatprep.subr.mxu0 0.0
  %7195 = vmatpush1.xpose.msra.mxu0 0.0
  %7196 = vmatprep.subr.mxu0 0.0
  %7197 = vmatpush1.xpose.msra.mxu0 0.0
  %7198 = vmatprep.subr.mxu0 0.0
  %7199 = vmatpush1.xpose.msra.mxu0 0.0
  %7200 = vmatprep.subr.mxu0 0.0
  %7201 = vmatpush1.xpose.msra.mxu0 0.0
  %7202 = vmatprep.subr.mxu0 0.0
  %7203 = vmatpush1.xpose.msra.mxu0 0.0
  %7204 = vmatprep.subr.mxu0 0.0
  %7205 = vmatpush1.xpose.msra.mxu0 0.0
  %7206 = vmatprep.subr.mxu0 0.0
  %7207 = vmatpush1.xpose.msra.mxu0 0.0
  %7208 = vmatprep.subr.mxu0 0.0
  %7209 = vmatpush1.xpose.msra.mxu0 0.0
  %7210 = vmatprep.subr.mxu0 0.0
  %7211 = vmatpush1.xpose.msra.mxu0 0.0
  %7212 = vmatprep.subr.mxu0 0.0
  %7213 = vmatpush1.xpose.msra.mxu0 0.0
  %7214 = vmatprep.subr.mxu0 0.0
  %7215 = vmatpush1.xpose.msra.mxu0 0.0
  %7216 = vmatprep.subr.mxu0 0.0
  %7217 = vmatpush1.xpose.msra.mxu0 0.0
  %7218 = vmatprep.subr.mxu0 0.0
  %7219 = vmatpush1.xpose.msra.mxu0 0.0
  %7220 = vmatprep.subr.mxu0 0.0
  %7221 = vmatpush1.xpose.msra.mxu0 0.0
  %7222 = vmatprep.subr.mxu0 0.0
  %7223 = vmatpush1.xpose.msra.mxu0 0.0
  %7224 = vmatprep.subr.mxu0 0.0
  %7225 = vmatpush1.xpose.msra.mxu0 0.0
  %7226 = vmatprep.subr.mxu0 0.0
  %7227 = vmatpush1.xpose.msra.mxu0 0.0
  %7228 = vmatprep.subr.mxu0 0.0
  %7229 = vmatpush1.xpose.msra.mxu0 0.0
  %7230 = vmatprep.subr.mxu0 0.0
  %7231 = vmatpush1.xpose.msra.mxu0 0.0
  %7232 = vmatprep.subr.mxu0 0.0
  %7233 = vmatpush1.xpose.msra.mxu0 0.0
  %7234 = vmatprep.subr.mxu0 0.0
  %7235 = vmatpush1.xpose.msra.mxu0 0.0
  %7236 = vmatprep.subr.mxu0 0.0
  %7237 = vmatpush1.xpose.msra.mxu0 0.0
  %7238 = vmatprep.subr.mxu0 0.0
  %7239 = vmatpush1.xpose.msra.mxu0 0.0
  %7240 = vmatprep.subr.mxu0 0.0
  %7241 = vmatpush1.xpose.msra.mxu0 0.0
  %7242 = vmatprep.subr.mxu0 0.0
  %7243 = vmatpush1.xpose.msra.mxu0 0.0
  %7244 = vmatprep.subr.mxu0 0.0
  %7245 = vmatpush1.xpose.msra.mxu0 0.0
  %7246 = vmatprep.subr.mxu0 0.0
  %7247 = vmatpush1.xpose.msra.mxu0 0.0
  %7248 = vmatprep.subr.mxu0 0.0
  %7249 = vmatpush1.xpose.msra.mxu0 0.0
  %7250 = vmatprep.subr.mxu0 0.0
  %7251 = vmatpush1.xpose.msra.mxu0 0.0
  %7252 = vmatprep.subr.mxu0 0.0
  %7253 = vmatpush1.xpose.msra.mxu0 0.0
  %7254 = vmatprep.mubr.f32.mxu0 0.0
  %7255 = vmatmul.mubr.f32.gmra.mrb[0].mxu0 %v7185
  %v7256 = vpop.f32.mrb[0].mxu0
  %v7257 = vadd.f32 0.0, %v7256
  %v7258 = vpop.f32.mrb[0].mxu0
  %7259 = vmatprep.mubr.f32.mxu0 0.0
  %7260 = vmatmul.mubr.f32.gmra.mrb[0].mxu0 %v7188
  %v7261 = vpop.f32.mrb[0].mxu0
  %v7262 = vadd.f32 0.0, %v7261
  %v7263 = vpop.f32.mrb[0].mxu0
  %7264 = vdwg.mxu0
  %v7266 = vsel %vm129, %v4538, 0
  %v7269 = vsel %vm129, %v4539, 0
  %7271 = vmatprep.subr.mxu0 0.0
  %7272 = vmatpush1.xpose.msra.mxu0 %v6158
  %7273 = vmatprep.subr.mxu0 0.0
  %7274 = vmatpush1.xpose.msra.mxu0 %v6161
  %7275 = vmatprep.subr.mxu0 0.0
  %7276 = vmatpush1.xpose.msra.mxu0 0.0
  %7277 = vmatprep.subr.mxu0 0.0
  %7278 = vmatpush1.xpose.msra.mxu0 0.0
  %7279 = vmatprep.subr.mxu0 0.0
  %7280 = vmatpush1.xpose.msra.mxu0 0.0
  %7281 = vmatprep.subr.mxu0 0.0
  %7282 = vmatpush1.xpose.msra.mxu0 0.0
  %7283 = vmatprep.subr.mxu0 0.0
  %7284 = vmatpush1.xpose.msra.mxu0 0.0
  %7285 = vmatprep.subr.mxu0 0.0
  %7286 = vmatpush1.xpose.msra.mxu0 0.0
  %7287 = vmatprep.subr.mxu0 0.0
  %7288 = vmatpush1.xpose.msra.mxu0 0.0
  %7289 = vmatprep.subr.mxu0 0.0
  %7290 = vmatpush1.xpose.msra.mxu0 0.0
  %7291 = vmatprep.subr.mxu0 0.0
  %7292 = vmatpush1.xpose.msra.mxu0 0.0
  %7293 = vmatprep.subr.mxu0 0.0
  %7294 = vmatpush1.xpose.msra.mxu0 0.0
  %7295 = vmatprep.subr.mxu0 0.0
  %7296 = vmatpush1.xpose.msra.mxu0 0.0
  %7297 = vmatprep.subr.mxu0 0.0
  %7298 = vmatpush1.xpose.msra.mxu0 0.0
  %7299 = vmatprep.subr.mxu0 0.0
  %7300 = vmatpush1.xpose.msra.mxu0 0.0
  %7301 = vmatprep.subr.mxu0 0.0
  %7302 = vmatpush1.xpose.msra.mxu0 0.0
  %7303 = vmatprep.subr.mxu0 0.0
  %7304 = vmatpush1.xpose.msra.mxu0 0.0
  %7305 = vmatprep.subr.mxu0 0.0
  %7306 = vmatpush1.xpose.msra.mxu0 0.0
  %7307 = vmatprep.subr.mxu0 0.0
  %7308 = vmatpush1.xpose.msra.mxu0 0.0
  %7309 = vmatprep.subr.mxu0 0.0
  %7310 = vmatpush1.xpose.msra.mxu0 0.0
  %7311 = vmatprep.subr.mxu0 0.0
  %7312 = vmatpush1.xpose.msra.mxu0 0.0
  %7313 = vmatprep.subr.mxu0 0.0
  %7314 = vmatpush1.xpose.msra.mxu0 0.0
  %7315 = vmatprep.subr.mxu0 0.0
  %7316 = vmatpush1.xpose.msra.mxu0 0.0
  %7317 = vmatprep.subr.mxu0 0.0
  %7318 = vmatpush1.xpose.msra.mxu0 0.0
  %7319 = vmatprep.subr.mxu0 0.0
  %7320 = vmatpush1.xpose.msra.mxu0 0.0
  %7321 = vmatprep.subr.mxu0 0.0
  %7322 = vmatpush1.xpose.msra.mxu0 0.0
  %7323 = vmatprep.subr.mxu0 0.0
  %7324 = vmatpush1.xpose.msra.mxu0 0.0
  %7325 = vmatprep.subr.mxu0 0.0
  %7326 = vmatpush1.xpose.msra.mxu0 0.0
  %7327 = vmatprep.subr.mxu0 0.0
  %7328 = vmatpush1.xpose.msra.mxu0 0.0
  %7329 = vmatprep.subr.mxu0 0.0
  %7330 = vmatpush1.xpose.msra.mxu0 0.0
  %7331 = vmatprep.subr.mxu0 0.0
  %7332 = vmatpush1.xpose.msra.mxu0 0.0
  %7333 = vmatprep.subr.mxu0 0.0
  %7334 = vmatpush1.xpose.msra.mxu0 0.0
  %7335 = vmatprep.mubr.f32.mxu0 0.0
  %7336 = vmatmul.mubr.f32.gmra.mrb[0].mxu0 %v7266
  %v7337 = vpop.f32.mrb[0].mxu0
  %v7338 = vadd.f32 0.0, %v7337
  %v7339 = vpop.f32.mrb[0].mxu0
  %7340 = vmatprep.mubr.f32.mxu0 0.0
  %7341 = vmatmul.mubr.f32.gmra.mrb[0].mxu0 %v7269
  %v7342 = vpop.f32.mrb[0].mxu0
  %v7343 = vadd.f32 0.0, %v7342
  %v7344 = vpop.f32.mrb[0].mxu0
  %7345 = vdwg.mxu0
  %v7346 = vsel %vm692, %v7257, -inf
  %7347 = vmax.xlane.f32.xlu0 %v7346
  %v7348 = vpop.xlane.xlu0 %7347
  %v7349 = vsel %vm692, %v7262, -inf
  %7350 = vmax.xlane.f32.xlu0 %v7349
  %v7351 = vpop.xlane.xlu0 %7350
  %v7352 = vsub.f32 %v7257, %v7348
  %v7353 = vsub.f32 %v7262, %v7351
  %v7354 = vmul.f32 %v7352, 1.442695
  %v7355 = vpow.pop %v7354
  %v7356 = vmul.f32 %v7353, 1.442695
  %v7357 = vpow.pop %v7356
  %v7358 = vsel %vm692, %v7355, 0.0
  %7359 = vadd.xlane.f32.xlu0 %v7358
  %v7360 = vpop.xlane.xlu0 %7359
  %v7361 = vsel %vm692, %v7357, 0.0
  %7362 = vadd.xlane.f32.xlu0 %v7361
  %v7363 = vpop.xlane.xlu0 %7362
  %v7364 = vrcp.pop %v7360
  %v7365 = vrcp.pop %v7363
  %v7366 = vmul.f32 %v7355, %v7364
  %v7367 = vmul.f32 %v7357, %v7365
  %v7369 = vsel %vm692, %v7366, 0
  %v7372 = vsel %vm692, %v7367, 0
  %7374 = vmatprep.subr.mxu0 0.0
  %7375 = vmatpush1.msra.mxu0 %v4570
  %7376 = vmatprep.subr.mxu0 0.0
  %7377 = vmatpush1.msra.mxu0 %v4571
  %7378 = vmatprep.subr.mxu0 0.0
  %7379 = vmatpush1.msra.mxu0 0.0
  %7380 = vmatprep.subr.mxu0 0.0
  %7381 = vmatpush1.msra.mxu0 0.0
  %7382 = vmatprep.subr.mxu0 0.0
  %7383 = vmatpush1.msra.mxu0 0.0
  %7384 = vmatprep.subr.mxu0 0.0
  %7385 = vmatpush1.msra.mxu0 0.0
  %7386 = vmatprep.subr.mxu0 0.0
  %7387 = vmatpush1.msra.mxu0 0.0
  %7388 = vmatprep.subr.mxu0 0.0
  %7389 = vmatpush1.msra.mxu0 0.0
  %7390 = vmatprep.subr.mxu0 0.0
  %7391 = vmatpush1.msra.mxu0 0.0
  %7392 = vmatprep.subr.mxu0 0.0
  %7393 = vmatpush1.msra.mxu0 0.0
  %7394 = vmatprep.subr.mxu0 0.0
  %7395 = vmatpush1.msra.mxu0 0.0
  %7396 = vmatprep.subr.mxu0 0.0
  %7397 = vmatpush1.msra.mxu0 0.0
  %7398 = vmatprep.subr.mxu0 0.0
  %7399 = vmatpush1.msra.mxu0 0.0
  %7400 = vmatprep.subr.mxu0 0.0
  %7401 = vmatpush1.msra.mxu0 0.0
  %7402 = vmatprep.subr.mxu0 0.0
  %7403 = vmatpush1.msra.mxu0 0.0
  %7404 = vmatprep.subr.mxu0 0.0
  %7405 = vmatpush1.msra.mxu0 0.0
  %7406 = vmatprep.subr.mxu0 0.0
  %7407 = vmatpush1.msra.mxu0 0.0
  %7408 = vmatprep.subr.mxu0 0.0
  %7409 = vmatpush1.msra.mxu0 0.0
  %7410 = vmatprep.subr.mxu0 0.0
  %7411 = vmatpush1.msra.mxu0 0.0
  %7412 = vmatprep.subr.mxu0 0.0
  %7413 = vmatpush1.msra.mxu0 0.0
  %7414 = vmatprep.subr.mxu0 0.0
  %7415 = vmatpush1.msra.mxu0 0.0
  %7416 = vmatprep.subr.mxu0 0.0
  %7417 = vmatpush1.msra.mxu0 0.0
  %7418 = vmatprep.subr.mxu0 0.0
  %7419 = vmatpush1.msra.mxu0 0.0
  %7420 = vmatprep.subr.mxu0 0.0
  %7421 = vmatpush1.msra.mxu0 0.0
  %7422 = vmatprep.subr.mxu0 0.0
  %7423 = vmatpush1.msra.mxu0 0.0
  %7424 = vmatprep.subr.mxu0 0.0
  %7425 = vmatpush1.msra.mxu0 0.0
  %7426 = vmatprep.subr.mxu0 0.0
  %7427 = vmatpush1.msra.mxu0 0.0
  %7428 = vmatprep.subr.mxu0 0.0
  %7429 = vmatpush1.msra.mxu0 0.0
  %7430 = vmatprep.subr.mxu0 0.0
  %7431 = vmatpush1.msra.mxu0 0.0
  %7432 = vmatprep.subr.mxu0 0.0
  %7433 = vmatpush1.msra.mxu0 0.0
  %7434 = vmatprep.subr.mxu0 0.0
  %7435 = vmatpush1.msra.mxu0 0.0
  %7436 = vmatprep.subr.mxu0 0.0
  %7437 = vmatpush1.msra.mxu0 0.0
  %7438 = vmatprep.mubr.f32.mxu0 0.0
  %7439 = vmatmul.mubr.f32.gmra.mrb[0].mxu0 %v7369
  %v7440 = vpop.f32.mrb[0].mxu0
  %v7441 = vadd.f32 0.0, %v7440
  %v7442 = vpop.f32.mrb[0].mxu0
  %7443 = vmatprep.mubr.f32.mxu0 0.0
  %7444 = vmatmul.mubr.f32.gmra.mrb[0].mxu0 %v7372
  %v7445 = vpop.f32.mrb[0].mxu0
  %v7446 = vadd.f32 0.0, %v7445
  %v7447 = vpop.f32.mrb[0].mxu0
  %7448 = vdwg.mxu0
  %v7449 = vadd.f32 %v7077, %v7441
  %v7450 = vadd.f32 %v7078, %v7446
  %v7451 = vsel %vm692, %v7338, -inf
  %7452 = vmax.xlane.f32.xlu0 %v7451
  %v7453 = vpop.xlane.xlu0 %7452
  %v7454 = vsel %vm692, %v7343, -inf
  %7455 = vmax.xlane.f32.xlu0 %v7454
  %v7456 = vpop.xlane.xlu0 %7455
  %v7457 = vsub.f32 %v7338, %v7453
  %v7458 = vsub.f32 %v7343, %v7456
  %v7459 = vmul.f32 %v7457, 1.442695
  %v7460 = vpow.pop %v7459
  %v7461 = vmul.f32 %v7458, 1.442695
  %v7462 = vpow.pop %v7461
  %v7463 = vsel %vm692, %v7460, 0.0
  %7464 = vadd.xlane.f32.xlu0 %v7463
  %v7465 = vpop.xlane.xlu0 %7464
  %v7466 = vsel %vm692, %v7462, 0.0
  %7467 = vadd.xlane.f32.xlu0 %v7466
  %v7468 = vpop.xlane.xlu0 %7467
  %v7469 = vrcp.pop %v7465
  %v7470 = vrcp.pop %v7468
  %v7471 = vmul.f32 %v7460, %v7469
  %v7472 = vmul.f32 %v7462, %v7470
  %v7474 = vsel %vm692, %v7471, 0
  %v7477 = vsel %vm692, %v7472, 0
  %7479 = vmatprep.subr.mxu0 0.0
  %7480 = vmatpush1.msra.mxu0 %v4566
  %7481 = vmatprep.subr.mxu0 0.0
  %7482 = vmatpush1.msra.mxu0 %v4567
  %7483 = vmatprep.subr.mxu0 0.0
  %7484 = vmatpush1.msra.mxu0 0.0
  %7485 = vmatprep.subr.mxu0 0.0
  %7486 = vmatpush1.msra.mxu0 0.0
  %7487 = vmatprep.subr.mxu0 0.0
  %7488 = vmatpush1.msra.mxu0 0.0
  %7489 = vmatprep.subr.mxu0 0.0
  %7490 = vmatpush1.msra.mxu0 0.0
  %7491 = vmatprep.subr.mxu0 0.0
  %7492 = vmatpush1.msra.mxu0 0.0
  %7493 = vmatprep.subr.mxu0 0.0
  %7494 = vmatpush1.msra.mxu0 0.0
  %7495 = vmatprep.subr.mxu0 0.0
  %7496 = vmatpush1.msra.mxu0 0.0
  %7497 = vmatprep.subr.mxu0 0.0
  %7498 = vmatpush1.msra.mxu0 0.0
  %7499 = vmatprep.subr.mxu0 0.0
  %7500 = vmatpush1.msra.mxu0 0.0
  %7501 = vmatprep.subr.mxu0 0.0
  %7502 = vmatpush1.msra.mxu0 0.0
  %7503 = vmatprep.subr.mxu0 0.0
  %7504 = vmatpush1.msra.mxu0 0.0
  %7505 = vmatprep.subr.mxu0 0.0
  %7506 = vmatpush1.msra.mxu0 0.0
  %7507 = vmatprep.subr.mxu0 0.0
  %7508 = vmatpush1.msra.mxu0 0.0
  %7509 = vmatprep.subr.mxu0 0.0
  %7510 = vmatpush1.msra.mxu0 0.0
  %7511 = vmatprep.subr.mxu0 0.0
  %7512 = vmatpush1.msra.mxu0 0.0
  %7513 = vmatprep.subr.mxu0 0.0
  %7514 = vmatpush1.msra.mxu0 0.0
  %7515 = vmatprep.subr.mxu0 0.0
  %7516 = vmatpush1.msra.mxu0 0.0
  %7517 = vmatprep.subr.mxu0 0.0
  %7518 = vmatpush1.msra.mxu0 0.0
  %7519 = vmatprep.subr.mxu0 0.0
  %7520 = vmatpush1.msra.mxu0 0.0
  %7521 = vmatprep.subr.mxu0 0.0
  %7522 = vmatpush1.msra.mxu0 0.0
  %7523 = vmatprep.subr.mxu0 0.0
  %7524 = vmatpush1.msra.mxu0 0.0
  %7525 = vmatprep.subr.mxu0 0.0
  %7526 = vmatpush1.msra.mxu0 0.0
  %7527 = vmatprep.subr.mxu0 0.0
  %7528 = vmatpush1.msra.mxu0 0.0
  %7529 = vmatprep.subr.mxu0 0.0
  %7530 = vmatpush1.msra.mxu0 0.0
  %7531 = vmatprep.subr.mxu0 0.0
  %7532 = vmatpush1.msra.mxu0 0.0
  %7533 = vmatprep.subr.mxu0 0.0
  %7534 = vmatpush1.msra.mxu0 0.0
  %7535 = vmatprep.subr.mxu0 0.0
  %7536 = vmatpush1.msra.mxu0 0.0
  %7537 = vmatprep.subr.mxu0 0.0
  %7538 = vmatpush1.msra.mxu0 0.0
  %7539 = vmatprep.subr.mxu0 0.0
  %7540 = vmatpush1.msra.mxu0 0.0
  %7541 = vmatprep.subr.mxu0 0.0
  %7542 = vmatpush1.msra.mxu0 0.0
  %7543 = vmatprep.mubr.f32.mxu0 0.0
  %7544 = vmatmul.mubr.f32.gmra.mrb[0].mxu0 %v7474
  %v7545 = vpop.f32.mrb[0].mxu0
  %v7546 = vadd.f32 0.0, %v7545
  %v7547 = vpop.f32.mrb[0].mxu0
  %7548 = vmatprep.mubr.f32.mxu0 0.0
  %7549 = vmatmul.mubr.f32.gmra.mrb[0].mxu0 %v7477
  %v7550 = vpop.f32.mrb[0].mxu0
  %v7551 = vadd.f32 0.0, %v7550
  %v7552 = vpop.f32.mrb[0].mxu0
  %7553 = vdwg.mxu0
  %v7554 = vadd.f32 %v7182, %v7546
  %v7555 = vadd.f32 %v7183, %v7551
  %v7556 = vld [vmem:[%s4 + $0x20] sm:$0xff]
  %v7557 = vld [vmem:[%s4 + $0x28] sm:$0xff]
  %v7558 = vld [vmem:[%s4 + $0x30] sm:$0xff]
  %v7559 = vld [vmem:[%s4 + $0x38] sm:$0xff]
  %v7561 = vsel %vm129, %v5957, 0
  %v7564 = vsel %vm129, %v5958, 0
  %v7567 = vsel %vm129, %v7449, 0
  %v7570 = vsel %vm129, %v7450, 0
  %7572 = vmatprep.subr.mxu0 0.0
  %7573 = vmatpush1.msra.mxu0 %v7556
  %7574 = vmatprep.subr.mxu0 0.0
  %7575 = vmatpush1.msra.mxu0 %v7557
  %7576 = vmatprep.subr.mxu0 0.0
  %7577 = vmatpush1.msra.mxu0 %v7558
  %7578 = vmatprep.subr.mxu0 0.0
  %7579 = vmatpush1.msra.mxu0 %v7559
  %7580 = vmatprep.subr.mxu0 0.0
  %7581 = vmatpush1.msra.mxu0 0.0
  %7582 = vmatprep.subr.mxu0 0.0
  %7583 = vmatpush1.msra.mxu0 0.0
  %7584 = vmatprep.subr.mxu0 0.0
  %7585 = vmatpush1.msra.mxu0 0.0
  %7586 = vmatprep.subr.mxu0 0.0
  %7587 = vmatpush1.msra.mxu0 0.0
  %7588 = vmatprep.subr.mxu0 0.0
  %7589 = vmatpush1.msra.mxu0 0.0
  %7590 = vmatprep.subr.mxu0 0.0
  %7591 = vmatpush1.msra.mxu0 0.0
  %7592 = vmatprep.subr.mxu0 0.0
  %7593 = vmatpush1.msra.mxu0 0.0
  %7594 = vmatprep.subr.mxu0 0.0
  %7595 = vmatpush1.msra.mxu0 0.0
  %7596 = vmatprep.subr.mxu0 0.0
  %7597 = vmatpush1.msra.mxu0 0.0
  %7598 = vmatprep.subr.mxu0 0.0
  %7599 = vmatpush1.msra.mxu0 0.0
  %7600 = vmatprep.subr.mxu0 0.0
  %7601 = vmatpush1.msra.mxu0 0.0
  %7602 = vmatprep.subr.mxu0 0.0
  %7603 = vmatpush1.msra.mxu0 0.0
  %7604 = vmatprep.subr.mxu0 0.0
  %7605 = vmatpush1.msra.mxu0 0.0
  %7606 = vmatprep.subr.mxu0 0.0
  %7607 = vmatpush1.msra.mxu0 0.0
  %7608 = vmatprep.subr.mxu0 0.0
  %7609 = vmatpush1.msra.mxu0 0.0
  %7610 = vmatprep.subr.mxu0 0.0
  %7611 = vmatpush1.msra.mxu0 0.0
  %7612 = vmatprep.subr.mxu0 0.0
  %7613 = vmatpush1.msra.mxu0 0.0
  %7614 = vmatprep.subr.mxu0 0.0
  %7615 = vmatpush1.msra.mxu0 0.0
  %7616 = vmatprep.subr.mxu0 0.0
  %7617 = vmatpush1.msra.mxu0 0.0
  %7618 = vmatprep.subr.mxu0 0.0
  %7619 = vmatpush1.msra.mxu0 0.0
  %7620 = vmatprep.subr.mxu0 0.0
  %7621 = vmatpush1.msra.mxu0 0.0
  %7622 = vmatprep.subr.mxu0 0.0
  %7623 = vmatpush1.msra.mxu0 0.0
  %7624 = vmatprep.subr.mxu0 0.0
  %7625 = vmatpush1.msra.mxu0 0.0
  %7626 = vmatprep.subr.mxu0 0.0
  %7627 = vmatpush1.msra.mxu0 0.0
  %7628 = vmatprep.subr.mxu0 0.0
  %7629 = vmatpush1.msra.mxu0 0.0
  %7630 = vmatprep.subr.mxu0 0.0
  %7631 = vmatpush1.msra.mxu0 0.0
  %7632 = vmatprep.subr.mxu0 0.0
  %7633 = vmatpush1.msra.mxu0 0.0
  %7634 = vmatprep.subr.mxu0 0.0
  %7635 = vmatpush1.msra.mxu0 0.0
  %7636 = vmatprep.mubr.f32.mxu0 0.0
  %7637 = vmatmul.mubr.f32.gmra.mrb[0].mxu0 %v7561
  %v7638 = vpop.f32.mrb[0].mxu0
  %v7639 = vadd.f32 0.0, %v7638
  %v7640 = vpop.f32.mrb[0].mxu0
  %7641 = vmatprep.mubr.f32.mxu0 0.0
  %7642 = vmatmul.mubr.f32.gmra.mrb[0].mxu0 %v7564
  %v7643 = vpop.f32.mrb[0].mxu0
  %v7644 = vadd.f32 0.0, %v7643
  %v7645 = vpop.f32.mrb[0].mxu0
  %7646 = vmatprep.mubr.f32.mxu0 0.0
  %7647 = vmatmul.mubr.f32.gmra.mrb[0].mxu0 %v7567
  %v7648 = vpop.f32.mrb[0].mxu0
  %v7649 = vadd.f32 0.0, %v7648
  %v7650 = vpop.f32.mrb[0].mxu0
  %7651 = vmatprep.mubr.f32.mxu0 0.0
  %7652 = vmatmul.mubr.f32.gmra.mrb[0].mxu0 %v7570
  %v7653 = vpop.f32.mrb[0].mxu0
  %v7654 = vadd.f32 0.0, %v7653
  %v7655 = vpop.f32.mrb[0].mxu0
  %7656 = vdwg.mxu0
  %v7657 = vadd.f32 %v4470, %v7639
  %v7658 = vadd.f32 %v4475, %v7644
  %v7659 = vadd.f32 %v4480, %v7649
  %v7660 = vadd.f32 %v4485, %v7654
  %v7662 = vsel %vm129, %v6062, 0
  %v7665 = vsel %vm129, %v6063, 0
  %v7668 = vsel %vm129, %v7554, 0
  %v7671 = vsel %vm129, %v7555, 0
  %7673 = vmatprep.subr.mxu0 0.0
  %7674 = vmatpush1.msra.mxu0 %v7556
  %7675 = vmatprep.subr.mxu0 0.0
  %7676 = vmatpush1.msra.mxu0 %v7557
  %7677 = vmatprep.subr.mxu0 0.0
  %7678 = vmatpush1.msra.mxu0 %v7558
  %7679 = vmatprep.subr.mxu0 0.0
  %7680 = vmatpush1.msra.mxu0 %v7559
  %7681 = vmatprep.subr.mxu0 0.0
  %7682 = vmatpush1.msra.mxu0 0.0
  %7683 = vmatprep.subr.mxu0 0.0
  %7684 = vmatpush1.msra.mxu0 0.0
  %7685 = vmatprep.subr.mxu0 0.0
  %7686 = vmatpush1.msra.mxu0 0.0
  %7687 = vmatprep.subr.mxu0 0.0
  %7688 = vmatpush1.msra.mxu0 0.0
  %7689 = vmatprep.subr.mxu0 0.0
  %7690 = vmatpush1.msra.mxu0 0.0
  %7691 = vmatprep.subr.mxu0 0.0
  %7692 = vmatpush1.msra.mxu0 0.0
  %7693 = vmatprep.subr.mxu0 0.0
  %7694 = vmatpush1.msra.mxu0 0.0
  %7695 = vmatprep.subr.mxu0 0.0
  %7696 = vmatpush1.msra.mxu0 0.0
  %7697 = vmatprep.subr.mxu0 0.0
  %7698 = vmatpush1.msra.mxu0 0.0
  %7699 = vmatprep.subr.mxu0 0.0
  %7700 = vmatpush1.msra.mxu0 0.0
  %7701 = vmatprep.subr.mxu0 0.0
  %7702 = vmatpush1.msra.mxu0 0.0
  %7703 = vmatprep.subr.mxu0 0.0
  %7704 = vmatpush1.msra.mxu0 0.0
  %7705 = vmatprep.subr.mxu0 0.0
  %7706 = vmatpush1.msra.mxu0 0.0
  %7707 = vmatprep.subr.mxu0 0.0
  %7708 = vmatpush1.msra.mxu0 0.0
  %7709 = vmatprep.subr.mxu0 0.0
  %7710 = vmatpush1.msra.mxu0 0.0
  %7711 = vmatprep.subr.mxu0 0.0
  %7712 = vmatpush1.msra.mxu0 0.0
  %7713 = vmatprep.subr.mxu0 0.0
  %7714 = vmatpush1.msra.mxu0 0.0
  %7715 = vmatprep.subr.mxu0 0.0
  %7716 = vmatpush1.msra.mxu0 0.0
  %7717 = vmatprep.subr.mxu0 0.0
  %7718 = vmatpush1.msra.mxu0 0.0
  %7719 = vmatprep.subr.mxu0 0.0
  %7720 = vmatpush1.msra.mxu0 0.0
  %7721 = vmatprep.subr.mxu0 0.0
  %7722 = vmatpush1.msra.mxu0 0.0
  %7723 = vmatprep.subr.mxu0 0.0
  %7724 = vmatpush1.msra.mxu0 0.0
  %7725 = vmatprep.subr.mxu0 0.0
  %7726 = vmatpush1.msra.mxu0 0.0
  %7727 = vmatprep.subr.mxu0 0.0
  %7728 = vmatpush1.msra.mxu0 0.0
  %7729 = vmatprep.subr.mxu0 0.0
  %7730 = vmatpush1.msra.mxu0 0.0
  %7731 = vmatprep.subr.mxu0 0.0
  %7732 = vmatpush1.msra.mxu0 0.0
  %7733 = vmatprep.subr.mxu0 0.0
  %7734 = vmatpush1.msra.mxu0 0.0
  %7735 = vmatprep.subr.mxu0 0.0
  %7736 = vmatpush1.msra.mxu0 0.0
  %7737 = vmatprep.mubr.f32.mxu0 0.0
  %7738 = vmatmul.mubr.f32.gmra.mrb[0].mxu0 %v7662
  %v7739 = vpop.f32.mrb[0].mxu0
  %v7740 = vadd.f32 0.0, %v7739
  %v7741 = vpop.f32.mrb[0].mxu0
  %7742 = vmatprep.mubr.f32.mxu0 0.0
  %7743 = vmatmul.mubr.f32.gmra.mrb[0].mxu0 %v7665
  %v7744 = vpop.f32.mrb[0].mxu0
  %v7745 = vadd.f32 0.0, %v7744
  %v7746 = vpop.f32.mrb[0].mxu0
  %7747 = vmatprep.mubr.f32.mxu0 0.0
  %7748 = vmatmul.mubr.f32.gmra.mrb[0].mxu0 %v7668
  %v7749 = vpop.f32.mrb[0].mxu0
  %v7750 = vadd.f32 0.0, %v7749
  %v7751 = vpop.f32.mrb[0].mxu0
  %7752 = vmatprep.mubr.f32.mxu0 0.0
  %7753 = vmatmul.mubr.f32.gmra.mrb[0].mxu0 %v7671
  %v7754 = vpop.f32.mrb[0].mxu0
  %v7755 = vadd.f32 0.0, %v7754
  %v7756 = vpop.f32.mrb[0].mxu0
  %7757 = vdwg.mxu0
  %v7758 = vadd.f32 %v4490, %v7740
  %v7759 = vadd.f32 %v4495, %v7745
  %v7760 = vadd.f32 %v4500, %v7750
  %v7761 = vadd.f32 %v4505, %v7755
  %v7762 = vld [vmem:[%s6 + $0x3] sm:$0x1]
  %v7763 = vld [vmem:[%s6 + $0x4] sm:$0x1]
  %v7764 = vld [vmem:[%s5 + $0x40] sm:$0xff]
  %v7765 = vld [vmem:[%s5 + $0x48] sm:$0xff]
  %v7766 = vld [vmem:[%s5 + $0x50] sm:$0xff]
  %v7767 = vld [vmem:[%s5 + $0x58] sm:$0xff]
  %v7768 = vld [vmem:[%s5 + $0x60] sm:$0xff]
  %v7769 = vld [vmem:[%s5 + $0x68] sm:$0xff]
  %v7770 = vld [vmem:[%s5 + $0x70] sm:$0xff]
  %v7771 = vld [vmem:[%s5 + $0x78] sm:$0xff]
  %v7772 = vld [vmem:[%s6 + $0x5] sm:$0x1]
  %v7773 = vsel %vm3742, %v7657, 0.0
  %7774 = vadd.xlane.f32.xlu0 %v7773
  %v7775 = vpop.xlane.xlu0 %7774
  %v7776 = vsel %vm3742, %v7658, 0.0
  %7777 = vadd.xlane.f32.xlu0 %v7776
  %v7778 = vpop.xlane.xlu0 %7777
  %v7779 = vsel %vm3742, %v7659, 0.0
  %7780 = vadd.xlane.f32.xlu0 %v7779
  %v7781 = vpop.xlane.xlu0 %7780
  %v7782 = vsel %vm3742, %v7660, 0.0
  %7783 = vadd.xlane.f32.xlu0 %v7782
  %v7784 = vpop.xlane.xlu0 %7783
  %v7785 = vmul.f32 %v7775, %v3767
  %v7786 = vmul.f32 %v7778, %v3767
  %v7787 = vmul.f32 %v7781, %v3767
  %v7788 = vmul.f32 %v7784, %v3767
  %v7789 = vsub.f32 %v7657, %v7785
  %v7790 = vsub.f32 %v7658, %v7786
  %v7791 = vsub.f32 %v7659, %v7787
  %v7792 = vsub.f32 %v7660, %v7788
  %v7793 = vmul.f32 %v7789, %v7789
  %v7794 = vmul.f32 %v7790, %v7790
  %v7795 = vmul.f32 %v7791, %v7791
  %v7796 = vmul.f32 %v7792, %v7792
  %v7797 = vsel %vm3742, %v7793, 0.0
  %7798 = vadd.xlane.f32.xlu0 %v7797
  %v7799 = vpop.xlane.xlu0 %7798
  %v7800 = vsel %vm3742, %v7794, 0.0
  %7801 = vadd.xlane.f32.xlu0 %v7800
  %v7802 = vpop.xlane.xlu0 %7801
  %v7803 = vsel %vm3742, %v7795, 0.0
  %7804 = vadd.xlane.f32.xlu0 %v7803
  %v7805 = vpop.xlane.xlu0 %7804
  %v7806 = vsel %vm3742, %v7796, 0.0
  %7807 = vadd.xlane.f32.xlu0 %v7806
  %v7808 = vpop.xlane.xlu0 %7807
  %v7809 = vmul.f32 %v7799, %v3767
  %v7810 = vmul.f32 %v7802, %v3767
  %v7811 = vmul.f32 %v7805, %v3767
  %v7812 = vmul.f32 %v7808, %v3767
  %v7813 = vadd.f32 %v7809, 1e-05
  %v7814 = vadd.f32 %v7810, 1e-05
  %v7815 = vadd.f32 %v7811, 1e-05
  %v7816 = vadd.f32 %v7812, 1e-05
  %v7817 = vrsqrt.pop %v7813
  %v7818 = vrsqrt.pop %v7814
  %v7819 = vrsqrt.pop %v7815
  %v7820 = vrsqrt.pop %v7816
  %v7821 = vmul.f32 %v7789, %v7817
  %v7822 = vmul.f32 %v7790, %v7818
  %v7823 = vmul.f32 %v7791, %v7819
  %v7824 = vmul.f32 %v7792, %v7820
  %v7825 = vlaneseq
  %v7826 = vshrl.u32 %v7825, 7
  %v7827 = vsub.s32 0, %v7826
  %v7828 = vrot.slane %v7762, %v7827
  %v7829 = vmul.f32 %v7821, %v7828
  %v7830 = vmul.f32 %v7822, %v7828
  %v7831 = vmul.f32 %v7823, %v7828
  %v7832 = vmul.f32 %v7824, %v7828
  %v7833 = vlaneseq
  %v7834 = vshrl.u32 %v7833, 7
  %v7835 = vsub.s32 0, %v7834
  %v7836 = vrot.slane %v7763, %v7835
  %v7837 = vadd.f32 %v7829, %v7836
  %v7838 = vadd.f32 %v7830, %v7836
  %v7839 = vadd.f32 %v7831, %v7836
  %v7840 = vadd.f32 %v7832, %v7836
  %v7841 = vmul.f32 %v7837, 0.5
  %v7842 = vmul.f32 %v7838, 0.5
  %v7843 = vmul.f32 %v7839, 0.5
  %v7844 = vmul.f32 %v7840, 0.5
  %v7845 = vmul.f32 %v7837, 0.70710677
  %v7846 = vmul.f32 %v7838, 0.70710677
  %v7847 = vmul.f32 %v7839, 0.70710677
  %v7848 = vmul.f32 %v7840, 0.70710677
  %v7849 = vand.u32 2147483647, %v7845
  %v7850 = vand.u32 2147483647, %v7846
  %v7851 = vand.u32 2147483647, %v7847
  %v7852 = vand.u32 2147483647, %v7848
  %v7853 = vmul.f32 %v7849, 0.3275911
  %v7854 = vmul.f32 %v7850, 0.3275911
  %v7855 = vmul.f32 %v7851, 0.3275911
  %v7856 = vmul.f32 %v7852, 0.3275911
  %v7857 = vadd.f32 %v7853, 1.0
  %v7858 = vadd.f32 %v7854, 1.0
  %v7859 = vadd.f32 %v7855, 1.0
  %v7860 = vadd.f32 %v7856, 1.0
  %v7861 = vrcp.pop %v7857
  %v7862 = vmul.f32 1.0, %v7861
  %v7863 = vrcp.pop %v7858
  %v7864 = vmul.f32 1.0, %v7863
  %v7865 = vrcp.pop %v7859
  %v7866 = vmul.f32 1.0, %v7865
  %v7867 = vrcp.pop %v7860
  %v7868 = vmul.f32 1.0, %v7867
  %v7869 = vmul.f32 %v7862, 1.0614054
  %v7870 = vmul.f32 %v7864, 1.0614054
  %v7871 = vmul.f32 %v7866, 1.0614054
  %v7872 = vmul.f32 %v7868, 1.0614054
  %v7873 = vadd.f32 %v7869, -1.4531521
  %v7874 = vadd.f32 %v7870, -1.4531521
  %v7875 = vadd.f32 %v7871, -1.4531521
  %v7876 = vadd.f32 %v7872, -1.4531521
  %v7877 = vmul.f32 %v7873, %v7862
  %v7878 = vmul.f32 %v7874, %v7864
  %v7879 = vmul.f32 %v7875, %v7866
  %v7880 = vmul.f32 %v7876, %v7868
  %v7881 = vadd.f32 %v7877, 1.4214138
  %v7882 = vadd.f32 %v7878, 1.4214138
  %v7883 = vadd.f32 %v7879, 1.4214138
  %v7884 = vadd.f32 %v7880, 1.4214138
  %v7885 = vmul.f32 %v7881, %v7862
  %v7886 = vmul.f32 %v7882, %v7864
  %v7887 = vmul.f32 %v7883, %v7866
  %v7888 = vmul.f32 %v7884, %v7868
  %v7889 = vadd.f32 %v7885, -0.28449672
  %v7890 = vadd.f32 %v7886, -0.28449672
  %v7891 = vadd.f32 %v7887, -0.28449672
  %v7892 = vadd.f32 %v7888, -0.28449672
  %v7893 = vmul.f32 %v7889, %v7862
  %v7894 = vmul.f32 %v7890, %v7864
  %v7895 = vmul.f32 %v7891, %v7866
  %v7896 = vmul.f32 %v7892, %v7868
  %v7897 = vadd.f32 %v7893, 0.2548296
  %v7898 = vadd.f32 %v7894, 0.2548296
  %v7899 = vadd.f32 %v7895, 0.2548296
  %v7900 = vadd.f32 %v7896, 0.2548296
  %v7901 = vmul.f32 %v7897, %v7862
  %v7902 = vmul.f32 %v7898, %v7864
  %v7903 = vmul.f32 %v7899, %v7866
  %v7904 = vmul.f32 %v7900, %v7868
  %v7905 = vsub.f32 0.0, %v7849
  %v7906 = vsub.f32 0.0, %v7850
  %v7907 = vsub.f32 0.0, %v7851
  %v7908 = vsub.f32 0.0, %v7852
  %v7909 = vmul.f32 %v7905, %v7849
  %v7910 = vmul.f32 %v7906, %v7850
  %v7911 = vmul.f32 %v7907, %v7851
  %v7912 = vmul.f32 %v7908, %v7852
  %v7913 = vmul.f32 %v7909, 1.442695
  %v7914 = vpow.pop %v7913
  %v7915 = vmul.f32 %v7910, 1.442695
  %v7916 = vpow.pop %v7915
  %v7917 = vmul.f32 %v7911, 1.442695
  %v7918 = vpow.pop %v7917
  %v7919 = vmul.f32 %v7912, 1.442695
  %v7920 = vpow.pop %v7919
  %v7921 = vmul.f32 %v7901, %v7914
  %v7922 = vmul.f32 %v7902, %v7916
  %v7923 = vmul.f32 %v7903, %v7918
  %v7924 = vmul.f32 %v7904, %v7920
  %v7925 = vsub.f32 1.0, %v7921
  %v7926 = vsub.f32 1.0, %v7922
  %v7927 = vsub.f32 1.0, %v7923
  %v7928 = vsub.f32 1.0, %v7924
  %vm7929 = vcmp.lt.f32.partialorder %v7845, 0.0
  %vm7930 = vcmp.lt.f32.partialorder %v7846, 0.0
  %vm7931 = vcmp.lt.f32.partialorder %v7847, 0.0
  %vm7932 = vcmp.lt.f32.partialorder %v7848, 0.0
  %v7933 = vsub.f32 0.0, %v7925
  %v7934 = vsub.f32 0.0, %v7926
  %v7935 = vsub.f32 0.0, %v7927
  %v7936 = vsub.f32 0.0, %v7928
  %v7937 = vsel %vm7929, %v7933, %v7925
  %v7938 = vsel %vm7930, %v7934, %v7926
  %v7939 = vsel %vm7931, %v7935, %v7927
  %v7940 = vsel %vm7932, %v7936, %v7928
  %v7941 = vadd.f32 %v7937, 1.0
  %v7942 = vadd.f32 %v7938, 1.0
  %v7943 = vadd.f32 %v7939, 1.0
  %v7944 = vadd.f32 %v7940, 1.0
  %v7945 = vmul.f32 %v7841, %v7941
  %v7946 = vmul.f32 %v7842, %v7942
  %v7947 = vmul.f32 %v7843, %v7943
  %v7948 = vmul.f32 %v7844, %v7944
  %v7950 = vsel %vm3742, %v7945, 0
  %v7953 = vsel %vm3742, %v7946, 0
  %v7956 = vsel %vm3742, %v7947, 0
  %v7959 = vsel %vm3742, %v7948, 0
  %7961 = vmatprep.subr.mxu0 0.0
  %7962 = vmatpush1.msra.mxu0 %v7764
  %7963 = vmatprep.subr.mxu0 0.0
  %7964 = vmatpush1.msra.mxu0 %v7765
  %7965 = vmatprep.subr.mxu0 0.0
  %7966 = vmatpush1.msra.mxu0 %v7766
  %7967 = vmatprep.subr.mxu0 0.0
  %7968 = vmatpush1.msra.mxu0 %v7767
  %7969 = vmatprep.subr.mxu0 0.0
  %7970 = vmatpush1.msra.mxu0 %v7768
  %7971 = vmatprep.subr.mxu0 0.0
  %7972 = vmatpush1.msra.mxu0 %v7769
  %7973 = vmatprep.subr.mxu0 0.0
  %7974 = vmatpush1.msra.mxu0 %v7770
  %7975 = vmatprep.subr.mxu0 0.0
  %7976 = vmatpush1.msra.mxu0 %v7771
  %7977 = vmatprep.subr.mxu0 0.0
  %7978 = vmatpush1.msra.mxu0 0.0
  %7979 = vmatprep.subr.mxu0 0.0
  %7980 = vmatpush1.msra.mxu0 0.0
  %7981 = vmatprep.subr.mxu0 0.0
  %7982 = vmatpush1.msra.mxu0 0.0
  %7983 = vmatprep.subr.mxu0 0.0
  %7984 = vmatpush1.msra.mxu0 0.0
  %7985 = vmatprep.subr.mxu0 0.0
  %7986 = vmatpush1.msra.mxu0 0.0
  %7987 = vmatprep.subr.mxu0 0.0
  %7988 = vmatpush1.msra.mxu0 0.0
  %7989 = vmatprep.subr.mxu0 0.0
  %7990 = vmatpush1.msra.mxu0 0.0
  %7991 = vmatprep.subr.mxu0 0.0
  %7992 = vmatpush1.msra.mxu0 0.0
  %7993 = vmatprep.subr.mxu0 0.0
  %7994 = vmatpush1.msra.mxu0 0.0
  %7995 = vmatprep.subr.mxu0 0.0
  %7996 = vmatpush1.msra.mxu0 0.0
  %7997 = vmatprep.subr.mxu0 0.0
  %7998 = vmatpush1.msra.mxu0 0.0
  %7999 = vmatprep.subr.mxu0 0.0
  %8000 = vmatpush1.msra.mxu0 0.0
  %8001 = vmatprep.subr.mxu0 0.0
  %8002 = vmatpush1.msra.mxu0 0.0
  %8003 = vmatprep.subr.mxu0 0.0
  %8004 = vmatpush1.msra.mxu0 0.0
  %8005 = vmatprep.subr.mxu0 0.0
  %8006 = vmatpush1.msra.mxu0 0.0
  %8007 = vmatprep.subr.mxu0 0.0
  %8008 = vmatpush1.msra.mxu0 0.0
  %8009 = vmatprep.subr.mxu0 0.0
  %8010 = vmatpush1.msra.mxu0 0.0
  %8011 = vmatprep.subr.mxu0 0.0
  %8012 = vmatpush1.msra.mxu0 0.0
  %8013 = vmatprep.subr.mxu0 0.0
  %8014 = vmatpush1.msra.mxu0 0.0
  %8015 = vmatprep.subr.mxu0 0.0
  %8016 = vmatpush1.msra.mxu0 0.0
  %8017 = vmatprep.subr.mxu0 0.0
  %8018 = vmatpush1.msra.mxu0 0.0
  %8019 = vmatprep.subr.mxu0 0.0
  %8020 = vmatpush1.msra.mxu0 0.0
  %8021 = vmatprep.subr.mxu0 0.0
  %8022 = vmatpush1.msra.mxu0 0.0
  %8023 = vmatprep.subr.mxu0 0.0
  %8024 = vmatpush1.msra.mxu0 0.0
  %8025 = vmatprep.mubr.f32.mxu0 0.0
  %8026 = vmatmul.mubr.f32.gmra.mrb[0].mxu0 %v7950
  %v8027 = vpop.f32.mrb[0].mxu0
  %v8028 = vadd.f32 0.0, %v8027
  %v8029 = vpop.f32.mrb[0].mxu0
  %8030 = vmatprep.mubr.f32.mxu0 0.0
  %8031 = vmatmul.mubr.f32.gmra.mrb[0].mxu0 %v7953
  %v8032 = vpop.f32.mrb[0].mxu0
  %v8033 = vadd.f32 0.0, %v8032
  %v8034 = vpop.f32.mrb[0].mxu0
  %8035 = vmatprep.mubr.f32.mxu0 0.0
  %8036 = vmatmul.mubr.f32.gmra.mrb[0].mxu0 %v7956
  %v8037 = vpop.f32.mrb[0].mxu0
  %v8038 = vadd.f32 0.0, %v8037
  %v8039 = vpop.f32.mrb[0].mxu0
  %8040 = vmatprep.mubr.f32.mxu0 0.0
  %8041 = vmatmul.mubr.f32.gmra.mrb[0].mxu0 %v7959
  %v8042 = vpop.f32.mrb[0].mxu0
  %v8043 = vadd.f32 0.0, %v8042
  %v8044 = vpop.f32.mrb[0].mxu0
  %8045 = vdwg.mxu0
  %v8046 = vadd.f32 %v4229, %v8028
  %v8047 = vadd.f32 %v4230, %v8033
  %v8048 = vadd.f32 %v4231, %v8038
  %v8049 = vadd.f32 %v4232, %v8043
  %v8050 = vlaneseq
  %v8051 = vshrl.u32 %v8050, 7
  %v8052 = vsub.s32 0, %v8051
  %v8053 = vrot.slane %v7772, %v8052
  %v8054 = vadd.f32 %v8046, %v8053
  %v8055 = vadd.f32 %v8047, %v8053
  %v8056 = vadd.f32 %v8048, %v8053
  %v8057 = vadd.f32 %v8049, %v8053
  %v8058 = vsel %vm3742, %v7758, 0.0
  %8059 = vadd.xlane.f32.xlu0 %v8058
  %v8060 = vpop.xlane.xlu0 %8059
  %v8061 = vsel %vm3742, %v7759, 0.0
  %8062 = vadd.xlane.f32.xlu0 %v8061
  %v8063 = vpop.xlane.xlu0 %8062
  %v8064 = vsel %vm3742, %v7760, 0.0
  %8065 = vadd.xlane.f32.xlu0 %v8064
  %v8066 = vpop.xlane.xlu0 %8065
  %v8067 = vsel %vm3742, %v7761, 0.0
  %8068 = vadd.xlane.f32.xlu0 %v8067
  %v8069 = vpop.xlane.xlu0 %8068
  %v8070 = vmul.f32 %v8060, %v3767
  %v8071 = vmul.f32 %v8063, %v3767
  %v8072 = vmul.f32 %v8066, %v3767
  %v8073 = vmul.f32 %v8069, %v3767
  %v8074 = vsub.f32 %v7758, %v8070
  %v8075 = vsub.f32 %v7759, %v8071
  %v8076 = vsub.f32 %v7760, %v8072
  %v8077 = vsub.f32 %v7761, %v8073
  %v8078 = vmul.f32 %v8074, %v8074
  %v8079 = vmul.f32 %v8075, %v8075
  %v8080 = vmul.f32 %v8076, %v8076
  %v8081 = vmul.f32 %v8077, %v8077
  %v8082 = vsel %vm3742, %v8078, 0.0
  %8083 = vadd.xlane.f32.xlu0 %v8082
  %v8084 = vpop.xlane.xlu0 %8083
  %v8085 = vsel %vm3742, %v8079, 0.0
  %8086 = vadd.xlane.f32.xlu0 %v8085
  %v8087 = vpop.xlane.xlu0 %8086
  %v8088 = vsel %vm3742, %v8080, 0.0
  %8089 = vadd.xlane.f32.xlu0 %v8088
  %v8090 = vpop.xlane.xlu0 %8089
  %v8091 = vsel %vm3742, %v8081, 0.0
  %8092 = vadd.xlane.f32.xlu0 %v8091
  %v8093 = vpop.xlane.xlu0 %8092
  %v8094 = vmul.f32 %v8084, %v3767
  %v8095 = vmul.f32 %v8087, %v3767
  %v8096 = vmul.f32 %v8090, %v3767
  %v8097 = vmul.f32 %v8093, %v3767
  %v8098 = vadd.f32 %v8094, 1e-05
  %v8099 = vadd.f32 %v8095, 1e-05
  %v8100 = vadd.f32 %v8096, 1e-05
  %v8101 = vadd.f32 %v8097, 1e-05
  %v8102 = vrsqrt.pop %v8098
  %v8103 = vrsqrt.pop %v8099
  %v8104 = vrsqrt.pop %v8100
  %v8105 = vrsqrt.pop %v8101
  %v8106 = vmul.f32 %v8074, %v8102
  %v8107 = vmul.f32 %v8075, %v8103
  %v8108 = vmul.f32 %v8076, %v8104
  %v8109 = vmul.f32 %v8077, %v8105
  %v8110 = vmul.f32 %v8106, %v7828
  %v8111 = vmul.f32 %v8107, %v7828
  %v8112 = vmul.f32 %v8108, %v7828
  %v8113 = vmul.f32 %v8109, %v7828
  %v8114 = vadd.f32 %v8110, %v7836
  %v8115 = vadd.f32 %v8111, %v7836
  %v8116 = vadd.f32 %v8112, %v7836
  %v8117 = vadd.f32 %v8113, %v7836
  %v8118 = vmul.f32 %v8114, 0.5
  %v8119 = vmul.f32 %v8115, 0.5
  %v8120 = vmul.f32 %v8116, 0.5
  %v8121 = vmul.f32 %v8117, 0.5
  %v8122 = vmul.f32 %v8114, 0.70710677
  %v8123 = vmul.f32 %v8115, 0.70710677
  %v8124 = vmul.f32 %v8116, 0.70710677
  %v8125 = vmul.f32 %v8117, 0.70710677
  %v8126 = vand.u32 2147483647, %v8122
  %v8127 = vand.u32 2147483647, %v8123
  %v8128 = vand.u32 2147483647, %v8124
  %v8129 = vand.u32 2147483647, %v8125
  %v8130 = vmul.f32 %v8126, 0.3275911
  %v8131 = vmul.f32 %v8127, 0.3275911
  %v8132 = vmul.f32 %v8128, 0.3275911
  %v8133 = vmul.f32 %v8129, 0.3275911
  %v8134 = vadd.f32 %v8130, 1.0
  %v8135 = vadd.f32 %v8131, 1.0
  %v8136 = vadd.f32 %v8132, 1.0
  %v8137 = vadd.f32 %v8133, 1.0
  %v8138 = vrcp.pop %v8134
  %v8139 = vmul.f32 1.0, %v8138
  %v8140 = vrcp.pop %v8135
  %v8141 = vmul.f32 1.0, %v8140
  %v8142 = vrcp.pop %v8136
  %v8143 = vmul.f32 1.0, %v8142
  %v8144 = vrcp.pop %v8137
  %v8145 = vmul.f32 1.0, %v8144
  %v8146 = vmul.f32 %v8139, 1.0614054
  %v8147 = vmul.f32 %v8141, 1.0614054
  %v8148 = vmul.f32 %v8143, 1.0614054
  %v8149 = vmul.f32 %v8145, 1.0614054
  %v8150 = vadd.f32 %v8146, -1.4531521
  %v8151 = vadd.f32 %v8147, -1.4531521
  %v8152 = vadd.f32 %v8148, -1.4531521
  %v8153 = vadd.f32 %v8149, -1.4531521
  %v8154 = vmul.f32 %v8150, %v8139
  %v8155 = vmul.f32 %v8151, %v8141
  %v8156 = vmul.f32 %v8152, %v8143
  %v8157 = vmul.f32 %v8153, %v8145
  %v8158 = vadd.f32 %v8154, 1.4214138
  %v8159 = vadd.f32 %v8155, 1.4214138
  %v8160 = vadd.f32 %v8156, 1.4214138
  %v8161 = vadd.f32 %v8157, 1.4214138
  %v8162 = vmul.f32 %v8158, %v8139
  %v8163 = vmul.f32 %v8159, %v8141
  %v8164 = vmul.f32 %v8160, %v8143
  %v8165 = vmul.f32 %v8161, %v8145
  %v8166 = vadd.f32 %v8162, -0.28449672
  %v8167 = vadd.f32 %v8163, -0.28449672
  %v8168 = vadd.f32 %v8164, -0.28449672
  %v8169 = vadd.f32 %v8165, -0.28449672
  %v8170 = vmul.f32 %v8166, %v8139
  %v8171 = vmul.f32 %v8167, %v8141
  %v8172 = vmul.f32 %v8168, %v8143
  %v8173 = vmul.f32 %v8169, %v8145
  %v8174 = vadd.f32 %v8170, 0.2548296
  %v8175 = vadd.f32 %v8171, 0.2548296
  %v8176 = vadd.f32 %v8172, 0.2548296
  %v8177 = vadd.f32 %v8173, 0.2548296
  %v8178 = vmul.f32 %v8174, %v8139
  %v8179 = vmul.f32 %v8175, %v8141
  %v8180 = vmul.f32 %v8176, %v8143
  %v8181 = vmul.f32 %v8177, %v8145
  %v8182 = vsub.f32 0.0, %v8126
  %v8183 = vsub.f32 0.0, %v8127
  %v8184 = vsub.f32 0.0, %v8128
  %v8185 = vsub.f32 0.0, %v8129
  %v8186 = vmul.f32 %v8182, %v8126
  %v8187 = vmul.f32 %v8183, %v8127
  %v8188 = vmul.f32 %v8184, %v8128
  %v8189 = vmul.f32 %v8185, %v8129
  %v8190 = vmul.f32 %v8186, 1.442695
  %v8191 = vpow.pop %v8190
  %v8192 = vmul.f32 %v8187, 1.442695
  %v8193 = vpow.pop %v8192
  %v8194 = vmul.f32 %v8188, 1.442695
  %v8195 = vpow.pop %v8194
  %v8196 = vmul.f32 %v8189, 1.442695
  %v8197 = vpow.pop %v8196
  %v8198 = vmul.f32 %v8178, %v8191
  %v8199 = vmul.f32 %v8179, %v8193
  %v8200 = vmul.f32 %v8180, %v8195
  %v8201 = vmul.f32 %v8181, %v8197
  %v8202 = vsub.f32 1.0, %v8198
  %v8203 = vsub.f32 1.0, %v8199
  %v8204 = vsub.f32 1.0, %v8200
  %v8205 = vsub.f32 1.0, %v8201
  %vm8206 = vcmp.lt.f32.partialorder %v8122, 0.0
  %vm8207 = vcmp.lt.f32.partialorder %v8123, 0.0
  %vm8208 = vcmp.lt.f32.partialorder %v8124, 0.0
  %vm8209 = vcmp.lt.f32.partialorder %v8125, 0.0
  %v8210 = vsub.f32 0.0, %v8202
  %v8211 = vsub.f32 0.0, %v8203
  %v8212 = vsub.f32 0.0, %v8204
  %v8213 = vsub.f32 0.0, %v8205
  %v8214 = vsel %vm8206, %v8210, %v8202
  %v8215 = vsel %vm8207, %v8211, %v8203
  %v8216 = vsel %vm8208, %v8212, %v8204
  %v8217 = vsel %vm8209, %v8213, %v8205
  %v8218 = vadd.f32 %v8214, 1.0
  %v8219 = vadd.f32 %v8215, 1.0
  %v8220 = vadd.f32 %v8216, 1.0
  %v8221 = vadd.f32 %v8217, 1.0
  %v8222 = vmul.f32 %v8118, %v8218
  %v8223 = vmul.f32 %v8119, %v8219
  %v8224 = vmul.f32 %v8120, %v8220
  %v8225 = vmul.f32 %v8121, %v8221
  %v8227 = vsel %vm3742, %v8222, 0
  %v8230 = vsel %vm3742, %v8223, 0
  %v8233 = vsel %vm3742, %v8224, 0
  %v8236 = vsel %vm3742, %v8225, 0
  %8238 = vmatprep.subr.mxu0 0.0
  %8239 = vmatpush1.msra.mxu0 %v7764
  %8240 = vmatprep.subr.mxu0 0.0
  %8241 = vmatpush1.msra.mxu0 %v7765
  %8242 = vmatprep.subr.mxu0 0.0
  %8243 = vmatpush1.msra.mxu0 %v7766
  %8244 = vmatprep.subr.mxu0 0.0
  %8245 = vmatpush1.msra.mxu0 %v7767
  %8246 = vmatprep.subr.mxu0 0.0
  %8247 = vmatpush1.msra.mxu0 %v7768
  %8248 = vmatprep.subr.mxu0 0.0
  %8249 = vmatpush1.msra.mxu0 %v7769
  %8250 = vmatprep.subr.mxu0 0.0
  %8251 = vmatpush1.msra.mxu0 %v7770
  %8252 = vmatprep.subr.mxu0 0.0
  %8253 = vmatpush1.msra.mxu0 %v7771
  %8254 = vmatprep.subr.mxu0 0.0
  %8255 = vmatpush1.msra.mxu0 0.0
  %8256 = vmatprep.subr.mxu0 0.0
  %8257 = vmatpush1.msra.mxu0 0.0
  %8258 = vmatprep.subr.mxu0 0.0
  %8259 = vmatpush1.msra.mxu0 0.0
  %8260 = vmatprep.subr.mxu0 0.0
  %8261 = vmatpush1.msra.mxu0 0.0
  %8262 = vmatprep.subr.mxu0 0.0
  %8263 = vmatpush1.msra.mxu0 0.0
  %8264 = vmatprep.subr.mxu0 0.0
  %8265 = vmatpush1.msra.mxu0 0.0
  %8266 = vmatprep.subr.mxu0 0.0
  %8267 = vmatpush1.msra.mxu0 0.0
  %8268 = vmatprep.subr.mxu0 0.0
  %8269 = vmatpush1.msra.mxu0 0.0
  %8270 = vmatprep.subr.mxu0 0.0
  %8271 = vmatpush1.msra.mxu0 0.0
  %8272 = vmatprep.subr.mxu0 0.0
  %8273 = vmatpush1.msra.mxu0 0.0
  %8274 = vmatprep.subr.mxu0 0.0
  %8275 = vmatpush1.msra.mxu0 0.0
  %8276 = vmatprep.subr.mxu0 0.0
  %8277 = vmatpush1.msra.mxu0 0.0
  %8278 = vmatprep.subr.mxu0 0.0
  %8279 = vmatpush1.msra.mxu0 0.0
  %8280 = vmatprep.subr.mxu0 0.0
  %8281 = vmatpush1.msra.mxu0 0.0
  %8282 = vmatprep.subr.mxu0 0.0
  %8283 = vmatpush1.msra.mxu0 0.0
  %8284 = vmatprep.subr.mxu0 0.0
  %8285 = vmatpush1.msra.mxu0 0.0
  %8286 = vmatprep.subr.mxu0 0.0
  %8287 = vmatpush1.msra.mxu0 0.0
  %8288 = vmatprep.subr.mxu0 0.0
  %8289 = vmatpush1.msra.mxu0 0.0
  %8290 = vmatprep.subr.mxu0 0.0
  %8291 = vmatpush1.msra.mxu0 0.0
  %8292 = vmatprep.subr.mxu0 0.0
  %8293 = vmatpush1.msra.mxu0 0.0
  %8294 = vmatprep.subr.mxu0 0.0
  %8295 = vmatpush1.msra.mxu0 0.0
  %8296 = vmatprep.subr.mxu0 0.0
  %8297 = vmatpush1.msra.mxu0 0.0
  %8298 = vmatprep.subr.mxu0 0.0
  %8299 = vmatpush1.msra.mxu0 0.0
  %8300 = vmatprep.subr.mxu0 0.0
  %8301 = vmatpush1.msra.mxu0 0.0
  %8302 = vmatprep.mubr.f32.mxu0 0.0
  %8303 = vmatmul.mubr.f32.gmra.mrb[0].mxu0 %v8227
  %v8304 = vpop.f32.mrb[0].mxu0
  %v8305 = vadd.f32 0.0, %v8304
  %v8306 = vpop.f32.mrb[0].mxu0
  %8307 = vmatprep.mubr.f32.mxu0 0.0
  %8308 = vmatmul.mubr.f32.gmra.mrb[0].mxu0 %v8230
  %v8309 = vpop.f32.mrb[0].mxu0
  %v8310 = vadd.f32 0.0, %v8309
  %v8311 = vpop.f32.mrb[0].mxu0
  %8312 = vmatprep.mubr.f32.mxu0 0.0
  %8313 = vmatmul.mubr.f32.gmra.mrb[0].mxu0 %v8233
  %v8314 = vpop.f32.mrb[0].mxu0
  %v8315 = vadd.f32 0.0, %v8314
  %v8316 = vpop.f32.mrb[0].mxu0
  %8317 = vmatprep.mubr.f32.mxu0 0.0
  %8318 = vmatmul.mubr.f32.gmra.mrb[0].mxu0 %v8236
  %v8319 = vpop.f32.mrb[0].mxu0
  %v8320 = vadd.f32 0.0, %v8319
  %v8321 = vpop.f32.mrb[0].mxu0
  %8322 = vdwg.mxu0
  %v8323 = vadd.f32 %v4233, %v8305
  %v8324 = vadd.f32 %v4234, %v8310
  %v8325 = vadd.f32 %v4235, %v8315
  %v8326 = vadd.f32 %v4236, %v8320
  %v8327 = vadd.f32 %v8323, %v8053
  %v8328 = vadd.f32 %v8324, %v8053
  %v8329 = vadd.f32 %v8325, %v8053
  %v8330 = vadd.f32 %v8326, %v8053
  %8335 = vrot.lane.b32.xlu0 %v8327, 32
  %v8336 = vpop.permute.xlu0 %8335
  %8337 = vrot.lane.b32.xlu0 %v8328, 32
  %v8338 = vpop.permute.xlu0 %8337
  %8339 = vrot.lane.b32.xlu0 %v8329, 32
  %v8340 = vpop.permute.xlu0 %8339
  %8341 = vrot.lane.b32.xlu0 %v8330, 32
  %v8342 = vpop.permute.xlu0 %8341
  %v8347 = vsel %vm129, %v8054, %v8336
  %v8348 = vsel %vm129, %v8055, %v8338
  %v8349 = vsel %vm129, %v8056, %v8340
  %v8350 = vsel %vm129, %v8057, %v8342
  %8351 = vst.msk [vmem:[%s7] sm:$0xff] %vm3742, %v8347
  %8352 = vst.msk [vmem:[%s7 + $0x8] sm:$0xff] %vm3742, %v8348
  %8353 = vst.msk [vmem:[%s7 + $0x10] sm:$0xff] %vm3742, %v8349
  %8354 = vst.msk [vmem:[%s7 + $0x18] sm:$0xff] %vm3742, %v8350
  // Predicated region
  $region30: #{my_transformer_layer.1} parent=0 // pred_check
    _
  $region31: #{my_transformer_layer.1} parent=0 // pred_check_branch
    %8356 = sbr.rel (0) target = $region33
  $region32: #{my_transformer_layer.1} parent=0 // pred_region
    _
  $region33: #{my_transformer_layer.1} parent=0 // pred_fallthru
    _
  // Predicated region
  $region34: #{my_transformer_layer.1} parent=0 // pred_check
    _
  $region35: #{my_transformer_layer.1} parent=0 // pred_check_branch
    %8358 = sbr.rel (0) target = $region37
  $region36: #{my_transformer_layer.1} parent=0 // pred_region
    _
  $region37: #{my_transformer_layer.1} parent=0 // pred_fallthru
    _

</llo_original>
